<compile_context>
chip_gen: v7x
topology: tpu7x:2x2x1
jax: 0.10.0
libtpu: 0.0.40
codegen_flags: <defaults>
</compile_context>

<pallas_src>
import functools

import jax
import jax.numpy as jnp
from jax.experimental import pallas as pl
from jax.experimental.pallas import tpu as pltpu


CIN = 3             # input channels
C1 = 64             # conv1 output channels (vgg11.features[0])
C2 = 128            # conv2 output channels (vgg11.features[3])
FC_H = 32           # classifier hidden width
N_CLS = 2           # classifier outputs
FC_PAD = 128        # lane-dense padded classifier width
K1 = 9 * CIN        # conv1 im2col depth (3x3 taps * 3 channels) = 27
K2 = 9 * C1         # conv2 im2col depth = 576
FEAT = C2 * 4 * 4   # flattened feature width fed to fc1 = 2048


def _cnn_fused_kernel(
    # inputs
    x_ref, w1_ref, b1_ref, w2_ref, b2_ref, fc1w_ref, fc1b_ref, fc2w_ref, fc2b_ref,
    # output
    o_ref,
    # scratch
    pad1_ref, pad2_ref,
    *, B, H, W):
  Ha, Wa = H // 2, W // 2          # after maxpool1
  Hb, Wb = H // 4, W // 4          # after maxpool2
  f32 = jnp.float32
  bf16 = jnp.bfloat16

  # ---- stage 0: halo-zeroed bf16 copy of the input (no full-buffer zero fill) -------------
  zrow = jnp.zeros((B, 1, W + 2, CIN), bf16)
  pad1_ref[:, 0:1, :, :] = zrow
  pad1_ref[:, H + 1:H + 2, :, :] = zrow
  zcol = jnp.zeros((B, H, 1, CIN), bf16)
  pad1_ref[:, 1:H + 1, 0:1, :] = zcol
  pad1_ref[:, 1:H + 1, W + 1:W + 2, :] = zcol
  pad1_ref[:, 1:H + 1, 1:W + 1, :] = x_ref[...]                 # already bf16

  # ---- stage 1: conv1 as a single im2col matmul, K=27 --------------------------------------
  patches1 = [pad1_ref[:, dy:dy + H, dx:dx + W, :]
              for dy in range(3) for dx in range(3)]            # 9 x (B,H,W,CIN) bf16
  im1 = jnp.concatenate(patches1, axis=-1).reshape(B * H * W, K1)
  h1 = jnp.dot(im1, w1_ref[...], preferred_element_type=f32) + b1_ref[...]
  h1 = jnp.maximum(h1, 0.0)                                     # fused ReLU, (B*H*W, C1) f32

  # ---- stage 2: in-register 2x2 max pool ----------------------------------------------------
  t = h1.reshape(B, H, Wa, 2, C1)
  t = jnp.maximum(t[..., 0, :], t[..., 1, :])                   # pool along W -> (B,H,Wa,C1)
  t = t.reshape(B, Ha, 2, Wa, C1)
  p1 = jnp.maximum(t[:, :, 0], t[:, :, 1])                      # pool along H -> (B,Ha,Wa,C1)

  # ---- stage 3: halo-zeroed bf16 copy of the pooled map for conv2 ---------------------------
  zrow2 = jnp.zeros((B, 1, Wa + 2, C1), bf16)
  pad2_ref[:, 0:1, :, :] = zrow2
  pad2_ref[:, Ha + 1:Ha + 2, :, :] = zrow2
  zcol2 = jnp.zeros((B, Ha, 1, C1), bf16)
  pad2_ref[:, 1:Ha + 1, 0:1, :] = zcol2
  pad2_ref[:, 1:Ha + 1, Wa + 1:Wa + 2, :] = zcol2
  pad2_ref[:, 1:Ha + 1, 1:Wa + 1, :] = p1.astype(bf16)          # single cast here

  # ---- stage 4: conv2 as a single im2col matmul, K=576 --------------------------------------
  patches2 = [pad2_ref[:, dy:dy + Ha, dx:dx + Wa, :]
              for dy in range(3) for dx in range(3)]            # 9 x (B,Ha,Wa,C1) bf16
  im2 = jnp.concatenate(patches2, axis=-1).reshape(B * Ha * Wa, K2)
  h2 = jnp.dot(im2, w2_ref[...], preferred_element_type=f32) + b2_ref[...]
  h2 = jnp.maximum(h2, 0.0)                                     # (B*Ha*Wa, C2) f32

  # ---- stage 5: in-register 2x2 max pool ----------------------------------------------------
  t = h2.reshape(B, Ha, Wb, 2, C2)
  t = jnp.maximum(t[..., 0, :], t[..., 1, :])                   # pool along W
  t = t.reshape(B, Hb, 2, Wb, C2)
  p2 = jnp.maximum(t[:, :, 0], t[:, :, 1])                      # (B,Hb,Wb,C2) f32

  # ---- stage 6: AdaptiveAvgPool2d((4,4)) -----------------------------------------------------
  if Hb == 4 and Wb == 4:
    favg = p2                                                   # identity at this size
  else:
    # TODO(synk): general adaptive path only supports Hb, Wb divisible by 4.
    ph, pw = Hb // 4, Wb // 4
    a = jnp.mean(p2.reshape(B, 4, ph, Wb, C2), axis=2)          # (B,4,Wb,C2)
    favg = jnp.mean(a.reshape(B, 4, 4, pw, C2), axis=3)         # (B,4,4,C2)

  # ---- stage 7: classifier (single K=2048 fc1 dot, lane-dense 128-wide output slab) ----------
  # torch.flatten(NCHW) ordering is folded into fc1_w host-side, so the kernel flattens in
  # natural NHWC order with a lane-aligned concat (16 x 128 lanes).
  flat = jnp.concatenate([favg[:, i, j, :] for i in range(4) for j in range(4)],
                         axis=-1)                               # (B, 2048) f32
  z1 = jnp.dot(flat.astype(bf16), fc1w_ref[...],
               preferred_element_type=f32) + fc1b_ref[...]      # (B, FC_PAD)
  # Dropout(p=0.5): inference-mode identity.
  hfc = jnp.maximum(z1, 0.0)                                    # ReLU
  z2 = jnp.dot(hfc.astype(bf16), fc2w_ref[...],
               preferred_element_type=f32) + fc2b_ref[...]      # (B, FC_PAD)
  # Dropout(p=0.5): inference-mode identity.
  lane = jax.lax.broadcasted_iota(jnp.int32, (B, FC_PAD), 1)
  valid = lane < N_CLS
  z2 = jnp.where(valid, z2, -jnp.inf)                           # mask padded lanes
  m = jnp.max(z2, axis=-1, keepdims=True)                       # LogSoftmax(dim=1)
  lse = jnp.log(jnp.sum(jnp.exp(z2 - m), axis=-1, keepdims=True))
  o_ref[...] = jnp.where(valid, (z2 - m) - lse, 0.0).reshape(1, B, FC_PAD)


# ----------------------------------------------------------------------------
# Parameters: synthetic values in PyTorch-native layouts, then a one-time
# host-side repack into the layouts the fused kernel consumes.
# ----------------------------------------------------------------------------
def init_params(key):
  ks = jax.random.split(key, 8)
  s = 0.05
  return {
      "conv1_w": s * jax.random.normal(ks[0], (C1, CIN, 3, 3), jnp.float32),      # OIHW
      "conv1_b": s * jax.random.normal(ks[1], (C1,), jnp.float32),
      "conv2_w": s * jax.random.normal(ks[2], (C2, C1, 3, 3), jnp.float32),       # OIHW
      "conv2_b": s * jax.random.normal(ks[3], (C2,), jnp.float32),
      "fc1_w":   s * jax.random.normal(ks[4], (FC_H, FEAT), jnp.float32),         # (out, NCHW-flat in)
      "fc1_b":   s * jax.random.normal(ks[5], (FC_H,), jnp.float32),
      "fc2_w":   s * jax.random.normal(ks[6], (N_CLS, FC_H), jnp.float32),
      "fc2_b":   s * jax.random.normal(ks[7], (N_CLS,), jnp.float32),
  }


def prepare_params(p):
  """One-time host-side repack (layout + dtype) for the fused kernel."""
  # conv weights: OIHW -> (kh, kw, in, out) -> flattened im2col (9*in, out), bf16 for the MXU.
  w1 = jnp.transpose(p["conv1_w"], (2, 3, 1, 0)).reshape(K1, C1).astype(jnp.bfloat16)
  w2 = jnp.transpose(p["conv2_w"], (2, 3, 1, 0)).reshape(K2, C2).astype(jnp.bfloat16)
  # fc1: torch rows are NCHW-flatten (c*16 + h*4 + w); permute once to the kernel's NHWC
  # flatten order ((h*4 + w)*C2 + c) and pad the 32-wide hidden dim to 128 lanes.
  fc1 = jnp.transpose(p["fc1_w"], (1, 0)).reshape(C2, 4, 4, FC_H)
  fc1 = jnp.transpose(fc1, (1, 2, 0, 3)).reshape(FEAT, FC_H)
  fc1 = jnp.pad(fc1, ((0, 0), (0, FC_PAD - FC_H))).astype(jnp.bfloat16)            # (2048,128)
  fc1_b = jnp.pad(p["fc1_b"], (0, FC_PAD - FC_H)).reshape(1, FC_PAD).astype(jnp.float32)
  # fc2: (2,32) -> (32,2), zero-padded to a lane-dense (128,128) block.
  fc2 = jnp.transpose(p["fc2_w"], (1, 0))
  fc2 = jnp.pad(fc2, ((0, FC_PAD - FC_H), (0, FC_PAD - N_CLS))).astype(jnp.bfloat16)
  fc2_b = jnp.pad(p["fc2_b"], (0, FC_PAD - N_CLS)).reshape(1, FC_PAD).astype(jnp.float32)
  return {
      "conv1_w": w1, "conv1_b": p["conv1_b"].reshape(1, C1).astype(jnp.float32),
      "conv2_w": w2, "conv2_b": p["conv2_b"].reshape(1, C2).astype(jnp.float32),
      "fc1_w": fc1,  "fc1_b": fc1_b,
      "fc2_w": fc2,  "fc2_b": fc2_b,
  }


def _pick_batch_block(n):
  # Largest block that divides N while keeping >=2 grid steps (both v7x TensorCores busy).
  for b in (8, 4, 2, 1):
    if n % b == 0 and n // b >= 2:
      return b
  return 1


def cnn_forward(params, x_nchw, batch_block=None):
  # x_nchw: (N, 3, H, W) float32 (PyTorch convention).
  x = jnp.transpose(x_nchw, (0, 2, 3, 1)).astype(jnp.bfloat16)  # NCHW -> NHWC, bf16 once
  N, H, W, Cin = x.shape
  if Cin != CIN:
    raise ValueError("cnn_forward expects 3 input channels")
  if H % 16 != 0 or W % 16 != 0:
    # TODO(synk): adaptive-pool path only implemented for H, W divisible by 16.
    raise ValueError("cnn_forward requires spatial dims divisible by 16")
  B = batch_block if batch_block is not None else _pick_batch_block(N)
  if N % B != 0:
    raise ValueError("batch_block must divide the batch size")
  Ha, Wa = H // 2, W // 2

  kern = functools.partial(_cnn_fused_kernel, B=B, H=H, W=W)
  out = pl.pallas_call(
      kern,
      out_shape=jax.ShapeDtypeStruct((N // B, B, FC_PAD), jnp.float32),
      grid=(N // B,),
      in_specs=[
          pl.BlockSpec((B, H, W, CIN), lambda n: (n, 0, 0, 0)),
          pl.BlockSpec((K1, C1), lambda n: (0, 0)),
          pl.BlockSpec((1, C1), lambda n: (0, 0)),
          pl.BlockSpec((K2, C2), lambda n: (0, 0)),
          pl.BlockSpec((1, C2), lambda n: (0, 0)),
          pl.BlockSpec((FEAT, FC_PAD), lambda n: (0, 0)),
          pl.BlockSpec((1, FC_PAD), lambda n: (0, 0)),
          pl.BlockSpec((FC_PAD, FC_PAD), lambda n: (0, 0)),
          pl.BlockSpec((1, FC_PAD), lambda n: (0, 0)),
      ],
      out_specs=pl.BlockSpec((1, B, FC_PAD), lambda n: (n, 0, 0)),
      scratch_shapes=[
          pltpu.VMEM((B, H + 2, W + 2, CIN), jnp.bfloat16),     # padded input (bf16)
          pltpu.VMEM((B, Ha + 2, Wa + 2, C1), jnp.bfloat16),    # padded pooled map (bf16)
      ],
      compiler_params=pltpu.CompilerParams(dimension_semantics=("parallel",)),
  )(x, params["conv1_w"], params["conv1_b"], params["conv2_w"], params["conv2_b"],
    params["fc1_w"], params["fc1_b"], params["fc2_w"], params["fc2_b"])
  # Lane-dense (N,128) slab from the kernel; slice the 2 real classes in the wrapper.
  return out.reshape(N, FC_PAD)[:, :N_CLS]


if __name__ == "__main__":
  key = jax.random.PRNGKey(0)
  pkey, xkey = jax.random.split(key)
  params = prepare_params(init_params(pkey))
  x = jax.random.normal(xkey, (2, 3, 16, 16), jnp.float32)      # NCHW input
  out = jax.jit(cnn_forward)(params, x)
  out = jax.block_until_ready(out)
  assert out.shape == (2, N_CLS)
  assert bool(jnp.all(jnp.isfinite(out)))
  # log-softmax rows should exponentiate-sum to 1
  assert bool(jnp.allclose(jnp.sum(jnp.exp(out), axis=1), 1.0, atol=1e-3))
  print("KERNEL_OK")
</pallas_src>

<mosaic_0001>
module attributes {stable_mosaic.version = 11 : i64} {
  func.func @_cnn_fused_kernel(%arg0: i32, %arg1: memref<1x16x16x3xbf16, #tpu.memory_space<vmem>>, %arg2: memref<27x64xbf16, #tpu.memory_space<vmem>>, %arg3: memref<1x64xf32, #tpu.memory_space<vmem>>, %arg4: memref<576x128xbf16, #tpu.memory_space<vmem>>, %arg5: memref<1x128xf32, #tpu.memory_space<vmem>>, %arg6: memref<2048x128xbf16, #tpu.memory_space<vmem>>, %arg7: memref<1x128xf32, #tpu.memory_space<vmem>>, %arg8: memref<128x128xbf16, #tpu.memory_space<vmem>>, %arg9: memref<1x128xf32, #tpu.memory_space<vmem>>, %arg10: memref<1x1x128xf32, #tpu.memory_space<vmem>>, %arg11: memref<1x18x18x3xbf16, #tpu.memory_space<vmem>>, %arg12: memref<1x10x10x64xbf16, #tpu.memory_space<vmem>>) attributes {dimension_semantics = [#tpu.dimension_semantics<parallel>], iteration_bounds = array<i64: 2>, scalar_prefetch = 0 : i64, scratch_operands = 2 : i64, tpu.core_type = #tpu.core_type<tc>, window_params = [{transform_indices = @transform_0, window_bounds = array<i64: 1, 16, 16, 3>}, {pipeline_mode = #tpu.pipeline_mode<synchronous>, transform_indices = @transform_1, window_bounds = array<i64: 27, 64>}, {pipeline_mode = #tpu.pipeline_mode<synchronous>, transform_indices = @transform_2, window_bounds = array<i64: 1, 64>}, {pipeline_mode = #tpu.pipeline_mode<synchronous>, transform_indices = @transform_3, window_bounds = array<i64: 576, 128>}, {pipeline_mode = #tpu.pipeline_mode<synchronous>, transform_indices = @transform_4, window_bounds = array<i64: 1, 128>}, {pipeline_mode = #tpu.pipeline_mode<synchronous>, transform_indices = @transform_5, window_bounds = array<i64: 2048, 128>}, {pipeline_mode = #tpu.pipeline_mode<synchronous>, transform_indices = @transform_6, window_bounds = array<i64: 1, 128>}, {pipeline_mode = #tpu.pipeline_mode<synchronous>, transform_indices = @transform_7, window_bounds = array<i64: 128, 128>}, {pipeline_mode = #tpu.pipeline_mode<synchronous>, transform_indices = @transform_8, window_bounds = array<i64: 1, 128>}, {transform_indices = @transform_9, window_bounds = array<i64: 1, 1, 128>}]} {
    %cst = arith.constant 0.000000e+00 : bf16
    %0 = vector.broadcast %cst : bf16 to vector<1x1x18x3xbf16>
    %c0 = arith.constant 0 : index
    %c0_0 = arith.constant 0 : index
    %c0_1 = arith.constant 0 : index
    %c0_2 = arith.constant 0 : index
    %1 = vector.load %arg11[%c0, %c0_0, %c0_1, %c0_2] : memref<1x18x18x3xbf16, #tpu.memory_space<vmem>>, vector<1x1x18x3xbf16>
    tpu.vector_store %arg11[%c0, %c0_0, %c0_1, %c0_2], %0 {strides = array<i32>} : memref<1x18x18x3xbf16, #tpu.memory_space<vmem>>, vector<1x1x18x3xbf16>,
    %c0_3 = arith.constant 0 : index
    %c17 = arith.constant 17 : index
    %c0_4 = arith.constant 0 : index
    %c0_5 = arith.constant 0 : index
    %2 = vector.load %arg11[%c0_3, %c17, %c0_4, %c0_5] : memref<1x18x18x3xbf16, #tpu.memory_space<vmem>>, vector<1x1x18x3xbf16>
    tpu.vector_store %arg11[%c0_3, %c17, %c0_4, %c0_5], %0 {strides = array<i32>} : memref<1x18x18x3xbf16, #tpu.memory_space<vmem>>, vector<1x1x18x3xbf16>,
    %cst_6 = arith.constant 0.000000e+00 : bf16
    %3 = vector.broadcast %cst_6 : bf16 to vector<1x16x1x3xbf16>
    %c0_7 = arith.constant 0 : index
    %c1 = arith.constant 1 : index
    %c0_8 = arith.constant 0 : index
    %c0_9 = arith.constant 0 : index
    %4 = vector.load %arg11[%c0_7, %c1, %c0_8, %c0_9] : memref<1x18x18x3xbf16, #tpu.memory_space<vmem>>, vector<1x16x1x3xbf16>
    tpu.vector_store %arg11[%c0_7, %c1, %c0_8, %c0_9], %3 {strides = array<i32>} : memref<1x18x18x3xbf16, #tpu.memory_space<vmem>>, vector<1x16x1x3xbf16>,
    %c0_10 = arith.constant 0 : index
    %c1_11 = arith.constant 1 : index
    %c17_12 = arith.constant 17 : index
    %c0_13 = arith.constant 0 : index
    %5 = vector.load %arg11[%c0_10, %c1_11, %c17_12, %c0_13] : memref<1x18x18x3xbf16, #tpu.memory_space<vmem>>, vector<1x16x1x3xbf16>
    tpu.vector_store %arg11[%c0_10, %c1_11, %c17_12, %c0_13], %3 {strides = array<i32>} : memref<1x18x18x3xbf16, #tpu.memory_space<vmem>>, vector<1x16x1x3xbf16>,
    %c0_14 = arith.constant 0 : index
    %c0_15 = arith.constant 0 : index
    %c0_16 = arith.constant 0 : index
    %c0_17 = arith.constant 0 : index
    %6 = vector.load %arg1[%c0_14, %c0_15, %c0_16, %c0_17] : memref<1x16x16x3xbf16, #tpu.memory_space<vmem>>, vector<1x16x16x3xbf16>
    %c0_18 = arith.constant 0 : index
    %c1_19 = arith.constant 1 : index
    %c1_20 = arith.constant 1 : index
    %c0_21 = arith.constant 0 : index
    %7 = vector.load %arg11[%c0_18, %c1_19, %c1_20, %c0_21] : memref<1x18x18x3xbf16, #tpu.memory_space<vmem>>, vector<1x16x16x3xbf16>
    tpu.vector_store %arg11[%c0_18, %c1_19, %c1_20, %c0_21], %6 {strides = array<i32>} : memref<1x18x18x3xbf16, #tpu.memory_space<vmem>>, vector<1x16x16x3xbf16>,
    %c0_22 = arith.constant 0 : index
    %c0_23 = arith.constant 0 : index
    %c0_24 = arith.constant 0 : index
    %c0_25 = arith.constant 0 : index
    %8 = vector.load %arg11[%c0_22, %c0_23, %c0_24, %c0_25] : memref<1x18x18x3xbf16, #tpu.memory_space<vmem>>, vector<1x16x16x3xbf16>
    %c0_26 = arith.constant 0 : index
    %c0_27 = arith.constant 0 : index
    %c1_28 = arith.constant 1 : index
    %c0_29 = arith.constant 0 : index
    %9 = vector.load %arg11[%c0_26, %c0_27, %c1_28, %c0_29] : memref<1x18x18x3xbf16, #tpu.memory_space<vmem>>, vector<1x16x16x3xbf16>
    %c0_30 = arith.constant 0 : index
    %c0_31 = arith.constant 0 : index
    %c2 = arith.constant 2 : index
    %c0_32 = arith.constant 0 : index
    %10 = vector.load %arg11[%c0_30, %c0_31, %c2, %c0_32] : memref<1x18x18x3xbf16, #tpu.memory_space<vmem>>, vector<1x16x16x3xbf16>
    %c0_33 = arith.constant 0 : index
    %c1_34 = arith.constant 1 : index
    %c0_35 = arith.constant 0 : index
    %c0_36 = arith.constant 0 : index
    %11 = vector.load %arg11[%c0_33, %c1_34, %c0_35, %c0_36] : memref<1x18x18x3xbf16, #tpu.memory_space<vmem>>, vector<1x16x16x3xbf16>
    %c0_37 = arith.constant 0 : index
    %c1_38 = arith.constant 1 : index
    %c1_39 = arith.constant 1 : index
    %c0_40 = arith.constant 0 : index
    %12 = vector.load %arg11[%c0_37, %c1_38, %c1_39, %c0_40] : memref<1x18x18x3xbf16, #tpu.memory_space<vmem>>, vector<1x16x16x3xbf16>
    %c0_41 = arith.constant 0 : index
    %c1_42 = arith.constant 1 : index
    %c2_43 = arith.constant 2 : index
    %c0_44 = arith.constant 0 : index
    %13 = vector.load %arg11[%c0_41, %c1_42, %c2_43, %c0_44] : memref<1x18x18x3xbf16, #tpu.memory_space<vmem>>, vector<1x16x16x3xbf16>
    %c0_45 = arith.constant 0 : index
    %c2_46 = arith.constant 2 : index
    %c0_47 = arith.constant 0 : index
    %c0_48 = arith.constant 0 : index
    %14 = vector.load %arg11[%c0_45, %c2_46, %c0_47, %c0_48] : memref<1x18x18x3xbf16, #tpu.memory_space<vmem>>, vector<1x16x16x3xbf16>
    %c0_49 = arith.constant 0 : index
    %c2_50 = arith.constant 2 : index
    %c1_51 = arith.constant 1 : index
    %c0_52 = arith.constant 0 : index
    %15 = vector.load %arg11[%c0_49, %c2_50, %c1_51, %c0_52] : memref<1x18x18x3xbf16, #tpu.memory_space<vmem>>, vector<1x16x16x3xbf16>
    %c0_53 = arith.constant 0 : index
    %c2_54 = arith.constant 2 : index
    %c2_55 = arith.constant 2 : index
    %c0_56 = arith.constant 0 : index
    %16 = vector.load %arg11[%c0_53, %c2_54, %c2_55, %c0_56] : memref<1x18x18x3xbf16, #tpu.memory_space<vmem>>, vector<1x16x16x3xbf16>
    %17 = tpu.concatenate %8, %9, %10, %11, %12, %13, %14, %15, %16 in 3 : vector<1x16x16x3xbf16>, vector<1x16x16x3xbf16>, vector<1x16x16x3xbf16>, vector<1x16x16x3xbf16>, vector<1x16x16x3xbf16>, vector<1x16x16x3xbf16>, vector<1x16x16x3xbf16>, vector<1x16x16x3xbf16>, vector<1x16x16x3xbf16> -> vector<1x16x16x27xbf16>
    %18 = vector.shape_cast %17 : vector<1x16x16x27xbf16> to vector<256x27xbf16>
    %c0_57 = arith.constant 0 : index
    %c0_58 = arith.constant 0 : index
    %19 = vector.load %arg2[%c0_57, %c0_58] : memref<27x64xbf16, #tpu.memory_space<vmem>>, vector<27x64xbf16>
    %cst_59 = arith.constant dense<0.000000e+00> : vector<256x64xf32>
    %20 = tpu.matmul %18, %19, %cst_59 {dimension_numbers = #tpu.dot_dimension_numbers<[1], [0], [0], [1], [0, 0, 1, 1], [], []>} : vector<256x27xbf16>, vector<27x64xbf16>, vector<256x64xf32> -> vector<256x64xf32>
    %c0_60 = arith.constant 0 : index
    %c0_61 = arith.constant 0 : index
    %21 = vector.load %arg3[%c0_60, %c0_61] : memref<1x64xf32, #tpu.memory_space<vmem>>, vector<1x64xf32>
    %22 = vector.broadcast %21 : vector<1x64xf32> to vector<256x64xf32>
    %23 = arith.addf %20, %22 : vector<256x64xf32>
    %cst_62 = arith.constant 0.000000e+00 : f32
    %24 = vector.broadcast %cst_62 : f32 to vector<256x64xf32>
    %25 = arith.maximumf %23, %24 : vector<256x64xf32>
    %26 = vector.shape_cast %25 : vector<256x64xf32> to vector<1x16x8x2x64xf32>
    %27 = vector.extract_strided_slice %26 {offsets = [0, 0, 0, 0, 0], sizes = [1, 16, 8, 1, 64], strides = [1, 1, 1, 1, 1]} : vector<1x16x8x2x64xf32> to vector<1x16x8x1x64xf32>
    %28 = vector.shape_cast %27 : vector<1x16x8x1x64xf32> to vector<1x16x8x64xf32>
    %29 = vector.extract_strided_slice %26 {offsets = [0, 0, 0, 1, 0], sizes = [1, 16, 8, 1, 64], strides = [1, 1, 1, 1, 1]} : vector<1x16x8x2x64xf32> to vector<1x16x8x1x64xf32>
    %30 = vector.shape_cast %29 : vector<1x16x8x1x64xf32> to vector<1x16x8x64xf32>
    %31 = arith.maximumf %28, %30 : vector<1x16x8x64xf32>
    %32 = vector.shape_cast %31 : vector<1x16x8x64xf32> to vector<1x8x2x8x64xf32>
    %33 = vector.extract_strided_slice %32 {offsets = [0, 0, 0, 0, 0], sizes = [1, 8, 1, 8, 64], strides = [1, 1, 1, 1, 1]} : vector<1x8x2x8x64xf32> to vector<1x8x1x8x64xf32>
    %34 = vector.shape_cast %33 : vector<1x8x1x8x64xf32> to vector<1x8x8x64xf32>
    %35 = vector.extract_strided_slice %32 {offsets = [0, 0, 1, 0, 0], sizes = [1, 8, 1, 8, 64], strides = [1, 1, 1, 1, 1]} : vector<1x8x2x8x64xf32> to vector<1x8x1x8x64xf32>
    %36 = vector.shape_cast %35 : vector<1x8x1x8x64xf32> to vector<1x8x8x64xf32>
    %37 = arith.maximumf %34, %36 : vector<1x8x8x64xf32>
    %cst_63 = arith.constant 0.000000e+00 : bf16
    %38 = vector.broadcast %cst_63 : bf16 to vector<1x1x10x64xbf16>
    %c0_64 = arith.constant 0 : index
    %c0_65 = arith.constant 0 : index
    %c0_66 = arith.constant 0 : index
    %c0_67 = arith.constant 0 : index
    %39 = vector.load %arg12[%c0_64, %c0_65, %c0_66, %c0_67] : memref<1x10x10x64xbf16, #tpu.memory_space<vmem>>, vector<1x1x10x64xbf16>
    tpu.vector_store %arg12[%c0_64, %c0_65, %c0_66, %c0_67], %38 {strides = array<i32>} : memref<1x10x10x64xbf16, #tpu.memory_space<vmem>>, vector<1x1x10x64xbf16>,
    %c0_68 = arith.constant 0 : index
    %c9 = arith.constant 9 : index
    %c0_69 = arith.constant 0 : index
    %c0_70 = arith.constant 0 : index
    %40 = vector.load %arg12[%c0_68, %c9, %c0_69, %c0_70] : memref<1x10x10x64xbf16, #tpu.memory_space<vmem>>, vector<1x1x10x64xbf16>
    tpu.vector_store %arg12[%c0_68, %c9, %c0_69, %c0_70], %38 {strides = array<i32>} : memref<1x10x10x64xbf16, #tpu.memory_space<vmem>>, vector<1x1x10x64xbf16>,
    %cst_71 = arith.constant 0.000000e+00 : bf16
    %41 = vector.broadcast %cst_71 : bf16 to vector<1x8x1x64xbf16>
    %c0_72 = arith.constant 0 : index
    %c1_73 = arith.constant 1 : index
    %c0_74 = arith.constant 0 : index
    %c0_75 = arith.constant 0 : index
    %42 = vector.load %arg12[%c0_72, %c1_73, %c0_74, %c0_75] : memref<1x10x10x64xbf16, #tpu.memory_space<vmem>>, vector<1x8x1x64xbf16>
    tpu.vector_store %arg12[%c0_72, %c1_73, %c0_74, %c0_75], %41 {strides = array<i32>} : memref<1x10x10x64xbf16, #tpu.memory_space<vmem>>, vector<1x8x1x64xbf16>,
    %c0_76 = arith.constant 0 : index
    %c1_77 = arith.constant 1 : index
    %c9_78 = arith.constant 9 : index
    %c0_79 = arith.constant 0 : index
    %43 = vector.load %arg12[%c0_76, %c1_77, %c9_78, %c0_79] : memref<1x10x10x64xbf16, #tpu.memory_space<vmem>>, vector<1x8x1x64xbf16>
    tpu.vector_store %arg12[%c0_76, %c1_77, %c9_78, %c0_79], %41 {strides = array<i32>} : memref<1x10x10x64xbf16, #tpu.memory_space<vmem>>, vector<1x8x1x64xbf16>,
    %44 = arith.truncf %37 : vector<1x8x8x64xf32> to vector<1x8x8x64xbf16>
    %c0_80 = arith.constant 0 : index
    %c1_81 = arith.constant 1 : index
    %c1_82 = arith.constant 1 : index
    %c0_83 = arith.constant 0 : index
    %45 = vector.load %arg12[%c0_80, %c1_81, %c1_82, %c0_83] : memref<1x10x10x64xbf16, #tpu.memory_space<vmem>>, vector<1x8x8x64xbf16>
    tpu.vector_store %arg12[%c0_80, %c1_81, %c1_82, %c0_83], %44 {strides = array<i32>} : memref<1x10x10x64xbf16, #tpu.memory_space<vmem>>, vector<1x8x8x64xbf16>,
    %c0_84 = arith.constant 0 : index
    %c0_85 = arith.constant 0 : index
    %c0_86 = arith.constant 0 : index
    %c0_87 = arith.constant 0 : index
    %46 = vector.load %arg12[%c0_84, %c0_85, %c0_86, %c0_87] : memref<1x10x10x64xbf16, #tpu.memory_space<vmem>>, vector<1x8x8x64xbf16>
    %c0_88 = arith.constant 0 : index
    %c0_89 = arith.constant 0 : index
    %c1_90 = arith.constant 1 : index
    %c0_91 = arith.constant 0 : index
    %47 = vector.load %arg12[%c0_88, %c0_89, %c1_90, %c0_91] : memref<1x10x10x64xbf16, #tpu.memory_space<vmem>>, vector<1x8x8x64xbf16>
    %c0_92 = arith.constant 0 : index
    %c0_93 = arith.constant 0 : index
    %c2_94 = arith.constant 2 : index
    %c0_95 = arith.constant 0 : index
    %48 = vector.load %arg12[%c0_92, %c0_93, %c2_94, %c0_95] : memref<1x10x10x64xbf16, #tpu.memory_space<vmem>>, vector<1x8x8x64xbf16>
    %c0_96 = arith.constant 0 : index
    %c1_97 = arith.constant 1 : index
    %c0_98 = arith.constant 0 : index
    %c0_99 = arith.constant 0 : index
    %49 = vector.load %arg12[%c0_96, %c1_97, %c0_98, %c0_99] : memref<1x10x10x64xbf16, #tpu.memory_space<vmem>>, vector<1x8x8x64xbf16>
    %c0_100 = arith.constant 0 : index
    %c1_101 = arith.constant 1 : index
    %c1_102 = arith.constant 1 : index
    %c0_103 = arith.constant 0 : index
    %50 = vector.load %arg12[%c0_100, %c1_101, %c1_102, %c0_103] : memref<1x10x10x64xbf16, #tpu.memory_space<vmem>>, vector<1x8x8x64xbf16>
    %c0_104 = arith.constant 0 : index
    %c1_105 = arith.constant 1 : index
    %c2_106 = arith.constant 2 : index
    %c0_107 = arith.constant 0 : index
    %51 = vector.load %arg12[%c0_104, %c1_105, %c2_106, %c0_107] : memref<1x10x10x64xbf16, #tpu.memory_space<vmem>>, vector<1x8x8x64xbf16>
    %c0_108 = arith.constant 0 : index
    %c2_109 = arith.constant 2 : index
    %c0_110 = arith.constant 0 : index
    %c0_111 = arith.constant 0 : index
    %52 = vector.load %arg12[%c0_108, %c2_109, %c0_110, %c0_111] : memref<1x10x10x64xbf16, #tpu.memory_space<vmem>>, vector<1x8x8x64xbf16>
    %c0_112 = arith.constant 0 : index
    %c2_113 = arith.constant 2 : index
    %c1_114 = arith.constant 1 : index
    %c0_115 = arith.constant 0 : index
    %53 = vector.load %arg12[%c0_112, %c2_113, %c1_114, %c0_115] : memref<1x10x10x64xbf16, #tpu.memory_space<vmem>>, vector<1x8x8x64xbf16>
    %c0_116 = arith.constant 0 : index
    %c2_117 = arith.constant 2 : index
    %c2_118 = arith.constant 2 : index
    %c0_119 = arith.constant 0 : index
    %54 = vector.load %arg12[%c0_116, %c2_117, %c2_118, %c0_119] : memref<1x10x10x64xbf16, #tpu.memory_space<vmem>>, vector<1x8x8x64xbf16>
    %55 = tpu.concatenate %46, %47, %48, %49, %50, %51, %52, %53, %54 in 3 : vector<1x8x8x64xbf16>, vector<1x8x8x64xbf16>, vector<1x8x8x64xbf16>, vector<1x8x8x64xbf16>, vector<1x8x8x64xbf16>, vector<1x8x8x64xbf16>, vector<1x8x8x64xbf16>, vector<1x8x8x64xbf16>, vector<1x8x8x64xbf16> -> vector<1x8x8x576xbf16>
    %56 = vector.shape_cast %55 : vector<1x8x8x576xbf16> to vector<64x576xbf16>
    %c0_120 = arith.constant 0 : index
    %c0_121 = arith.constant 0 : index
    %57 = vector.load %arg4[%c0_120, %c0_121] : memref<576x128xbf16, #tpu.memory_space<vmem>>, vector<576x128xbf16>
    %cst_122 = arith.constant dense<0.000000e+00> : vector<64x128xf32>
    %58 = tpu.matmul %56, %57, %cst_122 {dimension_numbers = #tpu.dot_dimension_numbers<[1], [0], [0], [1], [0, 0, 1, 1], [], []>} : vector<64x576xbf16>, vector<576x128xbf16>, vector<64x128xf32> -> vector<64x128xf32>
    %c0_123 = arith.constant 0 : index
    %c0_124 = arith.constant 0 : index
    %59 = vector.load %arg5[%c0_123, %c0_124] : memref<1x128xf32, #tpu.memory_space<vmem>>, vector<1x128xf32>
    %60 = vector.broadcast %59 : vector<1x128xf32> to vector<64x128xf32>
    %61 = arith.addf %58, %60 : vector<64x128xf32>
    %cst_125 = arith.constant 0.000000e+00 : f32
    %62 = vector.broadcast %cst_125 : f32 to vector<64x128xf32>
    %63 = arith.maximumf %61, %62 : vector<64x128xf32>
    %64 = vector.shape_cast %63 : vector<64x128xf32> to vector<1x8x4x2x128xf32>
    %65 = vector.extract_strided_slice %64 {offsets = [0, 0, 0, 0, 0], sizes = [1, 8, 4, 1, 128], strides = [1, 1, 1, 1, 1]} : vector<1x8x4x2x128xf32> to vector<1x8x4x1x128xf32>
    %66 = vector.shape_cast %65 : vector<1x8x4x1x128xf32> to vector<1x8x4x128xf32>
    %67 = vector.extract_strided_slice %64 {offsets = [0, 0, 0, 1, 0], sizes = [1, 8, 4, 1, 128], strides = [1, 1, 1, 1, 1]} : vector<1x8x4x2x128xf32> to vector<1x8x4x1x128xf32>
    %68 = vector.shape_cast %67 : vector<1x8x4x1x128xf32> to vector<1x8x4x128xf32>
    %69 = arith.maximumf %66, %68 : vector<1x8x4x128xf32>
    %70 = vector.shape_cast %69 : vector<1x8x4x128xf32> to vector<1x4x2x4x128xf32>
    %71 = vector.extract_strided_slice %70 {offsets = [0, 0, 0, 0, 0], sizes = [1, 4, 1, 4, 128], strides = [1, 1, 1, 1, 1]} : vector<1x4x2x4x128xf32> to vector<1x4x1x4x128xf32>
    %72 = vector.shape_cast %71 : vector<1x4x1x4x128xf32> to vector<1x4x4x128xf32>
    %73 = vector.extract_strided_slice %70 {offsets = [0, 0, 1, 0, 0], sizes = [1, 4, 1, 4, 128], strides = [1, 1, 1, 1, 1]} : vector<1x4x2x4x128xf32> to vector<1x4x1x4x128xf32>
    %74 = vector.shape_cast %73 : vector<1x4x1x4x128xf32> to vector<1x4x4x128xf32>
    %75 = arith.maximumf %72, %74 : vector<1x4x4x128xf32>
    %76 = vector.extract_strided_slice %75 {offsets = [0, 0, 0, 0], sizes = [1, 1, 1, 128], strides = [1, 1, 1, 1]} : vector<1x4x4x128xf32> to vector<1x1x1x128xf32>
    %77 = vector.shape_cast %76 : vector<1x1x1x128xf32> to vector<1x128xf32>
    %78 = vector.extract_strided_slice %75 {offsets = [0, 0, 1, 0], sizes = [1, 1, 1, 128], strides = [1, 1, 1, 1]} : vector<1x4x4x128xf32> to vector<1x1x1x128xf32>
    %79 = vector.shape_cast %78 : vector<1x1x1x128xf32> to vector<1x128xf32>
    %80 = vector.extract_strided_slice %75 {offsets = [0, 0, 2, 0], sizes = [1, 1, 1, 128], strides = [1, 1, 1, 1]} : vector<1x4x4x128xf32> to vector<1x1x1x128xf32>
    %81 = vector.shape_cast %80 : vector<1x1x1x128xf32> to vector<1x128xf32>
    %82 = vector.extract_strided_slice %75 {offsets = [0, 0, 3, 0], sizes = [1, 1, 1, 128], strides = [1, 1, 1, 1]} : vector<1x4x4x128xf32> to vector<1x1x1x128xf32>
    %83 = vector.shape_cast %82 : vector<1x1x1x128xf32> to vector<1x128xf32>
    %84 = vector.extract_strided_slice %75 {offsets = [0, 1, 0, 0], sizes = [1, 1, 1, 128], strides = [1, 1, 1, 1]} : vector<1x4x4x128xf32> to vector<1x1x1x128xf32>
    %85 = vector.shape_cast %84 : vector<1x1x1x128xf32> to vector<1x128xf32>
    %86 = vector.extract_strided_slice %75 {offsets = [0, 1, 1, 0], sizes = [1, 1, 1, 128], strides = [1, 1, 1, 1]} : vector<1x4x4x128xf32> to vector<1x1x1x128xf32>
    %87 = vector.shape_cast %86 : vector<1x1x1x128xf32> to vector<1x128xf32>
    %88 = vector.extract_strided_slice %75 {offsets = [0, 1, 2, 0], sizes = [1, 1, 1, 128], strides = [1, 1, 1, 1]} : vector<1x4x4x128xf32> to vector<1x1x1x128xf32>
    %89 = vector.shape_cast %88 : vector<1x1x1x128xf32> to vector<1x128xf32>
    %90 = vector.extract_strided_slice %75 {offsets = [0, 1, 3, 0], sizes = [1, 1, 1, 128], strides = [1, 1, 1, 1]} : vector<1x4x4x128xf32> to vector<1x1x1x128xf32>
    %91 = vector.shape_cast %90 : vector<1x1x1x128xf32> to vector<1x128xf32>
    %92 = vector.extract_strided_slice %75 {offsets = [0, 2, 0, 0], sizes = [1, 1, 1, 128], strides = [1, 1, 1, 1]} : vector<1x4x4x128xf32> to vector<1x1x1x128xf32>
    %93 = vector.shape_cast %92 : vector<1x1x1x128xf32> to vector<1x128xf32>
    %94 = vector.extract_strided_slice %75 {offsets = [0, 2, 1, 0], sizes = [1, 1, 1, 128], strides = [1, 1, 1, 1]} : vector<1x4x4x128xf32> to vector<1x1x1x128xf32>
    %95 = vector.shape_cast %94 : vector<1x1x1x128xf32> to vector<1x128xf32>
    %96 = vector.extract_strided_slice %75 {offsets = [0, 2, 2, 0], sizes = [1, 1, 1, 128], strides = [1, 1, 1, 1]} : vector<1x4x4x128xf32> to vector<1x1x1x128xf32>
    %97 = vector.shape_cast %96 : vector<1x1x1x128xf32> to vector<1x128xf32>
    %98 = vector.extract_strided_slice %75 {offsets = [0, 2, 3, 0], sizes = [1, 1, 1, 128], strides = [1, 1, 1, 1]} : vector<1x4x4x128xf32> to vector<1x1x1x128xf32>
    %99 = vector.shape_cast %98 : vector<1x1x1x128xf32> to vector<1x128xf32>
    %100 = vector.extract_strided_slice %75 {offsets = [0, 3, 0, 0], sizes = [1, 1, 1, 128], strides = [1, 1, 1, 1]} : vector<1x4x4x128xf32> to vector<1x1x1x128xf32>
    %101 = vector.shape_cast %100 : vector<1x1x1x128xf32> to vector<1x128xf32>
    %102 = vector.extract_strided_slice %75 {offsets = [0, 3, 1, 0], sizes = [1, 1, 1, 128], strides = [1, 1, 1, 1]} : vector<1x4x4x128xf32> to vector<1x1x1x128xf32>
    %103 = vector.shape_cast %102 : vector<1x1x1x128xf32> to vector<1x128xf32>
    %104 = vector.extract_strided_slice %75 {offsets = [0, 3, 2, 0], sizes = [1, 1, 1, 128], strides = [1, 1, 1, 1]} : vector<1x4x4x128xf32> to vector<1x1x1x128xf32>
    %105 = vector.shape_cast %104 : vector<1x1x1x128xf32> to vector<1x128xf32>
    %106 = vector.extract_strided_slice %75 {offsets = [0, 3, 3, 0], sizes = [1, 1, 1, 128], strides = [1, 1, 1, 1]} : vector<1x4x4x128xf32> to vector<1x1x1x128xf32>
    %107 = vector.shape_cast %106 : vector<1x1x1x128xf32> to vector<1x128xf32>
    %108 = tpu.concatenate %77, %79, %81, %83, %85, %87, %89, %91, %93, %95, %97, %99, %101, %103, %105, %107 in 1 : vector<1x128xf32>, vector<1x128xf32>, vector<1x128xf32>, vector<1x128xf32>, vector<1x128xf32>, vector<1x128xf32>, vector<1x128xf32>, vector<1x128xf32>, vector<1x128xf32>, vector<1x128xf32>, vector<1x128xf32>, vector<1x128xf32>, vector<1x128xf32>, vector<1x128xf32>, vector<1x128xf32>, vector<1x128xf32> -> vector<1x2048xf32>
    %109 = arith.truncf %108 : vector<1x2048xf32> to vector<1x2048xbf16>
    %c0_126 = arith.constant 0 : index
    %c0_127 = arith.constant 0 : index
    %110 = vector.load %arg6[%c0_126, %c0_127] : memref<2048x128xbf16, #tpu.memory_space<vmem>>, vector<2048x128xbf16>
    %cst_128 = arith.constant dense<0.000000e+00> : vector<1x128xf32>
    %111 = tpu.matmul %109, %110, %cst_128 {dimension_numbers = #tpu.dot_dimension_numbers<[1], [0], [0], [1], [0, 0, 1, 1], [], []>} : vector<1x2048xbf16>, vector<2048x128xbf16>, vector<1x128xf32> -> vector<1x128xf32>
    %c0_129 = arith.constant 0 : index
    %c0_130 = arith.constant 0 : index
    %112 = vector.load %arg7[%c0_129, %c0_130] : memref<1x128xf32, #tpu.memory_space<vmem>>, vector<1x128xf32>
    %113 = arith.addf %111, %112 : vector<1x128xf32>
    %cst_131 = arith.constant 0.000000e+00 : f32
    %114 = vector.broadcast %cst_131 : f32 to vector<1x128xf32>
    %115 = arith.maximumf %113, %114 : vector<1x128xf32>
    %116 = arith.truncf %115 : vector<1x128xf32> to vector<1x128xbf16>
    %c0_132 = arith.constant 0 : index
    %c0_133 = arith.constant 0 : index
    %117 = vector.load %arg8[%c0_132, %c0_133] : memref<128x128xbf16, #tpu.memory_space<vmem>>, vector<128x128xbf16>
    %cst_134 = arith.constant dense<0.000000e+00> : vector<1x128xf32>
    %118 = tpu.matmul %116, %117, %cst_134 {dimension_numbers = #tpu.dot_dimension_numbers<[1], [0], [0], [1], [0, 0, 1, 1], [], []>} : vector<1x128xbf16>, vector<128x128xbf16>, vector<1x128xf32> -> vector<1x128xf32>
    %c0_135 = arith.constant 0 : index
    %c0_136 = arith.constant 0 : index
    %119 = vector.load %arg9[%c0_135, %c0_136] : memref<1x128xf32, #tpu.memory_space<vmem>>, vector<1x128xf32>
    %120 = arith.addf %118, %119 : vector<1x128xf32>
    %121 = tpu.iota {dimensions = array<i32: 1>} : vector<1x128xi32>
    %c2_i32 = arith.constant 2 : i32
    %122 = vector.broadcast %c2_i32 : i32 to vector<1x128xi32>
    %123 = arith.cmpi slt, %121, %122 : vector<1x128xi32>
    %cst_137 = arith.constant 0xFF800000 : f32
    %124 = vector.broadcast %cst_137 : f32 to vector<1x128xf32>
    %125 = arith.select %123, %120, %124 : vector<1x128xi1>, vector<1x128xf32>
    %cst_138 = arith.constant dense<0xFF800000> : vector<1xf32>
    %126 = vector.multi_reduction <maximumf>, %125, %cst_138 [1] : vector<1x128xf32> to vector<1xf32>
    %127 = vector.shape_cast %126 : vector<1xf32> to vector<1x1xf32>
    %128 = vector.broadcast %127 : vector<1x1xf32> to vector<1x128xf32>
    %129 = arith.subf %125, %128 : vector<1x128xf32>
    %130 = math.exp %129 : vector<1x128xf32>
    %cst_139 = arith.constant dense<0.000000e+00> : vector<1xf32>
    %131 = vector.multi_reduction <add>, %130, %cst_139 [1] : vector<1x128xf32> to vector<1xf32>
    %132 = vector.shape_cast %131 : vector<1xf32> to vector<1x1xf32>
    %133 = math.log %132 : vector<1x1xf32>
    %134 = vector.broadcast %127 : vector<1x1xf32> to vector<1x128xf32>
    %135 = arith.subf %125, %134 : vector<1x128xf32>
    %136 = vector.broadcast %133 : vector<1x1xf32> to vector<1x128xf32>
    %137 = arith.subf %135, %136 : vector<1x128xf32>
    %cst_140 = arith.constant 0.000000e+00 : f32
    %138 = vector.broadcast %cst_140 : f32 to vector<1x128xf32>
    %139 = arith.select %123, %137, %138 : vector<1x128xi1>, vector<1x128xf32>
    %140 = vector.shape_cast %139 : vector<1x128xf32> to vector<1x1x128xf32>
    %c0_141 = arith.constant 0 : index
    %c0_142 = arith.constant 0 : index
    %c0_143 = arith.constant 0 : index
    %141 = vector.load %arg10[%c0_141, %c0_142, %c0_143] : memref<1x1x128xf32, #tpu.memory_space<vmem>>, vector<1x1x128xf32>
    tpu.vector_store %arg10[%c0_141, %c0_142, %c0_143], %140 {strides = array<i32>} : memref<1x1x128xf32, #tpu.memory_space<vmem>>, vector<1x1x128xf32>,
    return
  }
  func.func @transform_0(%arg0: i32) -> (i32, i32, i32, i32) {
    %c0_i32 = arith.constant 0 : i32
    %c0_i32_0 = arith.constant 0 : i32
    %c0_i32_1 = arith.constant 0 : i32
    %c0_i32_2 = arith.constant 0 : i32
    return %arg0, %c0_i32, %c0_i32_0, %c0_i32_1 : i32, i32, i32, i32
  }
  func.func @transform_1(%arg0: i32) -> (i32, i32) {
    %c0_i32 = arith.constant 0 : i32
    %c0_i32_0 = arith.constant 0 : i32
    %c0_i32_1 = arith.constant 0 : i32
    return %c0_i32, %c0_i32_0 : i32, i32
  }
  func.func @transform_2(%arg0: i32) -> (i32, i32) {
    %c0_i32 = arith.constant 0 : i32
    %c0_i32_0 = arith.constant 0 : i32
    %c0_i32_1 = arith.constant 0 : i32
    return %c0_i32, %c0_i32_0 : i32, i32
  }
  func.func @transform_3(%arg0: i32) -> (i32, i32) {
    %c0_i32 = arith.constant 0 : i32
    %c0_i32_0 = arith.constant 0 : i32
    %c0_i32_1 = arith.constant 0 : i32
    return %c0_i32, %c0_i32_0 : i32, i32
  }
  func.func @transform_4(%arg0: i32) -> (i32, i32) {
    %c0_i32 = arith.constant 0 : i32
    %c0_i32_0 = arith.constant 0 : i32
    %c0_i32_1 = arith.constant 0 : i32
    return %c0_i32, %c0_i32_0 : i32, i32
  }
  func.func @transform_5(%arg0: i32) -> (i32, i32) {
    %c0_i32 = arith.constant 0 : i32
    %c0_i32_0 = arith.constant 0 : i32
    %c0_i32_1 = arith.constant 0 : i32
    return %c0_i32, %c0_i32_0 : i32, i32
  }
  func.func @transform_6(%arg0: i32) -> (i32, i32) {
    %c0_i32 = arith.constant 0 : i32
    %c0_i32_0 = arith.constant 0 : i32
    %c0_i32_1 = arith.constant 0 : i32
    return %c0_i32, %c0_i32_0 : i32, i32
  }
  func.func @transform_7(%arg0: i32) -> (i32, i32) {
    %c0_i32 = arith.constant 0 : i32
    %c0_i32_0 = arith.constant 0 : i32
    %c0_i32_1 = arith.constant 0 : i32
    return %c0_i32, %c0_i32_0 : i32, i32
  }
  func.func @transform_8(%arg0: i32) -> (i32, i32) {
    %c0_i32 = arith.constant 0 : i32
    %c0_i32_0 = arith.constant 0 : i32
    %c0_i32_1 = arith.constant 0 : i32
    return %c0_i32, %c0_i32_0 : i32, i32
  }
  func.func @transform_9(%arg0: i32) -> (i32, i32, i32) {
    %c0_i32 = arith.constant 0 : i32
    %c0_i32_0 = arith.constant 0 : i32
    %c0_i32_1 = arith.constant 0 : i32
    return %arg0, %c0_i32, %c0_i32_0 : i32, i32, i32
  }
}

</mosaic_0001>

<llo_original>
// kernel: cnn_forward.1
$region0: #{cnn_forward.1}
  #allocation0 [shape = 'u32[]', space=smem, size = 0x4, offset = 0x4, fixed_abs, tag = 'smem constant byte address 0x4 - core index']
  #allocation1 [shape = 'u32[144,128]{1,0:T(1,128)}', space=vmem, size = 0x12000, scoped, tag = 'internal scratch']
  #allocation2 [shape = 'bf16[1,18,18,3]{3,2,1,0:T(8,128)(2,1)}', space=vmem, size = 0x1b000, scoped, tag = 'scratch operand']
  #allocation3 [shape = 'bf16[1,10,10,64]{3,2,1,0:T(8,128)(2,1)}', space=vmem, size = 0xa000, scoped, tag = 'scratch operand']
  %s0 = inlined_call_operand.vmem [shape: bf16[2,16,16,3], index: 0, kind: input, shape index: {}]
  %s1 = inlined_call_operand.vmem [shape: bf16[27,64], index: 1, kind: input, shape index: {}]
  %s2 = inlined_call_operand.vmem [shape: f32[1,64], index: 2, kind: input, shape index: {}]
  %s3 = inlined_call_operand.vmem [shape: bf16[576,128], index: 3, kind: input, shape index: {}]
  %s4 = inlined_call_operand.vmem [shape: f32[1,128], index: 4, kind: input, shape index: {}]
  %s5 = inlined_call_operand.hbm [shape: bf16[2048,128], index: 5, kind: input, shape index: {}]
  %s6 = inlined_call_operand.vmem [shape: f32[1,128], index: 6, kind: input, shape index: {}]
  %s7 = inlined_call_operand.vmem [shape: bf16[128,128], index: 7, kind: input, shape index: {}]
  %s8 = inlined_call_operand.vmem [shape: f32[1,128], index: 8, kind: input, shape index: {}]
  %s9 = inlined_call_operand.hbm [shape: f32[2,1,128], index: 9, kind: output, shape index: {}]
  %s10 = sld [smem:[#allocation0]]
  $region73: #{cnn_forward.1} parent=0
    _
  %s12 = ssub.s32 1, %s10
  %s13 = scalar_select 0, %s12, %s10
  $region1: #{cnn_forward.1} parent=0
    #allocation4 [shape = 'u8[524288]{0}', space=vmem, size = 0x80000, scoped, tag = 'input window, operand 5, single buffered']
    #allocation5 [shape = 's32[2]{0}', space=sflag, size = 0x8, scoped, tag = 'scoped memory for cnn_forward.1']
    #allocation6 [shape = 's32[2]{0}', space=sflag, size = 0x8, scoped, tag = 'scoped memory for cnn_forward.1']
    #allocation7 [shape = 'u8[1024]{0}', space=vmem, size = 0x400, scoped, tag = 'output window, operand 0']
    %14 = vsyncpa [#allocation5], 0
    %15 = vsyncpa [#allocation6], 0
    %s16 = scalar_lea.sflag [#allocation6], 1
    %17 = vsyncpa %s16, 0
    loop: start=0, step=1, limit=4
    $region2: #{cnn_forward.1} parent=1 // loop_pre_header
      _
    $region3: #{cnn_forward.1} parent=1 // loop_header
      %s19 = sphi 0, %s23
      %p20 = scmp.ge.s32.totalorder %s19, 4
      %s29 = sphi 0, %s31
      %s32 = sphi 0, %s29
      %s33 = sphi 0, %s32
      %s49 = sphi 0, %s33
      %s53 = sphi 0, %s53
      %s55 = sphi 0, %s53
      %s56 = sphi 0, %s55
      %s70 = sphi 0, %s56
      %s74 = sphi 0, %s74
      %s76 = sphi 0, %s74
      %s77 = sphi 0, %s76
      %s91 = sphi 0, %s77
      %s95 = sphi 0, %s95
      %s97 = sphi 0, %s95
      %s98 = sphi 0, %s97
      %s112 = sphi 0, %s98
      %s116 = sphi 0, %s116
      %s118 = sphi 0, %s116
      %s119 = sphi 0, %s118
      %s133 = sphi 0, %s119
      %s137 = sphi 0, %s137
      %s139 = sphi 0, %s137
      %s140 = sphi 0, %s139
      %s154 = sphi 0, %s140
      %s158 = sphi 0, %s158
      %s160 = sphi 0, %s158
      %s161 = sphi 0, %s160
      %s175 = sphi 0, %s161
      %s179 = sphi 0, %s179
      %s181 = sphi 0, %s179
      %s182 = sphi 0, %s181
      %s196 = sphi 0, %s182
      %s200 = sphi 0, %s200
      %s202 = sphi 0, %s200
      %s203 = sphi 0, %s202
      %s217 = sphi 0, %s203
      %s223 = sphi 0, %s225
      %s226 = sphi 0, %s223
      %s227 = sphi 0, %s226
      %s243 = sphi 0, %s227
    $region4: #{cnn_forward.1} parent=1 // loop_header_branch
      %22 = sbr.rel (%p20) target = $region8
    $region5: #{cnn_forward.1} parent=1 // loop_body
      %s24 = ssub.s32 %s19, 1
      %s25 = ssub.s32 %s19, 2
      %s26 = sadd.s32 %s19, 1
      %s27 = ssub.s32 %s19, %s26
      %p28 = scmp.eq.s32.totalorder %s27, 0
      %s30 = sadd.s32 %s29, 1
      %s31 = scalar_select %p28, %s29, %s30
      %p34 = pneg %p28
      %p35 = scmp.eq.s32.totalorder %s19, 1
      %p36 = por %p34, %p35
      %p37 = scmp.ne.s32.totalorder %s29, %s32
      %p38 = scmp.eq.s32.totalorder %s19, 0
      %p39 = por %p37, %p38
      %p40 = scmp.ne.s32.totalorder %s29, %s32
      %p41 = scmp.eq.s32.totalorder %s24, 1
      %p42 = por %p40, %p41
      %p43 = scmp.ne.s32.totalorder %s32, %s33
      %p44 = scmp.eq.s32.totalorder %s24, 0
      %p45 = por %p43, %p44
      %p46 = scmp.ne.s32.totalorder %s32, %s33
      %p47 = scmp.eq.s32.totalorder %s25, 1
      %p48 = por %p46, %p47
      %p50 = scmp.ne.s32.totalorder %s33, %s49
      %p51 = scmp.eq.s32.totalorder %s25, 0
      %p52 = por %p50, %p51
      %s54 = sadd.s32 %s53, 1
      %p57 = scmp.eq.s32.totalorder %s19, 1
      %p58 = scmp.ne.s32.totalorder %s53, %s55
      %p59 = scmp.eq.s32.totalorder %s19, 0
      %p60 = por %p58, %p59
      %p61 = scmp.ne.s32.totalorder %s53, %s55
      %p62 = scmp.eq.s32.totalorder %s24, 1
      %p63 = por %p61, %p62
      %p64 = scmp.ne.s32.totalorder %s55, %s56
      %p65 = scmp.eq.s32.totalorder %s24, 0
      %p66 = por %p64, %p65
      %p67 = scmp.ne.s32.totalorder %s55, %s56
      %p68 = scmp.eq.s32.totalorder %s25, 1
      %p69 = por %p67, %p68
      %p71 = scmp.ne.s32.totalorder %s56, %s70
      %p72 = scmp.eq.s32.totalorder %s25, 0
      %p73 = por %p71, %p72
      %s75 = sadd.s32 %s74, 1
      %p78 = scmp.eq.s32.totalorder %s19, 1
      %p79 = scmp.ne.s32.totalorder %s74, %s76
      %p80 = scmp.eq.s32.totalorder %s19, 0
      %p81 = por %p79, %p80
      %p82 = scmp.ne.s32.totalorder %s74, %s76
      %p83 = scmp.eq.s32.totalorder %s24, 1
      %p84 = por %p82, %p83
      %p85 = scmp.ne.s32.totalorder %s76, %s77
      %p86 = scmp.eq.s32.totalorder %s24, 0
      %p87 = por %p85, %p86
      %p88 = scmp.ne.s32.totalorder %s76, %s77
      %p89 = scmp.eq.s32.totalorder %s25, 1
      %p90 = por %p88, %p89
      %p92 = scmp.ne.s32.totalorder %s77, %s91
      %p93 = scmp.eq.s32.totalorder %s25, 0
      %p94 = por %p92, %p93
      %s96 = sadd.s32 %s95, 1
      %p99 = scmp.eq.s32.totalorder %s19, 1
      %p100 = scmp.ne.s32.totalorder %s95, %s97
      %p101 = scmp.eq.s32.totalorder %s19, 0
      %p102 = por %p100, %p101
      %p103 = scmp.ne.s32.totalorder %s95, %s97
      %p104 = scmp.eq.s32.totalorder %s24, 1
      %p105 = por %p103, %p104
      %p106 = scmp.ne.s32.totalorder %s97, %s98
      %p107 = scmp.eq.s32.totalorder %s24, 0
      %p108 = por %p106, %p107
      %p109 = scmp.ne.s32.totalorder %s97, %s98
      %p110 = scmp.eq.s32.totalorder %s25, 1
      %p111 = por %p109, %p110
      %p113 = scmp.ne.s32.totalorder %s98, %s112
      %p114 = scmp.eq.s32.totalorder %s25, 0
      %p115 = por %p113, %p114
      %s117 = sadd.s32 %s116, 1
      %p120 = scmp.eq.s32.totalorder %s19, 1
      %p121 = scmp.ne.s32.totalorder %s116, %s118
      %p122 = scmp.eq.s32.totalorder %s19, 0
      %p123 = por %p121, %p122
      %p124 = scmp.ne.s32.totalorder %s116, %s118
      %p125 = scmp.eq.s32.totalorder %s24, 1
      %p126 = por %p124, %p125
      %p127 = scmp.ne.s32.totalorder %s118, %s119
      %p128 = scmp.eq.s32.totalorder %s24, 0
      %p129 = por %p127, %p128
      %p130 = scmp.ne.s32.totalorder %s118, %s119
      %p131 = scmp.eq.s32.totalorder %s25, 1
      %p132 = por %p130, %p131
      %p134 = scmp.ne.s32.totalorder %s119, %s133
      %p135 = scmp.eq.s32.totalorder %s25, 0
      %p136 = por %p134, %p135
      %s138 = sadd.s32 %s137, 1
      %p141 = scmp.eq.s32.totalorder %s19, 1
      %p142 = scmp.ne.s32.totalorder %s137, %s139
      %p143 = scmp.eq.s32.totalorder %s19, 0
      %p144 = por %p142, %p143
      %p145 = scmp.ne.s32.totalorder %s137, %s139
      %p146 = scmp.eq.s32.totalorder %s24, 1
      %p147 = por %p145, %p146
      %p148 = scmp.ne.s32.totalorder %s139, %s140
      %p149 = scmp.eq.s32.totalorder %s24, 0
      %p150 = por %p148, %p149
      %p151 = scmp.ne.s32.totalorder %s139, %s140
      %p152 = scmp.eq.s32.totalorder %s25, 1
      %p153 = por %p151, %p152
      %p155 = scmp.ne.s32.totalorder %s140, %s154
      %p156 = scmp.eq.s32.totalorder %s25, 0
      %p157 = por %p155, %p156
      %s159 = sadd.s32 %s158, 1
      %p162 = scmp.eq.s32.totalorder %s19, 1
      %p163 = scmp.ne.s32.totalorder %s158, %s160
      %p164 = scmp.eq.s32.totalorder %s19, 0
      %p165 = por %p163, %p164
      %p166 = scmp.ne.s32.totalorder %s158, %s160
      %p167 = scmp.eq.s32.totalorder %s24, 1
      %p168 = por %p166, %p167
      %p169 = scmp.ne.s32.totalorder %s160, %s161
      %p170 = scmp.eq.s32.totalorder %s24, 0
      %p171 = por %p169, %p170
      %p172 = scmp.ne.s32.totalorder %s160, %s161
      %p173 = scmp.eq.s32.totalorder %s25, 1
      %p174 = por %p172, %p173
      %p176 = scmp.ne.s32.totalorder %s161, %s175
      %p177 = scmp.eq.s32.totalorder %s25, 0
      %p178 = por %p176, %p177
      %s180 = sadd.s32 %s179, 1
      %p183 = scmp.eq.s32.totalorder %s19, 1
      %p184 = scmp.ne.s32.totalorder %s179, %s181
      %p185 = scmp.eq.s32.totalorder %s19, 0
      %p186 = por %p184, %p185
      %p187 = scmp.ne.s32.totalorder %s179, %s181
      %p188 = scmp.eq.s32.totalorder %s24, 1
      %p189 = por %p187, %p188
      %p190 = scmp.ne.s32.totalorder %s181, %s182
      %p191 = scmp.eq.s32.totalorder %s24, 0
      %p192 = por %p190, %p191
      %p193 = scmp.ne.s32.totalorder %s181, %s182
      %p194 = scmp.eq.s32.totalorder %s25, 1
      %p195 = por %p193, %p194
      %p197 = scmp.ne.s32.totalorder %s182, %s196
      %p198 = scmp.eq.s32.totalorder %s25, 0
      %p199 = por %p197, %p198
      %s201 = sadd.s32 %s200, 1
      %p204 = scmp.eq.s32.totalorder %s19, 1
      %p205 = scmp.ne.s32.totalorder %s200, %s202
      %p206 = scmp.eq.s32.totalorder %s19, 0
      %p207 = por %p205, %p206
      %p208 = scmp.ne.s32.totalorder %s200, %s202
      %p209 = scmp.eq.s32.totalorder %s24, 1
      %p210 = por %p208, %p209
      %p211 = scmp.ne.s32.totalorder %s202, %s203
      %p212 = scmp.eq.s32.totalorder %s24, 0
      %p213 = por %p211, %p212
      %p214 = scmp.ne.s32.totalorder %s202, %s203
      %p215 = scmp.eq.s32.totalorder %s25, 1
      %p216 = por %p214, %p215
      %p218 = scmp.ne.s32.totalorder %s203, %s217
      %p219 = scmp.eq.s32.totalorder %s25, 0
      %p220 = por %p218, %p219
      %s221 = ssub.s32 %s19, %s26
      %p222 = scmp.eq.s32.totalorder %s221, 0
      %s224 = sadd.s32 %s223, 1
      %s225 = scalar_select %p222, %s223, %s224
      %p228 = pneg %p222
      %p229 = scmp.eq.s32.totalorder %s19, 1
      %p230 = por %p228, %p229
      %p231 = scmp.ne.s32.totalorder %s223, %s226
      %p232 = scmp.eq.s32.totalorder %s19, 0
      %p233 = por %p231, %p232
      %p234 = scmp.ne.s32.totalorder %s223, %s226
      %p235 = scmp.eq.s32.totalorder %s24, 1
      %p236 = por %p234, %p235
      %p237 = scmp.ne.s32.totalorder %s226, %s227
      %p238 = scmp.eq.s32.totalorder %s24, 0
      %p239 = por %p237, %p238
      %p240 = scmp.ne.s32.totalorder %s226, %s227
      %p241 = scmp.eq.s32.totalorder %s25, 1
      %p242 = por %p240, %p241
      %p244 = scmp.ne.s32.totalorder %s227, %s243
      %p245 = scmp.eq.s32.totalorder %s25, 0
      %p246 = por %p244, %p245
      %p247 = scmp.le.s32.totalorder 1, %s19
      %p248 = scmp.lt.s32.totalorder %s19, 3
      %p249 = pnand %p247, %p248
      %p250 = pneg %p249
      // Predicated region
      $region9: #{cnn_forward.1} parent=5 // pred_check
        _
      $region10: #{cnn_forward.1} parent=5 // pred_check_branch
        %252 = sbr.rel (%p249) target = $region12
      $region11: #{cnn_forward.1} parent=5 // pred_region
        %s253 = ssub.s32 %s19, 1
        // Predicated region
        $region13: #{cnn_forward.1} parent=11 // pred_check
          %p254 = pneg %p66
        $region14: #{cnn_forward.1} parent=11 // pred_check_branch
          %256 = sbr.rel (%p254) target = $region16
        $region15: #{cnn_forward.1} parent=11 // pred_region
          _
        $region16: #{cnn_forward.1} parent=11 // pred_fallthru
          _
        // Predicated region
        $region17: #{cnn_forward.1} parent=11 // pred_check
          %p257 = pneg %p87
        $region18: #{cnn_forward.1} parent=11 // pred_check_branch
          %259 = sbr.rel (%p257) target = $region20
        $region19: #{cnn_forward.1} parent=11 // pred_region
          _
        $region20: #{cnn_forward.1} parent=11 // pred_fallthru
          _
        // Predicated region
        $region21: #{cnn_forward.1} parent=11 // pred_check
          %p260 = pneg %p108
        $region22: #{cnn_forward.1} parent=11 // pred_check_branch
          %262 = sbr.rel (%p260) target = $region24
        $region23: #{cnn_forward.1} parent=11 // pred_region
          _
        $region24: #{cnn_forward.1} parent=11 // pred_fallthru
          _
        // Predicated region
        $region25: #{cnn_forward.1} parent=11 // pred_check
          %p263 = pneg %p129
        $region26: #{cnn_forward.1} parent=11 // pred_check_branch
          %265 = sbr.rel (%p263) target = $region28
        $region27: #{cnn_forward.1} parent=11 // pred_region
          _
        $region28: #{cnn_forward.1} parent=11 // pred_fallthru
          _
        // Predicated region
        $region29: #{cnn_forward.1} parent=11 // pred_check
          %p266 = pneg %p150
        $region30: #{cnn_forward.1} parent=11 // pred_check_branch
          %268 = sbr.rel (%p266) target = $region32
        $region31: #{cnn_forward.1} parent=11 // pred_region
          %s270 = ssub.s32 16384, 16384
          %271 = vsyncadd [#allocation5], %s270
          %s272 = sshll.u32 [#allocation4], 4
          %s273 = int_to_ptr.vmem [resolvable:$true] %s272
          %278 = dma.hbm_to_vmem [thread:$0]  %s5, 16384, %s273, [#allocation5], 64, 64, 4
        $region32: #{cnn_forward.1} parent=11 // pred_fallthru
          _
        // Predicated region
        $region33: #{cnn_forward.1} parent=11 // pred_check
          %p279 = pneg %p171
        $region34: #{cnn_forward.1} parent=11 // pred_check_branch
          %281 = sbr.rel (%p279) target = $region36
        $region35: #{cnn_forward.1} parent=11 // pred_region
          _
        $region36: #{cnn_forward.1} parent=11 // pred_fallthru
          _
        // Predicated region
        $region37: #{cnn_forward.1} parent=11 // pred_check
          %p282 = pneg %p192
        $region38: #{cnn_forward.1} parent=11 // pred_check_branch
          %284 = sbr.rel (%p282) target = $region40
        $region39: #{cnn_forward.1} parent=11 // pred_region
          _
        $region40: #{cnn_forward.1} parent=11 // pred_fallthru
          _
        // Predicated region
        $region41: #{cnn_forward.1} parent=11 // pred_check
          %p285 = pneg %p213
        $region42: #{cnn_forward.1} parent=11 // pred_check_branch
          %287 = sbr.rel (%p285) target = $region44
        $region43: #{cnn_forward.1} parent=11 // pred_region
          _
        $region44: #{cnn_forward.1} parent=11 // pred_fallthru
          _
      $region12: #{cnn_forward.1} parent=5 // pred_fallthru
        _
      %p288 = scmp.lt.s32.totalorder %s19, 2
      // Predicated region
      $region45: #{cnn_forward.1} parent=5 // pred_check
        %p289 = pneg %p288
      $region46: #{cnn_forward.1} parent=5 // pred_check_branch
        %291 = sbr.rel (%p289) target = $region48
      $region47: #{cnn_forward.1} parent=5 // pred_region
        // Predicated region
        $region49: #{cnn_forward.1} parent=47 // pred_check
          %p292 = pneg %p39
        $region50: #{cnn_forward.1} parent=47 // pred_check_branch
          %294 = sbr.rel (%p292) target = $region52
        $region51: #{cnn_forward.1} parent=47 // pred_region
          %p295 = scmp.lt.s32.totalorder %s19, 1
          %s296 = scalar_select %p295, %s19, 1
          %s297 = smul.addr %s296, 32
          %s298 = smul.addr %s297, 4
          %s299 = scalar_lea.vmem %s0, %s298
        $region52: #{cnn_forward.1} parent=47 // pred_fallthru
          _
      $region48: #{cnn_forward.1} parent=5 // pred_fallthru
        _
      %p300 = scmp.le.s32.totalorder 1, %s19
      %p301 = scmp.lt.s32.totalorder %s19, 3
      %p302 = pnand %p300, %p301
      %p303 = pneg %p302
      // Predicated region
      $region53: #{cnn_forward.1} parent=5 // pred_check
        _
      $region54: #{cnn_forward.1} parent=5 // pred_check_branch
        %305 = sbr.rel (%p302) target = $region56
      $region55: #{cnn_forward.1} parent=5 // pred_region
        %s306 = ssub.s32 %s19, 1
        // Predicated region
        $region57: #{cnn_forward.1} parent=55 // pred_check
          %p307 = pneg %p150
        $region58: #{cnn_forward.1} parent=55 // pred_check_branch
          %309 = sbr.rel (%p307) target = $region60
        $region59: #{cnn_forward.1} parent=55 // pred_region
          %310 = dma.done [#allocation5], 16384
        $region60: #{cnn_forward.1} parent=55 // pred_fallthru
          _
        %p311 = scmp.lt.s32.totalorder %s24, 1
        %s312 = scalar_select %p311, %s24, 1
        %s313 = smul.addr %s312, 32
        %s314 = smul.addr %s313, 4
        %s315 = scalar_lea.vmem %s0, %s314
        %p316 = pneg %p45
        %p317 = pneg %p42
        %p318 = pneg %p66
        %p319 = pneg %p63
        %p320 = pneg %p87
        %p321 = pneg %p84
        %p322 = pneg %p108
        %p323 = pneg %p105
        %p324 = pneg %p129
        %p325 = pneg %p126
        %p326 = pneg %p150
        %p327 = pneg %p147
        %p328 = pneg %p171
        %p329 = pneg %p168
        %p330 = pneg %p192
        %p331 = pneg %p189
        %p332 = pneg %p213
        %p333 = pneg %p210
        %p334 = pneg %p239
        %p335 = pneg %p236
        %s336 = sand.u32 %s226, 1
        %s337 = scalar_lea.sflag [#allocation6], %s336
        %s338 = sand.u32 %s226, 1
        %s339 = scalar_lea.vmem [#allocation7], %s338
        %p340 = scmp.lt.s32.totalorder %s24, 1
        %s341 = scalar_select %p340, %s24, 1
        %s342 = smul.addr %s341, 32
        %s343 = smul.addr %s342, 4
        %s344 = scalar_lea.vmem %s0, %s343
        %vm346 = vcmask 19456
        %347 = vst.msk [vmem:[#allocation2] sm:$0xf] %vm346, 0
        %348 = vst.msk [vmem:[#allocation2 + $0x4] sm:$0xf] %vm346, 0
        %vm349 = vcmask 16384
        %350 = vst.msk [vmem:[#allocation2 + $0x8] sm:$0x1] %vm349, 0
        %s351 = scalar_lea.vmem [#allocation2], 204
        %352 = vst.msk [vmem:[%s351] sm:$0xf] %vm346, 0
        %353 = vst.msk [vmem:[%s351 + $0x4] sm:$0xf] %vm346, 0
        %354 = vst.msk [vmem:[%s351 + $0x8] sm:$0x1] %vm349, 0
        %s355 = scalar_lea.vmem [#allocation2], 12
        %vm356 = vcmask 16384
        %vm357 = vsmask.f32 256
        %vm358 = vmand %vm356, %vm357
        %v359 = vld [vmem:[%s355] sm:$0x1]
        %v360 = vsel %vm358, 0, %v359
        %361 = vst [vmem:[%s355] sm:$0x1] %v360
        %v362 = vld [vmem:[%s355 + $0xc] sm:$0x1]
        %v363 = vsel %vm358, 0, %v362
        %364 = vst [vmem:[%s355 + $0xc] sm:$0x1] %v363
        %v365 = vld [vmem:[%s355 + $0x18] sm:$0x1]
        %v366 = vsel %vm358, 0, %v365
        %367 = vst [vmem:[%s355 + $0x18] sm:$0x1] %v366
        %v368 = vld [vmem:[%s355 + $0x24] sm:$0x1]
        %v369 = vsel %vm358, 0, %v368
        %370 = vst [vmem:[%s355 + $0x24] sm:$0x1] %v369
        %v371 = vld [vmem:[%s355 + $0x30] sm:$0x1]
        %v372 = vsel %vm358, 0, %v371
        %373 = vst [vmem:[%s355 + $0x30] sm:$0x1] %v372
        %v374 = vld [vmem:[%s355 + $0x3c] sm:$0x1]
        %v375 = vsel %vm358, 0, %v374
        %376 = vst [vmem:[%s355 + $0x3c] sm:$0x1] %v375
        %v377 = vld [vmem:[%s355 + $0x48] sm:$0x1]
        %v378 = vsel %vm358, 0, %v377
        %379 = vst [vmem:[%s355 + $0x48] sm:$0x1] %v378
        %v380 = vld [vmem:[%s355 + $0x54] sm:$0x1]
        %v381 = vsel %vm358, 0, %v380
        %382 = vst [vmem:[%s355 + $0x54] sm:$0x1] %v381
        %v383 = vld [vmem:[%s355 + $0x60] sm:$0x1]
        %v384 = vsel %vm358, 0, %v383
        %385 = vst [vmem:[%s355 + $0x60] sm:$0x1] %v384
        %v386 = vld [vmem:[%s355 + $0x6c] sm:$0x1]
        %v387 = vsel %vm358, 0, %v386
        %388 = vst [vmem:[%s355 + $0x6c] sm:$0x1] %v387
        %v389 = vld [vmem:[%s355 + $0x78] sm:$0x1]
        %v390 = vsel %vm358, 0, %v389
        %391 = vst [vmem:[%s355 + $0x78] sm:$0x1] %v390
        %v392 = vld [vmem:[%s355 + $0x84] sm:$0x1]
        %v393 = vsel %vm358, 0, %v392
        %394 = vst [vmem:[%s355 + $0x84] sm:$0x1] %v393
        %v395 = vld [vmem:[%s355 + $0x90] sm:$0x1]
        %v396 = vsel %vm358, 0, %v395
        %397 = vst [vmem:[%s355 + $0x90] sm:$0x1] %v396
        %v398 = vld [vmem:[%s355 + $0x9c] sm:$0x1]
        %v399 = vsel %vm358, 0, %v398
        %400 = vst [vmem:[%s355 + $0x9c] sm:$0x1] %v399
        %v401 = vld [vmem:[%s355 + $0xa8] sm:$0x1]
        %v402 = vsel %vm358, 0, %v401
        %403 = vst [vmem:[%s355 + $0xa8] sm:$0x1] %v402
        %v404 = vld [vmem:[%s355 + $0xb4] sm:$0x1]
        %v405 = vsel %vm358, 0, %v404
        %406 = vst [vmem:[%s355 + $0xb4] sm:$0x1] %v405
        %vm407 = vsmask.f32 7938
        %vm408 = vmand %vm356, %vm407
        %v409 = vld [vmem:[%s355 + $0x8] sm:$0x1]
        %v410 = vsel %vm408, 0, %v409
        %411 = vst [vmem:[%s355 + $0x8] sm:$0x1] %v410
        %v412 = vld [vmem:[%s355 + $0x14] sm:$0x1]
        %v413 = vsel %vm408, 0, %v412
        %414 = vst [vmem:[%s355 + $0x14] sm:$0x1] %v413
        %v415 = vld [vmem:[%s355 + $0x20] sm:$0x1]
        %v416 = vsel %vm408, 0, %v415
        %417 = vst [vmem:[%s355 + $0x20] sm:$0x1] %v416
        %v418 = vld [vmem:[%s355 + $0x2c] sm:$0x1]
        %v419 = vsel %vm408, 0, %v418
        %420 = vst [vmem:[%s355 + $0x2c] sm:$0x1] %v419
        %v421 = vld [vmem:[%s355 + $0x38] sm:$0x1]
        %v422 = vsel %vm408, 0, %v421
        %423 = vst [vmem:[%s355 + $0x38] sm:$0x1] %v422
        %v424 = vld [vmem:[%s355 + $0x44] sm:$0x1]
        %v425 = vsel %vm408, 0, %v424
        %426 = vst [vmem:[%s355 + $0x44] sm:$0x1] %v425
        %v427 = vld [vmem:[%s355 + $0x50] sm:$0x1]
        %v428 = vsel %vm408, 0, %v427
        %429 = vst [vmem:[%s355 + $0x50] sm:$0x1] %v428
        %v430 = vld [vmem:[%s355 + $0x5c] sm:$0x1]
        %v431 = vsel %vm408, 0, %v430
        %432 = vst [vmem:[%s355 + $0x5c] sm:$0x1] %v431
        %v433 = vld [vmem:[%s355 + $0x68] sm:$0x1]
        %v434 = vsel %vm408, 0, %v433
        %435 = vst [vmem:[%s355 + $0x68] sm:$0x1] %v434
        %v436 = vld [vmem:[%s355 + $0x74] sm:$0x1]
        %v437 = vsel %vm408, 0, %v436
        %438 = vst [vmem:[%s355 + $0x74] sm:$0x1] %v437
        %v439 = vld [vmem:[%s355 + $0x80] sm:$0x1]
        %v440 = vsel %vm408, 0, %v439
        %441 = vst [vmem:[%s355 + $0x80] sm:$0x1] %v440
        %v442 = vld [vmem:[%s355 + $0x8c] sm:$0x1]
        %v443 = vsel %vm408, 0, %v442
        %444 = vst [vmem:[%s355 + $0x8c] sm:$0x1] %v443
        %v445 = vld [vmem:[%s355 + $0x98] sm:$0x1]
        %v446 = vsel %vm408, 0, %v445
        %447 = vst [vmem:[%s355 + $0x98] sm:$0x1] %v446
        %v448 = vld [vmem:[%s355 + $0xa4] sm:$0x1]
        %v449 = vsel %vm408, 0, %v448
        %450 = vst [vmem:[%s355 + $0xa4] sm:$0x1] %v449
        %v451 = vld [vmem:[%s355 + $0xb0] sm:$0x1]
        %v452 = vsel %vm408, 0, %v451
        %453 = vst [vmem:[%s355 + $0xb0] sm:$0x1] %v452
        %v454 = vld [vmem:[%s355 + $0xbc] sm:$0x1]
        %v455 = vsel %vm408, 0, %v454
        %456 = vst [vmem:[%s355 + $0xbc] sm:$0x1] %v455
        %v457 = vld [vmem:[%s344] sm:$0xf]
        %v458 = vld [vmem:[%s344 + $0x4] sm:$0xf]
        %v459 = vld [vmem:[%s344 + $0x8] sm:$0xf]
        %v460 = vld [vmem:[%s344 + $0xc] sm:$0xf]
        %v461 = vld [vmem:[%s344 + $0x10] sm:$0xf]
        %v462 = vld [vmem:[%s344 + $0x14] sm:$0xf]
        %v463 = vld [vmem:[%s344 + $0x18] sm:$0xf]
        %v464 = vld [vmem:[%s344 + $0x1c] sm:$0xf]
        %v465 = vld [vmem:[%s344 + $0x20] sm:$0xf]
        %v466 = vld [vmem:[%s344 + $0x24] sm:$0xf]
        %v467 = vld [vmem:[%s344 + $0x28] sm:$0xf]
        %v468 = vld [vmem:[%s344 + $0x2c] sm:$0xf]
        %v469 = vld [vmem:[%s344 + $0x30] sm:$0xf]
        %v470 = vld [vmem:[%s344 + $0x34] sm:$0xf]
        %v471 = vld [vmem:[%s344 + $0x38] sm:$0xf]
        %v472 = vld [vmem:[%s344 + $0x3c] sm:$0xf]
        %v473 = vld [vmem:[%s344 + $0x40] sm:$0xf]
        %v474 = vld [vmem:[%s344 + $0x44] sm:$0xf]
        %v475 = vld [vmem:[%s344 + $0x48] sm:$0xf]
        %v476 = vld [vmem:[%s344 + $0x4c] sm:$0xf]
        %v477 = vld [vmem:[%s344 + $0x50] sm:$0xf]
        %v478 = vld [vmem:[%s344 + $0x54] sm:$0xf]
        %v479 = vld [vmem:[%s344 + $0x58] sm:$0xf]
        %v480 = vld [vmem:[%s344 + $0x5c] sm:$0xf]
        %v481 = vld [vmem:[%s344 + $0x60] sm:$0xf]
        %v482 = vld [vmem:[%s344 + $0x64] sm:$0xf]
        %v483 = vld [vmem:[%s344 + $0x68] sm:$0xf]
        %v484 = vld [vmem:[%s344 + $0x6c] sm:$0xf]
        %v485 = vld [vmem:[%s344 + $0x70] sm:$0xf]
        %v486 = vld [vmem:[%s344 + $0x74] sm:$0xf]
        %v487 = vld [vmem:[%s344 + $0x78] sm:$0xf]
        %v488 = vld [vmem:[%s344 + $0x7c] sm:$0xf]
        %vm489 = vsmask.f32 4368
        %vm490 = vmor %vm357, %vm489
        %v492 = vshrl.u32 %v457, 16
        %v494 = vrot.slane %v492, 7
        %v495 = vshll.u32 %v457, 16
        %v497 = vor.u32 %v494, %v495
        %v498 = vrot.slane %v494, 4
        %v500 = vshrl.u32 %v458, 16
        %v502 = vrot.slane %v500, 7
        %v503 = vshll.u32 %v458, 16
        %v505 = vor.u32 %v502, %v503
        %v506 = vsel %vm490, %v498, %v505
        %v507 = vrot.slane %v502, 4
        %v509 = vshrl.u32 %v459, 16
        %v511 = vrot.slane %v509, 7
        %v512 = vshll.u32 %v459, 16
        %v514 = vor.u32 %v511, %v512
        %v515 = vrot.slane %v511, 4
        %v517 = vshrl.u32 %v460, 16
        %v519 = vrot.slane %v517, 7
        %v520 = vshll.u32 %v460, 16
        %v522 = vor.u32 %v519, %v520
        %v523 = vsel %vm490, %v515, %v522
        %v524 = vrot.slane %v519, 4
        %v526 = vshrl.u32 %v461, 16
        %v528 = vrot.slane %v526, 7
        %v529 = vshll.u32 %v461, 16
        %v531 = vor.u32 %v528, %v529
        %v532 = vrot.slane %v528, 4
        %v534 = vshrl.u32 %v462, 16
        %v536 = vrot.slane %v534, 7
        %v537 = vshll.u32 %v462, 16
        %v539 = vor.u32 %v536, %v537
        %v540 = vsel %vm490, %v532, %v539
        %v541 = vrot.slane %v536, 4
        %v543 = vshrl.u32 %v463, 16
        %v545 = vrot.slane %v543, 7
        %v546 = vshll.u32 %v463, 16
        %v548 = vor.u32 %v545, %v546
        %v549 = vrot.slane %v545, 4
        %v551 = vshrl.u32 %v464, 16
        %v553 = vrot.slane %v551, 7
        %v554 = vshll.u32 %v464, 16
        %v556 = vor.u32 %v553, %v554
        %v557 = vsel %vm490, %v549, %v556
        %v558 = vrot.slane %v553, 4
        %v560 = vshrl.u32 %v465, 16
        %v562 = vrot.slane %v560, 7
        %v563 = vshll.u32 %v465, 16
        %v565 = vor.u32 %v562, %v563
        %v566 = vrot.slane %v562, 4
        %v568 = vshrl.u32 %v466, 16
        %v570 = vrot.slane %v568, 7
        %v571 = vshll.u32 %v466, 16
        %v573 = vor.u32 %v570, %v571
        %v574 = vsel %vm490, %v566, %v573
        %v575 = vrot.slane %v570, 4
        %v577 = vshrl.u32 %v467, 16
        %v579 = vrot.slane %v577, 7
        %v580 = vshll.u32 %v467, 16
        %v582 = vor.u32 %v579, %v580
        %v583 = vrot.slane %v579, 4
        %v585 = vshrl.u32 %v468, 16
        %v587 = vrot.slane %v585, 7
        %v588 = vshll.u32 %v468, 16
        %v590 = vor.u32 %v587, %v588
        %v591 = vsel %vm490, %v583, %v590
        %v592 = vrot.slane %v587, 4
        %v594 = vshrl.u32 %v469, 16
        %v596 = vrot.slane %v594, 7
        %v597 = vshll.u32 %v469, 16
        %v599 = vor.u32 %v596, %v597
        %v600 = vrot.slane %v596, 4
        %v602 = vshrl.u32 %v470, 16
        %v604 = vrot.slane %v602, 7
        %v605 = vshll.u32 %v470, 16
        %v607 = vor.u32 %v604, %v605
        %v608 = vsel %vm490, %v600, %v607
        %v609 = vrot.slane %v604, 4
        %v611 = vshrl.u32 %v471, 16
        %v613 = vrot.slane %v611, 7
        %v614 = vshll.u32 %v471, 16
        %v616 = vor.u32 %v613, %v614
        %v617 = vrot.slane %v613, 4
        %v619 = vshrl.u32 %v472, 16
        %v621 = vrot.slane %v619, 7
        %v622 = vshll.u32 %v472, 16
        %v624 = vor.u32 %v621, %v622
        %v625 = vsel %vm490, %v617, %v624
        %v626 = vrot.slane %v621, 4
        %v628 = vshrl.u32 %v473, 16
        %v630 = vrot.slane %v628, 7
        %v631 = vshll.u32 %v473, 16
        %v633 = vor.u32 %v630, %v631
        %v634 = vrot.slane %v630, 4
        %v636 = vshrl.u32 %v474, 16
        %v638 = vrot.slane %v636, 7
        %v639 = vshll.u32 %v474, 16
        %v641 = vor.u32 %v638, %v639
        %v642 = vsel %vm490, %v634, %v641
        %v643 = vrot.slane %v638, 4
        %v645 = vshrl.u32 %v475, 16
        %v647 = vrot.slane %v645, 7
        %v648 = vshll.u32 %v475, 16
        %v650 = vor.u32 %v647, %v648
        %v651 = vrot.slane %v647, 4
        %v653 = vshrl.u32 %v476, 16
        %v655 = vrot.slane %v653, 7
        %v656 = vshll.u32 %v476, 16
        %v658 = vor.u32 %v655, %v656
        %v659 = vsel %vm490, %v651, %v658
        %v660 = vrot.slane %v655, 4
        %v662 = vshrl.u32 %v477, 16
        %v664 = vrot.slane %v662, 7
        %v665 = vshll.u32 %v477, 16
        %v667 = vor.u32 %v664, %v665
        %v668 = vrot.slane %v664, 4
        %v670 = vshrl.u32 %v478, 16
        %v672 = vrot.slane %v670, 7
        %v673 = vshll.u32 %v478, 16
        %v675 = vor.u32 %v672, %v673
        %v676 = vsel %vm490, %v668, %v675
        %v677 = vrot.slane %v672, 4
        %v679 = vshrl.u32 %v479, 16
        %v681 = vrot.slane %v679, 7
        %v682 = vshll.u32 %v479, 16
        %v684 = vor.u32 %v681, %v682
        %v685 = vrot.slane %v681, 4
        %v687 = vshrl.u32 %v480, 16
        %v689 = vrot.slane %v687, 7
        %v690 = vshll.u32 %v480, 16
        %v692 = vor.u32 %v689, %v690
        %v693 = vsel %vm490, %v685, %v692
        %v694 = vrot.slane %v689, 4
        %v696 = vshrl.u32 %v481, 16
        %v698 = vrot.slane %v696, 7
        %v699 = vshll.u32 %v481, 16
        %v701 = vor.u32 %v698, %v699
        %v702 = vrot.slane %v698, 4
        %v704 = vshrl.u32 %v482, 16
        %v706 = vrot.slane %v704, 7
        %v707 = vshll.u32 %v482, 16
        %v709 = vor.u32 %v706, %v707
        %v710 = vsel %vm490, %v702, %v709
        %v711 = vrot.slane %v706, 4
        %v713 = vshrl.u32 %v483, 16
        %v715 = vrot.slane %v713, 7
        %v716 = vshll.u32 %v483, 16
        %v718 = vor.u32 %v715, %v716
        %v719 = vrot.slane %v715, 4
        %v721 = vshrl.u32 %v484, 16
        %v723 = vrot.slane %v721, 7
        %v724 = vshll.u32 %v484, 16
        %v726 = vor.u32 %v723, %v724
        %v727 = vsel %vm490, %v719, %v726
        %v728 = vrot.slane %v723, 4
        %v730 = vshrl.u32 %v485, 16
        %v732 = vrot.slane %v730, 7
        %v733 = vshll.u32 %v485, 16
        %v735 = vor.u32 %v732, %v733
        %v736 = vrot.slane %v732, 4
        %v738 = vshrl.u32 %v486, 16
        %v740 = vrot.slane %v738, 7
        %v741 = vshll.u32 %v486, 16
        %v743 = vor.u32 %v740, %v741
        %v744 = vsel %vm490, %v736, %v743
        %v745 = vrot.slane %v740, 4
        %v747 = vshrl.u32 %v487, 16
        %v749 = vrot.slane %v747, 7
        %v750 = vshll.u32 %v487, 16
        %v752 = vor.u32 %v749, %v750
        %v753 = vrot.slane %v749, 4
        %v755 = vshrl.u32 %v488, 16
        %v757 = vrot.slane %v755, 7
        %v758 = vshll.u32 %v488, 16
        %v760 = vor.u32 %v757, %v758
        %v761 = vsel %vm490, %v753, %v760
        %v762 = vrot.slane %v757, 4
        %vm811 = vcmask 19456
        %vm812 = vmand %vm811, %vm407
        %v813 = vld [vmem:[%s355] sm:$0xf]
        %v814 = vsel %vm812, %v497, %v813
        %815 = vst [vmem:[%s355] sm:$0xf] %v814
        %816 = vst.msk [vmem:[%s355 + $0x4] sm:$0xf] %vm346, %v506
        %v817 = vld [vmem:[%s355 + $0x8] sm:$0x1]
        %v818 = vsel %vm358, %v507, %v817
        %819 = vst [vmem:[%s355 + $0x8] sm:$0x1] %v818
        %v820 = vld [vmem:[%s355 + $0xc] sm:$0xf]
        %v821 = vsel %vm812, %v514, %v820
        %822 = vst [vmem:[%s355 + $0xc] sm:$0xf] %v821
        %823 = vst.msk [vmem:[%s355 + $0x10] sm:$0xf] %vm346, %v523
        %v824 = vld [vmem:[%s355 + $0x14] sm:$0x1]
        %v825 = vsel %vm358, %v524, %v824
        %826 = vst [vmem:[%s355 + $0x14] sm:$0x1] %v825
        %v827 = vld [vmem:[%s355 + $0x18] sm:$0xf]
        %v828 = vsel %vm812, %v531, %v827
        %829 = vst [vmem:[%s355 + $0x18] sm:$0xf] %v828
        %830 = vst.msk [vmem:[%s355 + $0x1c] sm:$0xf] %vm346, %v540
        %v831 = vld [vmem:[%s355 + $0x20] sm:$0x1]
        %v832 = vsel %vm358, %v541, %v831
        %833 = vst [vmem:[%s355 + $0x20] sm:$0x1] %v832
        %v834 = vld [vmem:[%s355 + $0x24] sm:$0xf]
        %v835 = vsel %vm812, %v548, %v834
        %836 = vst [vmem:[%s355 + $0x24] sm:$0xf] %v835
        %837 = vst.msk [vmem:[%s355 + $0x28] sm:$0xf] %vm346, %v557
        %v838 = vld [vmem:[%s355 + $0x2c] sm:$0x1]
        %v839 = vsel %vm358, %v558, %v838
        %840 = vst [vmem:[%s355 + $0x2c] sm:$0x1] %v839
        %v841 = vld [vmem:[%s355 + $0x30] sm:$0xf]
        %v842 = vsel %vm812, %v565, %v841
        %843 = vst [vmem:[%s355 + $0x30] sm:$0xf] %v842
        %844 = vst.msk [vmem:[%s355 + $0x34] sm:$0xf] %vm346, %v574
        %v845 = vld [vmem:[%s355 + $0x38] sm:$0x1]
        %v846 = vsel %vm358, %v575, %v845
        %847 = vst [vmem:[%s355 + $0x38] sm:$0x1] %v846
        %v848 = vld [vmem:[%s355 + $0x3c] sm:$0xf]
        %v849 = vsel %vm812, %v582, %v848
        %850 = vst [vmem:[%s355 + $0x3c] sm:$0xf] %v849
        %851 = vst.msk [vmem:[%s355 + $0x40] sm:$0xf] %vm346, %v591
        %v852 = vld [vmem:[%s355 + $0x44] sm:$0x1]
        %v853 = vsel %vm358, %v592, %v852
        %854 = vst [vmem:[%s355 + $0x44] sm:$0x1] %v853
        %v855 = vld [vmem:[%s355 + $0x48] sm:$0xf]
        %v856 = vsel %vm812, %v599, %v855
        %857 = vst [vmem:[%s355 + $0x48] sm:$0xf] %v856
        %858 = vst.msk [vmem:[%s355 + $0x4c] sm:$0xf] %vm346, %v608
        %v859 = vld [vmem:[%s355 + $0x50] sm:$0x1]
        %v860 = vsel %vm358, %v609, %v859
        %861 = vst [vmem:[%s355 + $0x50] sm:$0x1] %v860
        %v862 = vld [vmem:[%s355 + $0x54] sm:$0xf]
        %v863 = vsel %vm812, %v616, %v862
        %864 = vst [vmem:[%s355 + $0x54] sm:$0xf] %v863
        %865 = vst.msk [vmem:[%s355 + $0x58] sm:$0xf] %vm346, %v625
        %v866 = vld [vmem:[%s355 + $0x5c] sm:$0x1]
        %v867 = vsel %vm358, %v626, %v866
        %868 = vst [vmem:[%s355 + $0x5c] sm:$0x1] %v867
        %v869 = vld [vmem:[%s355 + $0x60] sm:$0xf]
        %v870 = vsel %vm812, %v633, %v869
        %871 = vst [vmem:[%s355 + $0x60] sm:$0xf] %v870
        %872 = vst.msk [vmem:[%s355 + $0x64] sm:$0xf] %vm346, %v642
        %v873 = vld [vmem:[%s355 + $0x68] sm:$0x1]
        %v874 = vsel %vm358, %v643, %v873
        %875 = vst [vmem:[%s355 + $0x68] sm:$0x1] %v874
        %v876 = vld [vmem:[%s355 + $0x6c] sm:$0xf]
        %v877 = vsel %vm812, %v650, %v876
        %878 = vst [vmem:[%s355 + $0x6c] sm:$0xf] %v877
        %879 = vst.msk [vmem:[%s355 + $0x70] sm:$0xf] %vm346, %v659
        %v880 = vld [vmem:[%s355 + $0x74] sm:$0x1]
        %v881 = vsel %vm358, %v660, %v880
        %882 = vst [vmem:[%s355 + $0x74] sm:$0x1] %v881
        %v883 = vld [vmem:[%s355 + $0x78] sm:$0xf]
        %v884 = vsel %vm812, %v667, %v883
        %885 = vst [vmem:[%s355 + $0x78] sm:$0xf] %v884
        %886 = vst.msk [vmem:[%s355 + $0x7c] sm:$0xf] %vm346, %v676
        %v887 = vld [vmem:[%s355 + $0x80] sm:$0x1]
        %v888 = vsel %vm358, %v677, %v887
        %889 = vst [vmem:[%s355 + $0x80] sm:$0x1] %v888
        %v890 = vld [vmem:[%s355 + $0x84] sm:$0xf]
        %v891 = vsel %vm812, %v684, %v890
        %892 = vst [vmem:[%s355 + $0x84] sm:$0xf] %v891
        %893 = vst.msk [vmem:[%s355 + $0x88] sm:$0xf] %vm346, %v693
        %v894 = vld [vmem:[%s355 + $0x8c] sm:$0x1]
        %v895 = vsel %vm358, %v694, %v894
        %896 = vst [vmem:[%s355 + $0x8c] sm:$0x1] %v895
        %v897 = vld [vmem:[%s355 + $0x90] sm:$0xf]
        %v898 = vsel %vm812, %v701, %v897
        %899 = vst [vmem:[%s355 + $0x90] sm:$0xf] %v898
        %900 = vst.msk [vmem:[%s355 + $0x94] sm:$0xf] %vm346, %v710
        %v901 = vld [vmem:[%s355 + $0x98] sm:$0x1]
        %v902 = vsel %vm358, %v711, %v901
        %903 = vst [vmem:[%s355 + $0x98] sm:$0x1] %v902
        %v904 = vld [vmem:[%s355 + $0x9c] sm:$0xf]
        %v905 = vsel %vm812, %v718, %v904
        %906 = vst [vmem:[%s355 + $0x9c] sm:$0xf] %v905
        %907 = vst.msk [vmem:[%s355 + $0xa0] sm:$0xf] %vm346, %v727
        %v908 = vld [vmem:[%s355 + $0xa4] sm:$0x1]
        %v909 = vsel %vm358, %v728, %v908
        %910 = vst [vmem:[%s355 + $0xa4] sm:$0x1] %v909
        %v911 = vld [vmem:[%s355 + $0xa8] sm:$0xf]
        %v912 = vsel %vm812, %v735, %v911
        %913 = vst [vmem:[%s355 + $0xa8] sm:$0xf] %v912
        %914 = vst.msk [vmem:[%s355 + $0xac] sm:$0xf] %vm346, %v744
        %v915 = vld [vmem:[%s355 + $0xb0] sm:$0x1]
        %v916 = vsel %vm358, %v745, %v915
        %917 = vst [vmem:[%s355 + $0xb0] sm:$0x1] %v916
        %v918 = vld [vmem:[%s355 + $0xb4] sm:$0xf]
        %v919 = vsel %vm812, %v752, %v918
        %920 = vst [vmem:[%s355 + $0xb4] sm:$0xf] %v919
        %921 = vst.msk [vmem:[%s355 + $0xb8] sm:$0xf] %vm346, %v761
        %v922 = vld [vmem:[%s355 + $0xbc] sm:$0x1]
        %v923 = vsel %vm358, %v762, %v922
        %924 = vst [vmem:[%s355 + $0xbc] sm:$0x1] %v923
        %v925 = vld [vmem:[#allocation2] sm:$0xf]
        %v926 = vld [vmem:[#allocation2 + $0x4] sm:$0xf]
        %v927 = vld [vmem:[#allocation2 + $0xc] sm:$0xf]
        %v928 = vld [vmem:[#allocation2 + $0x10] sm:$0xf]
        %v929 = vld [vmem:[#allocation2 + $0x18] sm:$0xf]
        %v930 = vld [vmem:[#allocation2 + $0x1c] sm:$0xf]
        %v931 = vld [vmem:[#allocation2 + $0x24] sm:$0xf]
        %v932 = vld [vmem:[#allocation2 + $0x28] sm:$0xf]
        %v933 = vld [vmem:[#allocation2 + $0x30] sm:$0xf]
        %v934 = vld [vmem:[#allocation2 + $0x34] sm:$0xf]
        %v935 = vld [vmem:[#allocation2 + $0x3c] sm:$0xf]
        %v936 = vld [vmem:[#allocation2 + $0x40] sm:$0xf]
        %v937 = vld [vmem:[#allocation2 + $0x48] sm:$0xf]
        %v938 = vld [vmem:[#allocation2 + $0x4c] sm:$0xf]
        %v939 = vld [vmem:[#allocation2 + $0x54] sm:$0xf]
        %v940 = vld [vmem:[#allocation2 + $0x58] sm:$0xf]
        %v941 = vld [vmem:[#allocation2 + $0x60] sm:$0xf]
        %v942 = vld [vmem:[#allocation2 + $0x64] sm:$0xf]
        %v943 = vld [vmem:[#allocation2 + $0x6c] sm:$0xf]
        %v944 = vld [vmem:[#allocation2 + $0x70] sm:$0xf]
        %v945 = vld [vmem:[#allocation2 + $0x78] sm:$0xf]
        %v946 = vld [vmem:[#allocation2 + $0x7c] sm:$0xf]
        %v947 = vld [vmem:[#allocation2 + $0x84] sm:$0xf]
        %v948 = vld [vmem:[#allocation2 + $0x88] sm:$0xf]
        %v949 = vld [vmem:[#allocation2 + $0x90] sm:$0xf]
        %v950 = vld [vmem:[#allocation2 + $0x94] sm:$0xf]
        %v951 = vld [vmem:[#allocation2 + $0x9c] sm:$0xf]
        %v952 = vld [vmem:[#allocation2 + $0xa0] sm:$0xf]
        %v953 = vld [vmem:[#allocation2 + $0xa8] sm:$0xf]
        %v954 = vld [vmem:[#allocation2 + $0xac] sm:$0xf]
        %v955 = vld [vmem:[#allocation2 + $0xb4] sm:$0xf]
        %v956 = vld [vmem:[#allocation2 + $0xb8] sm:$0xf]
        %v957 = vld [vmem:[#allocation2 + $0x8] sm:$0x1]
        %v958 = vld [vmem:[#allocation2 + $0x14] sm:$0x1]
        %v959 = vld [vmem:[#allocation2 + $0x20] sm:$0x1]
        %v960 = vld [vmem:[#allocation2 + $0x2c] sm:$0x1]
        %v961 = vld [vmem:[#allocation2 + $0x38] sm:$0x1]
        %v962 = vld [vmem:[#allocation2 + $0x44] sm:$0x1]
        %v963 = vld [vmem:[#allocation2 + $0x50] sm:$0x1]
        %v964 = vld [vmem:[#allocation2 + $0x5c] sm:$0x1]
        %v965 = vld [vmem:[#allocation2 + $0x68] sm:$0x1]
        %v966 = vld [vmem:[#allocation2 + $0x74] sm:$0x1]
        %v967 = vld [vmem:[#allocation2 + $0x80] sm:$0x1]
        %v968 = vld [vmem:[#allocation2 + $0x8c] sm:$0x1]
        %v969 = vld [vmem:[#allocation2 + $0x98] sm:$0x1]
        %v970 = vld [vmem:[#allocation2 + $0xa4] sm:$0x1]
        %v971 = vld [vmem:[#allocation2 + $0xb0] sm:$0x1]
        %v972 = vld [vmem:[#allocation2 + $0xbc] sm:$0x1]
        %v973 = vld [vmem:[#allocation2] sm:$0xe]
        %v974 = vld [vmem:[#allocation2 + $0xc] sm:$0xe]
        %v975 = vld [vmem:[#allocation2 + $0x18] sm:$0xe]
        %v976 = vld [vmem:[#allocation2 + $0x24] sm:$0xe]
        %v977 = vld [vmem:[#allocation2 + $0x30] sm:$0xe]
        %v978 = vld [vmem:[#allocation2 + $0x3c] sm:$0xe]
        %v979 = vld [vmem:[#allocation2 + $0x48] sm:$0xe]
        %v980 = vld [vmem:[#allocation2 + $0x54] sm:$0xe]
        %v981 = vld [vmem:[#allocation2 + $0x60] sm:$0xe]
        %v982 = vld [vmem:[#allocation2 + $0x6c] sm:$0xe]
        %v983 = vld [vmem:[#allocation2 + $0x78] sm:$0xe]
        %v984 = vld [vmem:[#allocation2 + $0x84] sm:$0xe]
        %v985 = vld [vmem:[#allocation2 + $0x90] sm:$0xe]
        %v986 = vld [vmem:[#allocation2 + $0x9c] sm:$0xe]
        %v987 = vld [vmem:[#allocation2 + $0xa8] sm:$0xe]
        %v988 = vld [vmem:[#allocation2 + $0xb4] sm:$0xe]
        %v989 = vld [vmem:[%s355] sm:$0xf]
        %v990 = vld [vmem:[%s355 + $0x4] sm:$0xf]
        %v991 = vld [vmem:[%s355 + $0xc] sm:$0xf]
        %v992 = vld [vmem:[%s355 + $0x10] sm:$0xf]
        %v993 = vld [vmem:[%s355 + $0x18] sm:$0xf]
        %v994 = vld [vmem:[%s355 + $0x1c] sm:$0xf]
        %v995 = vld [vmem:[%s355 + $0x24] sm:$0xf]
        %v996 = vld [vmem:[%s355 + $0x28] sm:$0xf]
        %v997 = vld [vmem:[%s355 + $0x30] sm:$0xf]
        %v998 = vld [vmem:[%s355 + $0x34] sm:$0xf]
        %v999 = vld [vmem:[%s355 + $0x3c] sm:$0xf]
        %v1000 = vld [vmem:[%s355 + $0x40] sm:$0xf]
        %v1001 = vld [vmem:[%s355 + $0x48] sm:$0xf]
        %v1002 = vld [vmem:[%s355 + $0x4c] sm:$0xf]
        %v1003 = vld [vmem:[%s355 + $0x54] sm:$0xf]
        %v1004 = vld [vmem:[%s355 + $0x58] sm:$0xf]
        %v1005 = vld [vmem:[%s355 + $0x60] sm:$0xf]
        %v1006 = vld [vmem:[%s355 + $0x64] sm:$0xf]
        %v1007 = vld [vmem:[%s355 + $0x6c] sm:$0xf]
        %v1008 = vld [vmem:[%s355 + $0x70] sm:$0xf]
        %v1009 = vld [vmem:[%s355 + $0x78] sm:$0xf]
        %v1010 = vld [vmem:[%s355 + $0x7c] sm:$0xf]
        %v1011 = vld [vmem:[%s355 + $0x84] sm:$0xf]
        %v1012 = vld [vmem:[%s355 + $0x88] sm:$0xf]
        %v1013 = vld [vmem:[%s355 + $0x90] sm:$0xf]
        %v1014 = vld [vmem:[%s355 + $0x94] sm:$0xf]
        %v1015 = vld [vmem:[%s355 + $0x9c] sm:$0xf]
        %v1016 = vld [vmem:[%s355 + $0xa0] sm:$0xf]
        %v1017 = vld [vmem:[%s355 + $0xa8] sm:$0xf]
        %v1018 = vld [vmem:[%s355 + $0xac] sm:$0xf]
        %v1019 = vld [vmem:[%s355 + $0xb4] sm:$0xf]
        %v1020 = vld [vmem:[%s355 + $0xb8] sm:$0xf]
        %v1021 = vld [vmem:[%s355 + $0x8] sm:$0x1]
        %v1022 = vld [vmem:[%s355 + $0x14] sm:$0x1]
        %v1023 = vld [vmem:[%s355 + $0x20] sm:$0x1]
        %v1024 = vld [vmem:[%s355 + $0x2c] sm:$0x1]
        %v1025 = vld [vmem:[%s355 + $0x38] sm:$0x1]
        %v1026 = vld [vmem:[%s355 + $0x44] sm:$0x1]
        %v1027 = vld [vmem:[%s355 + $0x50] sm:$0x1]
        %v1028 = vld [vmem:[%s355 + $0x5c] sm:$0x1]
        %v1029 = vld [vmem:[%s355 + $0x68] sm:$0x1]
        %v1030 = vld [vmem:[%s355 + $0x74] sm:$0x1]
        %v1031 = vld [vmem:[%s355 + $0x80] sm:$0x1]
        %v1032 = vld [vmem:[%s355 + $0x8c] sm:$0x1]
        %v1033 = vld [vmem:[%s355 + $0x98] sm:$0x1]
        %v1034 = vld [vmem:[%s355 + $0xa4] sm:$0x1]
        %v1035 = vld [vmem:[%s355 + $0xb0] sm:$0x1]
        %v1036 = vld [vmem:[%s355 + $0xbc] sm:$0x1]
        %v1037 = vld [vmem:[%s355] sm:$0xe]
        %v1038 = vld [vmem:[%s355 + $0xc] sm:$0xe]
        %v1039 = vld [vmem:[%s355 + $0x18] sm:$0xe]
        %v1040 = vld [vmem:[%s355 + $0x24] sm:$0xe]
        %v1041 = vld [vmem:[%s355 + $0x30] sm:$0xe]
        %v1042 = vld [vmem:[%s355 + $0x3c] sm:$0xe]
        %v1043 = vld [vmem:[%s355 + $0x48] sm:$0xe]
        %v1044 = vld [vmem:[%s355 + $0x54] sm:$0xe]
        %v1045 = vld [vmem:[%s355 + $0x60] sm:$0xe]
        %v1046 = vld [vmem:[%s355 + $0x6c] sm:$0xe]
        %v1047 = vld [vmem:[%s355 + $0x78] sm:$0xe]
        %v1048 = vld [vmem:[%s355 + $0x84] sm:$0xe]
        %v1049 = vld [vmem:[%s355 + $0x90] sm:$0xe]
        %v1050 = vld [vmem:[%s355 + $0x9c] sm:$0xe]
        %v1051 = vld [vmem:[%s355 + $0xa8] sm:$0xe]
        %v1052 = vld [vmem:[%s355 + $0xb4] sm:$0xe]
        %s1053 = scalar_lea.vmem [#allocation2], 24
        %v1054 = vld [vmem:[%s1053] sm:$0xf]
        %v1055 = vld [vmem:[%s1053 + $0x4] sm:$0xf]
        %v1056 = vld [vmem:[%s1053 + $0xc] sm:$0xf]
        %v1057 = vld [vmem:[%s1053 + $0x10] sm:$0xf]
        %v1058 = vld [vmem:[%s1053 + $0x18] sm:$0xf]
        %v1059 = vld [vmem:[%s1053 + $0x1c] sm:$0xf]
        %v1060 = vld [vmem:[%s1053 + $0x24] sm:$0xf]
        %v1061 = vld [vmem:[%s1053 + $0x28] sm:$0xf]
        %v1062 = vld [vmem:[%s1053 + $0x30] sm:$0xf]
        %v1063 = vld [vmem:[%s1053 + $0x34] sm:$0xf]
        %v1064 = vld [vmem:[%s1053 + $0x3c] sm:$0xf]
        %v1065 = vld [vmem:[%s1053 + $0x40] sm:$0xf]
        %v1066 = vld [vmem:[%s1053 + $0x48] sm:$0xf]
        %v1067 = vld [vmem:[%s1053 + $0x4c] sm:$0xf]
        %v1068 = vld [vmem:[%s1053 + $0x54] sm:$0xf]
        %v1069 = vld [vmem:[%s1053 + $0x58] sm:$0xf]
        %v1070 = vld [vmem:[%s1053 + $0x60] sm:$0xf]
        %v1071 = vld [vmem:[%s1053 + $0x64] sm:$0xf]
        %v1072 = vld [vmem:[%s1053 + $0x6c] sm:$0xf]
        %v1073 = vld [vmem:[%s1053 + $0x70] sm:$0xf]
        %v1074 = vld [vmem:[%s1053 + $0x78] sm:$0xf]
        %v1075 = vld [vmem:[%s1053 + $0x7c] sm:$0xf]
        %v1076 = vld [vmem:[%s1053 + $0x84] sm:$0xf]
        %v1077 = vld [vmem:[%s1053 + $0x88] sm:$0xf]
        %v1078 = vld [vmem:[%s1053 + $0x90] sm:$0xf]
        %v1079 = vld [vmem:[%s1053 + $0x94] sm:$0xf]
        %v1080 = vld [vmem:[%s1053 + $0x9c] sm:$0xf]
        %v1081 = vld [vmem:[%s1053 + $0xa0] sm:$0xf]
        %v1082 = vld [vmem:[%s1053 + $0xa8] sm:$0xf]
        %v1083 = vld [vmem:[%s1053 + $0xac] sm:$0xf]
        %v1084 = vld [vmem:[%s1053 + $0xb4] sm:$0xf]
        %v1085 = vld [vmem:[%s1053 + $0xb8] sm:$0xf]
        %v1086 = vld [vmem:[%s1053 + $0x8] sm:$0x1]
        %v1087 = vld [vmem:[%s1053 + $0x14] sm:$0x1]
        %v1088 = vld [vmem:[%s1053 + $0x20] sm:$0x1]
        %v1089 = vld [vmem:[%s1053 + $0x2c] sm:$0x1]
        %v1090 = vld [vmem:[%s1053 + $0x38] sm:$0x1]
        %v1091 = vld [vmem:[%s1053 + $0x44] sm:$0x1]
        %v1092 = vld [vmem:[%s1053 + $0x50] sm:$0x1]
        %v1093 = vld [vmem:[%s1053 + $0x5c] sm:$0x1]
        %v1094 = vld [vmem:[%s1053 + $0x68] sm:$0x1]
        %v1095 = vld [vmem:[%s1053 + $0x74] sm:$0x1]
        %v1096 = vld [vmem:[%s1053 + $0x80] sm:$0x1]
        %v1097 = vld [vmem:[%s1053 + $0x8c] sm:$0x1]
        %v1098 = vld [vmem:[%s1053 + $0x98] sm:$0x1]
        %v1099 = vld [vmem:[%s1053 + $0xa4] sm:$0x1]
        %v1100 = vld [vmem:[%s1053 + $0xb0] sm:$0x1]
        %v1101 = vld [vmem:[%s1053 + $0xbc] sm:$0x1]
        %v1102 = vld [vmem:[%s1053] sm:$0xe]
        %v1103 = vld [vmem:[%s1053 + $0xc] sm:$0xe]
        %v1104 = vld [vmem:[%s1053 + $0x18] sm:$0xe]
        %v1105 = vld [vmem:[%s1053 + $0x24] sm:$0xe]
        %v1106 = vld [vmem:[%s1053 + $0x30] sm:$0xe]
        %v1107 = vld [vmem:[%s1053 + $0x3c] sm:$0xe]
        %v1108 = vld [vmem:[%s1053 + $0x48] sm:$0xe]
        %v1109 = vld [vmem:[%s1053 + $0x54] sm:$0xe]
        %v1110 = vld [vmem:[%s1053 + $0x60] sm:$0xe]
        %v1111 = vld [vmem:[%s1053 + $0x6c] sm:$0xe]
        %v1112 = vld [vmem:[%s1053 + $0x78] sm:$0xe]
        %v1113 = vld [vmem:[%s1053 + $0x84] sm:$0xe]
        %v1114 = vld [vmem:[%s1053 + $0x90] sm:$0xe]
        %v1115 = vld [vmem:[%s1053 + $0x9c] sm:$0xe]
        %v1116 = vld [vmem:[%s1053 + $0xa8] sm:$0xe]
        %v1117 = vld [vmem:[%s1053 + $0xb4] sm:$0xe]
        %v1150 = vunpack.c.l.b16 %v925
        %v1151 = vunpack.c.l.b16 %v926
        %v1152 = vunpack.c.l.b16 %v927
        %v1153 = vunpack.c.l.b16 %v928
        %v1154 = vunpack.c.l.b16 %v929
        %v1155 = vunpack.c.l.b16 %v930
        %v1156 = vunpack.c.l.b16 %v931
        %v1157 = vunpack.c.l.b16 %v932
        %v1158 = vunpack.c.l.b16 %v933
        %v1159 = vunpack.c.l.b16 %v934
        %v1160 = vunpack.c.l.b16 %v935
        %v1161 = vunpack.c.l.b16 %v936
        %v1162 = vunpack.c.l.b16 %v937
        %v1163 = vunpack.c.l.b16 %v938
        %v1164 = vunpack.c.l.b16 %v939
        %v1165 = vunpack.c.l.b16 %v940
        %v1166 = vunpack.c.l.b16 %v941
        %v1167 = vunpack.c.l.b16 %v942
        %v1168 = vunpack.c.l.b16 %v943
        %v1169 = vunpack.c.l.b16 %v944
        %v1170 = vunpack.c.l.b16 %v945
        %v1171 = vunpack.c.l.b16 %v946
        %v1172 = vunpack.c.l.b16 %v947
        %v1173 = vunpack.c.l.b16 %v948
        %v1174 = vunpack.c.l.b16 %v949
        %v1175 = vunpack.c.l.b16 %v950
        %v1176 = vunpack.c.l.b16 %v951
        %v1177 = vunpack.c.l.b16 %v952
        %v1178 = vunpack.c.l.b16 %v953
        %v1179 = vunpack.c.l.b16 %v954
        %v1180 = vunpack.c.l.b16 %v955
        %v1181 = vunpack.c.l.b16 %v956
        %v1182 = vpack.c.b16 %v1151, %v1150
        %v1183 = vpack.c.b16 %v1153, %v1152
        %v1184 = vpack.c.b16 %v1155, %v1154
        %v1185 = vpack.c.b16 %v1157, %v1156
        %v1186 = vpack.c.b16 %v1159, %v1158
        %v1187 = vpack.c.b16 %v1161, %v1160
        %v1188 = vpack.c.b16 %v1163, %v1162
        %v1189 = vpack.c.b16 %v1165, %v1164
        %v1190 = vpack.c.b16 %v1167, %v1166
        %v1191 = vpack.c.b16 %v1169, %v1168
        %v1192 = vpack.c.b16 %v1171, %v1170
        %v1193 = vpack.c.b16 %v1173, %v1172
        %v1194 = vpack.c.b16 %v1175, %v1174
        %v1195 = vpack.c.b16 %v1177, %v1176
        %v1196 = vpack.c.b16 %v1179, %v1178
        %v1197 = vpack.c.b16 %v1181, %v1180
        %v1214 = vunpack.c.l.b16 %v957
        %v1215 = vunpack.c.l.b16 %v958
        %v1216 = vunpack.c.l.b16 %v959
        %v1217 = vunpack.c.l.b16 %v960
        %v1218 = vunpack.c.l.b16 %v961
        %v1219 = vunpack.c.l.b16 %v962
        %v1220 = vunpack.c.l.b16 %v963
        %v1221 = vunpack.c.l.b16 %v964
        %v1222 = vunpack.c.l.b16 %v965
        %v1223 = vunpack.c.l.b16 %v966
        %v1224 = vunpack.c.l.b16 %v967
        %v1225 = vunpack.c.l.b16 %v968
        %v1226 = vunpack.c.l.b16 %v969
        %v1227 = vunpack.c.l.b16 %v970
        %v1228 = vunpack.c.l.b16 %v971
        %v1229 = vunpack.c.l.b16 %v972
        %v1230 = vpack.c.b16 %v1214, %v1214
        %v1231 = vpack.c.b16 %v1215, %v1215
        %v1232 = vpack.c.b16 %v1216, %v1216
        %v1233 = vpack.c.b16 %v1217, %v1217
        %v1234 = vpack.c.b16 %v1218, %v1218
        %v1235 = vpack.c.b16 %v1219, %v1219
        %v1236 = vpack.c.b16 %v1220, %v1220
        %v1237 = vpack.c.b16 %v1221, %v1221
        %v1238 = vpack.c.b16 %v1222, %v1222
        %v1239 = vpack.c.b16 %v1223, %v1223
        %v1240 = vpack.c.b16 %v1224, %v1224
        %v1241 = vpack.c.b16 %v1225, %v1225
        %v1242 = vpack.c.b16 %v1226, %v1226
        %v1243 = vpack.c.b16 %v1227, %v1227
        %v1244 = vpack.c.b16 %v1228, %v1228
        %v1245 = vpack.c.b16 %v1229, %v1229
        %vm1246 = vsmask.f32 7424
        %v1248 = vshrl.u32 %v1182, 16
        %v1250 = vshll.u32 %v1182, 16
        %v1252 = vrot.slane %v1250, 1
        %v1253 = vor.u32 %v1248, %v1252
        %v1255 = vshll.u32 %v1230, 16
        %v1257 = vrot.slane %v1255, 1
        %v1258 = vsel %vm1246, %v1253, %v1257
        %v1260 = vshrl.u32 %v1183, 16
        %v1262 = vshll.u32 %v1183, 16
        %v1264 = vrot.slane %v1262, 1
        %v1265 = vor.u32 %v1260, %v1264
        %v1267 = vshll.u32 %v1231, 16
        %v1269 = vrot.slane %v1267, 1
        %v1270 = vsel %vm1246, %v1265, %v1269
        %v1272 = vshrl.u32 %v1184, 16
        %v1274 = vshll.u32 %v1184, 16
        %v1276 = vrot.slane %v1274, 1
        %v1277 = vor.u32 %v1272, %v1276
        %v1279 = vshll.u32 %v1232, 16
        %v1281 = vrot.slane %v1279, 1
        %v1282 = vsel %vm1246, %v1277, %v1281
        %v1284 = vshrl.u32 %v1185, 16
        %v1286 = vshll.u32 %v1185, 16
        %v1288 = vrot.slane %v1286, 1
        %v1289 = vor.u32 %v1284, %v1288
        %v1291 = vshll.u32 %v1233, 16
        %v1293 = vrot.slane %v1291, 1
        %v1294 = vsel %vm1246, %v1289, %v1293
        %v1296 = vshrl.u32 %v1186, 16
        %v1298 = vshll.u32 %v1186, 16
        %v1300 = vrot.slane %v1298, 1
        %v1301 = vor.u32 %v1296, %v1300
        %v1303 = vshll.u32 %v1234, 16
        %v1305 = vrot.slane %v1303, 1
        %v1306 = vsel %vm1246, %v1301, %v1305
        %v1308 = vshrl.u32 %v1187, 16
        %v1310 = vshll.u32 %v1187, 16
        %v1312 = vrot.slane %v1310, 1
        %v1313 = vor.u32 %v1308, %v1312
        %v1315 = vshll.u32 %v1235, 16
        %v1317 = vrot.slane %v1315, 1
        %v1318 = vsel %vm1246, %v1313, %v1317
        %v1320 = vshrl.u32 %v1188, 16
        %v1322 = vshll.u32 %v1188, 16
        %v1324 = vrot.slane %v1322, 1
        %v1325 = vor.u32 %v1320, %v1324
        %v1327 = vshll.u32 %v1236, 16
        %v1329 = vrot.slane %v1327, 1
        %v1330 = vsel %vm1246, %v1325, %v1329
        %v1332 = vshrl.u32 %v1189, 16
        %v1334 = vshll.u32 %v1189, 16
        %v1336 = vrot.slane %v1334, 1
        %v1337 = vor.u32 %v1332, %v1336
        %v1339 = vshll.u32 %v1237, 16
        %v1341 = vrot.slane %v1339, 1
        %v1342 = vsel %vm1246, %v1337, %v1341
        %v1344 = vshrl.u32 %v1190, 16
        %v1346 = vshll.u32 %v1190, 16
        %v1348 = vrot.slane %v1346, 1
        %v1349 = vor.u32 %v1344, %v1348
        %v1351 = vshll.u32 %v1238, 16
        %v1353 = vrot.slane %v1351, 1
        %v1354 = vsel %vm1246, %v1349, %v1353
        %v1356 = vshrl.u32 %v1191, 16
        %v1358 = vshll.u32 %v1191, 16
        %v1360 = vrot.slane %v1358, 1
        %v1361 = vor.u32 %v1356, %v1360
        %v1363 = vshll.u32 %v1239, 16
        %v1365 = vrot.slane %v1363, 1
        %v1366 = vsel %vm1246, %v1361, %v1365
        %v1368 = vshrl.u32 %v1192, 16
        %v1370 = vshll.u32 %v1192, 16
        %v1372 = vrot.slane %v1370, 1
        %v1373 = vor.u32 %v1368, %v1372
        %v1375 = vshll.u32 %v1240, 16
        %v1377 = vrot.slane %v1375, 1
        %v1378 = vsel %vm1246, %v1373, %v1377
        %v1380 = vshrl.u32 %v1193, 16
        %v1382 = vshll.u32 %v1193, 16
        %v1384 = vrot.slane %v1382, 1
        %v1385 = vor.u32 %v1380, %v1384
        %v1387 = vshll.u32 %v1241, 16
        %v1389 = vrot.slane %v1387, 1
        %v1390 = vsel %vm1246, %v1385, %v1389
        %v1392 = vshrl.u32 %v1194, 16
        %v1394 = vshll.u32 %v1194, 16
        %v1396 = vrot.slane %v1394, 1
        %v1397 = vor.u32 %v1392, %v1396
        %v1399 = vshll.u32 %v1242, 16
        %v1401 = vrot.slane %v1399, 1
        %v1402 = vsel %vm1246, %v1397, %v1401
        %v1404 = vshrl.u32 %v1195, 16
        %v1406 = vshll.u32 %v1195, 16
        %v1408 = vrot.slane %v1406, 1
        %v1409 = vor.u32 %v1404, %v1408
        %v1411 = vshll.u32 %v1243, 16
        %v1413 = vrot.slane %v1411, 1
        %v1414 = vsel %vm1246, %v1409, %v1413
        %v1416 = vshrl.u32 %v1196, 16
        %v1418 = vshll.u32 %v1196, 16
        %v1420 = vrot.slane %v1418, 1
        %v1421 = vor.u32 %v1416, %v1420
        %v1423 = vshll.u32 %v1244, 16
        %v1425 = vrot.slane %v1423, 1
        %v1426 = vsel %vm1246, %v1421, %v1425
        %v1428 = vshrl.u32 %v1197, 16
        %v1430 = vshll.u32 %v1197, 16
        %v1432 = vrot.slane %v1430, 1
        %v1433 = vor.u32 %v1428, %v1432
        %v1435 = vshll.u32 %v1245, 16
        %v1437 = vrot.slane %v1435, 1
        %v1438 = vsel %vm1246, %v1433, %v1437
        %1439 = vrot.lane.b32.xlu0 %v1258, 3
        %v1440 = vpop.permute.xlu0 %1439
        %1441 = vrot.lane.b32.xlu0 %v1270, 3
        %v1442 = vpop.permute.xlu0 %1441
        %1443 = vrot.lane.b32.xlu0 %v1282, 3
        %v1444 = vpop.permute.xlu0 %1443
        %1445 = vrot.lane.b32.xlu0 %v1294, 3
        %v1446 = vpop.permute.xlu0 %1445
        %1447 = vrot.lane.b32.xlu0 %v1306, 3
        %v1448 = vpop.permute.xlu0 %1447
        %1449 = vrot.lane.b32.xlu0 %v1318, 3
        %v1450 = vpop.permute.xlu0 %1449
        %1451 = vrot.lane.b32.xlu0 %v1330, 3
        %v1452 = vpop.permute.xlu0 %1451
        %1453 = vrot.lane.b32.xlu0 %v1342, 3
        %v1454 = vpop.permute.xlu0 %1453
        %1455 = vrot.lane.b32.xlu0 %v1354, 3
        %v1456 = vpop.permute.xlu0 %1455
        %1457 = vrot.lane.b32.xlu0 %v1366, 3
        %v1458 = vpop.permute.xlu0 %1457
        %1459 = vrot.lane.b32.xlu0 %v1378, 3
        %v1460 = vpop.permute.xlu0 %1459
        %1461 = vrot.lane.b32.xlu0 %v1390, 3
        %v1462 = vpop.permute.xlu0 %1461
        %1463 = vrot.lane.b32.xlu0 %v1402, 3
        %v1464 = vpop.permute.xlu0 %1463
        %1465 = vrot.lane.b32.xlu0 %v1414, 3
        %v1466 = vpop.permute.xlu0 %1465
        %1467 = vrot.lane.b32.xlu0 %v1426, 3
        %v1468 = vpop.permute.xlu0 %1467
        %1469 = vrot.lane.b32.xlu0 %v1438, 3
        %v1470 = vpop.permute.xlu0 %1469
        %v1487 = vunpack.c.l.b16 %v973
        %v1488 = vunpack.c.l.b16 %v974
        %v1489 = vunpack.c.l.b16 %v975
        %v1490 = vunpack.c.l.b16 %v976
        %v1491 = vunpack.c.l.b16 %v977
        %v1492 = vunpack.c.l.b16 %v978
        %v1493 = vunpack.c.l.b16 %v979
        %v1494 = vunpack.c.l.b16 %v980
        %v1495 = vunpack.c.l.b16 %v981
        %v1496 = vunpack.c.l.b16 %v982
        %v1497 = vunpack.c.l.b16 %v983
        %v1498 = vunpack.c.l.b16 %v984
        %v1499 = vunpack.c.l.b16 %v985
        %v1500 = vunpack.c.l.b16 %v986
        %v1501 = vunpack.c.l.b16 %v987
        %v1502 = vunpack.c.l.b16 %v988
        %v1503 = vpack.c.b16 %v1151, %v1487
        %v1504 = vpack.c.b16 %v1153, %v1488
        %v1505 = vpack.c.b16 %v1155, %v1489
        %v1506 = vpack.c.b16 %v1157, %v1490
        %v1507 = vpack.c.b16 %v1159, %v1491
        %v1508 = vpack.c.b16 %v1161, %v1492
        %v1509 = vpack.c.b16 %v1163, %v1493
        %v1510 = vpack.c.b16 %v1165, %v1494
        %v1511 = vpack.c.b16 %v1167, %v1495
        %v1512 = vpack.c.b16 %v1169, %v1496
        %v1513 = vpack.c.b16 %v1171, %v1497
        %v1514 = vpack.c.b16 %v1173, %v1498
        %v1515 = vpack.c.b16 %v1175, %v1499
        %v1516 = vpack.c.b16 %v1177, %v1500
        %v1517 = vpack.c.b16 %v1179, %v1501
        %v1518 = vpack.c.b16 %v1181, %v1502
        %vm1519 = vcmask 1046528
        %v1520 = vrot.slane %v1503, 1
        %v1521 = vrot.slane %v1230, 1
        %v1522 = vsel %vm1519, %v1520, %v1521
        %v1523 = vrot.slane %v1504, 1
        %v1524 = vrot.slane %v1231, 1
        %v1525 = vsel %vm1519, %v1523, %v1524
        %v1526 = vrot.slane %v1505, 1
        %v1527 = vrot.slane %v1232, 1
        %v1528 = vsel %vm1519, %v1526, %v1527
        %v1529 = vrot.slane %v1506, 1
        %v1530 = vrot.slane %v1233, 1
        %v1531 = vsel %vm1519, %v1529, %v1530
        %v1532 = vrot.slane %v1507, 1
        %v1533 = vrot.slane %v1234, 1
        %v1534 = vsel %vm1519, %v1532, %v1533
        %v1535 = vrot.slane %v1508, 1
        %v1536 = vrot.slane %v1235, 1
        %v1537 = vsel %vm1519, %v1535, %v1536
        %v1538 = vrot.slane %v1509, 1
        %v1539 = vrot.slane %v1236, 1
        %v1540 = vsel %vm1519, %v1538, %v1539
        %v1541 = vrot.slane %v1510, 1
        %v1542 = vrot.slane %v1237, 1
        %v1543 = vsel %vm1519, %v1541, %v1542
        %v1544 = vrot.slane %v1511, 1
        %v1545 = vrot.slane %v1238, 1
        %v1546 = vsel %vm1519, %v1544, %v1545
        %v1547 = vrot.slane %v1512, 1
        %v1548 = vrot.slane %v1239, 1
        %v1549 = vsel %vm1519, %v1547, %v1548
        %v1550 = vrot.slane %v1513, 1
        %v1551 = vrot.slane %v1240, 1
        %v1552 = vsel %vm1519, %v1550, %v1551
        %v1553 = vrot.slane %v1514, 1
        %v1554 = vrot.slane %v1241, 1
        %v1555 = vsel %vm1519, %v1553, %v1554
        %v1556 = vrot.slane %v1515, 1
        %v1557 = vrot.slane %v1242, 1
        %v1558 = vsel %vm1519, %v1556, %v1557
        %v1559 = vrot.slane %v1516, 1
        %v1560 = vrot.slane %v1243, 1
        %v1561 = vsel %vm1519, %v1559, %v1560
        %v1562 = vrot.slane %v1517, 1
        %v1563 = vrot.slane %v1244, 1
        %v1564 = vsel %vm1519, %v1562, %v1563
        %v1565 = vrot.slane %v1518, 1
        %v1566 = vrot.slane %v1245, 1
        %v1567 = vsel %vm1519, %v1565, %v1566
        %1568 = vrot.lane.b32.xlu0 %v1522, 6
        %v1569 = vpop.permute.xlu0 %1568
        %1570 = vrot.lane.b32.xlu0 %v1525, 6
        %v1571 = vpop.permute.xlu0 %1570
        %1572 = vrot.lane.b32.xlu0 %v1528, 6
        %v1573 = vpop.permute.xlu0 %1572
        %1574 = vrot.lane.b32.xlu0 %v1531, 6
        %v1575 = vpop.permute.xlu0 %1574
        %1576 = vrot.lane.b32.xlu0 %v1534, 6
        %v1577 = vpop.permute.xlu0 %1576
        %1578 = vrot.lane.b32.xlu0 %v1537, 6
        %v1579 = vpop.permute.xlu0 %1578
        %1580 = vrot.lane.b32.xlu0 %v1540, 6
        %v1581 = vpop.permute.xlu0 %1580
        %1582 = vrot.lane.b32.xlu0 %v1543, 6
        %v1583 = vpop.permute.xlu0 %1582
        %1584 = vrot.lane.b32.xlu0 %v1546, 6
        %v1585 = vpop.permute.xlu0 %1584
        %1586 = vrot.lane.b32.xlu0 %v1549, 6
        %v1587 = vpop.permute.xlu0 %1586
        %1588 = vrot.lane.b32.xlu0 %v1552, 6
        %v1589 = vpop.permute.xlu0 %1588
        %1590 = vrot.lane.b32.xlu0 %v1555, 6
        %v1591 = vpop.permute.xlu0 %1590
        %1592 = vrot.lane.b32.xlu0 %v1558, 6
        %v1593 = vpop.permute.xlu0 %1592
        %1594 = vrot.lane.b32.xlu0 %v1561, 6
        %v1595 = vpop.permute.xlu0 %1594
        %1596 = vrot.lane.b32.xlu0 %v1564, 6
        %v1597 = vpop.permute.xlu0 %1596
        %1598 = vrot.lane.b32.xlu0 %v1567, 6
        %v1599 = vpop.permute.xlu0 %1598
        %v1632 = vunpack.c.l.b16 %v989
        %v1633 = vunpack.c.l.b16 %v990
        %v1634 = vunpack.c.l.b16 %v991
        %v1635 = vunpack.c.l.b16 %v992
        %v1636 = vunpack.c.l.b16 %v993
        %v1637 = vunpack.c.l.b16 %v994
        %v1638 = vunpack.c.l.b16 %v995
        %v1639 = vunpack.c.l.b16 %v996
        %v1640 = vunpack.c.l.b16 %v997
        %v1641 = vunpack.c.l.b16 %v998
        %v1642 = vunpack.c.l.b16 %v999
        %v1643 = vunpack.c.l.b16 %v1000
        %v1644 = vunpack.c.l.b16 %v1001
        %v1645 = vunpack.c.l.b16 %v1002
        %v1646 = vunpack.c.l.b16 %v1003
        %v1647 = vunpack.c.l.b16 %v1004
        %v1648 = vunpack.c.l.b16 %v1005
        %v1649 = vunpack.c.l.b16 %v1006
        %v1650 = vunpack.c.l.b16 %v1007
        %v1651 = vunpack.c.l.b16 %v1008
        %v1652 = vunpack.c.l.b16 %v1009
        %v1653 = vunpack.c.l.b16 %v1010
        %v1654 = vunpack.c.l.b16 %v1011
        %v1655 = vunpack.c.l.b16 %v1012
        %v1656 = vunpack.c.l.b16 %v1013
        %v1657 = vunpack.c.l.b16 %v1014
        %v1658 = vunpack.c.l.b16 %v1015
        %v1659 = vunpack.c.l.b16 %v1016
        %v1660 = vunpack.c.l.b16 %v1017
        %v1661 = vunpack.c.l.b16 %v1018
        %v1662 = vunpack.c.l.b16 %v1019
        %v1663 = vunpack.c.l.b16 %v1020
        %v1664 = vpack.c.b16 %v1633, %v1632
        %v1665 = vpack.c.b16 %v1635, %v1634
        %v1666 = vpack.c.b16 %v1637, %v1636
        %v1667 = vpack.c.b16 %v1639, %v1638
        %v1668 = vpack.c.b16 %v1641, %v1640
        %v1669 = vpack.c.b16 %v1643, %v1642
        %v1670 = vpack.c.b16 %v1645, %v1644
        %v1671 = vpack.c.b16 %v1647, %v1646
        %v1672 = vpack.c.b16 %v1649, %v1648
        %v1673 = vpack.c.b16 %v1651, %v1650
        %v1674 = vpack.c.b16 %v1653, %v1652
        %v1675 = vpack.c.b16 %v1655, %v1654
        %v1676 = vpack.c.b16 %v1657, %v1656
        %v1677 = vpack.c.b16 %v1659, %v1658
        %v1678 = vpack.c.b16 %v1661, %v1660
        %v1679 = vpack.c.b16 %v1663, %v1662
        %1680 = vrot.lane.b32.xlu0 %v1664, 9
        %v1681 = vpop.permute.xlu0 %1680
        %1682 = vrot.lane.b32.xlu0 %v1665, 9
        %v1683 = vpop.permute.xlu0 %1682
        %1684 = vrot.lane.b32.xlu0 %v1666, 9
        %v1685 = vpop.permute.xlu0 %1684
        %1686 = vrot.lane.b32.xlu0 %v1667, 9
        %v1687 = vpop.permute.xlu0 %1686
        %1688 = vrot.lane.b32.xlu0 %v1668, 9
        %v1689 = vpop.permute.xlu0 %1688
        %1690 = vrot.lane.b32.xlu0 %v1669, 9
        %v1691 = vpop.permute.xlu0 %1690
        %1692 = vrot.lane.b32.xlu0 %v1670, 9
        %v1693 = vpop.permute.xlu0 %1692
        %1694 = vrot.lane.b32.xlu0 %v1671, 9
        %v1695 = vpop.permute.xlu0 %1694
        %1696 = vrot.lane.b32.xlu0 %v1672, 9
        %v1697 = vpop.permute.xlu0 %1696
        %1698 = vrot.lane.b32.xlu0 %v1673, 9
        %v1699 = vpop.permute.xlu0 %1698
        %1700 = vrot.lane.b32.xlu0 %v1674, 9
        %v1701 = vpop.permute.xlu0 %1700
        %1702 = vrot.lane.b32.xlu0 %v1675, 9
        %v1703 = vpop.permute.xlu0 %1702
        %1704 = vrot.lane.b32.xlu0 %v1676, 9
        %v1705 = vpop.permute.xlu0 %1704
        %1706 = vrot.lane.b32.xlu0 %v1677, 9
        %v1707 = vpop.permute.xlu0 %1706
        %1708 = vrot.lane.b32.xlu0 %v1678, 9
        %v1709 = vpop.permute.xlu0 %1708
        %1710 = vrot.lane.b32.xlu0 %v1679, 9
        %v1711 = vpop.permute.xlu0 %1710
        %v1728 = vunpack.c.l.b16 %v1021
        %v1729 = vunpack.c.l.b16 %v1022
        %v1730 = vunpack.c.l.b16 %v1023
        %v1731 = vunpack.c.l.b16 %v1024
        %v1732 = vunpack.c.l.b16 %v1025
        %v1733 = vunpack.c.l.b16 %v1026
        %v1734 = vunpack.c.l.b16 %v1027
        %v1735 = vunpack.c.l.b16 %v1028
        %v1736 = vunpack.c.l.b16 %v1029
        %v1737 = vunpack.c.l.b16 %v1030
        %v1738 = vunpack.c.l.b16 %v1031
        %v1739 = vunpack.c.l.b16 %v1032
        %v1740 = vunpack.c.l.b16 %v1033
        %v1741 = vunpack.c.l.b16 %v1034
        %v1742 = vunpack.c.l.b16 %v1035
        %v1743 = vunpack.c.l.b16 %v1036
        %v1744 = vpack.c.b16 %v1728, %v1728
        %v1745 = vpack.c.b16 %v1729, %v1729
        %v1746 = vpack.c.b16 %v1730, %v1730
        %v1747 = vpack.c.b16 %v1731, %v1731
        %v1748 = vpack.c.b16 %v1732, %v1732
        %v1749 = vpack.c.b16 %v1733, %v1733
        %v1750 = vpack.c.b16 %v1734, %v1734
        %v1751 = vpack.c.b16 %v1735, %v1735
        %v1752 = vpack.c.b16 %v1736, %v1736
        %v1753 = vpack.c.b16 %v1737, %v1737
        %v1754 = vpack.c.b16 %v1738, %v1738
        %v1755 = vpack.c.b16 %v1739, %v1739
        %v1756 = vpack.c.b16 %v1740, %v1740
        %v1757 = vpack.c.b16 %v1741, %v1741
        %v1758 = vpack.c.b16 %v1742, %v1742
        %v1759 = vpack.c.b16 %v1743, %v1743
        %v1761 = vshrl.u32 %v1664, 16
        %v1763 = vshll.u32 %v1664, 16
        %v1765 = vrot.slane %v1763, 1
        %v1766 = vor.u32 %v1761, %v1765
        %v1768 = vshll.u32 %v1744, 16
        %v1770 = vrot.slane %v1768, 1
        %v1771 = vsel %vm1246, %v1766, %v1770
        %v1773 = vshrl.u32 %v1665, 16
        %v1775 = vshll.u32 %v1665, 16
        %v1777 = vrot.slane %v1775, 1
        %v1778 = vor.u32 %v1773, %v1777
        %v1780 = vshll.u32 %v1745, 16
        %v1782 = vrot.slane %v1780, 1
        %v1783 = vsel %vm1246, %v1778, %v1782
        %v1785 = vshrl.u32 %v1666, 16
        %v1787 = vshll.u32 %v1666, 16
        %v1789 = vrot.slane %v1787, 1
        %v1790 = vor.u32 %v1785, %v1789
        %v1792 = vshll.u32 %v1746, 16
        %v1794 = vrot.slane %v1792, 1
        %v1795 = vsel %vm1246, %v1790, %v1794
        %v1797 = vshrl.u32 %v1667, 16
        %v1799 = vshll.u32 %v1667, 16
        %v1801 = vrot.slane %v1799, 1
        %v1802 = vor.u32 %v1797, %v1801
        %v1804 = vshll.u32 %v1747, 16
        %v1806 = vrot.slane %v1804, 1
        %v1807 = vsel %vm1246, %v1802, %v1806
        %v1809 = vshrl.u32 %v1668, 16
        %v1811 = vshll.u32 %v1668, 16
        %v1813 = vrot.slane %v1811, 1
        %v1814 = vor.u32 %v1809, %v1813
        %v1816 = vshll.u32 %v1748, 16
        %v1818 = vrot.slane %v1816, 1
        %v1819 = vsel %vm1246, %v1814, %v1818
        %v1821 = vshrl.u32 %v1669, 16
        %v1823 = vshll.u32 %v1669, 16
        %v1825 = vrot.slane %v1823, 1
        %v1826 = vor.u32 %v1821, %v1825
        %v1828 = vshll.u32 %v1749, 16
        %v1830 = vrot.slane %v1828, 1
        %v1831 = vsel %vm1246, %v1826, %v1830
        %v1833 = vshrl.u32 %v1670, 16
        %v1835 = vshll.u32 %v1670, 16
        %v1837 = vrot.slane %v1835, 1
        %v1838 = vor.u32 %v1833, %v1837
        %v1840 = vshll.u32 %v1750, 16
        %v1842 = vrot.slane %v1840, 1
        %v1843 = vsel %vm1246, %v1838, %v1842
        %v1845 = vshrl.u32 %v1671, 16
        %v1847 = vshll.u32 %v1671, 16
        %v1849 = vrot.slane %v1847, 1
        %v1850 = vor.u32 %v1845, %v1849
        %v1852 = vshll.u32 %v1751, 16
        %v1854 = vrot.slane %v1852, 1
        %v1855 = vsel %vm1246, %v1850, %v1854
        %v1857 = vshrl.u32 %v1672, 16
        %v1859 = vshll.u32 %v1672, 16
        %v1861 = vrot.slane %v1859, 1
        %v1862 = vor.u32 %v1857, %v1861
        %v1864 = vshll.u32 %v1752, 16
        %v1866 = vrot.slane %v1864, 1
        %v1867 = vsel %vm1246, %v1862, %v1866
        %v1869 = vshrl.u32 %v1673, 16
        %v1871 = vshll.u32 %v1673, 16
        %v1873 = vrot.slane %v1871, 1
        %v1874 = vor.u32 %v1869, %v1873
        %v1876 = vshll.u32 %v1753, 16
        %v1878 = vrot.slane %v1876, 1
        %v1879 = vsel %vm1246, %v1874, %v1878
        %v1881 = vshrl.u32 %v1674, 16
        %v1883 = vshll.u32 %v1674, 16
        %v1885 = vrot.slane %v1883, 1
        %v1886 = vor.u32 %v1881, %v1885
        %v1888 = vshll.u32 %v1754, 16
        %v1890 = vrot.slane %v1888, 1
        %v1891 = vsel %vm1246, %v1886, %v1890
        %v1893 = vshrl.u32 %v1675, 16
        %v1895 = vshll.u32 %v1675, 16
        %v1897 = vrot.slane %v1895, 1
        %v1898 = vor.u32 %v1893, %v1897
        %v1900 = vshll.u32 %v1755, 16
        %v1902 = vrot.slane %v1900, 1
        %v1903 = vsel %vm1246, %v1898, %v1902
        %v1905 = vshrl.u32 %v1676, 16
        %v1907 = vshll.u32 %v1676, 16
        %v1909 = vrot.slane %v1907, 1
        %v1910 = vor.u32 %v1905, %v1909
        %v1912 = vshll.u32 %v1756, 16
        %v1914 = vrot.slane %v1912, 1
        %v1915 = vsel %vm1246, %v1910, %v1914
        %v1917 = vshrl.u32 %v1677, 16
        %v1919 = vshll.u32 %v1677, 16
        %v1921 = vrot.slane %v1919, 1
        %v1922 = vor.u32 %v1917, %v1921
        %v1924 = vshll.u32 %v1757, 16
        %v1926 = vrot.slane %v1924, 1
        %v1927 = vsel %vm1246, %v1922, %v1926
        %v1929 = vshrl.u32 %v1678, 16
        %v1931 = vshll.u32 %v1678, 16
        %v1933 = vrot.slane %v1931, 1
        %v1934 = vor.u32 %v1929, %v1933
        %v1936 = vshll.u32 %v1758, 16
        %v1938 = vrot.slane %v1936, 1
        %v1939 = vsel %vm1246, %v1934, %v1938
        %v1941 = vshrl.u32 %v1679, 16
        %v1943 = vshll.u32 %v1679, 16
        %v1945 = vrot.slane %v1943, 1
        %v1946 = vor.u32 %v1941, %v1945
        %v1948 = vshll.u32 %v1759, 16
        %v1950 = vrot.slane %v1948, 1
        %v1951 = vsel %vm1246, %v1946, %v1950
        %1952 = vrot.lane.b32.xlu0 %v1771, 12
        %v1953 = vpop.permute.xlu0 %1952
        %1954 = vrot.lane.b32.xlu0 %v1783, 12
        %v1955 = vpop.permute.xlu0 %1954
        %1956 = vrot.lane.b32.xlu0 %v1795, 12
        %v1957 = vpop.permute.xlu0 %1956
        %1958 = vrot.lane.b32.xlu0 %v1807, 12
        %v1959 = vpop.permute.xlu0 %1958
        %1960 = vrot.lane.b32.xlu0 %v1819, 12
        %v1961 = vpop.permute.xlu0 %1960
        %1962 = vrot.lane.b32.xlu0 %v1831, 12
        %v1963 = vpop.permute.xlu0 %1962
        %1964 = vrot.lane.b32.xlu0 %v1843, 12
        %v1965 = vpop.permute.xlu0 %1964
        %1966 = vrot.lane.b32.xlu0 %v1855, 12
        %v1967 = vpop.permute.xlu0 %1966
        %1968 = vrot.lane.b32.xlu0 %v1867, 12
        %v1969 = vpop.permute.xlu0 %1968
        %1970 = vrot.lane.b32.xlu0 %v1879, 12
        %v1971 = vpop.permute.xlu0 %1970
        %1972 = vrot.lane.b32.xlu0 %v1891, 12
        %v1973 = vpop.permute.xlu0 %1972
        %1974 = vrot.lane.b32.xlu0 %v1903, 12
        %v1975 = vpop.permute.xlu0 %1974
        %1976 = vrot.lane.b32.xlu0 %v1915, 12
        %v1977 = vpop.permute.xlu0 %1976
        %1978 = vrot.lane.b32.xlu0 %v1927, 12
        %v1979 = vpop.permute.xlu0 %1978
        %1980 = vrot.lane.b32.xlu0 %v1939, 12
        %v1981 = vpop.permute.xlu0 %1980
        %1982 = vrot.lane.b32.xlu0 %v1951, 12
        %v1983 = vpop.permute.xlu0 %1982
        %v2000 = vunpack.c.l.b16 %v1037
        %v2001 = vunpack.c.l.b16 %v1038
        %v2002 = vunpack.c.l.b16 %v1039
        %v2003 = vunpack.c.l.b16 %v1040
        %v2004 = vunpack.c.l.b16 %v1041
        %v2005 = vunpack.c.l.b16 %v1042
        %v2006 = vunpack.c.l.b16 %v1043
        %v2007 = vunpack.c.l.b16 %v1044
        %v2008 = vunpack.c.l.b16 %v1045
        %v2009 = vunpack.c.l.b16 %v1046
        %v2010 = vunpack.c.l.b16 %v1047
        %v2011 = vunpack.c.l.b16 %v1048
        %v2012 = vunpack.c.l.b16 %v1049
        %v2013 = vunpack.c.l.b16 %v1050
        %v2014 = vunpack.c.l.b16 %v1051
        %v2015 = vunpack.c.l.b16 %v1052
        %v2016 = vpack.c.b16 %v1633, %v2000
        %v2017 = vpack.c.b16 %v1635, %v2001
        %v2018 = vpack.c.b16 %v1637, %v2002
        %v2019 = vpack.c.b16 %v1639, %v2003
        %v2020 = vpack.c.b16 %v1641, %v2004
        %v2021 = vpack.c.b16 %v1643, %v2005
        %v2022 = vpack.c.b16 %v1645, %v2006
        %v2023 = vpack.c.b16 %v1647, %v2007
        %v2024 = vpack.c.b16 %v1649, %v2008
        %v2025 = vpack.c.b16 %v1651, %v2009
        %v2026 = vpack.c.b16 %v1653, %v2010
        %v2027 = vpack.c.b16 %v1655, %v2011
        %v2028 = vpack.c.b16 %v1657, %v2012
        %v2029 = vpack.c.b16 %v1659, %v2013
        %v2030 = vpack.c.b16 %v1661, %v2014
        %v2031 = vpack.c.b16 %v1663, %v2015
        %v2032 = vrot.slane %v2016, 1
        %v2033 = vrot.slane %v1744, 1
        %v2034 = vsel %vm1519, %v2032, %v2033
        %v2035 = vrot.slane %v2017, 1
        %v2036 = vrot.slane %v1745, 1
        %v2037 = vsel %vm1519, %v2035, %v2036
        %v2038 = vrot.slane %v2018, 1
        %v2039 = vrot.slane %v1746, 1
        %v2040 = vsel %vm1519, %v2038, %v2039
        %v2041 = vrot.slane %v2019, 1
        %v2042 = vrot.slane %v1747, 1
        %v2043 = vsel %vm1519, %v2041, %v2042
        %v2044 = vrot.slane %v2020, 1
        %v2045 = vrot.slane %v1748, 1
        %v2046 = vsel %vm1519, %v2044, %v2045
        %v2047 = vrot.slane %v2021, 1
        %v2048 = vrot.slane %v1749, 1
        %v2049 = vsel %vm1519, %v2047, %v2048
        %v2050 = vrot.slane %v2022, 1
        %v2051 = vrot.slane %v1750, 1
        %v2052 = vsel %vm1519, %v2050, %v2051
        %v2053 = vrot.slane %v2023, 1
        %v2054 = vrot.slane %v1751, 1
        %v2055 = vsel %vm1519, %v2053, %v2054
        %v2056 = vrot.slane %v2024, 1
        %v2057 = vrot.slane %v1752, 1
        %v2058 = vsel %vm1519, %v2056, %v2057
        %v2059 = vrot.slane %v2025, 1
        %v2060 = vrot.slane %v1753, 1
        %v2061 = vsel %vm1519, %v2059, %v2060
        %v2062 = vrot.slane %v2026, 1
        %v2063 = vrot.slane %v1754, 1
        %v2064 = vsel %vm1519, %v2062, %v2063
        %v2065 = vrot.slane %v2027, 1
        %v2066 = vrot.slane %v1755, 1
        %v2067 = vsel %vm1519, %v2065, %v2066
        %v2068 = vrot.slane %v2028, 1
        %v2069 = vrot.slane %v1756, 1
        %v2070 = vsel %vm1519, %v2068, %v2069
        %v2071 = vrot.slane %v2029, 1
        %v2072 = vrot.slane %v1757, 1
        %v2073 = vsel %vm1519, %v2071, %v2072
        %v2074 = vrot.slane %v2030, 1
        %v2075 = vrot.slane %v1758, 1
        %v2076 = vsel %vm1519, %v2074, %v2075
        %v2077 = vrot.slane %v2031, 1
        %v2078 = vrot.slane %v1759, 1
        %v2079 = vsel %vm1519, %v2077, %v2078
        %2080 = vrot.lane.b32.xlu0 %v2034, 15
        %v2081 = vpop.permute.xlu0 %2080
        %2082 = vrot.lane.b32.xlu0 %v2037, 15
        %v2083 = vpop.permute.xlu0 %2082
        %2084 = vrot.lane.b32.xlu0 %v2040, 15
        %v2085 = vpop.permute.xlu0 %2084
        %2086 = vrot.lane.b32.xlu0 %v2043, 15
        %v2087 = vpop.permute.xlu0 %2086
        %2088 = vrot.lane.b32.xlu0 %v2046, 15
        %v2089 = vpop.permute.xlu0 %2088
        %2090 = vrot.lane.b32.xlu0 %v2049, 15
        %v2091 = vpop.permute.xlu0 %2090
        %2092 = vrot.lane.b32.xlu0 %v2052, 15
        %v2093 = vpop.permute.xlu0 %2092
        %2094 = vrot.lane.b32.xlu0 %v2055, 15
        %v2095 = vpop.permute.xlu0 %2094
        %2096 = vrot.lane.b32.xlu0 %v2058, 15
        %v2097 = vpop.permute.xlu0 %2096
        %2098 = vrot.lane.b32.xlu0 %v2061, 15
        %v2099 = vpop.permute.xlu0 %2098
        %2100 = vrot.lane.b32.xlu0 %v2064, 15
        %v2101 = vpop.permute.xlu0 %2100
        %2102 = vrot.lane.b32.xlu0 %v2067, 15
        %v2103 = vpop.permute.xlu0 %2102
        %2104 = vrot.lane.b32.xlu0 %v2070, 15
        %v2105 = vpop.permute.xlu0 %2104
        %2106 = vrot.lane.b32.xlu0 %v2073, 15
        %v2107 = vpop.permute.xlu0 %2106
        %2108 = vrot.lane.b32.xlu0 %v2076, 15
        %v2109 = vpop.permute.xlu0 %2108
        %2110 = vrot.lane.b32.xlu0 %v2079, 15
        %v2111 = vpop.permute.xlu0 %2110
        %v2144 = vunpack.c.l.b16 %v1054
        %v2145 = vunpack.c.l.b16 %v1055
        %v2146 = vunpack.c.l.b16 %v1056
        %v2147 = vunpack.c.l.b16 %v1057
        %v2148 = vunpack.c.l.b16 %v1058
        %v2149 = vunpack.c.l.b16 %v1059
        %v2150 = vunpack.c.l.b16 %v1060
        %v2151 = vunpack.c.l.b16 %v1061
        %v2152 = vunpack.c.l.b16 %v1062
        %v2153 = vunpack.c.l.b16 %v1063
        %v2154 = vunpack.c.l.b16 %v1064
        %v2155 = vunpack.c.l.b16 %v1065
        %v2156 = vunpack.c.l.b16 %v1066
        %v2157 = vunpack.c.l.b16 %v1067
        %v2158 = vunpack.c.l.b16 %v1068
        %v2159 = vunpack.c.l.b16 %v1069
        %v2160 = vunpack.c.l.b16 %v1070
        %v2161 = vunpack.c.l.b16 %v1071
        %v2162 = vunpack.c.l.b16 %v1072
        %v2163 = vunpack.c.l.b16 %v1073
        %v2164 = vunpack.c.l.b16 %v1074
        %v2165 = vunpack.c.l.b16 %v1075
        %v2166 = vunpack.c.l.b16 %v1076
        %v2167 = vunpack.c.l.b16 %v1077
        %v2168 = vunpack.c.l.b16 %v1078
        %v2169 = vunpack.c.l.b16 %v1079
        %v2170 = vunpack.c.l.b16 %v1080
        %v2171 = vunpack.c.l.b16 %v1081
        %v2172 = vunpack.c.l.b16 %v1082
        %v2173 = vunpack.c.l.b16 %v1083
        %v2174 = vunpack.c.l.b16 %v1084
        %v2175 = vunpack.c.l.b16 %v1085
        %v2176 = vpack.c.b16 %v2145, %v2144
        %v2177 = vpack.c.b16 %v2147, %v2146
        %v2178 = vpack.c.b16 %v2149, %v2148
        %v2179 = vpack.c.b16 %v2151, %v2150
        %v2180 = vpack.c.b16 %v2153, %v2152
        %v2181 = vpack.c.b16 %v2155, %v2154
        %v2182 = vpack.c.b16 %v2157, %v2156
        %v2183 = vpack.c.b16 %v2159, %v2158
        %v2184 = vpack.c.b16 %v2161, %v2160
        %v2185 = vpack.c.b16 %v2163, %v2162
        %v2186 = vpack.c.b16 %v2165, %v2164
        %v2187 = vpack.c.b16 %v2167, %v2166
        %v2188 = vpack.c.b16 %v2169, %v2168
        %v2189 = vpack.c.b16 %v2171, %v2170
        %v2190 = vpack.c.b16 %v2173, %v2172
        %v2191 = vpack.c.b16 %v2175, %v2174
        %2192 = vrot.lane.b32.xlu0 %v2176, 18
        %v2193 = vpop.permute.xlu0 %2192
        %2194 = vrot.lane.b32.xlu0 %v2177, 18
        %v2195 = vpop.permute.xlu0 %2194
        %2196 = vrot.lane.b32.xlu0 %v2178, 18
        %v2197 = vpop.permute.xlu0 %2196
        %2198 = vrot.lane.b32.xlu0 %v2179, 18
        %v2199 = vpop.permute.xlu0 %2198
        %2200 = vrot.lane.b32.xlu0 %v2180, 18
        %v2201 = vpop.permute.xlu0 %2200
        %2202 = vrot.lane.b32.xlu0 %v2181, 18
        %v2203 = vpop.permute.xlu0 %2202
        %2204 = vrot.lane.b32.xlu0 %v2182, 18
        %v2205 = vpop.permute.xlu0 %2204
        %2206 = vrot.lane.b32.xlu0 %v2183, 18
        %v2207 = vpop.permute.xlu0 %2206
        %2208 = vrot.lane.b32.xlu0 %v2184, 18
        %v2209 = vpop.permute.xlu0 %2208
        %2210 = vrot.lane.b32.xlu0 %v2185, 18
        %v2211 = vpop.permute.xlu0 %2210
        %2212 = vrot.lane.b32.xlu0 %v2186, 18
        %v2213 = vpop.permute.xlu0 %2212
        %2214 = vrot.lane.b32.xlu0 %v2187, 18
        %v2215 = vpop.permute.xlu0 %2214
        %2216 = vrot.lane.b32.xlu0 %v2188, 18
        %v2217 = vpop.permute.xlu0 %2216
        %2218 = vrot.lane.b32.xlu0 %v2189, 18
        %v2219 = vpop.permute.xlu0 %2218
        %2220 = vrot.lane.b32.xlu0 %v2190, 18
        %v2221 = vpop.permute.xlu0 %2220
        %2222 = vrot.lane.b32.xlu0 %v2191, 18
        %v2223 = vpop.permute.xlu0 %2222
        %v2240 = vunpack.c.l.b16 %v1086
        %v2241 = vunpack.c.l.b16 %v1087
        %v2242 = vunpack.c.l.b16 %v1088
        %v2243 = vunpack.c.l.b16 %v1089
        %v2244 = vunpack.c.l.b16 %v1090
        %v2245 = vunpack.c.l.b16 %v1091
        %v2246 = vunpack.c.l.b16 %v1092
        %v2247 = vunpack.c.l.b16 %v1093
        %v2248 = vunpack.c.l.b16 %v1094
        %v2249 = vunpack.c.l.b16 %v1095
        %v2250 = vunpack.c.l.b16 %v1096
        %v2251 = vunpack.c.l.b16 %v1097
        %v2252 = vunpack.c.l.b16 %v1098
        %v2253 = vunpack.c.l.b16 %v1099
        %v2254 = vunpack.c.l.b16 %v1100
        %v2255 = vunpack.c.l.b16 %v1101
        %v2256 = vpack.c.b16 %v2240, %v2240
        %v2257 = vpack.c.b16 %v2241, %v2241
        %v2258 = vpack.c.b16 %v2242, %v2242
        %v2259 = vpack.c.b16 %v2243, %v2243
        %v2260 = vpack.c.b16 %v2244, %v2244
        %v2261 = vpack.c.b16 %v2245, %v2245
        %v2262 = vpack.c.b16 %v2246, %v2246
        %v2263 = vpack.c.b16 %v2247, %v2247
        %v2264 = vpack.c.b16 %v2248, %v2248
        %v2265 = vpack.c.b16 %v2249, %v2249
        %v2266 = vpack.c.b16 %v2250, %v2250
        %v2267 = vpack.c.b16 %v2251, %v2251
        %v2268 = vpack.c.b16 %v2252, %v2252
        %v2269 = vpack.c.b16 %v2253, %v2253
        %v2270 = vpack.c.b16 %v2254, %v2254
        %v2271 = vpack.c.b16 %v2255, %v2255
        %v2273 = vshrl.u32 %v2176, 16
        %v2275 = vshll.u32 %v2176, 16
        %v2277 = vrot.slane %v2275, 1
        %v2278 = vor.u32 %v2273, %v2277
        %v2280 = vshll.u32 %v2256, 16
        %v2282 = vrot.slane %v2280, 1
        %v2283 = vsel %vm1246, %v2278, %v2282
        %v2285 = vshrl.u32 %v2177, 16
        %v2287 = vshll.u32 %v2177, 16
        %v2289 = vrot.slane %v2287, 1
        %v2290 = vor.u32 %v2285, %v2289
        %v2292 = vshll.u32 %v2257, 16
        %v2294 = vrot.slane %v2292, 1
        %v2295 = vsel %vm1246, %v2290, %v2294
        %v2297 = vshrl.u32 %v2178, 16
        %v2299 = vshll.u32 %v2178, 16
        %v2301 = vrot.slane %v2299, 1
        %v2302 = vor.u32 %v2297, %v2301
        %v2304 = vshll.u32 %v2258, 16
        %v2306 = vrot.slane %v2304, 1
        %v2307 = vsel %vm1246, %v2302, %v2306
        %v2309 = vshrl.u32 %v2179, 16
        %v2311 = vshll.u32 %v2179, 16
        %v2313 = vrot.slane %v2311, 1
        %v2314 = vor.u32 %v2309, %v2313
        %v2316 = vshll.u32 %v2259, 16
        %v2318 = vrot.slane %v2316, 1
        %v2319 = vsel %vm1246, %v2314, %v2318
        %v2321 = vshrl.u32 %v2180, 16
        %v2323 = vshll.u32 %v2180, 16
        %v2325 = vrot.slane %v2323, 1
        %v2326 = vor.u32 %v2321, %v2325
        %v2328 = vshll.u32 %v2260, 16
        %v2330 = vrot.slane %v2328, 1
        %v2331 = vsel %vm1246, %v2326, %v2330
        %v2333 = vshrl.u32 %v2181, 16
        %v2335 = vshll.u32 %v2181, 16
        %v2337 = vrot.slane %v2335, 1
        %v2338 = vor.u32 %v2333, %v2337
        %v2340 = vshll.u32 %v2261, 16
        %v2342 = vrot.slane %v2340, 1
        %v2343 = vsel %vm1246, %v2338, %v2342
        %v2345 = vshrl.u32 %v2182, 16
        %v2347 = vshll.u32 %v2182, 16
        %v2349 = vrot.slane %v2347, 1
        %v2350 = vor.u32 %v2345, %v2349
        %v2352 = vshll.u32 %v2262, 16
        %v2354 = vrot.slane %v2352, 1
        %v2355 = vsel %vm1246, %v2350, %v2354
        %v2357 = vshrl.u32 %v2183, 16
        %v2359 = vshll.u32 %v2183, 16
        %v2361 = vrot.slane %v2359, 1
        %v2362 = vor.u32 %v2357, %v2361
        %v2364 = vshll.u32 %v2263, 16
        %v2366 = vrot.slane %v2364, 1
        %v2367 = vsel %vm1246, %v2362, %v2366
        %v2369 = vshrl.u32 %v2184, 16
        %v2371 = vshll.u32 %v2184, 16
        %v2373 = vrot.slane %v2371, 1
        %v2374 = vor.u32 %v2369, %v2373
        %v2376 = vshll.u32 %v2264, 16
        %v2378 = vrot.slane %v2376, 1
        %v2379 = vsel %vm1246, %v2374, %v2378
        %v2381 = vshrl.u32 %v2185, 16
        %v2383 = vshll.u32 %v2185, 16
        %v2385 = vrot.slane %v2383, 1
        %v2386 = vor.u32 %v2381, %v2385
        %v2388 = vshll.u32 %v2265, 16
        %v2390 = vrot.slane %v2388, 1
        %v2391 = vsel %vm1246, %v2386, %v2390
        %v2393 = vshrl.u32 %v2186, 16
        %v2395 = vshll.u32 %v2186, 16
        %v2397 = vrot.slane %v2395, 1
        %v2398 = vor.u32 %v2393, %v2397
        %v2400 = vshll.u32 %v2266, 16
        %v2402 = vrot.slane %v2400, 1
        %v2403 = vsel %vm1246, %v2398, %v2402
        %v2405 = vshrl.u32 %v2187, 16
        %v2407 = vshll.u32 %v2187, 16
        %v2409 = vrot.slane %v2407, 1
        %v2410 = vor.u32 %v2405, %v2409
        %v2412 = vshll.u32 %v2267, 16
        %v2414 = vrot.slane %v2412, 1
        %v2415 = vsel %vm1246, %v2410, %v2414
        %v2417 = vshrl.u32 %v2188, 16
        %v2419 = vshll.u32 %v2188, 16
        %v2421 = vrot.slane %v2419, 1
        %v2422 = vor.u32 %v2417, %v2421
        %v2424 = vshll.u32 %v2268, 16
        %v2426 = vrot.slane %v2424, 1
        %v2427 = vsel %vm1246, %v2422, %v2426
        %v2429 = vshrl.u32 %v2189, 16
        %v2431 = vshll.u32 %v2189, 16
        %v2433 = vrot.slane %v2431, 1
        %v2434 = vor.u32 %v2429, %v2433
        %v2436 = vshll.u32 %v2269, 16
        %v2438 = vrot.slane %v2436, 1
        %v2439 = vsel %vm1246, %v2434, %v2438
        %v2441 = vshrl.u32 %v2190, 16
        %v2443 = vshll.u32 %v2190, 16
        %v2445 = vrot.slane %v2443, 1
        %v2446 = vor.u32 %v2441, %v2445
        %v2448 = vshll.u32 %v2270, 16
        %v2450 = vrot.slane %v2448, 1
        %v2451 = vsel %vm1246, %v2446, %v2450
        %v2453 = vshrl.u32 %v2191, 16
        %v2455 = vshll.u32 %v2191, 16
        %v2457 = vrot.slane %v2455, 1
        %v2458 = vor.u32 %v2453, %v2457
        %v2460 = vshll.u32 %v2271, 16
        %v2462 = vrot.slane %v2460, 1
        %v2463 = vsel %vm1246, %v2458, %v2462
        %2464 = vrot.lane.b32.xlu0 %v2283, 21
        %v2465 = vpop.permute.xlu0 %2464
        %2466 = vrot.lane.b32.xlu0 %v2295, 21
        %v2467 = vpop.permute.xlu0 %2466
        %2468 = vrot.lane.b32.xlu0 %v2307, 21
        %v2469 = vpop.permute.xlu0 %2468
        %2470 = vrot.lane.b32.xlu0 %v2319, 21
        %v2471 = vpop.permute.xlu0 %2470
        %2472 = vrot.lane.b32.xlu0 %v2331, 21
        %v2473 = vpop.permute.xlu0 %2472
        %2474 = vrot.lane.b32.xlu0 %v2343, 21
        %v2475 = vpop.permute.xlu0 %2474
        %2476 = vrot.lane.b32.xlu0 %v2355, 21
        %v2477 = vpop.permute.xlu0 %2476
        %2478 = vrot.lane.b32.xlu0 %v2367, 21
        %v2479 = vpop.permute.xlu0 %2478
        %2480 = vrot.lane.b32.xlu0 %v2379, 21
        %v2481 = vpop.permute.xlu0 %2480
        %2482 = vrot.lane.b32.xlu0 %v2391, 21
        %v2483 = vpop.permute.xlu0 %2482
        %2484 = vrot.lane.b32.xlu0 %v2403, 21
        %v2485 = vpop.permute.xlu0 %2484
        %2486 = vrot.lane.b32.xlu0 %v2415, 21
        %v2487 = vpop.permute.xlu0 %2486
        %2488 = vrot.lane.b32.xlu0 %v2427, 21
        %v2489 = vpop.permute.xlu0 %2488
        %2490 = vrot.lane.b32.xlu0 %v2439, 21
        %v2491 = vpop.permute.xlu0 %2490
        %2492 = vrot.lane.b32.xlu0 %v2451, 21
        %v2493 = vpop.permute.xlu0 %2492
        %2494 = vrot.lane.b32.xlu0 %v2463, 21
        %v2495 = vpop.permute.xlu0 %2494
        %v2512 = vunpack.c.l.b16 %v1102
        %v2513 = vunpack.c.l.b16 %v1103
        %v2514 = vunpack.c.l.b16 %v1104
        %v2515 = vunpack.c.l.b16 %v1105
        %v2516 = vunpack.c.l.b16 %v1106
        %v2517 = vunpack.c.l.b16 %v1107
        %v2518 = vunpack.c.l.b16 %v1108
        %v2519 = vunpack.c.l.b16 %v1109
        %v2520 = vunpack.c.l.b16 %v1110
        %v2521 = vunpack.c.l.b16 %v1111
        %v2522 = vunpack.c.l.b16 %v1112
        %v2523 = vunpack.c.l.b16 %v1113
        %v2524 = vunpack.c.l.b16 %v1114
        %v2525 = vunpack.c.l.b16 %v1115
        %v2526 = vunpack.c.l.b16 %v1116
        %v2527 = vunpack.c.l.b16 %v1117
        %v2528 = vpack.c.b16 %v2145, %v2512
        %v2529 = vpack.c.b16 %v2147, %v2513
        %v2530 = vpack.c.b16 %v2149, %v2514
        %v2531 = vpack.c.b16 %v2151, %v2515
        %v2532 = vpack.c.b16 %v2153, %v2516
        %v2533 = vpack.c.b16 %v2155, %v2517
        %v2534 = vpack.c.b16 %v2157, %v2518
        %v2535 = vpack.c.b16 %v2159, %v2519
        %v2536 = vpack.c.b16 %v2161, %v2520
        %v2537 = vpack.c.b16 %v2163, %v2521
        %v2538 = vpack.c.b16 %v2165, %v2522
        %v2539 = vpack.c.b16 %v2167, %v2523
        %v2540 = vpack.c.b16 %v2169, %v2524
        %v2541 = vpack.c.b16 %v2171, %v2525
        %v2542 = vpack.c.b16 %v2173, %v2526
        %v2543 = vpack.c.b16 %v2175, %v2527
        %v2544 = vrot.slane %v2528, 1
        %v2545 = vrot.slane %v2256, 1
        %v2546 = vsel %vm1519, %v2544, %v2545
        %v2547 = vrot.slane %v2529, 1
        %v2548 = vrot.slane %v2257, 1
        %v2549 = vsel %vm1519, %v2547, %v2548
        %v2550 = vrot.slane %v2530, 1
        %v2551 = vrot.slane %v2258, 1
        %v2552 = vsel %vm1519, %v2550, %v2551
        %v2553 = vrot.slane %v2531, 1
        %v2554 = vrot.slane %v2259, 1
        %v2555 = vsel %vm1519, %v2553, %v2554
        %v2556 = vrot.slane %v2532, 1
        %v2557 = vrot.slane %v2260, 1
        %v2558 = vsel %vm1519, %v2556, %v2557
        %v2559 = vrot.slane %v2533, 1
        %v2560 = vrot.slane %v2261, 1
        %v2561 = vsel %vm1519, %v2559, %v2560
        %v2562 = vrot.slane %v2534, 1
        %v2563 = vrot.slane %v2262, 1
        %v2564 = vsel %vm1519, %v2562, %v2563
        %v2565 = vrot.slane %v2535, 1
        %v2566 = vrot.slane %v2263, 1
        %v2567 = vsel %vm1519, %v2565, %v2566
        %v2568 = vrot.slane %v2536, 1
        %v2569 = vrot.slane %v2264, 1
        %v2570 = vsel %vm1519, %v2568, %v2569
        %v2571 = vrot.slane %v2537, 1
        %v2572 = vrot.slane %v2265, 1
        %v2573 = vsel %vm1519, %v2571, %v2572
        %v2574 = vrot.slane %v2538, 1
        %v2575 = vrot.slane %v2266, 1
        %v2576 = vsel %vm1519, %v2574, %v2575
        %v2577 = vrot.slane %v2539, 1
        %v2578 = vrot.slane %v2267, 1
        %v2579 = vsel %vm1519, %v2577, %v2578
        %v2580 = vrot.slane %v2540, 1
        %v2581 = vrot.slane %v2268, 1
        %v2582 = vsel %vm1519, %v2580, %v2581
        %v2583 = vrot.slane %v2541, 1
        %v2584 = vrot.slane %v2269, 1
        %v2585 = vsel %vm1519, %v2583, %v2584
        %v2586 = vrot.slane %v2542, 1
        %v2587 = vrot.slane %v2270, 1
        %v2588 = vsel %vm1519, %v2586, %v2587
        %v2589 = vrot.slane %v2543, 1
        %v2590 = vrot.slane %v2271, 1
        %v2591 = vsel %vm1519, %v2589, %v2590
        %2592 = vrot.lane.b32.xlu0 %v2546, 24
        %v2593 = vpop.permute.xlu0 %2592
        %2594 = vrot.lane.b32.xlu0 %v2549, 24
        %v2595 = vpop.permute.xlu0 %2594
        %2596 = vrot.lane.b32.xlu0 %v2552, 24
        %v2597 = vpop.permute.xlu0 %2596
        %2598 = vrot.lane.b32.xlu0 %v2555, 24
        %v2599 = vpop.permute.xlu0 %2598
        %2600 = vrot.lane.b32.xlu0 %v2558, 24
        %v2601 = vpop.permute.xlu0 %2600
        %2602 = vrot.lane.b32.xlu0 %v2561, 24
        %v2603 = vpop.permute.xlu0 %2602
        %2604 = vrot.lane.b32.xlu0 %v2564, 24
        %v2605 = vpop.permute.xlu0 %2604
        %2606 = vrot.lane.b32.xlu0 %v2567, 24
        %v2607 = vpop.permute.xlu0 %2606
        %2608 = vrot.lane.b32.xlu0 %v2570, 24
        %v2609 = vpop.permute.xlu0 %2608
        %2610 = vrot.lane.b32.xlu0 %v2573, 24
        %v2611 = vpop.permute.xlu0 %2610
        %2612 = vrot.lane.b32.xlu0 %v2576, 24
        %v2613 = vpop.permute.xlu0 %2612
        %2614 = vrot.lane.b32.xlu0 %v2579, 24
        %v2615 = vpop.permute.xlu0 %2614
        %2616 = vrot.lane.b32.xlu0 %v2582, 24
        %v2617 = vpop.permute.xlu0 %2616
        %2618 = vrot.lane.b32.xlu0 %v2585, 24
        %v2619 = vpop.permute.xlu0 %2618
        %2620 = vrot.lane.b32.xlu0 %v2588, 24
        %v2621 = vpop.permute.xlu0 %2620
        %2622 = vrot.lane.b32.xlu0 %v2591, 24
        %v2623 = vpop.permute.xlu0 %2622
        %vm2624 = vcmask 23552
        %v2626 = vsel %vm2624, %v1182, %v1440
        %v2628 = vsel %vm2624, %v1183, %v1442
        %v2630 = vsel %vm2624, %v1184, %v1444
        %v2632 = vsel %vm2624, %v1185, %v1446
        %v2634 = vsel %vm2624, %v1186, %v1448
        %v2636 = vsel %vm2624, %v1187, %v1450
        %v2638 = vsel %vm2624, %v1188, %v1452
        %v2640 = vsel %vm2624, %v1189, %v1454
        %v2642 = vsel %vm2624, %v1190, %v1456
        %v2644 = vsel %vm2624, %v1191, %v1458
        %v2646 = vsel %vm2624, %v1192, %v1460
        %v2648 = vsel %vm2624, %v1193, %v1462
        %v2650 = vsel %vm2624, %v1194, %v1464
        %v2652 = vsel %vm2624, %v1195, %v1466
        %v2654 = vsel %vm2624, %v1196, %v1468
        %v2656 = vsel %vm2624, %v1197, %v1470
        %vm2657 = vcmask 48128
        %v2659 = vsel %vm2657, %v2626, %v1569
        %v2661 = vsel %vm2657, %v2628, %v1571
        %v2663 = vsel %vm2657, %v2630, %v1573
        %v2665 = vsel %vm2657, %v2632, %v1575
        %v2667 = vsel %vm2657, %v2634, %v1577
        %v2669 = vsel %vm2657, %v2636, %v1579
        %v2671 = vsel %vm2657, %v2638, %v1581
        %v2673 = vsel %vm2657, %v2640, %v1583
        %v2675 = vsel %vm2657, %v2642, %v1585
        %v2677 = vsel %vm2657, %v2644, %v1587
        %v2679 = vsel %vm2657, %v2646, %v1589
        %v2681 = vsel %vm2657, %v2648, %v1591
        %v2683 = vsel %vm2657, %v2650, %v1593
        %v2685 = vsel %vm2657, %v2652, %v1595
        %v2687 = vsel %vm2657, %v2654, %v1597
        %v2689 = vsel %vm2657, %v2656, %v1599
        %vm2690 = vcmask 72704
        %v2692 = vsel %vm2690, %v2659, %v1681
        %v2694 = vsel %vm2690, %v2661, %v1683
        %v2696 = vsel %vm2690, %v2663, %v1685
        %v2698 = vsel %vm2690, %v2665, %v1687
        %v2700 = vsel %vm2690, %v2667, %v1689
        %v2702 = vsel %vm2690, %v2669, %v1691
        %v2704 = vsel %vm2690, %v2671, %v1693
        %v2706 = vsel %vm2690, %v2673, %v1695
        %v2708 = vsel %vm2690, %v2675, %v1697
        %v2710 = vsel %vm2690, %v2677, %v1699
        %v2712 = vsel %vm2690, %v2679, %v1701
        %v2714 = vsel %vm2690, %v2681, %v1703
        %v2716 = vsel %vm2690, %v2683, %v1705
        %v2718 = vsel %vm2690, %v2685, %v1707
        %v2720 = vsel %vm2690, %v2687, %v1709
        %v2722 = vsel %vm2690, %v2689, %v1711
        %vm2723 = vcmask 97280
        %v2725 = vsel %vm2723, %v2692, %v1953
        %v2727 = vsel %vm2723, %v2694, %v1955
        %v2729 = vsel %vm2723, %v2696, %v1957
        %v2731 = vsel %vm2723, %v2698, %v1959
        %v2733 = vsel %vm2723, %v2700, %v1961
        %v2735 = vsel %vm2723, %v2702, %v1963
        %v2737 = vsel %vm2723, %v2704, %v1965
        %v2739 = vsel %vm2723, %v2706, %v1967
        %v2741 = vsel %vm2723, %v2708, %v1969
        %v2743 = vsel %vm2723, %v2710, %v1971
        %v2745 = vsel %vm2723, %v2712, %v1973
        %v2747 = vsel %vm2723, %v2714, %v1975
        %v2749 = vsel %vm2723, %v2716, %v1977
        %v2751 = vsel %vm2723, %v2718, %v1979
        %v2753 = vsel %vm2723, %v2720, %v1981
        %v2755 = vsel %vm2723, %v2722, %v1983
        %vm2756 = vcmask 121856
        %v2758 = vsel %vm2756, %v2725, %v2081
        %v2760 = vsel %vm2756, %v2727, %v2083
        %v2762 = vsel %vm2756, %v2729, %v2085
        %v2764 = vsel %vm2756, %v2731, %v2087
        %v2766 = vsel %vm2756, %v2733, %v2089
        %v2768 = vsel %vm2756, %v2735, %v2091
        %v2770 = vsel %vm2756, %v2737, %v2093
        %v2772 = vsel %vm2756, %v2739, %v2095
        %v2774 = vsel %vm2756, %v2741, %v2097
        %v2776 = vsel %vm2756, %v2743, %v2099
        %v2778 = vsel %vm2756, %v2745, %v2101
        %v2780 = vsel %vm2756, %v2747, %v2103
        %v2782 = vsel %vm2756, %v2749, %v2105
        %v2784 = vsel %vm2756, %v2751, %v2107
        %v2786 = vsel %vm2756, %v2753, %v2109
        %v2788 = vsel %vm2756, %v2755, %v2111
        %vm2789 = vcmask 146432
        %v2791 = vsel %vm2789, %v2758, %v2193
        %v2793 = vsel %vm2789, %v2760, %v2195
        %v2795 = vsel %vm2789, %v2762, %v2197
        %v2797 = vsel %vm2789, %v2764, %v2199
        %v2799 = vsel %vm2789, %v2766, %v2201
        %v2801 = vsel %vm2789, %v2768, %v2203
        %v2803 = vsel %vm2789, %v2770, %v2205
        %v2805 = vsel %vm2789, %v2772, %v2207
        %v2807 = vsel %vm2789, %v2774, %v2209
        %v2809 = vsel %vm2789, %v2776, %v2211
        %v2811 = vsel %vm2789, %v2778, %v2213
        %v2813 = vsel %vm2789, %v2780, %v2215
        %v2815 = vsel %vm2789, %v2782, %v2217
        %v2817 = vsel %vm2789, %v2784, %v2219
        %v2819 = vsel %vm2789, %v2786, %v2221
        %v2821 = vsel %vm2789, %v2788, %v2223
        %vm2822 = vcmask 171008
        %v2824 = vsel %vm2822, %v2791, %v2465
        %v2826 = vsel %vm2822, %v2793, %v2467
        %v2828 = vsel %vm2822, %v2795, %v2469
        %v2830 = vsel %vm2822, %v2797, %v2471
        %v2832 = vsel %vm2822, %v2799, %v2473
        %v2834 = vsel %vm2822, %v2801, %v2475
        %v2836 = vsel %vm2822, %v2803, %v2477
        %v2838 = vsel %vm2822, %v2805, %v2479
        %v2840 = vsel %vm2822, %v2807, %v2481
        %v2842 = vsel %vm2822, %v2809, %v2483
        %v2844 = vsel %vm2822, %v2811, %v2485
        %v2846 = vsel %vm2822, %v2813, %v2487
        %v2848 = vsel %vm2822, %v2815, %v2489
        %v2850 = vsel %vm2822, %v2817, %v2491
        %v2852 = vsel %vm2822, %v2819, %v2493
        %v2854 = vsel %vm2822, %v2821, %v2495
        %vm2855 = vcmask 195584
        %v2857 = vsel %vm2855, %v2824, %v2593
        %v2859 = vsel %vm2855, %v2826, %v2595
        %v2861 = vsel %vm2855, %v2828, %v2597
        %v2863 = vsel %vm2855, %v2830, %v2599
        %v2865 = vsel %vm2855, %v2832, %v2601
        %v2867 = vsel %vm2855, %v2834, %v2603
        %v2869 = vsel %vm2855, %v2836, %v2605
        %v2871 = vsel %vm2855, %v2838, %v2607
        %v2873 = vsel %vm2855, %v2840, %v2609
        %v2875 = vsel %vm2855, %v2842, %v2611
        %v2877 = vsel %vm2855, %v2844, %v2613
        %v2879 = vsel %vm2855, %v2846, %v2615
        %v2881 = vsel %vm2855, %v2848, %v2617
        %v2883 = vsel %vm2855, %v2850, %v2619
        %v2885 = vsel %vm2855, %v2852, %v2621
        %v2887 = vsel %vm2855, %v2854, %v2623
        %v2888 = vld [vmem:[%s1] sm:$0xf]
        %v2889 = vld [vmem:[%s1 + $0x4] sm:$0xf]
        %v2890 = vld [vmem:[%s1 + $0x8] sm:$0xf]
        %v2891 = vld [vmem:[%s1 + $0xc] sm:$0x3]
        %v2892 = vld [vmem:[%s2] sm:$0x1]
        %v2894 = vlaneseq
        %v2895 = vshrl.u32 %v2894, 7
        %v2896 = vsub.s32 0, %v2895
        %v2897 = vrot.slane %v2892, %v2896
        %v2903 = vunpack.c.l.b16 %v2888
        %v2904 = vunpack.c.l.b16 %v2889
        %v2905 = vunpack.c.l.b16 %v2890
        %v2906 = vunpack.c.l.b16 %v2891
        %v2907 = vpack.c.b16 %v2904, %v2903
        %v2908 = vpack.c.b16 %v2906, %v2905
        %vm2910 = vcmask 220160
        %v2911 = vsel %vm2910, %v2857, 0
        %v2913 = vsel %vm2910, %v2859, 0
        %v2915 = vsel %vm2910, %v2861, 0
        %v2917 = vsel %vm2910, %v2863, 0
        %v2919 = vsel %vm2910, %v2865, 0
        %v2921 = vsel %vm2910, %v2867, 0
        %v2923 = vsel %vm2910, %v2869, 0
        %v2925 = vsel %vm2910, %v2871, 0
        %v2927 = vsel %vm2910, %v2873, 0
        %v2929 = vsel %vm2910, %v2875, 0
        %v2931 = vsel %vm2910, %v2877, 0
        %v2933 = vsel %vm2910, %v2879, 0
        %v2935 = vsel %vm2910, %v2881, 0
        %v2937 = vsel %vm2910, %v2883, 0
        %v2939 = vsel %vm2910, %v2885, 0
        %v2941 = vsel %vm2910, %v2887, 0
        %vm2943 = vcmask 1044480
        %vm2944 = vcmask 1045504
        %v2945 = vsel %vm2943, 4294967295, 65535
        %v2946 = vsel %vm2944, %v2945, 0
        %v2948 = vand.u32 %v2908, %v2946
        %2950 = vmatprep.subr.bf16.mxu0 0
        %2951 = vmatpush1.bf16.msra.mxu0 %v2907
        %2952 = vmatprep.subr.bf16.mxu0 0
        %2953 = vmatpush1.bf16.msra.mxu0 %v2948
        %2954 = vmatprep.subr.bf16.mxu0 0
        %2955 = vmatpush1.bf16.msra.mxu0 0
        %2956 = vmatprep.subr.bf16.mxu0 0
        %2957 = vmatpush1.bf16.msra.mxu0 0
        %2958 = vmatprep.subr.bf16.mxu0 0
        %2959 = vmatpush1.bf16.msra.mxu0 0
        %2960 = vmatprep.subr.bf16.mxu0 0
        %2961 = vmatpush1.bf16.msra.mxu0 0
        %2962 = vmatprep.subr.bf16.mxu0 0
        %2963 = vmatpush1.bf16.msra.mxu0 0
        %2964 = vmatprep.subr.bf16.mxu0 0
        %2965 = vmatpush1.bf16.msra.mxu0 0
        %2966 = vmatprep.subr.bf16.mxu0 0
        %2967 = vmatpush1.bf16.msra.mxu0 0
        %2968 = vmatprep.subr.bf16.mxu0 0
        %2969 = vmatpush1.bf16.msra.mxu0 0
        %2970 = vmatprep.subr.bf16.mxu0 0
        %2971 = vmatpush1.bf16.msra.mxu0 0
        %2972 = vmatprep.subr.bf16.mxu0 0
        %2973 = vmatpush1.bf16.msra.mxu0 0
        %2974 = vmatprep.subr.bf16.mxu0 0
        %2975 = vmatpush1.bf16.msra.mxu0 0
        %2976 = vmatprep.subr.bf16.mxu0 0
        %2977 = vmatpush1.bf16.msra.mxu0 0
        %2978 = vmatprep.subr.bf16.mxu0 0
        %2979 = vmatpush1.bf16.msra.mxu0 0
        %2980 = vmatprep.subr.bf16.mxu0 0
        %2981 = vmatpush1.bf16.msra.mxu0 0
        %2982 = vmatprep.mubr.bf16.mxu0 0
        %2983 = vmatmul.mubr.bf16.gmra.mrb[0].mxu0 %v2911
        %v2984 = vpop.f32.mrb[0].mxu0
        %v2985 = vadd.f32 %v2897, %v2984
        %v2986 = vpop.f32.mrb[0].mxu0
        %v2987 = vpop.f32.mrb[0].mxu0
        %v2988 = vadd.f32 %v2897, %v2987
        %v2989 = vpop.f32.mrb[0].mxu0
        %2990 = vmatprep.mubr.bf16.mxu0 0
        %2991 = vmatmul.mubr.bf16.gmra.mrb[0].mxu0 %v2913
        %v2992 = vpop.f32.mrb[0].mxu0
        %v2993 = vadd.f32 %v2897, %v2992
        %v2994 = vpop.f32.mrb[0].mxu0
        %v2995 = vpop.f32.mrb[0].mxu0
        %v2996 = vadd.f32 %v2897, %v2995
        %v2997 = vpop.f32.mrb[0].mxu0
        %2998 = vmatprep.mubr.bf16.mxu0 0
        %2999 = vmatmul.mubr.bf16.gmra.mrb[0].mxu0 %v2915
        %v3000 = vpop.f32.mrb[0].mxu0
        %v3001 = vadd.f32 %v2897, %v3000
        %v3002 = vpop.f32.mrb[0].mxu0
        %v3003 = vpop.f32.mrb[0].mxu0
        %v3004 = vadd.f32 %v2897, %v3003
        %v3005 = vpop.f32.mrb[0].mxu0
        %3006 = vmatprep.mubr.bf16.mxu0 0
        %3007 = vmatmul.mubr.bf16.gmra.mrb[0].mxu0 %v2917
        %v3008 = vpop.f32.mrb[0].mxu0
        %v3009 = vadd.f32 %v2897, %v3008
        %v3010 = vpop.f32.mrb[0].mxu0
        %v3011 = vpop.f32.mrb[0].mxu0
        %v3012 = vadd.f32 %v2897, %v3011
        %v3013 = vpop.f32.mrb[0].mxu0
        %3014 = vmatprep.mubr.bf16.mxu0 0
        %3015 = vmatmul.mubr.bf16.gmra.mrb[0].mxu0 %v2919
        %v3016 = vpop.f32.mrb[0].mxu0
        %v3017 = vadd.f32 %v2897, %v3016
        %v3018 = vpop.f32.mrb[0].mxu0
        %v3019 = vpop.f32.mrb[0].mxu0
        %v3020 = vadd.f32 %v2897, %v3019
        %v3021 = vpop.f32.mrb[0].mxu0
        %3022 = vmatprep.mubr.bf16.mxu0 0
        %3023 = vmatmul.mubr.bf16.gmra.mrb[0].mxu0 %v2921
        %v3024 = vpop.f32.mrb[0].mxu0
        %v3025 = vadd.f32 %v2897, %v3024
        %v3026 = vpop.f32.mrb[0].mxu0
        %v3027 = vpop.f32.mrb[0].mxu0
        %v3028 = vadd.f32 %v2897, %v3027
        %v3029 = vpop.f32.mrb[0].mxu0
        %3030 = vmatprep.mubr.bf16.mxu0 0
        %3031 = vmatmul.mubr.bf16.gmra.mrb[0].mxu0 %v2923
        %v3032 = vpop.f32.mrb[0].mxu0
        %v3033 = vadd.f32 %v2897, %v3032
        %v3034 = vpop.f32.mrb[0].mxu0
        %v3035 = vpop.f32.mrb[0].mxu0
        %v3036 = vadd.f32 %v2897, %v3035
        %v3037 = vpop.f32.mrb[0].mxu0
        %3038 = vmatprep.mubr.bf16.mxu0 0
        %3039 = vmatmul.mubr.bf16.gmra.mrb[0].mxu0 %v2925
        %v3040 = vpop.f32.mrb[0].mxu0
        %v3041 = vadd.f32 %v2897, %v3040
        %v3042 = vpop.f32.mrb[0].mxu0
        %v3043 = vpop.f32.mrb[0].mxu0
        %v3044 = vadd.f32 %v2897, %v3043
        %v3045 = vpop.f32.mrb[0].mxu0
        %3046 = vmatprep.mubr.bf16.mxu0 0
        %3047 = vmatmul.mubr.bf16.gmra.mrb[0].mxu0 %v2927
        %v3048 = vpop.f32.mrb[0].mxu0
        %v3049 = vadd.f32 %v2897, %v3048
        %v3050 = vpop.f32.mrb[0].mxu0
        %v3051 = vpop.f32.mrb[0].mxu0
        %v3052 = vadd.f32 %v2897, %v3051
        %v3053 = vpop.f32.mrb[0].mxu0
        %3054 = vmatprep.mubr.bf16.mxu0 0
        %3055 = vmatmul.mubr.bf16.gmra.mrb[0].mxu0 %v2929
        %v3056 = vpop.f32.mrb[0].mxu0
        %v3057 = vadd.f32 %v2897, %v3056
        %v3058 = vpop.f32.mrb[0].mxu0
        %v3059 = vpop.f32.mrb[0].mxu0
        %v3060 = vadd.f32 %v2897, %v3059
        %v3061 = vpop.f32.mrb[0].mxu0
        %3062 = vmatprep.mubr.bf16.mxu0 0
        %3063 = vmatmul.mubr.bf16.gmra.mrb[0].mxu0 %v2931
        %v3064 = vpop.f32.mrb[0].mxu0
        %v3065 = vadd.f32 %v2897, %v3064
        %v3066 = vpop.f32.mrb[0].mxu0
        %v3067 = vpop.f32.mrb[0].mxu0
        %v3068 = vadd.f32 %v2897, %v3067
        %v3069 = vpop.f32.mrb[0].mxu0
        %3070 = vmatprep.mubr.bf16.mxu0 0
        %3071 = vmatmul.mubr.bf16.gmra.mrb[0].mxu0 %v2933
        %v3072 = vpop.f32.mrb[0].mxu0
        %v3073 = vadd.f32 %v2897, %v3072
        %v3074 = vpop.f32.mrb[0].mxu0
        %v3075 = vpop.f32.mrb[0].mxu0
        %v3076 = vadd.f32 %v2897, %v3075
        %v3077 = vpop.f32.mrb[0].mxu0
        %3078 = vmatprep.mubr.bf16.mxu0 0
        %3079 = vmatmul.mubr.bf16.gmra.mrb[0].mxu0 %v2935
        %v3080 = vpop.f32.mrb[0].mxu0
        %v3081 = vadd.f32 %v2897, %v3080
        %v3082 = vpop.f32.mrb[0].mxu0
        %v3083 = vpop.f32.mrb[0].mxu0
        %v3084 = vadd.f32 %v2897, %v3083
        %v3085 = vpop.f32.mrb[0].mxu0
        %3086 = vmatprep.mubr.bf16.mxu0 0
        %3087 = vmatmul.mubr.bf16.gmra.mrb[0].mxu0 %v2937
        %v3088 = vpop.f32.mrb[0].mxu0
        %v3089 = vadd.f32 %v2897, %v3088
        %v3090 = vpop.f32.mrb[0].mxu0
        %v3091 = vpop.f32.mrb[0].mxu0
        %v3092 = vadd.f32 %v2897, %v3091
        %v3093 = vpop.f32.mrb[0].mxu0
        %3094 = vmatprep.mubr.bf16.mxu0 0
        %3095 = vmatmul.mubr.bf16.gmra.mrb[0].mxu0 %v2939
        %v3096 = vpop.f32.mrb[0].mxu0
        %v3097 = vadd.f32 %v2897, %v3096
        %v3098 = vpop.f32.mrb[0].mxu0
        %v3099 = vpop.f32.mrb[0].mxu0
        %v3100 = vadd.f32 %v2897, %v3099
        %v3101 = vpop.f32.mrb[0].mxu0
        %3102 = vmatprep.mubr.bf16.mxu0 0
        %3103 = vmatmul.mubr.bf16.gmra.mrb[0].mxu0 %v2941
        %v3104 = vpop.f32.mrb[0].mxu0
        %v3105 = vadd.f32 %v2897, %v3104
        %v3106 = vpop.f32.mrb[0].mxu0
        %v3107 = vpop.f32.mrb[0].mxu0
        %v3108 = vadd.f32 %v2897, %v3107
        %v3109 = vpop.f32.mrb[0].mxu0
        %3110 = vdwg.mxu0
        %v3111 = vmax.f32 %v2985, 0.0
        %v3112 = vmax.f32 %v2988, 0.0
        %v3113 = vmax.f32 %v2993, 0.0
        %v3114 = vmax.f32 %v2996, 0.0
        %v3115 = vmax.f32 %v3001, 0.0
        %v3116 = vmax.f32 %v3004, 0.0
        %v3117 = vmax.f32 %v3009, 0.0
        %v3118 = vmax.f32 %v3012, 0.0
        %v3119 = vmax.f32 %v3017, 0.0
        %v3120 = vmax.f32 %v3020, 0.0
        %v3121 = vmax.f32 %v3025, 0.0
        %v3122 = vmax.f32 %v3028, 0.0
        %v3123 = vmax.f32 %v3033, 0.0
        %v3124 = vmax.f32 %v3036, 0.0
        %v3125 = vmax.f32 %v3041, 0.0
        %v3126 = vmax.f32 %v3044, 0.0
        %v3127 = vmax.f32 %v3049, 0.0
        %v3128 = vmax.f32 %v3052, 0.0
        %v3129 = vmax.f32 %v3057, 0.0
        %v3130 = vmax.f32 %v3060, 0.0
        %v3131 = vmax.f32 %v3065, 0.0
        %v3132 = vmax.f32 %v3068, 0.0
        %v3133 = vmax.f32 %v3073, 0.0
        %v3134 = vmax.f32 %v3076, 0.0
        %v3135 = vmax.f32 %v3081, 0.0
        %v3136 = vmax.f32 %v3084, 0.0
        %v3137 = vmax.f32 %v3089, 0.0
        %v3138 = vmax.f32 %v3092, 0.0
        %v3139 = vmax.f32 %v3097, 0.0
        %v3140 = vmax.f32 %v3100, 0.0
        %v3141 = vmax.f32 %v3105, 0.0
        %v3142 = vmax.f32 %v3108, 0.0
        %v3175 = vcombine.high %v3111, %v3111
        %v3177 = vunpack.c.l.s4 1983009808
        %v3178 = vunpack.c.0.s8 %v3177
        %v3179 = vlaneseq
        %v3180 = vshrl.u32 %v3179, 7
        %v3181 = vsub.s32 %v3178, %v3180
        %v3182 = vrot.slane %v3111, %v3181
        %v3184 = vunpack.c.l.s4 1983009808
        %v3185 = vunpack.c.0.s8 %v3184
        %v3186 = vlaneseq
        %v3187 = vshrl.u32 %v3186, 7
        %v3188 = vsub.s32 %v3185, %v3187
        %v3189 = vrot.slane %v3175, %v3188
        %v3190 = vcombine.high %v3182, %v3182
        %v3191 = vcombine.high %v3189, %v3189
        %v3192 = vcombine.high %v3112, %v3112
        %v3194 = vunpack.c.l.s4 1983009808
        %v3195 = vunpack.c.0.s8 %v3194
        %v3196 = vlaneseq
        %v3197 = vshrl.u32 %v3196, 7
        %v3198 = vsub.s32 %v3195, %v3197
        %v3199 = vrot.slane %v3112, %v3198
        %v3201 = vunpack.c.l.s4 1983009808
        %v3202 = vunpack.c.0.s8 %v3201
        %v3203 = vlaneseq
        %v3204 = vshrl.u32 %v3203, 7
        %v3205 = vsub.s32 %v3202, %v3204
        %v3206 = vrot.slane %v3192, %v3205
        %v3207 = vcombine.high %v3199, %v3199
        %v3208 = vcombine.high %v3206, %v3206
        %v3209 = vcombine.high %v3113, %v3113
        %v3211 = vunpack.c.l.s4 1983009808
        %v3212 = vunpack.c.0.s8 %v3211
        %v3213 = vlaneseq
        %v3214 = vshrl.u32 %v3213, 7
        %v3215 = vsub.s32 %v3212, %v3214
        %v3216 = vrot.slane %v3113, %v3215
        %v3218 = vunpack.c.l.s4 1983009808
        %v3219 = vunpack.c.0.s8 %v3218
        %v3220 = vlaneseq
        %v3221 = vshrl.u32 %v3220, 7
        %v3222 = vsub.s32 %v3219, %v3221
        %v3223 = vrot.slane %v3209, %v3222
        %v3224 = vcombine.high %v3216, %v3216
        %v3225 = vcombine.high %v3223, %v3223
        %v3226 = vcombine.high %v3114, %v3114
        %v3228 = vunpack.c.l.s4 1983009808
        %v3229 = vunpack.c.0.s8 %v3228
        %v3230 = vlaneseq
        %v3231 = vshrl.u32 %v3230, 7
        %v3232 = vsub.s32 %v3229, %v3231
        %v3233 = vrot.slane %v3114, %v3232
        %v3235 = vunpack.c.l.s4 1983009808
        %v3236 = vunpack.c.0.s8 %v3235
        %v3237 = vlaneseq
        %v3238 = vshrl.u32 %v3237, 7
        %v3239 = vsub.s32 %v3236, %v3238
        %v3240 = vrot.slane %v3226, %v3239
        %v3241 = vcombine.high %v3233, %v3233
        %v3242 = vcombine.high %v3240, %v3240
        %v3243 = vcombine.high %v3115, %v3115
        %v3245 = vunpack.c.l.s4 1983009808
        %v3246 = vunpack.c.0.s8 %v3245
        %v3247 = vlaneseq
        %v3248 = vshrl.u32 %v3247, 7
        %v3249 = vsub.s32 %v3246, %v3248
        %v3250 = vrot.slane %v3115, %v3249
        %v3252 = vunpack.c.l.s4 1983009808
        %v3253 = vunpack.c.0.s8 %v3252
        %v3254 = vlaneseq
        %v3255 = vshrl.u32 %v3254, 7
        %v3256 = vsub.s32 %v3253, %v3255
        %v3257 = vrot.slane %v3243, %v3256
        %v3258 = vcombine.high %v3250, %v3250
        %v3259 = vcombine.high %v3257, %v3257
        %v3260 = vcombine.high %v3116, %v3116
        %v3262 = vunpack.c.l.s4 1983009808
        %v3263 = vunpack.c.0.s8 %v3262
        %v3264 = vlaneseq
        %v3265 = vshrl.u32 %v3264, 7
        %v3266 = vsub.s32 %v3263, %v3265
        %v3267 = vrot.slane %v3116, %v3266
        %v3269 = vunpack.c.l.s4 1983009808
        %v3270 = vunpack.c.0.s8 %v3269
        %v3271 = vlaneseq
        %v3272 = vshrl.u32 %v3271, 7
        %v3273 = vsub.s32 %v3270, %v3272
        %v3274 = vrot.slane %v3260, %v3273
        %v3275 = vcombine.high %v3267, %v3267
        %v3276 = vcombine.high %v3274, %v3274
        %v3277 = vcombine.high %v3117, %v3117
        %v3279 = vunpack.c.l.s4 1983009808
        %v3280 = vunpack.c.0.s8 %v3279
        %v3281 = vlaneseq
        %v3282 = vshrl.u32 %v3281, 7
        %v3283 = vsub.s32 %v3280, %v3282
        %v3284 = vrot.slane %v3117, %v3283
        %v3286 = vunpack.c.l.s4 1983009808
        %v3287 = vunpack.c.0.s8 %v3286
        %v3288 = vlaneseq
        %v3289 = vshrl.u32 %v3288, 7
        %v3290 = vsub.s32 %v3287, %v3289
        %v3291 = vrot.slane %v3277, %v3290
        %v3292 = vcombine.high %v3284, %v3284
        %v3293 = vcombine.high %v3291, %v3291
        %v3294 = vcombine.high %v3118, %v3118
        %v3296 = vunpack.c.l.s4 1983009808
        %v3297 = vunpack.c.0.s8 %v3296
        %v3298 = vlaneseq
        %v3299 = vshrl.u32 %v3298, 7
        %v3300 = vsub.s32 %v3297, %v3299
        %v3301 = vrot.slane %v3118, %v3300
        %v3303 = vunpack.c.l.s4 1983009808
        %v3304 = vunpack.c.0.s8 %v3303
        %v3305 = vlaneseq
        %v3306 = vshrl.u32 %v3305, 7
        %v3307 = vsub.s32 %v3304, %v3306
        %v3308 = vrot.slane %v3294, %v3307
        %v3309 = vcombine.high %v3301, %v3301
        %v3310 = vcombine.high %v3308, %v3308
        %v3311 = vcombine.high %v3119, %v3119
        %v3313 = vunpack.c.l.s4 1983009808
        %v3314 = vunpack.c.0.s8 %v3313
        %v3315 = vlaneseq
        %v3316 = vshrl.u32 %v3315, 7
        %v3317 = vsub.s32 %v3314, %v3316
        %v3318 = vrot.slane %v3119, %v3317
        %v3320 = vunpack.c.l.s4 1983009808
        %v3321 = vunpack.c.0.s8 %v3320
        %v3322 = vlaneseq
        %v3323 = vshrl.u32 %v3322, 7
        %v3324 = vsub.s32 %v3321, %v3323
        %v3325 = vrot.slane %v3311, %v3324
        %v3326 = vcombine.high %v3318, %v3318
        %v3327 = vcombine.high %v3325, %v3325
        %v3328 = vcombine.high %v3120, %v3120
        %v3330 = vunpack.c.l.s4 1983009808
        %v3331 = vunpack.c.0.s8 %v3330
        %v3332 = vlaneseq
        %v3333 = vshrl.u32 %v3332, 7
        %v3334 = vsub.s32 %v3331, %v3333
        %v3335 = vrot.slane %v3120, %v3334
        %v3337 = vunpack.c.l.s4 1983009808
        %v3338 = vunpack.c.0.s8 %v3337
        %v3339 = vlaneseq
        %v3340 = vshrl.u32 %v3339, 7
        %v3341 = vsub.s32 %v3338, %v3340
        %v3342 = vrot.slane %v3328, %v3341
        %v3343 = vcombine.high %v3335, %v3335
        %v3344 = vcombine.high %v3342, %v3342
        %v3345 = vcombine.high %v3121, %v3121
        %v3347 = vunpack.c.l.s4 1983009808
        %v3348 = vunpack.c.0.s8 %v3347
        %v3349 = vlaneseq
        %v3350 = vshrl.u32 %v3349, 7
        %v3351 = vsub.s32 %v3348, %v3350
        %v3352 = vrot.slane %v3121, %v3351
        %v3354 = vunpack.c.l.s4 1983009808
        %v3355 = vunpack.c.0.s8 %v3354
        %v3356 = vlaneseq
        %v3357 = vshrl.u32 %v3356, 7
        %v3358 = vsub.s32 %v3355, %v3357
        %v3359 = vrot.slane %v3345, %v3358
        %v3360 = vcombine.high %v3352, %v3352
        %v3361 = vcombine.high %v3359, %v3359
        %v3362 = vcombine.high %v3122, %v3122
        %v3364 = vunpack.c.l.s4 1983009808
        %v3365 = vunpack.c.0.s8 %v3364
        %v3366 = vlaneseq
        %v3367 = vshrl.u32 %v3366, 7
        %v3368 = vsub.s32 %v3365, %v3367
        %v3369 = vrot.slane %v3122, %v3368
        %v3371 = vunpack.c.l.s4 1983009808
        %v3372 = vunpack.c.0.s8 %v3371
        %v3373 = vlaneseq
        %v3374 = vshrl.u32 %v3373, 7
        %v3375 = vsub.s32 %v3372, %v3374
        %v3376 = vrot.slane %v3362, %v3375
        %v3377 = vcombine.high %v3369, %v3369
        %v3378 = vcombine.high %v3376, %v3376
        %v3379 = vcombine.high %v3123, %v3123
        %v3381 = vunpack.c.l.s4 1983009808
        %v3382 = vunpack.c.0.s8 %v3381
        %v3383 = vlaneseq
        %v3384 = vshrl.u32 %v3383, 7
        %v3385 = vsub.s32 %v3382, %v3384
        %v3386 = vrot.slane %v3123, %v3385
        %v3388 = vunpack.c.l.s4 1983009808
        %v3389 = vunpack.c.0.s8 %v3388
        %v3390 = vlaneseq
        %v3391 = vshrl.u32 %v3390, 7
        %v3392 = vsub.s32 %v3389, %v3391
        %v3393 = vrot.slane %v3379, %v3392
        %v3394 = vcombine.high %v3386, %v3386
        %v3395 = vcombine.high %v3393, %v3393
        %v3396 = vcombine.high %v3124, %v3124
        %v3398 = vunpack.c.l.s4 1983009808
        %v3399 = vunpack.c.0.s8 %v3398
        %v3400 = vlaneseq
        %v3401 = vshrl.u32 %v3400, 7
        %v3402 = vsub.s32 %v3399, %v3401
        %v3403 = vrot.slane %v3124, %v3402
        %v3405 = vunpack.c.l.s4 1983009808
        %v3406 = vunpack.c.0.s8 %v3405
        %v3407 = vlaneseq
        %v3408 = vshrl.u32 %v3407, 7
        %v3409 = vsub.s32 %v3406, %v3408
        %v3410 = vrot.slane %v3396, %v3409
        %v3411 = vcombine.high %v3403, %v3403
        %v3412 = vcombine.high %v3410, %v3410
        %v3413 = vcombine.high %v3125, %v3125
        %v3415 = vunpack.c.l.s4 1983009808
        %v3416 = vunpack.c.0.s8 %v3415
        %v3417 = vlaneseq
        %v3418 = vshrl.u32 %v3417, 7
        %v3419 = vsub.s32 %v3416, %v3418
        %v3420 = vrot.slane %v3125, %v3419
        %v3422 = vunpack.c.l.s4 1983009808
        %v3423 = vunpack.c.0.s8 %v3422
        %v3424 = vlaneseq
        %v3425 = vshrl.u32 %v3424, 7
        %v3426 = vsub.s32 %v3423, %v3425
        %v3427 = vrot.slane %v3413, %v3426
        %v3428 = vcombine.high %v3420, %v3420
        %v3429 = vcombine.high %v3427, %v3427
        %v3430 = vcombine.high %v3126, %v3126
        %v3432 = vunpack.c.l.s4 1983009808
        %v3433 = vunpack.c.0.s8 %v3432
        %v3434 = vlaneseq
        %v3435 = vshrl.u32 %v3434, 7
        %v3436 = vsub.s32 %v3433, %v3435
        %v3437 = vrot.slane %v3126, %v3436
        %v3439 = vunpack.c.l.s4 1983009808
        %v3440 = vunpack.c.0.s8 %v3439
        %v3441 = vlaneseq
        %v3442 = vshrl.u32 %v3441, 7
        %v3443 = vsub.s32 %v3440, %v3442
        %v3444 = vrot.slane %v3430, %v3443
        %v3445 = vcombine.high %v3437, %v3437
        %v3446 = vcombine.high %v3444, %v3444
        %v3447 = vcombine.high %v3127, %v3127
        %v3449 = vunpack.c.l.s4 1983009808
        %v3450 = vunpack.c.0.s8 %v3449
        %v3451 = vlaneseq
        %v3452 = vshrl.u32 %v3451, 7
        %v3453 = vsub.s32 %v3450, %v3452
        %v3454 = vrot.slane %v3127, %v3453
        %v3456 = vunpack.c.l.s4 1983009808
        %v3457 = vunpack.c.0.s8 %v3456
        %v3458 = vlaneseq
        %v3459 = vshrl.u32 %v3458, 7
        %v3460 = vsub.s32 %v3457, %v3459
        %v3461 = vrot.slane %v3447, %v3460
        %v3462 = vcombine.high %v3454, %v3454
        %v3463 = vcombine.high %v3461, %v3461
        %v3464 = vcombine.high %v3128, %v3128
        %v3466 = vunpack.c.l.s4 1983009808
        %v3467 = vunpack.c.0.s8 %v3466
        %v3468 = vlaneseq
        %v3469 = vshrl.u32 %v3468, 7
        %v3470 = vsub.s32 %v3467, %v3469
        %v3471 = vrot.slane %v3128, %v3470
        %v3473 = vunpack.c.l.s4 1983009808
        %v3474 = vunpack.c.0.s8 %v3473
        %v3475 = vlaneseq
        %v3476 = vshrl.u32 %v3475, 7
        %v3477 = vsub.s32 %v3474, %v3476
        %v3478 = vrot.slane %v3464, %v3477
        %v3479 = vcombine.high %v3471, %v3471
        %v3480 = vcombine.high %v3478, %v3478
        %v3481 = vcombine.high %v3129, %v3129
        %v3483 = vunpack.c.l.s4 1983009808
        %v3484 = vunpack.c.0.s8 %v3483
        %v3485 = vlaneseq
        %v3486 = vshrl.u32 %v3485, 7
        %v3487 = vsub.s32 %v3484, %v3486
        %v3488 = vrot.slane %v3129, %v3487
        %v3490 = vunpack.c.l.s4 1983009808
        %v3491 = vunpack.c.0.s8 %v3490
        %v3492 = vlaneseq
        %v3493 = vshrl.u32 %v3492, 7
        %v3494 = vsub.s32 %v3491, %v3493
        %v3495 = vrot.slane %v3481, %v3494
        %v3496 = vcombine.high %v3488, %v3488
        %v3497 = vcombine.high %v3495, %v3495
        %v3498 = vcombine.high %v3130, %v3130
        %v3500 = vunpack.c.l.s4 1983009808
        %v3501 = vunpack.c.0.s8 %v3500
        %v3502 = vlaneseq
        %v3503 = vshrl.u32 %v3502, 7
        %v3504 = vsub.s32 %v3501, %v3503
        %v3505 = vrot.slane %v3130, %v3504
        %v3507 = vunpack.c.l.s4 1983009808
        %v3508 = vunpack.c.0.s8 %v3507
        %v3509 = vlaneseq
        %v3510 = vshrl.u32 %v3509, 7
        %v3511 = vsub.s32 %v3508, %v3510
        %v3512 = vrot.slane %v3498, %v3511
        %v3513 = vcombine.high %v3505, %v3505
        %v3514 = vcombine.high %v3512, %v3512
        %v3515 = vcombine.high %v3131, %v3131
        %v3517 = vunpack.c.l.s4 1983009808
        %v3518 = vunpack.c.0.s8 %v3517
        %v3519 = vlaneseq
        %v3520 = vshrl.u32 %v3519, 7
        %v3521 = vsub.s32 %v3518, %v3520
        %v3522 = vrot.slane %v3131, %v3521
        %v3524 = vunpack.c.l.s4 1983009808
        %v3525 = vunpack.c.0.s8 %v3524
        %v3526 = vlaneseq
        %v3527 = vshrl.u32 %v3526, 7
        %v3528 = vsub.s32 %v3525, %v3527
        %v3529 = vrot.slane %v3515, %v3528
        %v3530 = vcombine.high %v3522, %v3522
        %v3531 = vcombine.high %v3529, %v3529
        %v3532 = vcombine.high %v3132, %v3132
        %v3534 = vunpack.c.l.s4 1983009808
        %v3535 = vunpack.c.0.s8 %v3534
        %v3536 = vlaneseq
        %v3537 = vshrl.u32 %v3536, 7
        %v3538 = vsub.s32 %v3535, %v3537
        %v3539 = vrot.slane %v3132, %v3538
        %v3541 = vunpack.c.l.s4 1983009808
        %v3542 = vunpack.c.0.s8 %v3541
        %v3543 = vlaneseq
        %v3544 = vshrl.u32 %v3543, 7
        %v3545 = vsub.s32 %v3542, %v3544
        %v3546 = vrot.slane %v3532, %v3545
        %v3547 = vcombine.high %v3539, %v3539
        %v3548 = vcombine.high %v3546, %v3546
        %v3549 = vcombine.high %v3133, %v3133
        %v3551 = vunpack.c.l.s4 1983009808
        %v3552 = vunpack.c.0.s8 %v3551
        %v3553 = vlaneseq
        %v3554 = vshrl.u32 %v3553, 7
        %v3555 = vsub.s32 %v3552, %v3554
        %v3556 = vrot.slane %v3133, %v3555
        %v3558 = vunpack.c.l.s4 1983009808
        %v3559 = vunpack.c.0.s8 %v3558
        %v3560 = vlaneseq
        %v3561 = vshrl.u32 %v3560, 7
        %v3562 = vsub.s32 %v3559, %v3561
        %v3563 = vrot.slane %v3549, %v3562
        %v3564 = vcombine.high %v3556, %v3556
        %v3565 = vcombine.high %v3563, %v3563
        %v3566 = vcombine.high %v3134, %v3134
        %v3568 = vunpack.c.l.s4 1983009808
        %v3569 = vunpack.c.0.s8 %v3568
        %v3570 = vlaneseq
        %v3571 = vshrl.u32 %v3570, 7
        %v3572 = vsub.s32 %v3569, %v3571
        %v3573 = vrot.slane %v3134, %v3572
        %v3575 = vunpack.c.l.s4 1983009808
        %v3576 = vunpack.c.0.s8 %v3575
        %v3577 = vlaneseq
        %v3578 = vshrl.u32 %v3577, 7
        %v3579 = vsub.s32 %v3576, %v3578
        %v3580 = vrot.slane %v3566, %v3579
        %v3581 = vcombine.high %v3573, %v3573
        %v3582 = vcombine.high %v3580, %v3580
        %v3583 = vcombine.high %v3135, %v3135
        %v3585 = vunpack.c.l.s4 1983009808
        %v3586 = vunpack.c.0.s8 %v3585
        %v3587 = vlaneseq
        %v3588 = vshrl.u32 %v3587, 7
        %v3589 = vsub.s32 %v3586, %v3588
        %v3590 = vrot.slane %v3135, %v3589
        %v3592 = vunpack.c.l.s4 1983009808
        %v3593 = vunpack.c.0.s8 %v3592
        %v3594 = vlaneseq
        %v3595 = vshrl.u32 %v3594, 7
        %v3596 = vsub.s32 %v3593, %v3595
        %v3597 = vrot.slane %v3583, %v3596
        %v3598 = vcombine.high %v3590, %v3590
        %v3599 = vcombine.high %v3597, %v3597
        %v3600 = vcombine.high %v3136, %v3136
        %v3602 = vunpack.c.l.s4 1983009808
        %v3603 = vunpack.c.0.s8 %v3602
        %v3604 = vlaneseq
        %v3605 = vshrl.u32 %v3604, 7
        %v3606 = vsub.s32 %v3603, %v3605
        %v3607 = vrot.slane %v3136, %v3606
        %v3609 = vunpack.c.l.s4 1983009808
        %v3610 = vunpack.c.0.s8 %v3609
        %v3611 = vlaneseq
        %v3612 = vshrl.u32 %v3611, 7
        %v3613 = vsub.s32 %v3610, %v3612
        %v3614 = vrot.slane %v3600, %v3613
        %v3615 = vcombine.high %v3607, %v3607
        %v3616 = vcombine.high %v3614, %v3614
        %v3617 = vcombine.high %v3137, %v3137
        %v3619 = vunpack.c.l.s4 1983009808
        %v3620 = vunpack.c.0.s8 %v3619
        %v3621 = vlaneseq
        %v3622 = vshrl.u32 %v3621, 7
        %v3623 = vsub.s32 %v3620, %v3622
        %v3624 = vrot.slane %v3137, %v3623
        %v3626 = vunpack.c.l.s4 1983009808
        %v3627 = vunpack.c.0.s8 %v3626
        %v3628 = vlaneseq
        %v3629 = vshrl.u32 %v3628, 7
        %v3630 = vsub.s32 %v3627, %v3629
        %v3631 = vrot.slane %v3617, %v3630
        %v3632 = vcombine.high %v3624, %v3624
        %v3633 = vcombine.high %v3631, %v3631
        %v3634 = vcombine.high %v3138, %v3138
        %v3636 = vunpack.c.l.s4 1983009808
        %v3637 = vunpack.c.0.s8 %v3636
        %v3638 = vlaneseq
        %v3639 = vshrl.u32 %v3638, 7
        %v3640 = vsub.s32 %v3637, %v3639
        %v3641 = vrot.slane %v3138, %v3640
        %v3643 = vunpack.c.l.s4 1983009808
        %v3644 = vunpack.c.0.s8 %v3643
        %v3645 = vlaneseq
        %v3646 = vshrl.u32 %v3645, 7
        %v3647 = vsub.s32 %v3644, %v3646
        %v3648 = vrot.slane %v3634, %v3647
        %v3649 = vcombine.high %v3641, %v3641
        %v3650 = vcombine.high %v3648, %v3648
        %v3651 = vcombine.high %v3139, %v3139
        %v3653 = vunpack.c.l.s4 1983009808
        %v3654 = vunpack.c.0.s8 %v3653
        %v3655 = vlaneseq
        %v3656 = vshrl.u32 %v3655, 7
        %v3657 = vsub.s32 %v3654, %v3656
        %v3658 = vrot.slane %v3139, %v3657
        %v3660 = vunpack.c.l.s4 1983009808
        %v3661 = vunpack.c.0.s8 %v3660
        %v3662 = vlaneseq
        %v3663 = vshrl.u32 %v3662, 7
        %v3664 = vsub.s32 %v3661, %v3663
        %v3665 = vrot.slane %v3651, %v3664
        %v3666 = vcombine.high %v3658, %v3658
        %v3667 = vcombine.high %v3665, %v3665
        %v3668 = vcombine.high %v3140, %v3140
        %v3670 = vunpack.c.l.s4 1983009808
        %v3671 = vunpack.c.0.s8 %v3670
        %v3672 = vlaneseq
        %v3673 = vshrl.u32 %v3672, 7
        %v3674 = vsub.s32 %v3671, %v3673
        %v3675 = vrot.slane %v3140, %v3674
        %v3677 = vunpack.c.l.s4 1983009808
        %v3678 = vunpack.c.0.s8 %v3677
        %v3679 = vlaneseq
        %v3680 = vshrl.u32 %v3679, 7
        %v3681 = vsub.s32 %v3678, %v3680
        %v3682 = vrot.slane %v3668, %v3681
        %v3683 = vcombine.high %v3675, %v3675
        %v3684 = vcombine.high %v3682, %v3682
        %v3685 = vcombine.high %v3141, %v3141
        %v3687 = vunpack.c.l.s4 1983009808
        %v3688 = vunpack.c.0.s8 %v3687
        %v3689 = vlaneseq
        %v3690 = vshrl.u32 %v3689, 7
        %v3691 = vsub.s32 %v3688, %v3690
        %v3692 = vrot.slane %v3141, %v3691
        %v3694 = vunpack.c.l.s4 1983009808
        %v3695 = vunpack.c.0.s8 %v3694
        %v3696 = vlaneseq
        %v3697 = vshrl.u32 %v3696, 7
        %v3698 = vsub.s32 %v3695, %v3697
        %v3699 = vrot.slane %v3685, %v3698
        %v3700 = vcombine.high %v3692, %v3692
        %v3701 = vcombine.high %v3699, %v3699
        %v3702 = vcombine.high %v3142, %v3142
        %v3704 = vunpack.c.l.s4 1983009808
        %v3705 = vunpack.c.0.s8 %v3704
        %v3706 = vlaneseq
        %v3707 = vshrl.u32 %v3706, 7
        %v3708 = vsub.s32 %v3705, %v3707
        %v3709 = vrot.slane %v3142, %v3708
        %v3711 = vunpack.c.l.s4 1983009808
        %v3712 = vunpack.c.0.s8 %v3711
        %v3713 = vlaneseq
        %v3714 = vshrl.u32 %v3713, 7
        %v3715 = vsub.s32 %v3712, %v3714
        %v3716 = vrot.slane %v3702, %v3715
        %v3717 = vcombine.high %v3709, %v3709
        %v3718 = vcombine.high %v3716, %v3716
        %v3847 = vrot.slane %v3182, 7
        %v3848 = vrot.slane %v3847, 2
        %v3849 = vrot.slane %v3190, 7
        %v3850 = vrot.slane %v3849, 2
        %v3851 = vrot.slane %v3189, 7
        %v3852 = vrot.slane %v3851, 2
        %v3853 = vrot.slane %v3191, 7
        %v3854 = vrot.slane %v3853, 2
        %v3855 = vrot.slane %v3199, 7
        %v3856 = vrot.slane %v3855, 2
        %v3857 = vrot.slane %v3207, 7
        %v3858 = vrot.slane %v3857, 2
        %v3859 = vrot.slane %v3206, 7
        %v3860 = vrot.slane %v3859, 2
        %v3861 = vrot.slane %v3208, 7
        %v3862 = vrot.slane %v3861, 2
        %v3863 = vrot.slane %v3216, 7
        %v3864 = vrot.slane %v3863, 2
        %v3865 = vrot.slane %v3224, 7
        %v3866 = vrot.slane %v3865, 2
        %v3867 = vrot.slane %v3223, 7
        %v3868 = vrot.slane %v3867, 2
        %v3869 = vrot.slane %v3225, 7
        %v3870 = vrot.slane %v3869, 2
        %v3871 = vrot.slane %v3233, 7
        %v3872 = vrot.slane %v3871, 2
        %v3873 = vrot.slane %v3241, 7
        %v3874 = vrot.slane %v3873, 2
        %v3875 = vrot.slane %v3240, 7
        %v3876 = vrot.slane %v3875, 2
        %v3877 = vrot.slane %v3242, 7
        %v3878 = vrot.slane %v3877, 2
        %v3879 = vrot.slane %v3250, 7
        %v3880 = vrot.slane %v3879, 2
        %v3881 = vrot.slane %v3258, 7
        %v3882 = vrot.slane %v3881, 2
        %v3883 = vrot.slane %v3257, 7
        %v3884 = vrot.slane %v3883, 2
        %v3885 = vrot.slane %v3259, 7
        %v3886 = vrot.slane %v3885, 2
        %v3887 = vrot.slane %v3267, 7
        %v3888 = vrot.slane %v3887, 2
        %v3889 = vrot.slane %v3275, 7
        %v3890 = vrot.slane %v3889, 2
        %v3891 = vrot.slane %v3274, 7
        %v3892 = vrot.slane %v3891, 2
        %v3893 = vrot.slane %v3276, 7
        %v3894 = vrot.slane %v3893, 2
        %v3895 = vrot.slane %v3284, 7
        %v3896 = vrot.slane %v3895, 2
        %v3897 = vrot.slane %v3292, 7
        %v3898 = vrot.slane %v3897, 2
        %v3899 = vrot.slane %v3291, 7
        %v3900 = vrot.slane %v3899, 2
        %v3901 = vrot.slane %v3293, 7
        %v3902 = vrot.slane %v3901, 2
        %v3903 = vrot.slane %v3301, 7
        %v3904 = vrot.slane %v3903, 2
        %v3905 = vrot.slane %v3309, 7
        %v3906 = vrot.slane %v3905, 2
        %v3907 = vrot.slane %v3308, 7
        %v3908 = vrot.slane %v3907, 2
        %v3909 = vrot.slane %v3310, 7
        %v3910 = vrot.slane %v3909, 2
        %v3911 = vrot.slane %v3318, 7
        %v3912 = vrot.slane %v3911, 2
        %v3913 = vrot.slane %v3326, 7
        %v3914 = vrot.slane %v3913, 2
        %v3915 = vrot.slane %v3325, 7
        %v3916 = vrot.slane %v3915, 2
        %v3917 = vrot.slane %v3327, 7
        %v3918 = vrot.slane %v3917, 2
        %v3919 = vrot.slane %v3335, 7
        %v3920 = vrot.slane %v3919, 2
        %v3921 = vrot.slane %v3343, 7
        %v3922 = vrot.slane %v3921, 2
        %v3923 = vrot.slane %v3342, 7
        %v3924 = vrot.slane %v3923, 2
        %v3925 = vrot.slane %v3344, 7
        %v3926 = vrot.slane %v3925, 2
        %v3927 = vrot.slane %v3352, 7
        %v3928 = vrot.slane %v3927, 2
        %v3929 = vrot.slane %v3360, 7
        %v3930 = vrot.slane %v3929, 2
        %v3931 = vrot.slane %v3359, 7
        %v3932 = vrot.slane %v3931, 2
        %v3933 = vrot.slane %v3361, 7
        %v3934 = vrot.slane %v3933, 2
        %v3935 = vrot.slane %v3369, 7
        %v3936 = vrot.slane %v3935, 2
        %v3937 = vrot.slane %v3377, 7
        %v3938 = vrot.slane %v3937, 2
        %v3939 = vrot.slane %v3376, 7
        %v3940 = vrot.slane %v3939, 2
        %v3941 = vrot.slane %v3378, 7
        %v3942 = vrot.slane %v3941, 2
        %v3943 = vrot.slane %v3386, 7
        %v3944 = vrot.slane %v3943, 2
        %v3945 = vrot.slane %v3394, 7
        %v3946 = vrot.slane %v3945, 2
        %v3947 = vrot.slane %v3393, 7
        %v3948 = vrot.slane %v3947, 2
        %v3949 = vrot.slane %v3395, 7
        %v3950 = vrot.slane %v3949, 2
        %v3951 = vrot.slane %v3403, 7
        %v3952 = vrot.slane %v3951, 2
        %v3953 = vrot.slane %v3411, 7
        %v3954 = vrot.slane %v3953, 2
        %v3955 = vrot.slane %v3410, 7
        %v3956 = vrot.slane %v3955, 2
        %v3957 = vrot.slane %v3412, 7
        %v3958 = vrot.slane %v3957, 2
        %v3959 = vrot.slane %v3420, 7
        %v3960 = vrot.slane %v3959, 2
        %v3961 = vrot.slane %v3428, 7
        %v3962 = vrot.slane %v3961, 2
        %v3963 = vrot.slane %v3427, 7
        %v3964 = vrot.slane %v3963, 2
        %v3965 = vrot.slane %v3429, 7
        %v3966 = vrot.slane %v3965, 2
        %v3967 = vrot.slane %v3437, 7
        %v3968 = vrot.slane %v3967, 2
        %v3969 = vrot.slane %v3445, 7
        %v3970 = vrot.slane %v3969, 2
        %v3971 = vrot.slane %v3444, 7
        %v3972 = vrot.slane %v3971, 2
        %v3973 = vrot.slane %v3446, 7
        %v3974 = vrot.slane %v3973, 2
        %v3975 = vrot.slane %v3454, 7
        %v3976 = vrot.slane %v3975, 2
        %v3977 = vrot.slane %v3462, 7
        %v3978 = vrot.slane %v3977, 2
        %v3979 = vrot.slane %v3461, 7
        %v3980 = vrot.slane %v3979, 2
        %v3981 = vrot.slane %v3463, 7
        %v3982 = vrot.slane %v3981, 2
        %v3983 = vrot.slane %v3471, 7
        %v3984 = vrot.slane %v3983, 2
        %v3985 = vrot.slane %v3479, 7
        %v3986 = vrot.slane %v3985, 2
        %v3987 = vrot.slane %v3478, 7
        %v3988 = vrot.slane %v3987, 2
        %v3989 = vrot.slane %v3480, 7
        %v3990 = vrot.slane %v3989, 2
        %v3991 = vrot.slane %v3488, 7
        %v3992 = vrot.slane %v3991, 2
        %v3993 = vrot.slane %v3496, 7
        %v3994 = vrot.slane %v3993, 2
        %v3995 = vrot.slane %v3495, 7
        %v3996 = vrot.slane %v3995, 2
        %v3997 = vrot.slane %v3497, 7
        %v3998 = vrot.slane %v3997, 2
        %v3999 = vrot.slane %v3505, 7
        %v4000 = vrot.slane %v3999, 2
        %v4001 = vrot.slane %v3513, 7
        %v4002 = vrot.slane %v4001, 2
        %v4003 = vrot.slane %v3512, 7
        %v4004 = vrot.slane %v4003, 2
        %v4005 = vrot.slane %v3514, 7
        %v4006 = vrot.slane %v4005, 2
        %v4007 = vrot.slane %v3522, 7
        %v4008 = vrot.slane %v4007, 2
        %v4009 = vrot.slane %v3530, 7
        %v4010 = vrot.slane %v4009, 2
        %v4011 = vrot.slane %v3529, 7
        %v4012 = vrot.slane %v4011, 2
        %v4013 = vrot.slane %v3531, 7
        %v4014 = vrot.slane %v4013, 2
        %v4015 = vrot.slane %v3539, 7
        %v4016 = vrot.slane %v4015, 2
        %v4017 = vrot.slane %v3547, 7
        %v4018 = vrot.slane %v4017, 2
        %v4019 = vrot.slane %v3546, 7
        %v4020 = vrot.slane %v4019, 2
        %v4021 = vrot.slane %v3548, 7
        %v4022 = vrot.slane %v4021, 2
        %v4023 = vrot.slane %v3556, 7
        %v4024 = vrot.slane %v4023, 2
        %v4025 = vrot.slane %v3564, 7
        %v4026 = vrot.slane %v4025, 2
        %v4027 = vrot.slane %v3563, 7
        %v4028 = vrot.slane %v4027, 2
        %v4029 = vrot.slane %v3565, 7
        %v4030 = vrot.slane %v4029, 2
        %v4031 = vrot.slane %v3573, 7
        %v4032 = vrot.slane %v4031, 2
        %v4033 = vrot.slane %v3581, 7
        %v4034 = vrot.slane %v4033, 2
        %v4035 = vrot.slane %v3580, 7
        %v4036 = vrot.slane %v4035, 2
        %v4037 = vrot.slane %v3582, 7
        %v4038 = vrot.slane %v4037, 2
        %v4039 = vrot.slane %v3590, 7
        %v4040 = vrot.slane %v4039, 2
        %v4041 = vrot.slane %v3598, 7
        %v4042 = vrot.slane %v4041, 2
        %v4043 = vrot.slane %v3597, 7
        %v4044 = vrot.slane %v4043, 2
        %v4045 = vrot.slane %v3599, 7
        %v4046 = vrot.slane %v4045, 2
        %v4047 = vrot.slane %v3607, 7
        %v4048 = vrot.slane %v4047, 2
        %v4049 = vrot.slane %v3615, 7
        %v4050 = vrot.slane %v4049, 2
        %v4051 = vrot.slane %v3614, 7
        %v4052 = vrot.slane %v4051, 2
        %v4053 = vrot.slane %v3616, 7
        %v4054 = vrot.slane %v4053, 2
        %v4055 = vrot.slane %v3624, 7
        %v4056 = vrot.slane %v4055, 2
        %v4057 = vrot.slane %v3632, 7
        %v4058 = vrot.slane %v4057, 2
        %v4059 = vrot.slane %v3631, 7
        %v4060 = vrot.slane %v4059, 2
        %v4061 = vrot.slane %v3633, 7
        %v4062 = vrot.slane %v4061, 2
        %v4063 = vrot.slane %v3641, 7
        %v4064 = vrot.slane %v4063, 2
        %v4065 = vrot.slane %v3649, 7
        %v4066 = vrot.slane %v4065, 2
        %v4067 = vrot.slane %v3648, 7
        %v4068 = vrot.slane %v4067, 2
        %v4069 = vrot.slane %v3650, 7
        %v4070 = vrot.slane %v4069, 2
        %v4071 = vrot.slane %v3658, 7
        %v4072 = vrot.slane %v4071, 2
        %v4073 = vrot.slane %v3666, 7
        %v4074 = vrot.slane %v4073, 2
        %v4075 = vrot.slane %v3665, 7
        %v4076 = vrot.slane %v4075, 2
        %v4077 = vrot.slane %v3667, 7
        %v4078 = vrot.slane %v4077, 2
        %v4079 = vrot.slane %v3675, 7
        %v4080 = vrot.slane %v4079, 2
        %v4081 = vrot.slane %v3683, 7
        %v4082 = vrot.slane %v4081, 2
        %v4083 = vrot.slane %v3682, 7
        %v4084 = vrot.slane %v4083, 2
        %v4085 = vrot.slane %v3684, 7
        %v4086 = vrot.slane %v4085, 2
        %v4087 = vrot.slane %v3692, 7
        %v4088 = vrot.slane %v4087, 2
        %v4089 = vrot.slane %v3700, 7
        %v4090 = vrot.slane %v4089, 2
        %v4091 = vrot.slane %v3699, 7
        %v4092 = vrot.slane %v4091, 2
        %v4093 = vrot.slane %v3701, 7
        %v4094 = vrot.slane %v4093, 2
        %v4095 = vrot.slane %v3709, 7
        %v4096 = vrot.slane %v4095, 2
        %v4097 = vrot.slane %v3717, 7
        %v4098 = vrot.slane %v4097, 2
        %v4099 = vrot.slane %v3716, 7
        %v4100 = vrot.slane %v4099, 2
        %v4101 = vrot.slane %v3718, 7
        %v4102 = vrot.slane %v4101, 2
        %v4231 = vmax.f32 %v3182, %v3848
        %v4232 = vmax.f32 %v3190, %v3850
        %v4233 = vmax.f32 %v3189, %v3852
        %v4234 = vmax.f32 %v3191, %v3854
        %v4235 = vmax.f32 %v3199, %v3856
        %v4236 = vmax.f32 %v3207, %v3858
        %v4237 = vmax.f32 %v3206, %v3860
        %v4238 = vmax.f32 %v3208, %v3862
        %v4239 = vmax.f32 %v3216, %v3864
        %v4240 = vmax.f32 %v3224, %v3866
        %v4241 = vmax.f32 %v3223, %v3868
        %v4242 = vmax.f32 %v3225, %v3870
        %v4243 = vmax.f32 %v3233, %v3872
        %v4244 = vmax.f32 %v3241, %v3874
        %v4245 = vmax.f32 %v3240, %v3876
        %v4246 = vmax.f32 %v3242, %v3878
        %v4247 = vmax.f32 %v3250, %v3880
        %v4248 = vmax.f32 %v3258, %v3882
        %v4249 = vmax.f32 %v3257, %v3884
        %v4250 = vmax.f32 %v3259, %v3886
        %v4251 = vmax.f32 %v3267, %v3888
        %v4252 = vmax.f32 %v3275, %v3890
        %v4253 = vmax.f32 %v3274, %v3892
        %v4254 = vmax.f32 %v3276, %v3894
        %v4255 = vmax.f32 %v3284, %v3896
        %v4256 = vmax.f32 %v3292, %v3898
        %v4257 = vmax.f32 %v3291, %v3900
        %v4258 = vmax.f32 %v3293, %v3902
        %v4259 = vmax.f32 %v3301, %v3904
        %v4260 = vmax.f32 %v3309, %v3906
        %v4261 = vmax.f32 %v3308, %v3908
        %v4262 = vmax.f32 %v3310, %v3910
        %v4263 = vmax.f32 %v3318, %v3912
        %v4264 = vmax.f32 %v3326, %v3914
        %v4265 = vmax.f32 %v3325, %v3916
        %v4266 = vmax.f32 %v3327, %v3918
        %v4267 = vmax.f32 %v3335, %v3920
        %v4268 = vmax.f32 %v3343, %v3922
        %v4269 = vmax.f32 %v3342, %v3924
        %v4270 = vmax.f32 %v3344, %v3926
        %v4271 = vmax.f32 %v3352, %v3928
        %v4272 = vmax.f32 %v3360, %v3930
        %v4273 = vmax.f32 %v3359, %v3932
        %v4274 = vmax.f32 %v3361, %v3934
        %v4275 = vmax.f32 %v3369, %v3936
        %v4276 = vmax.f32 %v3377, %v3938
        %v4277 = vmax.f32 %v3376, %v3940
        %v4278 = vmax.f32 %v3378, %v3942
        %v4279 = vmax.f32 %v3386, %v3944
        %v4280 = vmax.f32 %v3394, %v3946
        %v4281 = vmax.f32 %v3393, %v3948
        %v4282 = vmax.f32 %v3395, %v3950
        %v4283 = vmax.f32 %v3403, %v3952
        %v4284 = vmax.f32 %v3411, %v3954
        %v4285 = vmax.f32 %v3410, %v3956
        %v4286 = vmax.f32 %v3412, %v3958
        %v4287 = vmax.f32 %v3420, %v3960
        %v4288 = vmax.f32 %v3428, %v3962
        %v4289 = vmax.f32 %v3427, %v3964
        %v4290 = vmax.f32 %v3429, %v3966
        %v4291 = vmax.f32 %v3437, %v3968
        %v4292 = vmax.f32 %v3445, %v3970
        %v4293 = vmax.f32 %v3444, %v3972
        %v4294 = vmax.f32 %v3446, %v3974
        %v4295 = vmax.f32 %v3454, %v3976
        %v4296 = vmax.f32 %v3462, %v3978
        %v4297 = vmax.f32 %v3461, %v3980
        %v4298 = vmax.f32 %v3463, %v3982
        %v4299 = vmax.f32 %v3471, %v3984
        %v4300 = vmax.f32 %v3479, %v3986
        %v4301 = vmax.f32 %v3478, %v3988
        %v4302 = vmax.f32 %v3480, %v3990
        %v4303 = vmax.f32 %v3488, %v3992
        %v4304 = vmax.f32 %v3496, %v3994
        %v4305 = vmax.f32 %v3495, %v3996
        %v4306 = vmax.f32 %v3497, %v3998
        %v4307 = vmax.f32 %v3505, %v4000
        %v4308 = vmax.f32 %v3513, %v4002
        %v4309 = vmax.f32 %v3512, %v4004
        %v4310 = vmax.f32 %v3514, %v4006
        %v4311 = vmax.f32 %v3522, %v4008
        %v4312 = vmax.f32 %v3530, %v4010
        %v4313 = vmax.f32 %v3529, %v4012
        %v4314 = vmax.f32 %v3531, %v4014
        %v4315 = vmax.f32 %v3539, %v4016
        %v4316 = vmax.f32 %v3547, %v4018
        %v4317 = vmax.f32 %v3546, %v4020
        %v4318 = vmax.f32 %v3548, %v4022
        %v4319 = vmax.f32 %v3556, %v4024
        %v4320 = vmax.f32 %v3564, %v4026
        %v4321 = vmax.f32 %v3563, %v4028
        %v4322 = vmax.f32 %v3565, %v4030
        %v4323 = vmax.f32 %v3573, %v4032
        %v4324 = vmax.f32 %v3581, %v4034
        %v4325 = vmax.f32 %v3580, %v4036
        %v4326 = vmax.f32 %v3582, %v4038
        %v4327 = vmax.f32 %v3590, %v4040
        %v4328 = vmax.f32 %v3598, %v4042
        %v4329 = vmax.f32 %v3597, %v4044
        %v4330 = vmax.f32 %v3599, %v4046
        %v4331 = vmax.f32 %v3607, %v4048
        %v4332 = vmax.f32 %v3615, %v4050
        %v4333 = vmax.f32 %v3614, %v4052
        %v4334 = vmax.f32 %v3616, %v4054
        %v4335 = vmax.f32 %v3624, %v4056
        %v4336 = vmax.f32 %v3632, %v4058
        %v4337 = vmax.f32 %v3631, %v4060
        %v4338 = vmax.f32 %v3633, %v4062
        %v4339 = vmax.f32 %v3641, %v4064
        %v4340 = vmax.f32 %v3649, %v4066
        %v4341 = vmax.f32 %v3648, %v4068
        %v4342 = vmax.f32 %v3650, %v4070
        %v4343 = vmax.f32 %v3658, %v4072
        %v4344 = vmax.f32 %v3666, %v4074
        %v4345 = vmax.f32 %v3665, %v4076
        %v4346 = vmax.f32 %v3667, %v4078
        %v4347 = vmax.f32 %v3675, %v4080
        %v4348 = vmax.f32 %v3683, %v4082
        %v4349 = vmax.f32 %v3682, %v4084
        %v4350 = vmax.f32 %v3684, %v4086
        %v4351 = vmax.f32 %v3692, %v4088
        %v4352 = vmax.f32 %v3700, %v4090
        %v4353 = vmax.f32 %v3699, %v4092
        %v4354 = vmax.f32 %v3701, %v4094
        %v4355 = vmax.f32 %v3709, %v4096
        %v4356 = vmax.f32 %v3717, %v4098
        %v4357 = vmax.f32 %v3716, %v4100
        %v4358 = vmax.f32 %v3718, %v4102
        %v4359 = vmax.f32 %v4231, %v4239
        %v4360 = vmax.f32 %v4232, %v4240
        %v4361 = vmax.f32 %v4233, %v4241
        %v4362 = vmax.f32 %v4234, %v4242
        %v4363 = vmax.f32 %v4235, %v4243
        %v4364 = vmax.f32 %v4236, %v4244
        %v4365 = vmax.f32 %v4237, %v4245
        %v4366 = vmax.f32 %v4238, %v4246
        %v4367 = vmax.f32 %v4247, %v4255
        %v4368 = vmax.f32 %v4248, %v4256
        %v4369 = vmax.f32 %v4249, %v4257
        %v4370 = vmax.f32 %v4250, %v4258
        %v4371 = vmax.f32 %v4251, %v4259
        %v4372 = vmax.f32 %v4252, %v4260
        %v4373 = vmax.f32 %v4253, %v4261
        %v4374 = vmax.f32 %v4254, %v4262
        %v4375 = vmax.f32 %v4263, %v4271
        %v4376 = vmax.f32 %v4264, %v4272
        %v4377 = vmax.f32 %v4265, %v4273
        %v4378 = vmax.f32 %v4266, %v4274
        %v4379 = vmax.f32 %v4267, %v4275
        %v4380 = vmax.f32 %v4268, %v4276
        %v4381 = vmax.f32 %v4269, %v4277
        %v4382 = vmax.f32 %v4270, %v4278
        %v4383 = vmax.f32 %v4279, %v4287
        %v4384 = vmax.f32 %v4280, %v4288
        %v4385 = vmax.f32 %v4281, %v4289
        %v4386 = vmax.f32 %v4282, %v4290
        %v4387 = vmax.f32 %v4283, %v4291
        %v4388 = vmax.f32 %v4284, %v4292
        %v4389 = vmax.f32 %v4285, %v4293
        %v4390 = vmax.f32 %v4286, %v4294
        %v4391 = vmax.f32 %v4295, %v4303
        %v4392 = vmax.f32 %v4296, %v4304
        %v4393 = vmax.f32 %v4297, %v4305
        %v4394 = vmax.f32 %v4298, %v4306
        %v4395 = vmax.f32 %v4299, %v4307
        %v4396 = vmax.f32 %v4300, %v4308
        %v4397 = vmax.f32 %v4301, %v4309
        %v4398 = vmax.f32 %v4302, %v4310
        %v4399 = vmax.f32 %v4311, %v4319
        %v4400 = vmax.f32 %v4312, %v4320
        %v4401 = vmax.f32 %v4313, %v4321
        %v4402 = vmax.f32 %v4314, %v4322
        %v4403 = vmax.f32 %v4315, %v4323
        %v4404 = vmax.f32 %v4316, %v4324
        %v4405 = vmax.f32 %v4317, %v4325
        %v4406 = vmax.f32 %v4318, %v4326
        %v4407 = vmax.f32 %v4327, %v4335
        %v4408 = vmax.f32 %v4328, %v4336
        %v4409 = vmax.f32 %v4329, %v4337
        %v4410 = vmax.f32 %v4330, %v4338
        %v4411 = vmax.f32 %v4331, %v4339
        %v4412 = vmax.f32 %v4332, %v4340
        %v4413 = vmax.f32 %v4333, %v4341
        %v4414 = vmax.f32 %v4334, %v4342
        %v4415 = vmax.f32 %v4343, %v4351
        %v4416 = vmax.f32 %v4344, %v4352
        %v4417 = vmax.f32 %v4345, %v4353
        %v4418 = vmax.f32 %v4346, %v4354
        %v4419 = vmax.f32 %v4347, %v4355
        %v4420 = vmax.f32 %v4348, %v4356
        %v4421 = vmax.f32 %v4349, %v4357
        %v4422 = vmax.f32 %v4350, %v4358
        %vm4423 = vcmask 519168
        %4424 = vst.msk [vmem:[#allocation3] sm:$0xf] %vm4423, 0
        %vm4425 = vcmask 516096
        %4426 = vst.msk [vmem:[#allocation3 + $0x4] sm:$0x1] %vm4425, 0
        %s4427 = scalar_lea.vmem [#allocation3], 72
        %4428 = vst.msk [vmem:[%s4427] sm:$0xf] %vm4423, 0
        %4429 = vst.msk [vmem:[%s4427 + $0x4] sm:$0x1] %vm4425, 0
        %s4430 = scalar_lea.vmem [#allocation3], 8
        %vm4431 = vcmask 516096
        %vm4432 = vmand %vm4431, %vm357
        %v4433 = vld [vmem:[%s4430] sm:$0x1]
        %v4434 = vsel %vm4432, 0, %v4433
        %4435 = vst [vmem:[%s4430] sm:$0x1] %v4434
        %v4436 = vld [vmem:[%s4430 + $0x8] sm:$0x1]
        %v4437 = vsel %vm4432, 0, %v4436
        %4438 = vst [vmem:[%s4430 + $0x8] sm:$0x1] %v4437
        %v4439 = vld [vmem:[%s4430 + $0x10] sm:$0x1]
        %v4440 = vsel %vm4432, 0, %v4439
        %4441 = vst [vmem:[%s4430 + $0x10] sm:$0x1] %v4440
        %v4442 = vld [vmem:[%s4430 + $0x18] sm:$0x1]
        %v4443 = vsel %vm4432, 0, %v4442
        %4444 = vst [vmem:[%s4430 + $0x18] sm:$0x1] %v4443
        %v4445 = vld [vmem:[%s4430 + $0x20] sm:$0x1]
        %v4446 = vsel %vm4432, 0, %v4445
        %4447 = vst [vmem:[%s4430 + $0x20] sm:$0x1] %v4446
        %v4448 = vld [vmem:[%s4430 + $0x28] sm:$0x1]
        %v4449 = vsel %vm4432, 0, %v4448
        %4450 = vst [vmem:[%s4430 + $0x28] sm:$0x1] %v4449
        %v4451 = vld [vmem:[%s4430 + $0x30] sm:$0x1]
        %v4452 = vsel %vm4432, 0, %v4451
        %4453 = vst [vmem:[%s4430 + $0x30] sm:$0x1] %v4452
        %v4454 = vld [vmem:[%s4430 + $0x38] sm:$0x1]
        %v4455 = vsel %vm4432, 0, %v4454
        %4456 = vst [vmem:[%s4430 + $0x38] sm:$0x1] %v4455
        %vm4457 = vmand %vm4431, %vm407
        %v4458 = vld [vmem:[%s4430 + $0x4] sm:$0x1]
        %v4459 = vsel %vm4457, 0, %v4458
        %4460 = vst [vmem:[%s4430 + $0x4] sm:$0x1] %v4459
        %v4461 = vld [vmem:[%s4430 + $0xc] sm:$0x1]
        %v4462 = vsel %vm4457, 0, %v4461
        %4463 = vst [vmem:[%s4430 + $0xc] sm:$0x1] %v4462
        %v4464 = vld [vmem:[%s4430 + $0x14] sm:$0x1]
        %v4465 = vsel %vm4457, 0, %v4464
        %4466 = vst [vmem:[%s4430 + $0x14] sm:$0x1] %v4465
        %v4467 = vld [vmem:[%s4430 + $0x1c] sm:$0x1]
        %v4468 = vsel %vm4457, 0, %v4467
        %4469 = vst [vmem:[%s4430 + $0x1c] sm:$0x1] %v4468
        %v4470 = vld [vmem:[%s4430 + $0x24] sm:$0x1]
        %v4471 = vsel %vm4457, 0, %v4470
        %4472 = vst [vmem:[%s4430 + $0x24] sm:$0x1] %v4471
        %v4473 = vld [vmem:[%s4430 + $0x2c] sm:$0x1]
        %v4474 = vsel %vm4457, 0, %v4473
        %4475 = vst [vmem:[%s4430 + $0x2c] sm:$0x1] %v4474
        %v4476 = vld [vmem:[%s4430 + $0x34] sm:$0x1]
        %v4477 = vsel %vm4457, 0, %v4476
        %4478 = vst [vmem:[%s4430 + $0x34] sm:$0x1] %v4477
        %v4479 = vld [vmem:[%s4430 + $0x3c] sm:$0x1]
        %v4480 = vsel %vm4457, 0, %v4479
        %4481 = vst [vmem:[%s4430 + $0x3c] sm:$0x1] %v4480
        %v4482 = vpack.c.bf16 %v4359, %v4359
        %v4483 = vpack.c.bf16 %v4360, %v4360
        %v4484 = vpack.c.bf16 %v4361, %v4361
        %v4485 = vpack.c.bf16 %v4362, %v4362
        %v4486 = vpack.c.bf16 %v4363, %v4363
        %v4487 = vpack.c.bf16 %v4364, %v4364
        %v4488 = vpack.c.bf16 %v4365, %v4365
        %v4489 = vpack.c.bf16 %v4366, %v4366
        %v4490 = vpack.c.bf16 %v4367, %v4367
        %v4491 = vpack.c.bf16 %v4368, %v4368
        %v4492 = vpack.c.bf16 %v4369, %v4369
        %v4493 = vpack.c.bf16 %v4370, %v4370
        %v4494 = vpack.c.bf16 %v4371, %v4371
        %v4495 = vpack.c.bf16 %v4372, %v4372
        %v4496 = vpack.c.bf16 %v4373, %v4373
        %v4497 = vpack.c.bf16 %v4374, %v4374
        %v4498 = vpack.c.bf16 %v4375, %v4375
        %v4499 = vpack.c.bf16 %v4376, %v4376
        %v4500 = vpack.c.bf16 %v4377, %v4377
        %v4501 = vpack.c.bf16 %v4378, %v4378
        %v4502 = vpack.c.bf16 %v4379, %v4379
        %v4503 = vpack.c.bf16 %v4380, %v4380
        %v4504 = vpack.c.bf16 %v4381, %v4381
        %v4505 = vpack.c.bf16 %v4382, %v4382
        %v4506 = vpack.c.bf16 %v4383, %v4383
        %v4507 = vpack.c.bf16 %v4384, %v4384
        %v4508 = vpack.c.bf16 %v4385, %v4385
        %v4509 = vpack.c.bf16 %v4386, %v4386
        %v4510 = vpack.c.bf16 %v4387, %v4387
        %v4511 = vpack.c.bf16 %v4388, %v4388
        %v4512 = vpack.c.bf16 %v4389, %v4389
        %v4513 = vpack.c.bf16 %v4390, %v4390
        %v4514 = vpack.c.bf16 %v4391, %v4391
        %v4515 = vpack.c.bf16 %v4392, %v4392
        %v4516 = vpack.c.bf16 %v4393, %v4393
        %v4517 = vpack.c.bf16 %v4394, %v4394
        %v4518 = vpack.c.bf16 %v4395, %v4395
        %v4519 = vpack.c.bf16 %v4396, %v4396
        %v4520 = vpack.c.bf16 %v4397, %v4397
        %v4521 = vpack.c.bf16 %v4398, %v4398
        %v4522 = vpack.c.bf16 %v4399, %v4399
        %v4523 = vpack.c.bf16 %v4400, %v4400
        %v4524 = vpack.c.bf16 %v4401, %v4401
        %v4525 = vpack.c.bf16 %v4402, %v4402
        %v4526 = vpack.c.bf16 %v4403, %v4403
        %v4527 = vpack.c.bf16 %v4404, %v4404
        %v4528 = vpack.c.bf16 %v4405, %v4405
        %v4529 = vpack.c.bf16 %v4406, %v4406
        %v4530 = vpack.c.bf16 %v4407, %v4407
        %v4531 = vpack.c.bf16 %v4408, %v4408
        %v4532 = vpack.c.bf16 %v4409, %v4409
        %v4533 = vpack.c.bf16 %v4410, %v4410
        %v4534 = vpack.c.bf16 %v4411, %v4411
        %v4535 = vpack.c.bf16 %v4412, %v4412
        %v4536 = vpack.c.bf16 %v4413, %v4413
        %v4537 = vpack.c.bf16 %v4414, %v4414
        %v4538 = vpack.c.bf16 %v4415, %v4415
        %v4539 = vpack.c.bf16 %v4416, %v4416
        %v4540 = vpack.c.bf16 %v4417, %v4417
        %v4541 = vpack.c.bf16 %v4418, %v4418
        %v4542 = vpack.c.bf16 %v4419, %v4419
        %v4543 = vpack.c.bf16 %v4420, %v4420
        %v4544 = vpack.c.bf16 %v4421, %v4421
        %v4545 = vpack.c.bf16 %v4422, %v4422
        %v4610 = vunpack.c.l.b16 %v4482
        %v4611 = vunpack.c.l.b16 %v4483
        %v4612 = vunpack.c.l.b16 %v4484
        %v4613 = vunpack.c.l.b16 %v4485
        %v4614 = vunpack.c.l.b16 %v4486
        %v4615 = vunpack.c.l.b16 %v4487
        %v4616 = vunpack.c.l.b16 %v4488
        %v4617 = vunpack.c.l.b16 %v4489
        %v4618 = vunpack.c.l.b16 %v4490
        %v4619 = vunpack.c.l.b16 %v4491
        %v4620 = vunpack.c.l.b16 %v4492
        %v4621 = vunpack.c.l.b16 %v4493
        %v4622 = vunpack.c.l.b16 %v4494
        %v4623 = vunpack.c.l.b16 %v4495
        %v4624 = vunpack.c.l.b16 %v4496
        %v4625 = vunpack.c.l.b16 %v4497
        %v4626 = vunpack.c.l.b16 %v4498
        %v4627 = vunpack.c.l.b16 %v4499
        %v4628 = vunpack.c.l.b16 %v4500
        %v4629 = vunpack.c.l.b16 %v4501
        %v4630 = vunpack.c.l.b16 %v4502
        %v4631 = vunpack.c.l.b16 %v4503
        %v4632 = vunpack.c.l.b16 %v4504
        %v4633 = vunpack.c.l.b16 %v4505
        %v4634 = vunpack.c.l.b16 %v4506
        %v4635 = vunpack.c.l.b16 %v4507
        %v4636 = vunpack.c.l.b16 %v4508
        %v4637 = vunpack.c.l.b16 %v4509
        %v4638 = vunpack.c.l.b16 %v4510
        %v4639 = vunpack.c.l.b16 %v4511
        %v4640 = vunpack.c.l.b16 %v4512
        %v4641 = vunpack.c.l.b16 %v4513
        %v4642 = vunpack.c.l.b16 %v4514
        %v4643 = vunpack.c.l.b16 %v4515
        %v4644 = vunpack.c.l.b16 %v4516
        %v4645 = vunpack.c.l.b16 %v4517
        %v4646 = vunpack.c.l.b16 %v4518
        %v4647 = vunpack.c.l.b16 %v4519
        %v4648 = vunpack.c.l.b16 %v4520
        %v4649 = vunpack.c.l.b16 %v4521
        %v4650 = vunpack.c.l.b16 %v4522
        %v4651 = vunpack.c.l.b16 %v4523
        %v4652 = vunpack.c.l.b16 %v4524
        %v4653 = vunpack.c.l.b16 %v4525
        %v4654 = vunpack.c.l.b16 %v4526
        %v4655 = vunpack.c.l.b16 %v4527
        %v4656 = vunpack.c.l.b16 %v4528
        %v4657 = vunpack.c.l.b16 %v4529
        %v4658 = vunpack.c.l.b16 %v4530
        %v4659 = vunpack.c.l.b16 %v4531
        %v4660 = vunpack.c.l.b16 %v4532
        %v4661 = vunpack.c.l.b16 %v4533
        %v4662 = vunpack.c.l.b16 %v4534
        %v4663 = vunpack.c.l.b16 %v4535
        %v4664 = vunpack.c.l.b16 %v4536
        %v4665 = vunpack.c.l.b16 %v4537
        %v4666 = vunpack.c.l.b16 %v4538
        %v4667 = vunpack.c.l.b16 %v4539
        %v4668 = vunpack.c.l.b16 %v4540
        %v4669 = vunpack.c.l.b16 %v4541
        %v4670 = vunpack.c.l.b16 %v4542
        %v4671 = vunpack.c.l.b16 %v4543
        %v4672 = vunpack.c.l.b16 %v4544
        %v4673 = vunpack.c.l.b16 %v4545
        %v4674 = vpack.c.b16 %v4610, %v4610
        %v4675 = vpack.c.b16 %v4611, %v4611
        %v4676 = vpack.c.b16 %v4612, %v4612
        %v4677 = vpack.c.b16 %v4613, %v4613
        %v4678 = vpack.c.b16 %v4614, %v4614
        %v4679 = vpack.c.b16 %v4615, %v4615
        %v4680 = vpack.c.b16 %v4616, %v4616
        %v4681 = vpack.c.b16 %v4617, %v4617
        %v4682 = vpack.c.b16 %v4618, %v4618
        %v4683 = vpack.c.b16 %v4619, %v4619
        %v4684 = vpack.c.b16 %v4620, %v4620
        %v4685 = vpack.c.b16 %v4621, %v4621
        %v4686 = vpack.c.b16 %v4622, %v4622
        %v4687 = vpack.c.b16 %v4623, %v4623
        %v4688 = vpack.c.b16 %v4624, %v4624
        %v4689 = vpack.c.b16 %v4625, %v4625
        %v4690 = vpack.c.b16 %v4626, %v4626
        %v4691 = vpack.c.b16 %v4627, %v4627
        %v4692 = vpack.c.b16 %v4628, %v4628
        %v4693 = vpack.c.b16 %v4629, %v4629
        %v4694 = vpack.c.b16 %v4630, %v4630
        %v4695 = vpack.c.b16 %v4631, %v4631
        %v4696 = vpack.c.b16 %v4632, %v4632
        %v4697 = vpack.c.b16 %v4633, %v4633
        %v4698 = vpack.c.b16 %v4634, %v4634
        %v4699 = vpack.c.b16 %v4635, %v4635
        %v4700 = vpack.c.b16 %v4636, %v4636
        %v4701 = vpack.c.b16 %v4637, %v4637
        %v4702 = vpack.c.b16 %v4638, %v4638
        %v4703 = vpack.c.b16 %v4639, %v4639
        %v4704 = vpack.c.b16 %v4640, %v4640
        %v4705 = vpack.c.b16 %v4641, %v4641
        %v4706 = vpack.c.b16 %v4642, %v4642
        %v4707 = vpack.c.b16 %v4643, %v4643
        %v4708 = vpack.c.b16 %v4644, %v4644
        %v4709 = vpack.c.b16 %v4645, %v4645
        %v4710 = vpack.c.b16 %v4646, %v4646
        %v4711 = vpack.c.b16 %v4647, %v4647
        %v4712 = vpack.c.b16 %v4648, %v4648
        %v4713 = vpack.c.b16 %v4649, %v4649
        %v4714 = vpack.c.b16 %v4650, %v4650
        %v4715 = vpack.c.b16 %v4651, %v4651
        %v4716 = vpack.c.b16 %v4652, %v4652
        %v4717 = vpack.c.b16 %v4653, %v4653
        %v4718 = vpack.c.b16 %v4654, %v4654
        %v4719 = vpack.c.b16 %v4655, %v4655
        %v4720 = vpack.c.b16 %v4656, %v4656
        %v4721 = vpack.c.b16 %v4657, %v4657
        %v4722 = vpack.c.b16 %v4658, %v4658
        %v4723 = vpack.c.b16 %v4659, %v4659
        %v4724 = vpack.c.b16 %v4660, %v4660
        %v4725 = vpack.c.b16 %v4661, %v4661
        %v4726 = vpack.c.b16 %v4662, %v4662
        %v4727 = vpack.c.b16 %v4663, %v4663
        %v4728 = vpack.c.b16 %v4664, %v4664
        %v4729 = vpack.c.b16 %v4665, %v4665
        %v4730 = vpack.c.b16 %v4666, %v4666
        %v4731 = vpack.c.b16 %v4667, %v4667
        %v4732 = vpack.c.b16 %v4668, %v4668
        %v4733 = vpack.c.b16 %v4669, %v4669
        %v4734 = vpack.c.b16 %v4670, %v4670
        %v4735 = vpack.c.b16 %v4671, %v4671
        %v4736 = vpack.c.b16 %v4672, %v4672
        %v4737 = vpack.c.b16 %v4673, %v4673
        %v4738 = vunpack.c.l.b16 %v4674
        %v4739 = vunpack.c.l.b16 %v4675
        %v4740 = vunpack.c.l.b16 %v4676
        %v4741 = vunpack.c.l.b16 %v4677
        %v4742 = vunpack.c.l.b16 %v4678
        %v4743 = vunpack.c.l.b16 %v4679
        %v4744 = vunpack.c.l.b16 %v4680
        %v4745 = vunpack.c.l.b16 %v4681
        %v4746 = vunpack.c.l.b16 %v4682
        %v4747 = vunpack.c.l.b16 %v4683
        %v4748 = vunpack.c.l.b16 %v4684
        %v4749 = vunpack.c.l.b16 %v4685
        %v4750 = vunpack.c.l.b16 %v4686
        %v4751 = vunpack.c.l.b16 %v4687
        %v4752 = vunpack.c.l.b16 %v4688
        %v4753 = vunpack.c.l.b16 %v4689
        %v4754 = vunpack.c.l.b16 %v4690
        %v4755 = vunpack.c.l.b16 %v4691
        %v4756 = vunpack.c.l.b16 %v4692
        %v4757 = vunpack.c.l.b16 %v4693
        %v4758 = vunpack.c.l.b16 %v4694
        %v4759 = vunpack.c.l.b16 %v4695
        %v4760 = vunpack.c.l.b16 %v4696
        %v4761 = vunpack.c.l.b16 %v4697
        %v4762 = vunpack.c.l.b16 %v4698
        %v4763 = vunpack.c.l.b16 %v4699
        %v4764 = vunpack.c.l.b16 %v4700
        %v4765 = vunpack.c.l.b16 %v4701
        %v4766 = vunpack.c.l.b16 %v4702
        %v4767 = vunpack.c.l.b16 %v4703
        %v4768 = vunpack.c.l.b16 %v4704
        %v4769 = vunpack.c.l.b16 %v4705
        %v4770 = vunpack.c.l.b16 %v4706
        %v4771 = vunpack.c.l.b16 %v4707
        %v4772 = vunpack.c.l.b16 %v4708
        %v4773 = vunpack.c.l.b16 %v4709
        %v4774 = vunpack.c.l.b16 %v4710
        %v4775 = vunpack.c.l.b16 %v4711
        %v4776 = vunpack.c.l.b16 %v4712
        %v4777 = vunpack.c.l.b16 %v4713
        %v4778 = vunpack.c.l.b16 %v4714
        %v4779 = vunpack.c.l.b16 %v4715
        %v4780 = vunpack.c.l.b16 %v4716
        %v4781 = vunpack.c.l.b16 %v4717
        %v4782 = vunpack.c.l.b16 %v4718
        %v4783 = vunpack.c.l.b16 %v4719
        %v4784 = vunpack.c.l.b16 %v4720
        %v4785 = vunpack.c.l.b16 %v4721
        %v4786 = vunpack.c.l.b16 %v4722
        %v4787 = vunpack.c.l.b16 %v4723
        %v4788 = vunpack.c.l.b16 %v4724
        %v4789 = vunpack.c.l.b16 %v4725
        %v4790 = vunpack.c.l.b16 %v4726
        %v4791 = vunpack.c.l.b16 %v4727
        %v4792 = vunpack.c.l.b16 %v4728
        %v4793 = vunpack.c.l.b16 %v4729
        %v4794 = vunpack.c.l.b16 %v4730
        %v4795 = vunpack.c.l.b16 %v4731
        %v4796 = vunpack.c.l.b16 %v4732
        %v4797 = vunpack.c.l.b16 %v4733
        %v4798 = vunpack.c.l.b16 %v4734
        %v4799 = vunpack.c.l.b16 %v4735
        %v4800 = vunpack.c.l.b16 %v4736
        %v4801 = vunpack.c.l.b16 %v4737
        %v4802 = vrot.slane %v4738, 7
        %v4803 = vrot.slane %v4739, 6
        %vm4804 = vcmask 1042434
        %v4805 = vsel %vm4804, %v4803, %v4802
        %v4806 = vrot.slane %v4740, 5
        %vm4807 = vcmask 1043459
        %v4808 = vsel %vm4807, %v4806, %v4805
        %v4809 = vrot.slane %v4741, 4
        %vm4810 = vcmask 1044484
        %v4811 = vsel %vm4810, %v4809, %v4808
        %v4812 = vrot.slane %v4742, 3
        %vm4813 = vcmask 1045509
        %v4814 = vsel %vm4813, %v4812, %v4811
        %v4815 = vrot.slane %v4743, 2
        %vm4816 = vcmask 1046534
        %v4817 = vsel %vm4816, %v4815, %v4814
        %v4818 = vrot.slane %v4744, 1
        %vm4819 = vcmask 1047559
        %v4820 = vsel %vm4819, %v4818, %v4817
        %v4821 = vrot.slane %v4746, 7
        %v4822 = vrot.slane %v4747, 6
        %v4823 = vsel %vm4804, %v4822, %v4821
        %v4824 = vrot.slane %v4748, 5
        %v4825 = vsel %vm4807, %v4824, %v4823
        %v4826 = vrot.slane %v4749, 4
        %v4827 = vsel %vm4810, %v4826, %v4825
        %v4828 = vrot.slane %v4750, 3
        %v4829 = vsel %vm4813, %v4828, %v4827
        %v4830 = vrot.slane %v4751, 2
        %v4831 = vsel %vm4816, %v4830, %v4829
        %v4832 = vrot.slane %v4752, 1
        %v4833 = vsel %vm4819, %v4832, %v4831
        %v4834 = vrot.slane %v4754, 7
        %v4835 = vrot.slane %v4755, 6
        %v4836 = vsel %vm4804, %v4835, %v4834
        %v4837 = vrot.slane %v4756, 5
        %v4838 = vsel %vm4807, %v4837, %v4836
        %v4839 = vrot.slane %v4757, 4
        %v4840 = vsel %vm4810, %v4839, %v4838
        %v4841 = vrot.slane %v4758, 3
        %v4842 = vsel %vm4813, %v4841, %v4840
        %v4843 = vrot.slane %v4759, 2
        %v4844 = vsel %vm4816, %v4843, %v4842
        %v4845 = vrot.slane %v4760, 1
        %v4846 = vsel %vm4819, %v4845, %v4844
        %v4847 = vrot.slane %v4762, 7
        %v4848 = vrot.slane %v4763, 6
        %v4849 = vsel %vm4804, %v4848, %v4847
        %v4850 = vrot.slane %v4764, 5
        %v4851 = vsel %vm4807, %v4850, %v4849
        %v4852 = vrot.slane %v4765, 4
        %v4853 = vsel %vm4810, %v4852, %v4851
        %v4854 = vrot.slane %v4766, 3
        %v4855 = vsel %vm4813, %v4854, %v4853
        %v4856 = vrot.slane %v4767, 2
        %v4857 = vsel %vm4816, %v4856, %v4855
        %v4858 = vrot.slane %v4768, 1
        %v4859 = vsel %vm4819, %v4858, %v4857
        %v4860 = vrot.slane %v4770, 7
        %v4861 = vrot.slane %v4771, 6
        %v4862 = vsel %vm4804, %v4861, %v4860
        %v4863 = vrot.slane %v4772, 5
        %v4864 = vsel %vm4807, %v4863, %v4862
        %v4865 = vrot.slane %v4773, 4
        %v4866 = vsel %vm4810, %v4865, %v4864
        %v4867 = vrot.slane %v4774, 3
        %v4868 = vsel %vm4813, %v4867, %v4866
        %v4869 = vrot.slane %v4775, 2
        %v4870 = vsel %vm4816, %v4869, %v4868
        %v4871 = vrot.slane %v4776, 1
        %v4872 = vsel %vm4819, %v4871, %v4870
        %v4873 = vrot.slane %v4778, 7
        %v4874 = vrot.slane %v4779, 6
        %v4875 = vsel %vm4804, %v4874, %v4873
        %v4876 = vrot.slane %v4780, 5
        %v4877 = vsel %vm4807, %v4876, %v4875
        %v4878 = vrot.slane %v4781, 4
        %v4879 = vsel %vm4810, %v4878, %v4877
        %v4880 = vrot.slane %v4782, 3
        %v4881 = vsel %vm4813, %v4880, %v4879
        %v4882 = vrot.slane %v4783, 2
        %v4883 = vsel %vm4816, %v4882, %v4881
        %v4884 = vrot.slane %v4784, 1
        %v4885 = vsel %vm4819, %v4884, %v4883
        %v4886 = vrot.slane %v4786, 7
        %v4887 = vrot.slane %v4787, 6
        %v4888 = vsel %vm4804, %v4887, %v4886
        %v4889 = vrot.slane %v4788, 5
        %v4890 = vsel %vm4807, %v4889, %v4888
        %v4891 = vrot.slane %v4789, 4
        %v4892 = vsel %vm4810, %v4891, %v4890
        %v4893 = vrot.slane %v4790, 3
        %v4894 = vsel %vm4813, %v4893, %v4892
        %v4895 = vrot.slane %v4791, 2
        %v4896 = vsel %vm4816, %v4895, %v4894
        %v4897 = vrot.slane %v4792, 1
        %v4898 = vsel %vm4819, %v4897, %v4896
        %v4899 = vrot.slane %v4794, 7
        %v4900 = vrot.slane %v4795, 6
        %v4901 = vsel %vm4804, %v4900, %v4899
        %v4902 = vrot.slane %v4796, 5
        %v4903 = vsel %vm4807, %v4902, %v4901
        %v4904 = vrot.slane %v4797, 4
        %v4905 = vsel %vm4810, %v4904, %v4903
        %v4906 = vrot.slane %v4798, 3
        %v4907 = vsel %vm4813, %v4906, %v4905
        %v4908 = vrot.slane %v4799, 2
        %v4909 = vsel %vm4816, %v4908, %v4907
        %v4910 = vrot.slane %v4800, 1
        %v4911 = vsel %vm4819, %v4910, %v4909
        %v4912 = vpack.c.b16 %v4820, %v4820
        %v4913 = vpack.c.b16 %v4745, %v4745
        %v4914 = vpack.c.b16 %v4833, %v4833
        %v4915 = vpack.c.b16 %v4753, %v4753
        %v4916 = vpack.c.b16 %v4846, %v4846
        %v4917 = vpack.c.b16 %v4761, %v4761
        %v4918 = vpack.c.b16 %v4859, %v4859
        %v4919 = vpack.c.b16 %v4769, %v4769
        %v4920 = vpack.c.b16 %v4872, %v4872
        %v4921 = vpack.c.b16 %v4777, %v4777
        %v4922 = vpack.c.b16 %v4885, %v4885
        %v4923 = vpack.c.b16 %v4785, %v4785
        %v4924 = vpack.c.b16 %v4898, %v4898
        %v4925 = vpack.c.b16 %v4793, %v4793
        %v4926 = vpack.c.b16 %v4911, %v4911
        %v4927 = vpack.c.b16 %v4801, %v4801
        %vm4944 = vcmask 519168
        %vm4945 = vmand %vm4944, %vm407
        %v4946 = vld [vmem:[%s4430] sm:$0xf]
        %v4947 = vsel %vm4945, %v4912, %v4946
        %4948 = vst [vmem:[%s4430] sm:$0xf] %v4947
        %v4949 = vld [vmem:[%s4430 + $0x4] sm:$0x1]
        %v4950 = vsel %vm4432, %v4913, %v4949
        %4951 = vst [vmem:[%s4430 + $0x4] sm:$0x1] %v4950
        %v4952 = vld [vmem:[%s4430 + $0x8] sm:$0xf]
        %v4953 = vsel %vm4945, %v4914, %v4952
        %4954 = vst [vmem:[%s4430 + $0x8] sm:$0xf] %v4953
        %v4955 = vld [vmem:[%s4430 + $0xc] sm:$0x1]
        %v4956 = vsel %vm4432, %v4915, %v4955
        %4957 = vst [vmem:[%s4430 + $0xc] sm:$0x1] %v4956
        %v4958 = vld [vmem:[%s4430 + $0x10] sm:$0xf]
        %v4959 = vsel %vm4945, %v4916, %v4958
        %4960 = vst [vmem:[%s4430 + $0x10] sm:$0xf] %v4959
        %v4961 = vld [vmem:[%s4430 + $0x14] sm:$0x1]
        %v4962 = vsel %vm4432, %v4917, %v4961
        %4963 = vst [vmem:[%s4430 + $0x14] sm:$0x1] %v4962
        %v4964 = vld [vmem:[%s4430 + $0x18] sm:$0xf]
        %v4965 = vsel %vm4945, %v4918, %v4964
        %4966 = vst [vmem:[%s4430 + $0x18] sm:$0xf] %v4965
        %v4967 = vld [vmem:[%s4430 + $0x1c] sm:$0x1]
        %v4968 = vsel %vm4432, %v4919, %v4967
        %4969 = vst [vmem:[%s4430 + $0x1c] sm:$0x1] %v4968
        %v4970 = vld [vmem:[%s4430 + $0x20] sm:$0xf]
        %v4971 = vsel %vm4945, %v4920, %v4970
        %4972 = vst [vmem:[%s4430 + $0x20] sm:$0xf] %v4971
        %v4973 = vld [vmem:[%s4430 + $0x24] sm:$0x1]
        %v4974 = vsel %vm4432, %v4921, %v4973
        %4975 = vst [vmem:[%s4430 + $0x24] sm:$0x1] %v4974
        %v4976 = vld [vmem:[%s4430 + $0x28] sm:$0xf]
        %v4977 = vsel %vm4945, %v4922, %v4976
        %4978 = vst [vmem:[%s4430 + $0x28] sm:$0xf] %v4977
        %v4979 = vld [vmem:[%s4430 + $0x2c] sm:$0x1]
        %v4980 = vsel %vm4432, %v4923, %v4979
        %4981 = vst [vmem:[%s4430 + $0x2c] sm:$0x1] %v4980
        %v4982 = vld [vmem:[%s4430 + $0x30] sm:$0xf]
        %v4983 = vsel %vm4945, %v4924, %v4982
        %4984 = vst [vmem:[%s4430 + $0x30] sm:$0xf] %v4983
        %v4985 = vld [vmem:[%s4430 + $0x34] sm:$0x1]
        %v4986 = vsel %vm4432, %v4925, %v4985
        %4987 = vst [vmem:[%s4430 + $0x34] sm:$0x1] %v4986
        %v4988 = vld [vmem:[%s4430 + $0x38] sm:$0xf]
        %v4989 = vsel %vm4945, %v4926, %v4988
        %4990 = vst [vmem:[%s4430 + $0x38] sm:$0xf] %v4989
        %v4991 = vld [vmem:[%s4430 + $0x3c] sm:$0x1]
        %v4992 = vsel %vm4432, %v4927, %v4991
        %4993 = vst [vmem:[%s4430 + $0x3c] sm:$0x1] %v4992
        %v4994 = vld [vmem:[#allocation3] sm:$0xf]
        %v4995 = vld [vmem:[#allocation3 + $0x8] sm:$0xf]
        %v4996 = vld [vmem:[#allocation3 + $0x10] sm:$0xf]
        %v4997 = vld [vmem:[#allocation3 + $0x18] sm:$0xf]
        %v4998 = vld [vmem:[#allocation3 + $0x20] sm:$0xf]
        %v4999 = vld [vmem:[#allocation3 + $0x28] sm:$0xf]
        %v5000 = vld [vmem:[#allocation3 + $0x30] sm:$0xf]
        %v5001 = vld [vmem:[#allocation3 + $0x38] sm:$0xf]
        %v5002 = vld [vmem:[#allocation3 + $0x4] sm:$0x1]
        %v5003 = vld [vmem:[#allocation3 + $0xc] sm:$0x1]
        %v5004 = vld [vmem:[#allocation3 + $0x14] sm:$0x1]
        %v5005 = vld [vmem:[#allocation3 + $0x1c] sm:$0x1]
        %v5006 = vld [vmem:[#allocation3 + $0x24] sm:$0x1]
        %v5007 = vld [vmem:[#allocation3 + $0x2c] sm:$0x1]
        %v5008 = vld [vmem:[#allocation3 + $0x34] sm:$0x1]
        %v5009 = vld [vmem:[#allocation3 + $0x3c] sm:$0x1]
        %v5010 = vld [vmem:[#allocation3] sm:$0xe]
        %v5011 = vld [vmem:[#allocation3 + $0x8] sm:$0xe]
        %v5012 = vld [vmem:[#allocation3 + $0x10] sm:$0xe]
        %v5013 = vld [vmem:[#allocation3 + $0x18] sm:$0xe]
        %v5014 = vld [vmem:[#allocation3 + $0x20] sm:$0xe]
        %v5015 = vld [vmem:[#allocation3 + $0x28] sm:$0xe]
        %v5016 = vld [vmem:[#allocation3 + $0x30] sm:$0xe]
        %v5017 = vld [vmem:[#allocation3 + $0x38] sm:$0xe]
        %v5018 = vld [vmem:[%s4430] sm:$0xf]
        %v5019 = vld [vmem:[%s4430 + $0x8] sm:$0xf]
        %v5020 = vld [vmem:[%s4430 + $0x10] sm:$0xf]
        %v5021 = vld [vmem:[%s4430 + $0x18] sm:$0xf]
        %v5022 = vld [vmem:[%s4430 + $0x20] sm:$0xf]
        %v5023 = vld [vmem:[%s4430 + $0x28] sm:$0xf]
        %v5024 = vld [vmem:[%s4430 + $0x30] sm:$0xf]
        %v5025 = vld [vmem:[%s4430 + $0x38] sm:$0xf]
        %v5026 = vld [vmem:[%s4430 + $0x4] sm:$0x1]
        %v5027 = vld [vmem:[%s4430 + $0xc] sm:$0x1]
        %v5028 = vld [vmem:[%s4430 + $0x14] sm:$0x1]
        %v5029 = vld [vmem:[%s4430 + $0x1c] sm:$0x1]
        %v5030 = vld [vmem:[%s4430 + $0x24] sm:$0x1]
        %v5031 = vld [vmem:[%s4430 + $0x2c] sm:$0x1]
        %v5032 = vld [vmem:[%s4430 + $0x34] sm:$0x1]
        %v5033 = vld [vmem:[%s4430 + $0x3c] sm:$0x1]
        %v5034 = vld [vmem:[%s4430] sm:$0xe]
        %v5035 = vld [vmem:[%s4430 + $0x8] sm:$0xe]
        %v5036 = vld [vmem:[%s4430 + $0x10] sm:$0xe]
        %v5037 = vld [vmem:[%s4430 + $0x18] sm:$0xe]
        %v5038 = vld [vmem:[%s4430 + $0x20] sm:$0xe]
        %v5039 = vld [vmem:[%s4430 + $0x28] sm:$0xe]
        %v5040 = vld [vmem:[%s4430 + $0x30] sm:$0xe]
        %v5041 = vld [vmem:[%s4430 + $0x38] sm:$0xe]
        %s5042 = scalar_lea.vmem [#allocation3], 16
        %v5043 = vld [vmem:[%s5042] sm:$0xf]
        %v5044 = vld [vmem:[%s5042 + $0x8] sm:$0xf]
        %v5045 = vld [vmem:[%s5042 + $0x10] sm:$0xf]
        %v5046 = vld [vmem:[%s5042 + $0x18] sm:$0xf]
        %v5047 = vld [vmem:[%s5042 + $0x20] sm:$0xf]
        %v5048 = vld [vmem:[%s5042 + $0x28] sm:$0xf]
        %v5049 = vld [vmem:[%s5042 + $0x30] sm:$0xf]
        %v5050 = vld [vmem:[%s5042 + $0x38] sm:$0xf]
        %v5051 = vld [vmem:[%s5042 + $0x4] sm:$0x1]
        %v5052 = vld [vmem:[%s5042 + $0xc] sm:$0x1]
        %v5053 = vld [vmem:[%s5042 + $0x14] sm:$0x1]
        %v5054 = vld [vmem:[%s5042 + $0x1c] sm:$0x1]
        %v5055 = vld [vmem:[%s5042 + $0x24] sm:$0x1]
        %v5056 = vld [vmem:[%s5042 + $0x2c] sm:$0x1]
        %v5057 = vld [vmem:[%s5042 + $0x34] sm:$0x1]
        %v5058 = vld [vmem:[%s5042 + $0x3c] sm:$0x1]
        %v5059 = vld [vmem:[%s5042] sm:$0xe]
        %v5060 = vld [vmem:[%s5042 + $0x8] sm:$0xe]
        %v5061 = vld [vmem:[%s5042 + $0x10] sm:$0xe]
        %v5062 = vld [vmem:[%s5042 + $0x18] sm:$0xe]
        %v5063 = vld [vmem:[%s5042 + $0x20] sm:$0xe]
        %v5064 = vld [vmem:[%s5042 + $0x28] sm:$0xe]
        %v5065 = vld [vmem:[%s5042 + $0x30] sm:$0xe]
        %v5066 = vld [vmem:[%s5042 + $0x38] sm:$0xe]
        %v5083 = vunpack.c.l.b16 %v4994
        %v5084 = vunpack.c.l.b16 %v5002
        %v5085 = vunpack.c.l.b16 %v4995
        %v5086 = vunpack.c.l.b16 %v5003
        %v5087 = vunpack.c.l.b16 %v4996
        %v5088 = vunpack.c.l.b16 %v5004
        %v5089 = vunpack.c.l.b16 %v4997
        %v5090 = vunpack.c.l.b16 %v5005
        %v5091 = vunpack.c.l.b16 %v4998
        %v5092 = vunpack.c.l.b16 %v5006
        %v5093 = vunpack.c.l.b16 %v4999
        %v5094 = vunpack.c.l.b16 %v5007
        %v5095 = vunpack.c.l.b16 %v5000
        %v5096 = vunpack.c.l.b16 %v5008
        %v5097 = vunpack.c.l.b16 %v5001
        %v5098 = vunpack.c.l.b16 %v5009
        %v5099 = vpack.c.b16 %v5084, %v5083
        %v5100 = vpack.c.b16 %v5086, %v5085
        %v5101 = vpack.c.b16 %v5088, %v5087
        %v5102 = vpack.c.b16 %v5090, %v5089
        %v5103 = vpack.c.b16 %v5092, %v5091
        %v5104 = vpack.c.b16 %v5094, %v5093
        %v5105 = vpack.c.b16 %v5096, %v5095
        %v5106 = vpack.c.b16 %v5098, %v5097
        %v5108 = vshrl.u32 %v5099, 16
        %v5110 = vshll.u32 %v5099, 16
        %v5112 = vrot.slane %v5110, 1
        %v5113 = vor.u32 %v5108, %v5112
        %v5115 = vshrl.u32 %v5100, 16
        %v5117 = vshll.u32 %v5100, 16
        %v5119 = vrot.slane %v5117, 1
        %v5120 = vor.u32 %v5115, %v5119
        %v5122 = vshrl.u32 %v5101, 16
        %v5124 = vshll.u32 %v5101, 16
        %v5126 = vrot.slane %v5124, 1
        %v5127 = vor.u32 %v5122, %v5126
        %v5129 = vshrl.u32 %v5102, 16
        %v5131 = vshll.u32 %v5102, 16
        %v5133 = vrot.slane %v5131, 1
        %v5134 = vor.u32 %v5129, %v5133
        %v5136 = vshrl.u32 %v5103, 16
        %v5138 = vshll.u32 %v5103, 16
        %v5140 = vrot.slane %v5138, 1
        %v5141 = vor.u32 %v5136, %v5140
        %v5143 = vshrl.u32 %v5104, 16
        %v5145 = vshll.u32 %v5104, 16
        %v5147 = vrot.slane %v5145, 1
        %v5148 = vor.u32 %v5143, %v5147
        %v5150 = vshrl.u32 %v5105, 16
        %v5152 = vshll.u32 %v5105, 16
        %v5154 = vrot.slane %v5152, 1
        %v5155 = vor.u32 %v5150, %v5154
        %v5157 = vshrl.u32 %v5106, 16
        %v5159 = vshll.u32 %v5106, 16
        %v5161 = vrot.slane %v5159, 1
        %v5162 = vor.u32 %v5157, %v5161
        %5163 = vrot.lane.b32.xlu0 %v5113, 64
        %v5164 = vpop.permute.xlu0 %5163
        %5165 = vrot.lane.b32.xlu0 %v5120, 64
        %v5166 = vpop.permute.xlu0 %5165
        %5167 = vrot.lane.b32.xlu0 %v5127, 64
        %v5168 = vpop.permute.xlu0 %5167
        %5169 = vrot.lane.b32.xlu0 %v5134, 64
        %v5170 = vpop.permute.xlu0 %5169
        %5171 = vrot.lane.b32.xlu0 %v5141, 64
        %v5172 = vpop.permute.xlu0 %5171
        %5173 = vrot.lane.b32.xlu0 %v5148, 64
        %v5174 = vpop.permute.xlu0 %5173
        %5175 = vrot.lane.b32.xlu0 %v5155, 64
        %v5176 = vpop.permute.xlu0 %5175
        %5177 = vrot.lane.b32.xlu0 %v5162, 64
        %v5178 = vpop.permute.xlu0 %5177
        %v5187 = vunpack.c.l.b16 %v5010
        %v5188 = vunpack.c.l.b16 %v5011
        %v5189 = vunpack.c.l.b16 %v5012
        %v5190 = vunpack.c.l.b16 %v5013
        %v5191 = vunpack.c.l.b16 %v5014
        %v5192 = vunpack.c.l.b16 %v5015
        %v5193 = vunpack.c.l.b16 %v5016
        %v5194 = vunpack.c.l.b16 %v5017
        %v5195 = vpack.c.b16 %v5084, %v5187
        %v5196 = vpack.c.b16 %v5086, %v5188
        %v5197 = vpack.c.b16 %v5088, %v5189
        %v5198 = vpack.c.b16 %v5090, %v5190
        %v5199 = vpack.c.b16 %v5092, %v5191
        %v5200 = vpack.c.b16 %v5094, %v5192
        %v5201 = vpack.c.b16 %v5096, %v5193
        %v5202 = vpack.c.b16 %v5098, %v5194
        %v5203 = vrot.slane %v5195, 1
        %v5204 = vrot.slane %v5196, 1
        %v5205 = vrot.slane %v5197, 1
        %v5206 = vrot.slane %v5198, 1
        %v5207 = vrot.slane %v5199, 1
        %v5208 = vrot.slane %v5200, 1
        %v5209 = vrot.slane %v5201, 1
        %v5210 = vrot.slane %v5202, 1
        %v5219 = vunpack.c.l.b16 %v5018
        %v5220 = vunpack.c.l.b16 %v5019
        %v5221 = vunpack.c.l.b16 %v5020
        %v5222 = vunpack.c.l.b16 %v5021
        %v5223 = vunpack.c.l.b16 %v5022
        %v5224 = vunpack.c.l.b16 %v5023
        %v5225 = vunpack.c.l.b16 %v5024
        %v5226 = vunpack.c.l.b16 %v5025
        %v5227 = vpack.c.b16 %v5219, %v5219
        %v5228 = vpack.c.b16 %v5220, %v5220
        %v5229 = vpack.c.b16 %v5221, %v5221
        %v5230 = vpack.c.b16 %v5222, %v5222
        %v5231 = vpack.c.b16 %v5223, %v5223
        %v5232 = vpack.c.b16 %v5224, %v5224
        %v5233 = vpack.c.b16 %v5225, %v5225
        %v5234 = vpack.c.b16 %v5226, %v5226
        %5235 = vrot.lane.b32.xlu0 %v5227, 64
        %v5236 = vpop.permute.xlu0 %5235
        %5237 = vrot.lane.b32.xlu0 %v5228, 64
        %v5238 = vpop.permute.xlu0 %5237
        %5239 = vrot.lane.b32.xlu0 %v5229, 64
        %v5240 = vpop.permute.xlu0 %5239
        %5241 = vrot.lane.b32.xlu0 %v5230, 64
        %v5242 = vpop.permute.xlu0 %5241
        %5243 = vrot.lane.b32.xlu0 %v5231, 64
        %v5244 = vpop.permute.xlu0 %5243
        %5245 = vrot.lane.b32.xlu0 %v5232, 64
        %v5246 = vpop.permute.xlu0 %5245
        %5247 = vrot.lane.b32.xlu0 %v5233, 64
        %v5248 = vpop.permute.xlu0 %5247
        %5249 = vrot.lane.b32.xlu0 %v5234, 64
        %v5250 = vpop.permute.xlu0 %5249
        %v5259 = vunpack.c.l.b16 %v5026
        %v5260 = vunpack.c.l.b16 %v5027
        %v5261 = vunpack.c.l.b16 %v5028
        %v5262 = vunpack.c.l.b16 %v5029
        %v5263 = vunpack.c.l.b16 %v5030
        %v5264 = vunpack.c.l.b16 %v5031
        %v5265 = vunpack.c.l.b16 %v5032
        %v5266 = vunpack.c.l.b16 %v5033
        %v5267 = vpack.c.b16 %v5259, %v5219
        %v5268 = vpack.c.b16 %v5260, %v5220
        %v5269 = vpack.c.b16 %v5261, %v5221
        %v5270 = vpack.c.b16 %v5262, %v5222
        %v5271 = vpack.c.b16 %v5263, %v5223
        %v5272 = vpack.c.b16 %v5264, %v5224
        %v5273 = vpack.c.b16 %v5265, %v5225
        %v5274 = vpack.c.b16 %v5266, %v5226
        %v5276 = vshrl.u32 %v5267, 16
        %v5278 = vshll.u32 %v5267, 16
        %v5280 = vrot.slane %v5278, 1
        %v5281 = vor.u32 %v5276, %v5280
        %v5283 = vshrl.u32 %v5268, 16
        %v5285 = vshll.u32 %v5268, 16
        %v5287 = vrot.slane %v5285, 1
        %v5288 = vor.u32 %v5283, %v5287
        %v5290 = vshrl.u32 %v5269, 16
        %v5292 = vshll.u32 %v5269, 16
        %v5294 = vrot.slane %v5292, 1
        %v5295 = vor.u32 %v5290, %v5294
        %v5297 = vshrl.u32 %v5270, 16
        %v5299 = vshll.u32 %v5270, 16
        %v5301 = vrot.slane %v5299, 1
        %v5302 = vor.u32 %v5297, %v5301
        %v5304 = vshrl.u32 %v5271, 16
        %v5306 = vshll.u32 %v5271, 16
        %v5308 = vrot.slane %v5306, 1
        %v5309 = vor.u32 %v5304, %v5308
        %v5311 = vshrl.u32 %v5272, 16
        %v5313 = vshll.u32 %v5272, 16
        %v5315 = vrot.slane %v5313, 1
        %v5316 = vor.u32 %v5311, %v5315
        %v5318 = vshrl.u32 %v5273, 16
        %v5320 = vshll.u32 %v5273, 16
        %v5322 = vrot.slane %v5320, 1
        %v5323 = vor.u32 %v5318, %v5322
        %v5325 = vshrl.u32 %v5274, 16
        %v5327 = vshll.u32 %v5274, 16
        %v5329 = vrot.slane %v5327, 1
        %v5330 = vor.u32 %v5325, %v5329
        %v5339 = vunpack.c.l.b16 %v5034
        %v5340 = vunpack.c.l.b16 %v5035
        %v5341 = vunpack.c.l.b16 %v5036
        %v5342 = vunpack.c.l.b16 %v5037
        %v5343 = vunpack.c.l.b16 %v5038
        %v5344 = vunpack.c.l.b16 %v5039
        %v5345 = vunpack.c.l.b16 %v5040
        %v5346 = vunpack.c.l.b16 %v5041
        %v5347 = vpack.c.b16 %v5259, %v5339
        %v5348 = vpack.c.b16 %v5260, %v5340
        %v5349 = vpack.c.b16 %v5261, %v5341
        %v5350 = vpack.c.b16 %v5262, %v5342
        %v5351 = vpack.c.b16 %v5263, %v5343
        %v5352 = vpack.c.b16 %v5264, %v5344
        %v5353 = vpack.c.b16 %v5265, %v5345
        %v5354 = vpack.c.b16 %v5266, %v5346
        %v5355 = vrot.slane %v5347, 1
        %v5356 = vrot.slane %v5348, 1
        %v5357 = vrot.slane %v5349, 1
        %v5358 = vrot.slane %v5350, 1
        %v5359 = vrot.slane %v5351, 1
        %v5360 = vrot.slane %v5352, 1
        %v5361 = vrot.slane %v5353, 1
        %v5362 = vrot.slane %v5354, 1
        %5363 = vrot.lane.b32.xlu0 %v5355, 64
        %v5364 = vpop.permute.xlu0 %5363
        %5365 = vrot.lane.b32.xlu0 %v5356, 64
        %v5366 = vpop.permute.xlu0 %5365
        %5367 = vrot.lane.b32.xlu0 %v5357, 64
        %v5368 = vpop.permute.xlu0 %5367
        %5369 = vrot.lane.b32.xlu0 %v5358, 64
        %v5370 = vpop.permute.xlu0 %5369
        %5371 = vrot.lane.b32.xlu0 %v5359, 64
        %v5372 = vpop.permute.xlu0 %5371
        %5373 = vrot.lane.b32.xlu0 %v5360, 64
        %v5374 = vpop.permute.xlu0 %5373
        %5375 = vrot.lane.b32.xlu0 %v5361, 64
        %v5376 = vpop.permute.xlu0 %5375
        %5377 = vrot.lane.b32.xlu0 %v5362, 64
        %v5378 = vpop.permute.xlu0 %5377
        %v5395 = vunpack.c.l.b16 %v5043
        %v5396 = vunpack.c.l.b16 %v5051
        %v5397 = vunpack.c.l.b16 %v5044
        %v5398 = vunpack.c.l.b16 %v5052
        %v5399 = vunpack.c.l.b16 %v5045
        %v5400 = vunpack.c.l.b16 %v5053
        %v5401 = vunpack.c.l.b16 %v5046
        %v5402 = vunpack.c.l.b16 %v5054
        %v5403 = vunpack.c.l.b16 %v5047
        %v5404 = vunpack.c.l.b16 %v5055
        %v5405 = vunpack.c.l.b16 %v5048
        %v5406 = vunpack.c.l.b16 %v5056
        %v5407 = vunpack.c.l.b16 %v5049
        %v5408 = vunpack.c.l.b16 %v5057
        %v5409 = vunpack.c.l.b16 %v5050
        %v5410 = vunpack.c.l.b16 %v5058
        %v5411 = vpack.c.b16 %v5396, %v5395
        %v5412 = vpack.c.b16 %v5398, %v5397
        %v5413 = vpack.c.b16 %v5400, %v5399
        %v5414 = vpack.c.b16 %v5402, %v5401
        %v5415 = vpack.c.b16 %v5404, %v5403
        %v5416 = vpack.c.b16 %v5406, %v5405
        %v5417 = vpack.c.b16 %v5408, %v5407
        %v5418 = vpack.c.b16 %v5410, %v5409
        %v5420 = vshrl.u32 %v5411, 16
        %v5422 = vshll.u32 %v5411, 16
        %v5424 = vrot.slane %v5422, 1
        %v5425 = vor.u32 %v5420, %v5424
        %v5427 = vshrl.u32 %v5412, 16
        %v5429 = vshll.u32 %v5412, 16
        %v5431 = vrot.slane %v5429, 1
        %v5432 = vor.u32 %v5427, %v5431
        %v5434 = vshrl.u32 %v5413, 16
        %v5436 = vshll.u32 %v5413, 16
        %v5438 = vrot.slane %v5436, 1
        %v5439 = vor.u32 %v5434, %v5438
        %v5441 = vshrl.u32 %v5414, 16
        %v5443 = vshll.u32 %v5414, 16
        %v5445 = vrot.slane %v5443, 1
        %v5446 = vor.u32 %v5441, %v5445
        %v5448 = vshrl.u32 %v5415, 16
        %v5450 = vshll.u32 %v5415, 16
        %v5452 = vrot.slane %v5450, 1
        %v5453 = vor.u32 %v5448, %v5452
        %v5455 = vshrl.u32 %v5416, 16
        %v5457 = vshll.u32 %v5416, 16
        %v5459 = vrot.slane %v5457, 1
        %v5460 = vor.u32 %v5455, %v5459
        %v5462 = vshrl.u32 %v5417, 16
        %v5464 = vshll.u32 %v5417, 16
        %v5466 = vrot.slane %v5464, 1
        %v5467 = vor.u32 %v5462, %v5466
        %v5469 = vshrl.u32 %v5418, 16
        %v5471 = vshll.u32 %v5418, 16
        %v5473 = vrot.slane %v5471, 1
        %v5474 = vor.u32 %v5469, %v5473
        %5475 = vrot.lane.b32.xlu0 %v5425, 64
        %v5476 = vpop.permute.xlu0 %5475
        %5477 = vrot.lane.b32.xlu0 %v5432, 64
        %v5478 = vpop.permute.xlu0 %5477
        %5479 = vrot.lane.b32.xlu0 %v5439, 64
        %v5480 = vpop.permute.xlu0 %5479
        %5481 = vrot.lane.b32.xlu0 %v5446, 64
        %v5482 = vpop.permute.xlu0 %5481
        %5483 = vrot.lane.b32.xlu0 %v5453, 64
        %v5484 = vpop.permute.xlu0 %5483
        %5485 = vrot.lane.b32.xlu0 %v5460, 64
        %v5486 = vpop.permute.xlu0 %5485
        %5487 = vrot.lane.b32.xlu0 %v5467, 64
        %v5488 = vpop.permute.xlu0 %5487
        %5489 = vrot.lane.b32.xlu0 %v5474, 64
        %v5490 = vpop.permute.xlu0 %5489
        %v5499 = vunpack.c.l.b16 %v5059
        %v5500 = vunpack.c.l.b16 %v5060
        %v5501 = vunpack.c.l.b16 %v5061
        %v5502 = vunpack.c.l.b16 %v5062
        %v5503 = vunpack.c.l.b16 %v5063
        %v5504 = vunpack.c.l.b16 %v5064
        %v5505 = vunpack.c.l.b16 %v5065
        %v5506 = vunpack.c.l.b16 %v5066
        %v5507 = vpack.c.b16 %v5396, %v5499
        %v5508 = vpack.c.b16 %v5398, %v5500
        %v5509 = vpack.c.b16 %v5400, %v5501
        %v5510 = vpack.c.b16 %v5402, %v5502
        %v5511 = vpack.c.b16 %v5404, %v5503
        %v5512 = vpack.c.b16 %v5406, %v5504
        %v5513 = vpack.c.b16 %v5408, %v5505
        %v5514 = vpack.c.b16 %v5410, %v5506
        %v5515 = vrot.slane %v5507, 1
        %v5516 = vrot.slane %v5508, 1
        %v5517 = vrot.slane %v5509, 1
        %v5518 = vrot.slane %v5510, 1
        %v5519 = vrot.slane %v5511, 1
        %v5520 = vrot.slane %v5512, 1
        %v5521 = vrot.slane %v5513, 1
        %v5522 = vrot.slane %v5514, 1
        %vm5523 = vcmask 523264
        %v5526 = vsel %vm5523, %v4994, %v5164
        %v5529 = vsel %vm5523, %v4995, %v5166
        %v5532 = vsel %vm5523, %v4996, %v5168
        %v5535 = vsel %vm5523, %v4997, %v5170
        %v5538 = vsel %vm5523, %v4998, %v5172
        %v5541 = vsel %vm5523, %v4999, %v5174
        %v5544 = vsel %vm5523, %v5000, %v5176
        %v5547 = vsel %vm5523, %v5001, %v5178
        %v5550 = vsel %vm5523, %v5203, %v5236
        %v5553 = vsel %vm5523, %v5204, %v5238
        %v5556 = vsel %vm5523, %v5205, %v5240
        %v5559 = vsel %vm5523, %v5206, %v5242
        %v5562 = vsel %vm5523, %v5207, %v5244
        %v5565 = vsel %vm5523, %v5208, %v5246
        %v5568 = vsel %vm5523, %v5209, %v5248
        %v5571 = vsel %vm5523, %v5210, %v5250
        %v5574 = vsel %vm5523, %v5281, %v5364
        %v5577 = vsel %vm5523, %v5288, %v5366
        %v5580 = vsel %vm5523, %v5295, %v5368
        %v5583 = vsel %vm5523, %v5302, %v5370
        %v5586 = vsel %vm5523, %v5309, %v5372
        %v5589 = vsel %vm5523, %v5316, %v5374
        %v5592 = vsel %vm5523, %v5323, %v5376
        %v5595 = vsel %vm5523, %v5330, %v5378
        %v5598 = vsel %vm5523, %v5043, %v5476
        %v5601 = vsel %vm5523, %v5044, %v5478
        %v5604 = vsel %vm5523, %v5045, %v5480
        %v5607 = vsel %vm5523, %v5046, %v5482
        %v5610 = vsel %vm5523, %v5047, %v5484
        %v5613 = vsel %vm5523, %v5048, %v5486
        %v5616 = vsel %vm5523, %v5049, %v5488
        %v5619 = vsel %vm5523, %v5050, %v5490
        %v5652 = vunpack.c.l.b16 %v5526
        %v5653 = vunpack.c.l.b16 %v5550
        %v5654 = vunpack.c.l.b16 %v5574
        %v5655 = vunpack.c.l.b16 %v5598
        %v5656 = vunpack.c.l.b16 %v5515
        %v5657 = vunpack.c.l.b16 %v5529
        %v5658 = vunpack.c.l.b16 %v5553
        %v5659 = vunpack.c.l.b16 %v5577
        %v5660 = vunpack.c.l.b16 %v5601
        %v5661 = vunpack.c.l.b16 %v5516
        %v5662 = vunpack.c.l.b16 %v5532
        %v5663 = vunpack.c.l.b16 %v5556
        %v5664 = vunpack.c.l.b16 %v5580
        %v5665 = vunpack.c.l.b16 %v5604
        %v5666 = vunpack.c.l.b16 %v5517
        %v5667 = vunpack.c.l.b16 %v5535
        %v5668 = vunpack.c.l.b16 %v5559
        %v5669 = vunpack.c.l.b16 %v5583
        %v5670 = vunpack.c.l.b16 %v5607
        %v5671 = vunpack.c.l.b16 %v5518
        %v5672 = vunpack.c.l.b16 %v5538
        %v5673 = vunpack.c.l.b16 %v5562
        %v5674 = vunpack.c.l.b16 %v5586
        %v5675 = vunpack.c.l.b16 %v5610
        %v5676 = vunpack.c.l.b16 %v5519
        %v5677 = vunpack.c.l.b16 %v5541
        %v5678 = vunpack.c.l.b16 %v5565
        %v5679 = vunpack.c.l.b16 %v5589
        %v5680 = vunpack.c.l.b16 %v5613
        %v5681 = vunpack.c.l.b16 %v5520
        %v5682 = vunpack.c.l.b16 %v5544
        %v5683 = vunpack.c.l.b16 %v5568
        %v5684 = vunpack.c.l.b16 %v5592
        %v5685 = vunpack.c.l.b16 %v5616
        %v5686 = vunpack.c.l.b16 %v5521
        %v5687 = vunpack.c.l.b16 %v5547
        %v5688 = vunpack.c.l.b16 %v5571
        %v5689 = vunpack.c.l.b16 %v5595
        %v5690 = vunpack.c.l.b16 %v5619
        %v5691 = vunpack.c.l.b16 %v5522
        %v5692 = vld [vmem:[%s3] sm:$0xf]
        %v5693 = vld [vmem:[%s3 + $0x4] sm:$0xf]
        %v5694 = vld [vmem:[%s3 + $0x8] sm:$0xf]
        %v5695 = vld [vmem:[%s3 + $0xc] sm:$0xf]
        %v5696 = vld [vmem:[%s3 + $0x10] sm:$0xf]
        %v5697 = vld [vmem:[%s3 + $0x14] sm:$0xf]
        %v5698 = vld [vmem:[%s3 + $0x18] sm:$0xf]
        %v5699 = vld [vmem:[%s3 + $0x1c] sm:$0xf]
        %v5700 = vld [vmem:[%s3 + $0x20] sm:$0xf]
        %v5701 = vld [vmem:[%s3 + $0x24] sm:$0xf]
        %v5702 = vld [vmem:[%s3 + $0x28] sm:$0xf]
        %v5703 = vld [vmem:[%s3 + $0x2c] sm:$0xf]
        %v5704 = vld [vmem:[%s3 + $0x30] sm:$0xf]
        %v5705 = vld [vmem:[%s3 + $0x34] sm:$0xf]
        %v5706 = vld [vmem:[%s3 + $0x38] sm:$0xf]
        %v5707 = vld [vmem:[%s3 + $0x3c] sm:$0xf]
        %v5708 = vld [vmem:[%s3 + $0x40] sm:$0xf]
        %v5709 = vld [vmem:[%s3 + $0x44] sm:$0xf]
        %v5710 = vld [vmem:[%s3 + $0x48] sm:$0xf]
        %v5711 = vld [vmem:[%s3 + $0x4c] sm:$0xf]
        %v5712 = vld [vmem:[%s3 + $0x50] sm:$0xf]
        %v5713 = vld [vmem:[%s3 + $0x54] sm:$0xf]
        %v5714 = vld [vmem:[%s3 + $0x58] sm:$0xf]
        %v5715 = vld [vmem:[%s3 + $0x5c] sm:$0xf]
        %v5716 = vld [vmem:[%s3 + $0x60] sm:$0xf]
        %v5717 = vld [vmem:[%s3 + $0x64] sm:$0xf]
        %v5718 = vld [vmem:[%s3 + $0x68] sm:$0xf]
        %v5719 = vld [vmem:[%s3 + $0x6c] sm:$0xf]
        %v5720 = vld [vmem:[%s3 + $0x70] sm:$0xf]
        %v5721 = vld [vmem:[%s3 + $0x74] sm:$0xf]
        %v5722 = vld [vmem:[%s3 + $0x78] sm:$0xf]
        %v5723 = vld [vmem:[%s3 + $0x7c] sm:$0xf]
        %v5724 = vld [vmem:[%s3 + $0x80] sm:$0xf]
        %v5725 = vld [vmem:[%s3 + $0x84] sm:$0xf]
        %v5726 = vld [vmem:[%s3 + $0x88] sm:$0xf]
        %v5727 = vld [vmem:[%s3 + $0x8c] sm:$0xf]
        %v5728 = vld [vmem:[%s3 + $0x90] sm:$0xf]
        %v5729 = vld [vmem:[%s3 + $0x94] sm:$0xf]
        %v5730 = vld [vmem:[%s3 + $0x98] sm:$0xf]
        %v5731 = vld [vmem:[%s3 + $0x9c] sm:$0xf]
        %v5732 = vld [vmem:[%s3 + $0xa0] sm:$0xf]
        %v5733 = vld [vmem:[%s3 + $0xa4] sm:$0xf]
        %v5734 = vld [vmem:[%s3 + $0xa8] sm:$0xf]
        %v5735 = vld [vmem:[%s3 + $0xac] sm:$0xf]
        %v5736 = vld [vmem:[%s3 + $0xb0] sm:$0xf]
        %v5737 = vld [vmem:[%s3 + $0xb4] sm:$0xf]
        %v5738 = vld [vmem:[%s3 + $0xb8] sm:$0xf]
        %v5739 = vld [vmem:[%s3 + $0xbc] sm:$0xf]
        %v5740 = vld [vmem:[%s3 + $0xc0] sm:$0xf]
        %v5741 = vld [vmem:[%s3 + $0xc4] sm:$0xf]
        %v5742 = vld [vmem:[%s3 + $0xc8] sm:$0xf]
        %v5743 = vld [vmem:[%s3 + $0xcc] sm:$0xf]
        %v5744 = vld [vmem:[%s3 + $0xd0] sm:$0xf]
        %v5745 = vld [vmem:[%s3 + $0xd4] sm:$0xf]
        %v5746 = vld [vmem:[%s3 + $0xd8] sm:$0xf]
        %v5747 = vld [vmem:[%s3 + $0xdc] sm:$0xf]
        %v5748 = vld [vmem:[%s3 + $0xe0] sm:$0xf]
        %v5749 = vld [vmem:[%s3 + $0xe4] sm:$0xf]
        %v5750 = vld [vmem:[%s3 + $0xe8] sm:$0xf]
        %v5751 = vld [vmem:[%s3 + $0xec] sm:$0xf]
        %v5752 = vld [vmem:[%s3 + $0xf0] sm:$0xf]
        %v5753 = vld [vmem:[%s3 + $0xf4] sm:$0xf]
        %v5754 = vld [vmem:[%s3 + $0xf8] sm:$0xf]
        %v5755 = vld [vmem:[%s3 + $0xfc] sm:$0xf]
        %v5756 = vld [vmem:[%s3 + $0x100] sm:$0xf]
        %v5757 = vld [vmem:[%s3 + $0x104] sm:$0xf]
        %v5758 = vld [vmem:[%s3 + $0x108] sm:$0xf]
        %v5759 = vld [vmem:[%s3 + $0x10c] sm:$0xf]
        %v5760 = vld [vmem:[%s3 + $0x110] sm:$0xf]
        %v5761 = vld [vmem:[%s3 + $0x114] sm:$0xf]
        %v5762 = vld [vmem:[%s3 + $0x118] sm:$0xf]
        %v5763 = vld [vmem:[%s3 + $0x11c] sm:$0xf]
        %v5764 = vld [vmem:[%s4] sm:$0x1]
        %v5766 = vlaneseq
        %v5767 = vshrl.u32 %v5766, 7
        %v5768 = vsub.s32 0, %v5767
        %v5769 = vrot.slane %v5764, %v5768
        %v5771 = vpack.c.b16 %v5657, %v5652
        %v5772 = vpack.c.b16 %v5658, %v5653
        %v5773 = vpack.c.b16 %v5659, %v5654
        %v5774 = vpack.c.b16 %v5660, %v5655
        %v5775 = vpack.c.b16 %v5661, %v5656
        %v5776 = vpack.c.b16 %v5667, %v5662
        %v5777 = vpack.c.b16 %v5668, %v5663
        %v5778 = vpack.c.b16 %v5669, %v5664
        %v5779 = vpack.c.b16 %v5670, %v5665
        %v5780 = vpack.c.b16 %v5671, %v5666
        %v5781 = vpack.c.b16 %v5677, %v5672
        %v5782 = vpack.c.b16 %v5678, %v5673
        %v5783 = vpack.c.b16 %v5679, %v5674
        %v5784 = vpack.c.b16 %v5680, %v5675
        %v5785 = vpack.c.b16 %v5681, %v5676
        %v5786 = vpack.c.b16 %v5687, %v5682
        %v5787 = vpack.c.b16 %v5688, %v5683
        %v5788 = vpack.c.b16 %v5689, %v5684
        %v5789 = vpack.c.b16 %v5690, %v5685
        %v5790 = vpack.c.b16 %v5691, %v5686
        %v5879 = vunpack.c.l.b16 %v5692
        %v5880 = vunpack.c.l.b16 %v5693
        %v5881 = vunpack.c.l.b16 %v5694
        %v5882 = vunpack.c.l.b16 %v5695
        %v5883 = vunpack.c.l.b16 %v5696
        %v5884 = vunpack.c.l.b16 %v5697
        %v5885 = vunpack.c.l.b16 %v5698
        %v5886 = vunpack.c.l.b16 %v5699
        %v5887 = vunpack.c.l.b16 %v5700
        %v5888 = vunpack.c.l.b16 %v5701
        %v5889 = vunpack.c.l.b16 %v5702
        %v5890 = vunpack.c.l.b16 %v5703
        %v5891 = vunpack.c.l.b16 %v5704
        %v5892 = vunpack.c.l.b16 %v5705
        %v5893 = vunpack.c.l.b16 %v5706
        %v5894 = vunpack.c.l.b16 %v5707
        %v5895 = vunpack.c.l.b16 %v5708
        %v5896 = vunpack.c.l.b16 %v5709
        %v5897 = vunpack.c.l.b16 %v5710
        %v5898 = vunpack.c.l.b16 %v5711
        %v5899 = vunpack.c.l.b16 %v5712
        %v5900 = vunpack.c.l.b16 %v5713
        %v5901 = vunpack.c.l.b16 %v5714
        %v5902 = vunpack.c.l.b16 %v5715
        %v5903 = vunpack.c.l.b16 %v5716
        %v5904 = vunpack.c.l.b16 %v5717
        %v5905 = vunpack.c.l.b16 %v5718
        %v5906 = vunpack.c.l.b16 %v5719
        %v5907 = vunpack.c.l.b16 %v5720
        %v5908 = vunpack.c.l.b16 %v5721
        %v5909 = vunpack.c.l.b16 %v5722
        %v5910 = vunpack.c.l.b16 %v5723
        %v5911 = vunpack.c.l.b16 %v5724
        %v5912 = vunpack.c.l.b16 %v5725
        %v5913 = vunpack.c.l.b16 %v5726
        %v5914 = vunpack.c.l.b16 %v5727
        %v5915 = vunpack.c.l.b16 %v5728
        %v5916 = vunpack.c.l.b16 %v5729
        %v5917 = vunpack.c.l.b16 %v5730
        %v5918 = vunpack.c.l.b16 %v5731
        %v5919 = vunpack.c.l.b16 %v5732
        %v5920 = vunpack.c.l.b16 %v5733
        %v5921 = vunpack.c.l.b16 %v5734
        %v5922 = vunpack.c.l.b16 %v5735
        %v5923 = vunpack.c.l.b16 %v5736
        %v5924 = vunpack.c.l.b16 %v5737
        %v5925 = vunpack.c.l.b16 %v5738
        %v5926 = vunpack.c.l.b16 %v5739
        %v5927 = vunpack.c.l.b16 %v5740
        %v5928 = vunpack.c.l.b16 %v5741
        %v5929 = vunpack.c.l.b16 %v5742
        %v5930 = vunpack.c.l.b16 %v5743
        %v5931 = vunpack.c.l.b16 %v5744
        %v5932 = vunpack.c.l.b16 %v5745
        %v5933 = vunpack.c.l.b16 %v5746
        %v5934 = vunpack.c.l.b16 %v5747
        %v5935 = vunpack.c.l.b16 %v5748
        %v5936 = vunpack.c.l.b16 %v5749
        %v5937 = vunpack.c.l.b16 %v5750
        %v5938 = vunpack.c.l.b16 %v5751
        %v5939 = vunpack.c.l.b16 %v5752
        %v5940 = vunpack.c.l.b16 %v5753
        %v5941 = vunpack.c.l.b16 %v5754
        %v5942 = vunpack.c.l.b16 %v5755
        %v5943 = vunpack.c.l.b16 %v5756
        %v5944 = vunpack.c.l.b16 %v5757
        %v5945 = vunpack.c.l.b16 %v5758
        %v5946 = vunpack.c.l.b16 %v5759
        %v5947 = vunpack.c.l.b16 %v5760
        %v5948 = vunpack.c.l.b16 %v5761
        %v5949 = vunpack.c.l.b16 %v5762
        %v5950 = vunpack.c.l.b16 %v5763
        %v5951 = vpack.c.b16 %v5880, %v5879
        %v5952 = vpack.c.b16 %v5882, %v5881
        %v5953 = vpack.c.b16 %v5884, %v5883
        %v5954 = vpack.c.b16 %v5886, %v5885
        %v5955 = vpack.c.b16 %v5888, %v5887
        %v5956 = vpack.c.b16 %v5890, %v5889
        %v5957 = vpack.c.b16 %v5892, %v5891
        %v5958 = vpack.c.b16 %v5894, %v5893
        %v5959 = vpack.c.b16 %v5896, %v5895
        %v5960 = vpack.c.b16 %v5898, %v5897
        %v5961 = vpack.c.b16 %v5900, %v5899
        %v5962 = vpack.c.b16 %v5902, %v5901
        %v5963 = vpack.c.b16 %v5904, %v5903
        %v5964 = vpack.c.b16 %v5906, %v5905
        %v5965 = vpack.c.b16 %v5908, %v5907
        %v5966 = vpack.c.b16 %v5910, %v5909
        %v5967 = vpack.c.b16 %v5912, %v5911
        %v5968 = vpack.c.b16 %v5914, %v5913
        %v5969 = vpack.c.b16 %v5916, %v5915
        %v5970 = vpack.c.b16 %v5918, %v5917
        %v5971 = vpack.c.b16 %v5920, %v5919
        %v5972 = vpack.c.b16 %v5922, %v5921
        %v5973 = vpack.c.b16 %v5924, %v5923
        %v5974 = vpack.c.b16 %v5926, %v5925
        %v5975 = vpack.c.b16 %v5928, %v5927
        %v5976 = vpack.c.b16 %v5930, %v5929
        %v5977 = vpack.c.b16 %v5932, %v5931
        %v5978 = vpack.c.b16 %v5934, %v5933
        %v5979 = vpack.c.b16 %v5936, %v5935
        %v5980 = vpack.c.b16 %v5938, %v5937
        %v5981 = vpack.c.b16 %v5940, %v5939
        %v5982 = vpack.c.b16 %v5942, %v5941
        %v5983 = vpack.c.b16 %v5944, %v5943
        %v5984 = vpack.c.b16 %v5946, %v5945
        %v5985 = vpack.c.b16 %v5948, %v5947
        %v5986 = vpack.c.b16 %v5950, %v5949
        %v6024 = vsel %vm5523, %v5775, 0
        %v6027 = vsel %vm5523, %v5780, 0
        %v6030 = vsel %vm5523, %v5785, 0
        %v6033 = vsel %vm5523, %v5790, 0
        %6035 = vmatprep.subr.bf16.mxu0 0
        %6036 = vmatpush1.bf16.msra.mxu0 %v5951
        %6037 = vmatprep.subr.bf16.mxu0 0
        %6038 = vmatpush1.bf16.msra.mxu0 %v5952
        %6039 = vmatprep.subr.bf16.mxu0 0
        %6040 = vmatpush1.bf16.msra.mxu0 %v5953
        %6041 = vmatprep.subr.bf16.mxu0 0
        %6042 = vmatpush1.bf16.msra.mxu0 %v5954
        %6043 = vmatprep.subr.bf16.mxu0 0
        %6044 = vmatpush1.bf16.msra.mxu0 %v5955
        %6045 = vmatprep.subr.bf16.mxu0 0
        %6046 = vmatpush1.bf16.msra.mxu0 %v5956
        %6047 = vmatprep.subr.bf16.mxu0 0
        %6048 = vmatpush1.bf16.msra.mxu0 %v5957
        %6049 = vmatprep.subr.bf16.mxu0 0
        %6050 = vmatpush1.bf16.msra.mxu0 %v5958
        %6051 = vmatprep.subr.bf16.mxu0 0
        %6052 = vmatpush1.bf16.msra.mxu0 %v5959
        %6053 = vmatprep.subr.bf16.mxu0 0
        %6054 = vmatpush1.bf16.msra.mxu0 %v5960
        %6055 = vmatprep.subr.bf16.mxu0 0
        %6056 = vmatpush1.bf16.msra.mxu0 %v5961
        %6057 = vmatprep.subr.bf16.mxu0 0
        %6058 = vmatpush1.bf16.msra.mxu0 %v5962
        %6059 = vmatprep.subr.bf16.mxu0 0
        %6060 = vmatpush1.bf16.msra.mxu0 %v5963
        %6061 = vmatprep.subr.bf16.mxu0 0
        %6062 = vmatpush1.bf16.msra.mxu0 %v5964
        %6063 = vmatprep.subr.bf16.mxu0 0
        %6064 = vmatpush1.bf16.msra.mxu0 %v5965
        %6065 = vmatprep.subr.bf16.mxu0 0
        %6066 = vmatpush1.bf16.msra.mxu0 %v5966
        %6067 = vmatprep.mubr.bf16.mxu0 %v5772
        %6068 = vmatmul.mubr.bf16.gmra.mrb[0].mxu0 %v5771
        %v6069 = vpop.f32.mrb[0].mxu0
        %v6070 = vadd.f32 %v5769, %v6069
        %v6071 = vpop.f32.mrb[0].mxu0
        %v6072 = vpop.f32.mrb[0].mxu0
        %v6073 = vadd.f32 %v5769, %v6072
        %v6074 = vpop.f32.mrb[0].mxu0
        %6075 = vmatprep.mubr.bf16.mxu0 %v5777
        %6076 = vmatmul.mubr.bf16.gmra.mrb[0].mxu0 %v5776
        %v6077 = vpop.f32.mrb[0].mxu0
        %v6078 = vadd.f32 %v5769, %v6077
        %v6079 = vpop.f32.mrb[0].mxu0
        %v6080 = vpop.f32.mrb[0].mxu0
        %v6081 = vadd.f32 %v5769, %v6080
        %v6082 = vpop.f32.mrb[0].mxu0
        %6083 = vmatprep.mubr.bf16.mxu0 %v5782
        %6084 = vmatmul.mubr.bf16.gmra.mrb[0].mxu0 %v5781
        %v6085 = vpop.f32.mrb[0].mxu0
        %v6086 = vadd.f32 %v5769, %v6085
        %v6087 = vpop.f32.mrb[0].mxu0
        %v6088 = vpop.f32.mrb[0].mxu0
        %v6089 = vadd.f32 %v5769, %v6088
        %v6090 = vpop.f32.mrb[0].mxu0
        %6091 = vmatprep.mubr.bf16.mxu0 %v5787
        %6092 = vmatmul.mubr.bf16.gmra.mrb[0].mxu0 %v5786
        %v6093 = vpop.f32.mrb[0].mxu0
        %v6094 = vadd.f32 %v5769, %v6093
        %v6095 = vpop.f32.mrb[0].mxu0
        %v6096 = vpop.f32.mrb[0].mxu0
        %v6097 = vadd.f32 %v5769, %v6096
        %v6098 = vpop.f32.mrb[0].mxu0
        %6099 = vdwg.mxu0
        %6100 = vmatprep.subr.bf16.mxu0 0
        %6101 = vmatpush1.bf16.msra.mxu0 %v5967
        %6102 = vmatprep.subr.bf16.mxu0 0
        %6103 = vmatpush1.bf16.msra.mxu0 %v5968
        %6104 = vmatprep.subr.bf16.mxu0 0
        %6105 = vmatpush1.bf16.msra.mxu0 %v5969
        %6106 = vmatprep.subr.bf16.mxu0 0
        %6107 = vmatpush1.bf16.msra.mxu0 %v5970
        %6108 = vmatprep.subr.bf16.mxu0 0
        %6109 = vmatpush1.bf16.msra.mxu0 %v5971
        %6110 = vmatprep.subr.bf16.mxu0 0
        %6111 = vmatpush1.bf16.msra.mxu0 %v5972
        %6112 = vmatprep.subr.bf16.mxu0 0
        %6113 = vmatpush1.bf16.msra.mxu0 %v5973
        %6114 = vmatprep.subr.bf16.mxu0 0
        %6115 = vmatpush1.bf16.msra.mxu0 %v5974
        %6116 = vmatprep.subr.bf16.mxu0 0
        %6117 = vmatpush1.bf16.msra.mxu0 %v5975
        %6118 = vmatprep.subr.bf16.mxu0 0
        %6119 = vmatpush1.bf16.msra.mxu0 %v5976
        %6120 = vmatprep.subr.bf16.mxu0 0
        %6121 = vmatpush1.bf16.msra.mxu0 %v5977
        %6122 = vmatprep.subr.bf16.mxu0 0
        %6123 = vmatpush1.bf16.msra.mxu0 %v5978
        %6124 = vmatprep.subr.bf16.mxu0 0
        %6125 = vmatpush1.bf16.msra.mxu0 %v5979
        %6126 = vmatprep.subr.bf16.mxu0 0
        %6127 = vmatpush1.bf16.msra.mxu0 %v5980
        %6128 = vmatprep.subr.bf16.mxu0 0
        %6129 = vmatpush1.bf16.msra.mxu0 %v5981
        %6130 = vmatprep.subr.bf16.mxu0 0
        %6131 = vmatpush1.bf16.msra.mxu0 %v5982
        %6132 = vmatprep.mubr.bf16.mxu0 %v5774
        %6133 = vmatmul.mubr.bf16.gmra.mrb[0].mxu0 %v5773
        %v6134 = vpop.f32.mrb[0].mxu0
        %v6135 = vadd.f32 %v6070, %v6134
        %v6136 = vpop.f32.mrb[0].mxu0
        %v6137 = vpop.f32.mrb[0].mxu0
        %v6138 = vadd.f32 %v6073, %v6137
        %v6139 = vpop.f32.mrb[0].mxu0
        %6140 = vmatprep.mubr.bf16.mxu0 %v5779
        %6141 = vmatmul.mubr.bf16.gmra.mrb[0].mxu0 %v5778
        %v6142 = vpop.f32.mrb[0].mxu0
        %v6143 = vadd.f32 %v6078, %v6142
        %v6144 = vpop.f32.mrb[0].mxu0
        %v6145 = vpop.f32.mrb[0].mxu0
        %v6146 = vadd.f32 %v6081, %v6145
        %v6147 = vpop.f32.mrb[0].mxu0
        %6148 = vmatprep.mubr.bf16.mxu0 %v5784
        %6149 = vmatmul.mubr.bf16.gmra.mrb[0].mxu0 %v5783
        %v6150 = vpop.f32.mrb[0].mxu0
        %v6151 = vadd.f32 %v6086, %v6150
        %v6152 = vpop.f32.mrb[0].mxu0
        %v6153 = vpop.f32.mrb[0].mxu0
        %v6154 = vadd.f32 %v6089, %v6153
        %v6155 = vpop.f32.mrb[0].mxu0
        %6156 = vmatprep.mubr.bf16.mxu0 %v5789
        %6157 = vmatmul.mubr.bf16.gmra.mrb[0].mxu0 %v5788
        %v6158 = vpop.f32.mrb[0].mxu0
        %v6159 = vadd.f32 %v6094, %v6158
        %v6160 = vpop.f32.mrb[0].mxu0
        %v6161 = vpop.f32.mrb[0].mxu0
        %v6162 = vadd.f32 %v6097, %v6161
        %v6163 = vpop.f32.mrb[0].mxu0
        %6164 = vdwg.mxu0
        %6165 = vmatprep.subr.bf16.mxu0 0
        %6166 = vmatpush1.bf16.msra.mxu0 %v5983
        %6167 = vmatprep.subr.bf16.mxu0 0
        %6168 = vmatpush1.bf16.msra.mxu0 %v5984
        %6169 = vmatprep.subr.bf16.mxu0 0
        %6170 = vmatpush1.bf16.msra.mxu0 %v5985
        %6171 = vmatprep.subr.bf16.mxu0 0
        %6172 = vmatpush1.bf16.msra.mxu0 %v5986
        %6173 = vmatprep.subr.bf16.mxu0 0
        %6174 = vmatpush1.bf16.msra.mxu0 0
        %6175 = vmatprep.subr.bf16.mxu0 0
        %6176 = vmatpush1.bf16.msra.mxu0 0
        %6177 = vmatprep.subr.bf16.mxu0 0
        %6178 = vmatpush1.bf16.msra.mxu0 0
        %6179 = vmatprep.subr.bf16.mxu0 0
        %6180 = vmatpush1.bf16.msra.mxu0 0
        %6181 = vmatprep.subr.bf16.mxu0 0
        %6182 = vmatpush1.bf16.msra.mxu0 0
        %6183 = vmatprep.subr.bf16.mxu0 0
        %6184 = vmatpush1.bf16.msra.mxu0 0
        %6185 = vmatprep.subr.bf16.mxu0 0
        %6186 = vmatpush1.bf16.msra.mxu0 0
        %6187 = vmatprep.subr.bf16.mxu0 0
        %6188 = vmatpush1.bf16.msra.mxu0 0
        %6189 = vmatprep.subr.bf16.mxu0 0
        %6190 = vmatpush1.bf16.msra.mxu0 0
        %6191 = vmatprep.subr.bf16.mxu0 0
        %6192 = vmatpush1.bf16.msra.mxu0 0
        %6193 = vmatprep.subr.bf16.mxu0 0
        %6194 = vmatpush1.bf16.msra.mxu0 0
        %6195 = vmatprep.subr.bf16.mxu0 0
        %6196 = vmatpush1.bf16.msra.mxu0 0
        %6197 = vmatprep.mubr.bf16.mxu0 0
        %6198 = vmatmul.mubr.bf16.gmra.mrb[0].mxu0 %v6024
        %v6199 = vpop.f32.mrb[0].mxu0
        %v6200 = vadd.f32 %v6135, %v6199
        %v6201 = vpop.f32.mrb[0].mxu0
        %v6202 = vpop.f32.mrb[0].mxu0
        %v6203 = vadd.f32 %v6138, %v6202
        %v6204 = vpop.f32.mrb[0].mxu0
        %6205 = vmatprep.mubr.bf16.mxu0 0
        %6206 = vmatmul.mubr.bf16.gmra.mrb[0].mxu0 %v6027
        %v6207 = vpop.f32.mrb[0].mxu0
        %v6208 = vadd.f32 %v6143, %v6207
        %v6209 = vpop.f32.mrb[0].mxu0
        %v6210 = vpop.f32.mrb[0].mxu0
        %v6211 = vadd.f32 %v6146, %v6210
        %v6212 = vpop.f32.mrb[0].mxu0
        %6213 = vmatprep.mubr.bf16.mxu0 0
        %6214 = vmatmul.mubr.bf16.gmra.mrb[0].mxu0 %v6030
        %v6215 = vpop.f32.mrb[0].mxu0
        %v6216 = vadd.f32 %v6151, %v6215
        %v6217 = vpop.f32.mrb[0].mxu0
        %v6218 = vpop.f32.mrb[0].mxu0
        %v6219 = vadd.f32 %v6154, %v6218
        %v6220 = vpop.f32.mrb[0].mxu0
        %6221 = vmatprep.mubr.bf16.mxu0 0
        %6222 = vmatmul.mubr.bf16.gmra.mrb[0].mxu0 %v6033
        %v6223 = vpop.f32.mrb[0].mxu0
        %v6224 = vadd.f32 %v6159, %v6223
        %v6225 = vpop.f32.mrb[0].mxu0
        %v6226 = vpop.f32.mrb[0].mxu0
        %v6227 = vadd.f32 %v6162, %v6226
        %v6228 = vpop.f32.mrb[0].mxu0
        %6229 = vdwg.mxu0
        %v6230 = vmax.f32 %v6200, 0.0
        %v6231 = vmax.f32 %v6203, 0.0
        %v6232 = vmax.f32 %v6208, 0.0
        %v6233 = vmax.f32 %v6211, 0.0
        %v6234 = vmax.f32 %v6216, 0.0
        %v6235 = vmax.f32 %v6219, 0.0
        %v6236 = vmax.f32 %v6224, 0.0
        %v6237 = vmax.f32 %v6227, 0.0
        %v6246 = vcombine.high %v6230, %v6230
        %v6248 = vunpack.c.l.s4 1983009808
        %v6249 = vunpack.c.0.s8 %v6248
        %v6250 = vlaneseq
        %v6251 = vshrl.u32 %v6250, 7
        %v6252 = vsub.s32 %v6249, %v6251
        %v6253 = vrot.slane %v6230, %v6252
        %v6255 = vunpack.c.l.s4 1983009808
        %v6256 = vunpack.c.0.s8 %v6255
        %v6257 = vlaneseq
        %v6258 = vshrl.u32 %v6257, 7
        %v6259 = vsub.s32 %v6256, %v6258
        %v6260 = vrot.slane %v6246, %v6259
        %v6261 = vcombine.high %v6253, %v6253
        %v6262 = vcombine.high %v6260, %v6260
        %v6263 = vcombine.high %v6231, %v6231
        %v6265 = vunpack.c.l.s4 1983009808
        %v6266 = vunpack.c.0.s8 %v6265
        %v6267 = vlaneseq
        %v6268 = vshrl.u32 %v6267, 7
        %v6269 = vsub.s32 %v6266, %v6268
        %v6270 = vrot.slane %v6231, %v6269
        %v6272 = vunpack.c.l.s4 1983009808
        %v6273 = vunpack.c.0.s8 %v6272
        %v6274 = vlaneseq
        %v6275 = vshrl.u32 %v6274, 7
        %v6276 = vsub.s32 %v6273, %v6275
        %v6277 = vrot.slane %v6263, %v6276
        %v6278 = vcombine.high %v6270, %v6270
        %v6279 = vcombine.high %v6277, %v6277
        %v6280 = vcombine.high %v6232, %v6232
        %v6282 = vunpack.c.l.s4 1983009808
        %v6283 = vunpack.c.0.s8 %v6282
        %v6284 = vlaneseq
        %v6285 = vshrl.u32 %v6284, 7
        %v6286 = vsub.s32 %v6283, %v6285
        %v6287 = vrot.slane %v6232, %v6286
        %v6289 = vunpack.c.l.s4 1983009808
        %v6290 = vunpack.c.0.s8 %v6289
        %v6291 = vlaneseq
        %v6292 = vshrl.u32 %v6291, 7
        %v6293 = vsub.s32 %v6290, %v6292
        %v6294 = vrot.slane %v6280, %v6293
        %v6295 = vcombine.high %v6287, %v6287
        %v6296 = vcombine.high %v6294, %v6294
        %v6297 = vcombine.high %v6233, %v6233
        %v6299 = vunpack.c.l.s4 1983009808
        %v6300 = vunpack.c.0.s8 %v6299
        %v6301 = vlaneseq
        %v6302 = vshrl.u32 %v6301, 7
        %v6303 = vsub.s32 %v6300, %v6302
        %v6304 = vrot.slane %v6233, %v6303
        %v6306 = vunpack.c.l.s4 1983009808
        %v6307 = vunpack.c.0.s8 %v6306
        %v6308 = vlaneseq
        %v6309 = vshrl.u32 %v6308, 7
        %v6310 = vsub.s32 %v6307, %v6309
        %v6311 = vrot.slane %v6297, %v6310
        %v6312 = vcombine.high %v6304, %v6304
        %v6313 = vcombine.high %v6311, %v6311
        %v6314 = vcombine.high %v6234, %v6234
        %v6316 = vunpack.c.l.s4 1983009808
        %v6317 = vunpack.c.0.s8 %v6316
        %v6318 = vlaneseq
        %v6319 = vshrl.u32 %v6318, 7
        %v6320 = vsub.s32 %v6317, %v6319
        %v6321 = vrot.slane %v6234, %v6320
        %v6323 = vunpack.c.l.s4 1983009808
        %v6324 = vunpack.c.0.s8 %v6323
        %v6325 = vlaneseq
        %v6326 = vshrl.u32 %v6325, 7
        %v6327 = vsub.s32 %v6324, %v6326
        %v6328 = vrot.slane %v6314, %v6327
        %v6329 = vcombine.high %v6321, %v6321
        %v6330 = vcombine.high %v6328, %v6328
        %v6331 = vcombine.high %v6235, %v6235
        %v6333 = vunpack.c.l.s4 1983009808
        %v6334 = vunpack.c.0.s8 %v6333
        %v6335 = vlaneseq
        %v6336 = vshrl.u32 %v6335, 7
        %v6337 = vsub.s32 %v6334, %v6336
        %v6338 = vrot.slane %v6235, %v6337
        %v6340 = vunpack.c.l.s4 1983009808
        %v6341 = vunpack.c.0.s8 %v6340
        %v6342 = vlaneseq
        %v6343 = vshrl.u32 %v6342, 7
        %v6344 = vsub.s32 %v6341, %v6343
        %v6345 = vrot.slane %v6331, %v6344
        %v6346 = vcombine.high %v6338, %v6338
        %v6347 = vcombine.high %v6345, %v6345
        %v6348 = vcombine.high %v6236, %v6236
        %v6350 = vunpack.c.l.s4 1983009808
        %v6351 = vunpack.c.0.s8 %v6350
        %v6352 = vlaneseq
        %v6353 = vshrl.u32 %v6352, 7
        %v6354 = vsub.s32 %v6351, %v6353
        %v6355 = vrot.slane %v6236, %v6354
        %v6357 = vunpack.c.l.s4 1983009808
        %v6358 = vunpack.c.0.s8 %v6357
        %v6359 = vlaneseq
        %v6360 = vshrl.u32 %v6359, 7
        %v6361 = vsub.s32 %v6358, %v6360
        %v6362 = vrot.slane %v6348, %v6361
        %v6363 = vcombine.high %v6355, %v6355
        %v6364 = vcombine.high %v6362, %v6362
        %v6365 = vcombine.high %v6237, %v6237
        %v6367 = vunpack.c.l.s4 1983009808
        %v6368 = vunpack.c.0.s8 %v6367
        %v6369 = vlaneseq
        %v6370 = vshrl.u32 %v6369, 7
        %v6371 = vsub.s32 %v6368, %v6370
        %v6372 = vrot.slane %v6237, %v6371
        %v6374 = vunpack.c.l.s4 1983009808
        %v6375 = vunpack.c.0.s8 %v6374
        %v6376 = vlaneseq
        %v6377 = vshrl.u32 %v6376, 7
        %v6378 = vsub.s32 %v6375, %v6377
        %v6379 = vrot.slane %v6365, %v6378
        %v6380 = vcombine.high %v6372, %v6372
        %v6381 = vcombine.high %v6379, %v6379
        %v6414 = vrot.slane %v6253, 7
        %v6415 = vrot.slane %v6414, 2
        %v6416 = vrot.slane %v6261, 7
        %v6417 = vrot.slane %v6416, 2
        %v6418 = vrot.slane %v6260, 7
        %v6419 = vrot.slane %v6418, 2
        %v6420 = vrot.slane %v6262, 7
        %v6421 = vrot.slane %v6420, 2
        %v6422 = vrot.slane %v6270, 7
        %v6423 = vrot.slane %v6422, 2
        %v6424 = vrot.slane %v6278, 7
        %v6425 = vrot.slane %v6424, 2
        %v6426 = vrot.slane %v6277, 7
        %v6427 = vrot.slane %v6426, 2
        %v6428 = vrot.slane %v6279, 7
        %v6429 = vrot.slane %v6428, 2
        %v6430 = vrot.slane %v6287, 7
        %v6431 = vrot.slane %v6430, 2
        %v6432 = vrot.slane %v6295, 7
        %v6433 = vrot.slane %v6432, 2
        %v6434 = vrot.slane %v6294, 7
        %v6435 = vrot.slane %v6434, 2
        %v6436 = vrot.slane %v6296, 7
        %v6437 = vrot.slane %v6436, 2
        %v6438 = vrot.slane %v6304, 7
        %v6439 = vrot.slane %v6438, 2
        %v6440 = vrot.slane %v6312, 7
        %v6441 = vrot.slane %v6440, 2
        %v6442 = vrot.slane %v6311, 7
        %v6443 = vrot.slane %v6442, 2
        %v6444 = vrot.slane %v6313, 7
        %v6445 = vrot.slane %v6444, 2
        %v6446 = vrot.slane %v6321, 7
        %v6447 = vrot.slane %v6446, 2
        %v6448 = vrot.slane %v6329, 7
        %v6449 = vrot.slane %v6448, 2
        %v6450 = vrot.slane %v6328, 7
        %v6451 = vrot.slane %v6450, 2
        %v6452 = vrot.slane %v6330, 7
        %v6453 = vrot.slane %v6452, 2
        %v6454 = vrot.slane %v6338, 7
        %v6455 = vrot.slane %v6454, 2
        %v6456 = vrot.slane %v6346, 7
        %v6457 = vrot.slane %v6456, 2
        %v6458 = vrot.slane %v6345, 7
        %v6459 = vrot.slane %v6458, 2
        %v6460 = vrot.slane %v6347, 7
        %v6461 = vrot.slane %v6460, 2
        %v6462 = vrot.slane %v6355, 7
        %v6463 = vrot.slane %v6462, 2
        %v6464 = vrot.slane %v6363, 7
        %v6465 = vrot.slane %v6464, 2
        %v6466 = vrot.slane %v6362, 7
        %v6467 = vrot.slane %v6466, 2
        %v6468 = vrot.slane %v6364, 7
        %v6469 = vrot.slane %v6468, 2
        %v6470 = vrot.slane %v6372, 7
        %v6471 = vrot.slane %v6470, 2
        %v6472 = vrot.slane %v6380, 7
        %v6473 = vrot.slane %v6472, 2
        %v6474 = vrot.slane %v6379, 7
        %v6475 = vrot.slane %v6474, 2
        %v6476 = vrot.slane %v6381, 7
        %v6477 = vrot.slane %v6476, 2
        %v6510 = vmax.f32 %v6253, %v6415
        %v6511 = vmax.f32 %v6261, %v6417
        %v6512 = vmax.f32 %v6260, %v6419
        %v6513 = vmax.f32 %v6262, %v6421
        %v6514 = vmax.f32 %v6270, %v6423
        %v6515 = vmax.f32 %v6278, %v6425
        %v6516 = vmax.f32 %v6277, %v6427
        %v6517 = vmax.f32 %v6279, %v6429
        %v6518 = vmax.f32 %v6287, %v6431
        %v6519 = vmax.f32 %v6295, %v6433
        %v6520 = vmax.f32 %v6294, %v6435
        %v6521 = vmax.f32 %v6296, %v6437
        %v6522 = vmax.f32 %v6304, %v6439
        %v6523 = vmax.f32 %v6312, %v6441
        %v6524 = vmax.f32 %v6311, %v6443
        %v6525 = vmax.f32 %v6313, %v6445
        %v6526 = vmax.f32 %v6321, %v6447
        %v6527 = vmax.f32 %v6329, %v6449
        %v6528 = vmax.f32 %v6328, %v6451
        %v6529 = vmax.f32 %v6330, %v6453
        %v6530 = vmax.f32 %v6338, %v6455
        %v6531 = vmax.f32 %v6346, %v6457
        %v6532 = vmax.f32 %v6345, %v6459
        %v6533 = vmax.f32 %v6347, %v6461
        %v6534 = vmax.f32 %v6355, %v6463
        %v6535 = vmax.f32 %v6363, %v6465
        %v6536 = vmax.f32 %v6362, %v6467
        %v6537 = vmax.f32 %v6364, %v6469
        %v6538 = vmax.f32 %v6372, %v6471
        %v6539 = vmax.f32 %v6380, %v6473
        %v6540 = vmax.f32 %v6379, %v6475
        %v6541 = vmax.f32 %v6381, %v6477
        %v6542 = vmax.f32 %v6510, %v6514
        %v6543 = vmax.f32 %v6511, %v6515
        %v6544 = vmax.f32 %v6512, %v6516
        %v6545 = vmax.f32 %v6513, %v6517
        %v6546 = vmax.f32 %v6518, %v6522
        %v6547 = vmax.f32 %v6519, %v6523
        %v6548 = vmax.f32 %v6520, %v6524
        %v6549 = vmax.f32 %v6521, %v6525
        %v6550 = vmax.f32 %v6526, %v6530
        %v6551 = vmax.f32 %v6527, %v6531
        %v6552 = vmax.f32 %v6528, %v6532
        %v6553 = vmax.f32 %v6529, %v6533
        %v6554 = vmax.f32 %v6534, %v6538
        %v6555 = vmax.f32 %v6535, %v6539
        %v6556 = vmax.f32 %v6536, %v6540
        %v6557 = vmax.f32 %v6537, %v6541
        %v6558 = vpack.c.bf16 %v6542, %v6542
        %v6559 = vpack.c.bf16 %v6543, %v6543
        %v6560 = vpack.c.bf16 %v6544, %v6544
        %v6561 = vpack.c.bf16 %v6545, %v6545
        %v6562 = vpack.c.bf16 %v6546, %v6546
        %v6563 = vpack.c.bf16 %v6547, %v6547
        %v6564 = vpack.c.bf16 %v6548, %v6548
        %v6565 = vpack.c.bf16 %v6549, %v6549
        %v6566 = vpack.c.bf16 %v6550, %v6550
        %v6567 = vpack.c.bf16 %v6551, %v6551
        %v6568 = vpack.c.bf16 %v6552, %v6552
        %v6569 = vpack.c.bf16 %v6553, %v6553
        %v6570 = vpack.c.bf16 %v6554, %v6554
        %v6571 = vpack.c.bf16 %v6555, %v6555
        %v6572 = vpack.c.bf16 %v6556, %v6556
        %v6573 = vpack.c.bf16 %v6557, %v6557
        %v6574 = vld [vmem:[#allocation4] sm:$0xf]
        %v6575 = vld [vmem:[#allocation4 + $0x4] sm:$0xf]
        %v6576 = vld [vmem:[#allocation4 + $0x8] sm:$0xf]
        %v6577 = vld [vmem:[#allocation4 + $0xc] sm:$0xf]
        %v6578 = vld [vmem:[#allocation4 + $0x10] sm:$0xf]
        %v6579 = vld [vmem:[#allocation4 + $0x14] sm:$0xf]
        %v6580 = vld [vmem:[#allocation4 + $0x18] sm:$0xf]
        %v6581 = vld [vmem:[#allocation4 + $0x1c] sm:$0xf]
        %v6582 = vld [vmem:[#allocation4 + $0x20] sm:$0xf]
        %v6583 = vld [vmem:[#allocation4 + $0x24] sm:$0xf]
        %v6584 = vld [vmem:[#allocation4 + $0x28] sm:$0xf]
        %v6585 = vld [vmem:[#allocation4 + $0x2c] sm:$0xf]
        %v6586 = vld [vmem:[#allocation4 + $0x30] sm:$0xf]
        %v6587 = vld [vmem:[#allocation4 + $0x34] sm:$0xf]
        %v6588 = vld [vmem:[#allocation4 + $0x38] sm:$0xf]
        %v6589 = vld [vmem:[#allocation4 + $0x3c] sm:$0xf]
        %v6590 = vld [vmem:[#allocation4 + $0x40] sm:$0xf]
        %v6591 = vld [vmem:[#allocation4 + $0x44] sm:$0xf]
        %v6592 = vld [vmem:[#allocation4 + $0x48] sm:$0xf]
        %v6593 = vld [vmem:[#allocation4 + $0x4c] sm:$0xf]
        %v6594 = vld [vmem:[#allocation4 + $0x50] sm:$0xf]
        %v6595 = vld [vmem:[#allocation4 + $0x54] sm:$0xf]
        %v6596 = vld [vmem:[#allocation4 + $0x58] sm:$0xf]
        %v6597 = vld [vmem:[#allocation4 + $0x5c] sm:$0xf]
        %v6598 = vld [vmem:[#allocation4 + $0x60] sm:$0xf]
        %v6599 = vld [vmem:[#allocation4 + $0x64] sm:$0xf]
        %v6600 = vld [vmem:[#allocation4 + $0x68] sm:$0xf]
        %v6601 = vld [vmem:[#allocation4 + $0x6c] sm:$0xf]
        %v6602 = vld [vmem:[#allocation4 + $0x70] sm:$0xf]
        %v6603 = vld [vmem:[#allocation4 + $0x74] sm:$0xf]
        %v6604 = vld [vmem:[#allocation4 + $0x78] sm:$0xf]
        %v6605 = vld [vmem:[#allocation4 + $0x7c] sm:$0xf]
        %v6606 = vld [vmem:[#allocation4 + $0x80] sm:$0xf]
        %v6607 = vld [vmem:[#allocation4 + $0x84] sm:$0xf]
        %v6608 = vld [vmem:[#allocation4 + $0x88] sm:$0xf]
        %v6609 = vld [vmem:[#allocation4 + $0x8c] sm:$0xf]
        %v6610 = vld [vmem:[#allocation4 + $0x90] sm:$0xf]
        %v6611 = vld [vmem:[#allocation4 + $0x94] sm:$0xf]
        %v6612 = vld [vmem:[#allocation4 + $0x98] sm:$0xf]
        %v6613 = vld [vmem:[#allocation4 + $0x9c] sm:$0xf]
        %v6614 = vld [vmem:[#allocation4 + $0xa0] sm:$0xf]
        %v6615 = vld [vmem:[#allocation4 + $0xa4] sm:$0xf]
        %v6616 = vld [vmem:[#allocation4 + $0xa8] sm:$0xf]
        %v6617 = vld [vmem:[#allocation4 + $0xac] sm:$0xf]
        %v6618 = vld [vmem:[#allocation4 + $0xb0] sm:$0xf]
        %v6619 = vld [vmem:[#allocation4 + $0xb4] sm:$0xf]
        %v6620 = vld [vmem:[#allocation4 + $0xb8] sm:$0xf]
        %v6621 = vld [vmem:[#allocation4 + $0xbc] sm:$0xf]
        %v6622 = vld [vmem:[#allocation4 + $0xc0] sm:$0xf]
        %v6623 = vld [vmem:[#allocation4 + $0xc4] sm:$0xf]
        %v6624 = vld [vmem:[#allocation4 + $0xc8] sm:$0xf]
        %v6625 = vld [vmem:[#allocation4 + $0xcc] sm:$0xf]
        %v6626 = vld [vmem:[#allocation4 + $0xd0] sm:$0xf]
        %v6627 = vld [vmem:[#allocation4 + $0xd4] sm:$0xf]
        %v6628 = vld [vmem:[#allocation4 + $0xd8] sm:$0xf]
        %v6629 = vld [vmem:[#allocation4 + $0xdc] sm:$0xf]
        %v6630 = vld [vmem:[#allocation4 + $0xe0] sm:$0xf]
        %v6631 = vld [vmem:[#allocation4 + $0xe4] sm:$0xf]
        %v6632 = vld [vmem:[#allocation4 + $0xe8] sm:$0xf]
        %v6633 = vld [vmem:[#allocation4 + $0xec] sm:$0xf]
        %v6634 = vld [vmem:[#allocation4 + $0xf0] sm:$0xf]
        %v6635 = vld [vmem:[#allocation4 + $0xf4] sm:$0xf]
        %v6636 = vld [vmem:[#allocation4 + $0xf8] sm:$0xf]
        %v6637 = vld [vmem:[#allocation4 + $0xfc] sm:$0xf]
        %v6638 = vld [vmem:[#allocation4 + $0x100] sm:$0xf]
        %v6639 = vld [vmem:[#allocation4 + $0x104] sm:$0xf]
        %v6640 = vld [vmem:[#allocation4 + $0x108] sm:$0xf]
        %v6641 = vld [vmem:[#allocation4 + $0x10c] sm:$0xf]
        %v6642 = vld [vmem:[#allocation4 + $0x110] sm:$0xf]
        %v6643 = vld [vmem:[#allocation4 + $0x114] sm:$0xf]
        %v6644 = vld [vmem:[#allocation4 + $0x118] sm:$0xf]
        %v6645 = vld [vmem:[#allocation4 + $0x11c] sm:$0xf]
        %v6646 = vld [vmem:[#allocation4 + $0x120] sm:$0xf]
        %v6647 = vld [vmem:[#allocation4 + $0x124] sm:$0xf]
        %v6648 = vld [vmem:[#allocation4 + $0x128] sm:$0xf]
        %v6649 = vld [vmem:[#allocation4 + $0x12c] sm:$0xf]
        %v6650 = vld [vmem:[#allocation4 + $0x130] sm:$0xf]
        %v6651 = vld [vmem:[#allocation4 + $0x134] sm:$0xf]
        %v6652 = vld [vmem:[#allocation4 + $0x138] sm:$0xf]
        %v6653 = vld [vmem:[#allocation4 + $0x13c] sm:$0xf]
        %v6654 = vld [vmem:[#allocation4 + $0x140] sm:$0xf]
        %v6655 = vld [vmem:[#allocation4 + $0x144] sm:$0xf]
        %v6656 = vld [vmem:[#allocation4 + $0x148] sm:$0xf]
        %v6657 = vld [vmem:[#allocation4 + $0x14c] sm:$0xf]
        %v6658 = vld [vmem:[#allocation4 + $0x150] sm:$0xf]
        %v6659 = vld [vmem:[#allocation4 + $0x154] sm:$0xf]
        %v6660 = vld [vmem:[#allocation4 + $0x158] sm:$0xf]
        %v6661 = vld [vmem:[#allocation4 + $0x15c] sm:$0xf]
        %v6662 = vld [vmem:[#allocation4 + $0x160] sm:$0xf]
        %v6663 = vld [vmem:[#allocation4 + $0x164] sm:$0xf]
        %v6664 = vld [vmem:[#allocation4 + $0x168] sm:$0xf]
        %v6665 = vld [vmem:[#allocation4 + $0x16c] sm:$0xf]
        %v6666 = vld [vmem:[#allocation4 + $0x170] sm:$0xf]
        %v6667 = vld [vmem:[#allocation4 + $0x174] sm:$0xf]
        %v6668 = vld [vmem:[#allocation4 + $0x178] sm:$0xf]
        %v6669 = vld [vmem:[#allocation4 + $0x17c] sm:$0xf]
        %v6670 = vld [vmem:[#allocation4 + $0x180] sm:$0xf]
        %v6671 = vld [vmem:[#allocation4 + $0x184] sm:$0xf]
        %v6672 = vld [vmem:[#allocation4 + $0x188] sm:$0xf]
        %v6673 = vld [vmem:[#allocation4 + $0x18c] sm:$0xf]
        %v6674 = vld [vmem:[#allocation4 + $0x190] sm:$0xf]
        %v6675 = vld [vmem:[#allocation4 + $0x194] sm:$0xf]
        %v6676 = vld [vmem:[#allocation4 + $0x198] sm:$0xf]
        %v6677 = vld [vmem:[#allocation4 + $0x19c] sm:$0xf]
        %v6678 = vld [vmem:[#allocation4 + $0x1a0] sm:$0xf]
        %v6679 = vld [vmem:[#allocation4 + $0x1a4] sm:$0xf]
        %v6680 = vld [vmem:[#allocation4 + $0x1a8] sm:$0xf]
        %v6681 = vld [vmem:[#allocation4 + $0x1ac] sm:$0xf]
        %v6682 = vld [vmem:[#allocation4 + $0x1b0] sm:$0xf]
        %v6683 = vld [vmem:[#allocation4 + $0x1b4] sm:$0xf]
        %v6684 = vld [vmem:[#allocation4 + $0x1b8] sm:$0xf]
        %v6685 = vld [vmem:[#allocation4 + $0x1bc] sm:$0xf]
        %v6686 = vld [vmem:[#allocation4 + $0x1c0] sm:$0xf]
        %v6687 = vld [vmem:[#allocation4 + $0x1c4] sm:$0xf]
        %v6688 = vld [vmem:[#allocation4 + $0x1c8] sm:$0xf]
        %v6689 = vld [vmem:[#allocation4 + $0x1cc] sm:$0xf]
        %v6690 = vld [vmem:[#allocation4 + $0x1d0] sm:$0xf]
        %v6691 = vld [vmem:[#allocation4 + $0x1d4] sm:$0xf]
        %v6692 = vld [vmem:[#allocation4 + $0x1d8] sm:$0xf]
        %v6693 = vld [vmem:[#allocation4 + $0x1dc] sm:$0xf]
        %v6694 = vld [vmem:[#allocation4 + $0x1e0] sm:$0xf]
        %v6695 = vld [vmem:[#allocation4 + $0x1e4] sm:$0xf]
        %v6696 = vld [vmem:[#allocation4 + $0x1e8] sm:$0xf]
        %v6697 = vld [vmem:[#allocation4 + $0x1ec] sm:$0xf]
        %v6698 = vld [vmem:[#allocation4 + $0x1f0] sm:$0xf]
        %v6699 = vld [vmem:[#allocation4 + $0x1f4] sm:$0xf]
        %v6700 = vld [vmem:[#allocation4 + $0x1f8] sm:$0xf]
        %v6701 = vld [vmem:[#allocation4 + $0x1fc] sm:$0xf]
        %v6702 = vld [vmem:[#allocation4 + $0x200] sm:$0xf]
        %v6703 = vld [vmem:[#allocation4 + $0x204] sm:$0xf]
        %v6704 = vld [vmem:[#allocation4 + $0x208] sm:$0xf]
        %v6705 = vld [vmem:[#allocation4 + $0x20c] sm:$0xf]
        %v6706 = vld [vmem:[#allocation4 + $0x210] sm:$0xf]
        %v6707 = vld [vmem:[#allocation4 + $0x214] sm:$0xf]
        %v6708 = vld [vmem:[#allocation4 + $0x218] sm:$0xf]
        %v6709 = vld [vmem:[#allocation4 + $0x21c] sm:$0xf]
        %v6710 = vld [vmem:[#allocation4 + $0x220] sm:$0xf]
        %v6711 = vld [vmem:[#allocation4 + $0x224] sm:$0xf]
        %v6712 = vld [vmem:[#allocation4 + $0x228] sm:$0xf]
        %v6713 = vld [vmem:[#allocation4 + $0x22c] sm:$0xf]
        %v6714 = vld [vmem:[#allocation4 + $0x230] sm:$0xf]
        %v6715 = vld [vmem:[#allocation4 + $0x234] sm:$0xf]
        %v6716 = vld [vmem:[#allocation4 + $0x238] sm:$0xf]
        %v6717 = vld [vmem:[#allocation4 + $0x23c] sm:$0xf]
        %v6718 = vld [vmem:[#allocation4 + $0x240] sm:$0xf]
        %v6719 = vld [vmem:[#allocation4 + $0x244] sm:$0xf]
        %v6720 = vld [vmem:[#allocation4 + $0x248] sm:$0xf]
        %v6721 = vld [vmem:[#allocation4 + $0x24c] sm:$0xf]
        %v6722 = vld [vmem:[#allocation4 + $0x250] sm:$0xf]
        %v6723 = vld [vmem:[#allocation4 + $0x254] sm:$0xf]
        %v6724 = vld [vmem:[#allocation4 + $0x258] sm:$0xf]
        %v6725 = vld [vmem:[#allocation4 + $0x25c] sm:$0xf]
        %v6726 = vld [vmem:[#allocation4 + $0x260] sm:$0xf]
        %v6727 = vld [vmem:[#allocation4 + $0x264] sm:$0xf]
        %v6728 = vld [vmem:[#allocation4 + $0x268] sm:$0xf]
        %v6729 = vld [vmem:[#allocation4 + $0x26c] sm:$0xf]
        %v6730 = vld [vmem:[#allocation4 + $0x270] sm:$0xf]
        %v6731 = vld [vmem:[#allocation4 + $0x274] sm:$0xf]
        %v6732 = vld [vmem:[#allocation4 + $0x278] sm:$0xf]
        %v6733 = vld [vmem:[#allocation4 + $0x27c] sm:$0xf]
        %v6734 = vld [vmem:[#allocation4 + $0x280] sm:$0xf]
        %v6735 = vld [vmem:[#allocation4 + $0x284] sm:$0xf]
        %v6736 = vld [vmem:[#allocation4 + $0x288] sm:$0xf]
        %v6737 = vld [vmem:[#allocation4 + $0x28c] sm:$0xf]
        %v6738 = vld [vmem:[#allocation4 + $0x290] sm:$0xf]
        %v6739 = vld [vmem:[#allocation4 + $0x294] sm:$0xf]
        %v6740 = vld [vmem:[#allocation4 + $0x298] sm:$0xf]
        %v6741 = vld [vmem:[#allocation4 + $0x29c] sm:$0xf]
        %v6742 = vld [vmem:[#allocation4 + $0x2a0] sm:$0xf]
        %v6743 = vld [vmem:[#allocation4 + $0x2a4] sm:$0xf]
        %v6744 = vld [vmem:[#allocation4 + $0x2a8] sm:$0xf]
        %v6745 = vld [vmem:[#allocation4 + $0x2ac] sm:$0xf]
        %v6746 = vld [vmem:[#allocation4 + $0x2b0] sm:$0xf]
        %v6747 = vld [vmem:[#allocation4 + $0x2b4] sm:$0xf]
        %v6748 = vld [vmem:[#allocation4 + $0x2b8] sm:$0xf]
        %v6749 = vld [vmem:[#allocation4 + $0x2bc] sm:$0xf]
        %v6750 = vld [vmem:[#allocation4 + $0x2c0] sm:$0xf]
        %v6751 = vld [vmem:[#allocation4 + $0x2c4] sm:$0xf]
        %v6752 = vld [vmem:[#allocation4 + $0x2c8] sm:$0xf]
        %v6753 = vld [vmem:[#allocation4 + $0x2cc] sm:$0xf]
        %v6754 = vld [vmem:[#allocation4 + $0x2d0] sm:$0xf]
        %v6755 = vld [vmem:[#allocation4 + $0x2d4] sm:$0xf]
        %v6756 = vld [vmem:[#allocation4 + $0x2d8] sm:$0xf]
        %v6757 = vld [vmem:[#allocation4 + $0x2dc] sm:$0xf]
        %v6758 = vld [vmem:[#allocation4 + $0x2e0] sm:$0xf]
        %v6759 = vld [vmem:[#allocation4 + $0x2e4] sm:$0xf]
        %v6760 = vld [vmem:[#allocation4 + $0x2e8] sm:$0xf]
        %v6761 = vld [vmem:[#allocation4 + $0x2ec] sm:$0xf]
        %v6762 = vld [vmem:[#allocation4 + $0x2f0] sm:$0xf]
        %v6763 = vld [vmem:[#allocation4 + $0x2f4] sm:$0xf]
        %v6764 = vld [vmem:[#allocation4 + $0x2f8] sm:$0xf]
        %v6765 = vld [vmem:[#allocation4 + $0x2fc] sm:$0xf]
        %v6766 = vld [vmem:[#allocation4 + $0x300] sm:$0xf]
        %v6767 = vld [vmem:[#allocation4 + $0x304] sm:$0xf]
        %v6768 = vld [vmem:[#allocation4 + $0x308] sm:$0xf]
        %v6769 = vld [vmem:[#allocation4 + $0x30c] sm:$0xf]
        %v6770 = vld [vmem:[#allocation4 + $0x310] sm:$0xf]
        %v6771 = vld [vmem:[#allocation4 + $0x314] sm:$0xf]
        %v6772 = vld [vmem:[#allocation4 + $0x318] sm:$0xf]
        %v6773 = vld [vmem:[#allocation4 + $0x31c] sm:$0xf]
        %v6774 = vld [vmem:[#allocation4 + $0x320] sm:$0xf]
        %v6775 = vld [vmem:[#allocation4 + $0x324] sm:$0xf]
        %v6776 = vld [vmem:[#allocation4 + $0x328] sm:$0xf]
        %v6777 = vld [vmem:[#allocation4 + $0x32c] sm:$0xf]
        %v6778 = vld [vmem:[#allocation4 + $0x330] sm:$0xf]
        %v6779 = vld [vmem:[#allocation4 + $0x334] sm:$0xf]
        %v6780 = vld [vmem:[#allocation4 + $0x338] sm:$0xf]
        %v6781 = vld [vmem:[#allocation4 + $0x33c] sm:$0xf]
        %v6782 = vld [vmem:[#allocation4 + $0x340] sm:$0xf]
        %v6783 = vld [vmem:[#allocation4 + $0x344] sm:$0xf]
        %v6784 = vld [vmem:[#allocation4 + $0x348] sm:$0xf]
        %v6785 = vld [vmem:[#allocation4 + $0x34c] sm:$0xf]
        %v6786 = vld [vmem:[#allocation4 + $0x350] sm:$0xf]
        %v6787 = vld [vmem:[#allocation4 + $0x354] sm:$0xf]
        %v6788 = vld [vmem:[#allocation4 + $0x358] sm:$0xf]
        %v6789 = vld [vmem:[#allocation4 + $0x35c] sm:$0xf]
        %v6790 = vld [vmem:[#allocation4 + $0x360] sm:$0xf]
        %v6791 = vld [vmem:[#allocation4 + $0x364] sm:$0xf]
        %v6792 = vld [vmem:[#allocation4 + $0x368] sm:$0xf]
        %v6793 = vld [vmem:[#allocation4 + $0x36c] sm:$0xf]
        %v6794 = vld [vmem:[#allocation4 + $0x370] sm:$0xf]
        %v6795 = vld [vmem:[#allocation4 + $0x374] sm:$0xf]
        %v6796 = vld [vmem:[#allocation4 + $0x378] sm:$0xf]
        %v6797 = vld [vmem:[#allocation4 + $0x37c] sm:$0xf]
        %v6798 = vld [vmem:[#allocation4 + $0x380] sm:$0xf]
        %v6799 = vld [vmem:[#allocation4 + $0x384] sm:$0xf]
        %v6800 = vld [vmem:[#allocation4 + $0x388] sm:$0xf]
        %v6801 = vld [vmem:[#allocation4 + $0x38c] sm:$0xf]
        %v6802 = vld [vmem:[#allocation4 + $0x390] sm:$0xf]
        %v6803 = vld [vmem:[#allocation4 + $0x394] sm:$0xf]
        %v6804 = vld [vmem:[#allocation4 + $0x398] sm:$0xf]
        %v6805 = vld [vmem:[#allocation4 + $0x39c] sm:$0xf]
        %v6806 = vld [vmem:[#allocation4 + $0x3a0] sm:$0xf]
        %v6807 = vld [vmem:[#allocation4 + $0x3a4] sm:$0xf]
        %v6808 = vld [vmem:[#allocation4 + $0x3a8] sm:$0xf]
        %v6809 = vld [vmem:[#allocation4 + $0x3ac] sm:$0xf]
        %v6810 = vld [vmem:[#allocation4 + $0x3b0] sm:$0xf]
        %v6811 = vld [vmem:[#allocation4 + $0x3b4] sm:$0xf]
        %v6812 = vld [vmem:[#allocation4 + $0x3b8] sm:$0xf]
        %v6813 = vld [vmem:[#allocation4 + $0x3bc] sm:$0xf]
        %v6814 = vld [vmem:[#allocation4 + $0x3c0] sm:$0xf]
        %v6815 = vld [vmem:[#allocation4 + $0x3c4] sm:$0xf]
        %v6816 = vld [vmem:[#allocation4 + $0x3c8] sm:$0xf]
        %v6817 = vld [vmem:[#allocation4 + $0x3cc] sm:$0xf]
        %v6818 = vld [vmem:[#allocation4 + $0x3d0] sm:$0xf]
        %v6819 = vld [vmem:[#allocation4 + $0x3d4] sm:$0xf]
        %v6820 = vld [vmem:[#allocation4 + $0x3d8] sm:$0xf]
        %v6821 = vld [vmem:[#allocation4 + $0x3dc] sm:$0xf]
        %v6822 = vld [vmem:[#allocation4 + $0x3e0] sm:$0xf]
        %v6823 = vld [vmem:[#allocation4 + $0x3e4] sm:$0xf]
        %v6824 = vld [vmem:[#allocation4 + $0x3e8] sm:$0xf]
        %v6825 = vld [vmem:[#allocation4 + $0x3ec] sm:$0xf]
        %v6826 = vld [vmem:[#allocation4 + $0x3f0] sm:$0xf]
        %v6827 = vld [vmem:[#allocation4 + $0x3f4] sm:$0xf]
        %v6828 = vld [vmem:[#allocation4 + $0x3f8] sm:$0xf]
        %v6829 = vld [vmem:[#allocation4 + $0x3fc] sm:$0xf]
        %v6830 = vld [vmem:[%s6] sm:$0x1]
        %v7087 = vunpack.c.l.b16 %v6574
        %v7088 = vunpack.c.l.b16 %v6575
        %v7089 = vunpack.c.l.b16 %v6576
        %v7090 = vunpack.c.l.b16 %v6577
        %v7091 = vunpack.c.l.b16 %v6578
        %v7092 = vunpack.c.l.b16 %v6579
        %v7093 = vunpack.c.l.b16 %v6580
        %v7094 = vunpack.c.l.b16 %v6581
        %v7095 = vunpack.c.l.b16 %v6582
        %v7096 = vunpack.c.l.b16 %v6583
        %v7097 = vunpack.c.l.b16 %v6584
        %v7098 = vunpack.c.l.b16 %v6585
        %v7099 = vunpack.c.l.b16 %v6586
        %v7100 = vunpack.c.l.b16 %v6587
        %v7101 = vunpack.c.l.b16 %v6588
        %v7102 = vunpack.c.l.b16 %v6589
        %v7103 = vunpack.c.l.b16 %v6590
        %v7104 = vunpack.c.l.b16 %v6591
        %v7105 = vunpack.c.l.b16 %v6592
        %v7106 = vunpack.c.l.b16 %v6593
        %v7107 = vunpack.c.l.b16 %v6594
        %v7108 = vunpack.c.l.b16 %v6595
        %v7109 = vunpack.c.l.b16 %v6596
        %v7110 = vunpack.c.l.b16 %v6597
        %v7111 = vunpack.c.l.b16 %v6598
        %v7112 = vunpack.c.l.b16 %v6599
        %v7113 = vunpack.c.l.b16 %v6600
        %v7114 = vunpack.c.l.b16 %v6601
        %v7115 = vunpack.c.l.b16 %v6602
        %v7116 = vunpack.c.l.b16 %v6603
        %v7117 = vunpack.c.l.b16 %v6604
        %v7118 = vunpack.c.l.b16 %v6605
        %v7119 = vunpack.c.l.b16 %v6606
        %v7120 = vunpack.c.l.b16 %v6607
        %v7121 = vunpack.c.l.b16 %v6608
        %v7122 = vunpack.c.l.b16 %v6609
        %v7123 = vunpack.c.l.b16 %v6610
        %v7124 = vunpack.c.l.b16 %v6611
        %v7125 = vunpack.c.l.b16 %v6612
        %v7126 = vunpack.c.l.b16 %v6613
        %v7127 = vunpack.c.l.b16 %v6614
        %v7128 = vunpack.c.l.b16 %v6615
        %v7129 = vunpack.c.l.b16 %v6616
        %v7130 = vunpack.c.l.b16 %v6617
        %v7131 = vunpack.c.l.b16 %v6618
        %v7132 = vunpack.c.l.b16 %v6619
        %v7133 = vunpack.c.l.b16 %v6620
        %v7134 = vunpack.c.l.b16 %v6621
        %v7135 = vunpack.c.l.b16 %v6622
        %v7136 = vunpack.c.l.b16 %v6623
        %v7137 = vunpack.c.l.b16 %v6624
        %v7138 = vunpack.c.l.b16 %v6625
        %v7139 = vunpack.c.l.b16 %v6626
        %v7140 = vunpack.c.l.b16 %v6627
        %v7141 = vunpack.c.l.b16 %v6628
        %v7142 = vunpack.c.l.b16 %v6629
        %v7143 = vunpack.c.l.b16 %v6630
        %v7144 = vunpack.c.l.b16 %v6631
        %v7145 = vunpack.c.l.b16 %v6632
        %v7146 = vunpack.c.l.b16 %v6633
        %v7147 = vunpack.c.l.b16 %v6634
        %v7148 = vunpack.c.l.b16 %v6635
        %v7149 = vunpack.c.l.b16 %v6636
        %v7150 = vunpack.c.l.b16 %v6637
        %v7151 = vunpack.c.l.b16 %v6638
        %v7152 = vunpack.c.l.b16 %v6639
        %v7153 = vunpack.c.l.b16 %v6640
        %v7154 = vunpack.c.l.b16 %v6641
        %v7155 = vunpack.c.l.b16 %v6642
        %v7156 = vunpack.c.l.b16 %v6643
        %v7157 = vunpack.c.l.b16 %v6644
        %v7158 = vunpack.c.l.b16 %v6645
        %v7159 = vunpack.c.l.b16 %v6646
        %v7160 = vunpack.c.l.b16 %v6647
        %v7161 = vunpack.c.l.b16 %v6648
        %v7162 = vunpack.c.l.b16 %v6649
        %v7163 = vunpack.c.l.b16 %v6650
        %v7164 = vunpack.c.l.b16 %v6651
        %v7165 = vunpack.c.l.b16 %v6652
        %v7166 = vunpack.c.l.b16 %v6653
        %v7167 = vunpack.c.l.b16 %v6654
        %v7168 = vunpack.c.l.b16 %v6655
        %v7169 = vunpack.c.l.b16 %v6656
        %v7170 = vunpack.c.l.b16 %v6657
        %v7171 = vunpack.c.l.b16 %v6658
        %v7172 = vunpack.c.l.b16 %v6659
        %v7173 = vunpack.c.l.b16 %v6660
        %v7174 = vunpack.c.l.b16 %v6661
        %v7175 = vunpack.c.l.b16 %v6662
        %v7176 = vunpack.c.l.b16 %v6663
        %v7177 = vunpack.c.l.b16 %v6664
        %v7178 = vunpack.c.l.b16 %v6665
        %v7179 = vunpack.c.l.b16 %v6666
        %v7180 = vunpack.c.l.b16 %v6667
        %v7181 = vunpack.c.l.b16 %v6668
        %v7182 = vunpack.c.l.b16 %v6669
        %v7183 = vunpack.c.l.b16 %v6670
        %v7184 = vunpack.c.l.b16 %v6671
        %v7185 = vunpack.c.l.b16 %v6672
        %v7186 = vunpack.c.l.b16 %v6673
        %v7187 = vunpack.c.l.b16 %v6674
        %v7188 = vunpack.c.l.b16 %v6675
        %v7189 = vunpack.c.l.b16 %v6676
        %v7190 = vunpack.c.l.b16 %v6677
        %v7191 = vunpack.c.l.b16 %v6678
        %v7192 = vunpack.c.l.b16 %v6679
        %v7193 = vunpack.c.l.b16 %v6680
        %v7194 = vunpack.c.l.b16 %v6681
        %v7195 = vunpack.c.l.b16 %v6682
        %v7196 = vunpack.c.l.b16 %v6683
        %v7197 = vunpack.c.l.b16 %v6684
        %v7198 = vunpack.c.l.b16 %v6685
        %v7199 = vunpack.c.l.b16 %v6686
        %v7200 = vunpack.c.l.b16 %v6687
        %v7201 = vunpack.c.l.b16 %v6688
        %v7202 = vunpack.c.l.b16 %v6689
        %v7203 = vunpack.c.l.b16 %v6690
        %v7204 = vunpack.c.l.b16 %v6691
        %v7205 = vunpack.c.l.b16 %v6692
        %v7206 = vunpack.c.l.b16 %v6693
        %v7207 = vunpack.c.l.b16 %v6694
        %v7208 = vunpack.c.l.b16 %v6695
        %v7209 = vunpack.c.l.b16 %v6696
        %v7210 = vunpack.c.l.b16 %v6697
        %v7211 = vunpack.c.l.b16 %v6698
        %v7212 = vunpack.c.l.b16 %v6699
        %v7213 = vunpack.c.l.b16 %v6700
        %v7214 = vunpack.c.l.b16 %v6701
        %v7215 = vunpack.c.l.b16 %v6702
        %v7216 = vunpack.c.l.b16 %v6703
        %v7217 = vunpack.c.l.b16 %v6704
        %v7218 = vunpack.c.l.b16 %v6705
        %v7219 = vunpack.c.l.b16 %v6706
        %v7220 = vunpack.c.l.b16 %v6707
        %v7221 = vunpack.c.l.b16 %v6708
        %v7222 = vunpack.c.l.b16 %v6709
        %v7223 = vunpack.c.l.b16 %v6710
        %v7224 = vunpack.c.l.b16 %v6711
        %v7225 = vunpack.c.l.b16 %v6712
        %v7226 = vunpack.c.l.b16 %v6713
        %v7227 = vunpack.c.l.b16 %v6714
        %v7228 = vunpack.c.l.b16 %v6715
        %v7229 = vunpack.c.l.b16 %v6716
        %v7230 = vunpack.c.l.b16 %v6717
        %v7231 = vunpack.c.l.b16 %v6718
        %v7232 = vunpack.c.l.b16 %v6719
        %v7233 = vunpack.c.l.b16 %v6720
        %v7234 = vunpack.c.l.b16 %v6721
        %v7235 = vunpack.c.l.b16 %v6722
        %v7236 = vunpack.c.l.b16 %v6723
        %v7237 = vunpack.c.l.b16 %v6724
        %v7238 = vunpack.c.l.b16 %v6725
        %v7239 = vunpack.c.l.b16 %v6726
        %v7240 = vunpack.c.l.b16 %v6727
        %v7241 = vunpack.c.l.b16 %v6728
        %v7242 = vunpack.c.l.b16 %v6729
        %v7243 = vunpack.c.l.b16 %v6730
        %v7244 = vunpack.c.l.b16 %v6731
        %v7245 = vunpack.c.l.b16 %v6732
        %v7246 = vunpack.c.l.b16 %v6733
        %v7247 = vunpack.c.l.b16 %v6734
        %v7248 = vunpack.c.l.b16 %v6735
        %v7249 = vunpack.c.l.b16 %v6736
        %v7250 = vunpack.c.l.b16 %v6737
        %v7251 = vunpack.c.l.b16 %v6738
        %v7252 = vunpack.c.l.b16 %v6739
        %v7253 = vunpack.c.l.b16 %v6740
        %v7254 = vunpack.c.l.b16 %v6741
        %v7255 = vunpack.c.l.b16 %v6742
        %v7256 = vunpack.c.l.b16 %v6743
        %v7257 = vunpack.c.l.b16 %v6744
        %v7258 = vunpack.c.l.b16 %v6745
        %v7259 = vunpack.c.l.b16 %v6746
        %v7260 = vunpack.c.l.b16 %v6747
        %v7261 = vunpack.c.l.b16 %v6748
        %v7262 = vunpack.c.l.b16 %v6749
        %v7263 = vunpack.c.l.b16 %v6750
        %v7264 = vunpack.c.l.b16 %v6751
        %v7265 = vunpack.c.l.b16 %v6752
        %v7266 = vunpack.c.l.b16 %v6753
        %v7267 = vunpack.c.l.b16 %v6754
        %v7268 = vunpack.c.l.b16 %v6755
        %v7269 = vunpack.c.l.b16 %v6756
        %v7270 = vunpack.c.l.b16 %v6757
        %v7271 = vunpack.c.l.b16 %v6758
        %v7272 = vunpack.c.l.b16 %v6759
        %v7273 = vunpack.c.l.b16 %v6760
        %v7274 = vunpack.c.l.b16 %v6761
        %v7275 = vunpack.c.l.b16 %v6762
        %v7276 = vunpack.c.l.b16 %v6763
        %v7277 = vunpack.c.l.b16 %v6764
        %v7278 = vunpack.c.l.b16 %v6765
        %v7279 = vunpack.c.l.b16 %v6766
        %v7280 = vunpack.c.l.b16 %v6767
        %v7281 = vunpack.c.l.b16 %v6768
        %v7282 = vunpack.c.l.b16 %v6769
        %v7283 = vunpack.c.l.b16 %v6770
        %v7284 = vunpack.c.l.b16 %v6771
        %v7285 = vunpack.c.l.b16 %v6772
        %v7286 = vunpack.c.l.b16 %v6773
        %v7287 = vunpack.c.l.b16 %v6774
        %v7288 = vunpack.c.l.b16 %v6775
        %v7289 = vunpack.c.l.b16 %v6776
        %v7290 = vunpack.c.l.b16 %v6777
        %v7291 = vunpack.c.l.b16 %v6778
        %v7292 = vunpack.c.l.b16 %v6779
        %v7293 = vunpack.c.l.b16 %v6780
        %v7294 = vunpack.c.l.b16 %v6781
        %v7295 = vunpack.c.l.b16 %v6782
        %v7296 = vunpack.c.l.b16 %v6783
        %v7297 = vunpack.c.l.b16 %v6784
        %v7298 = vunpack.c.l.b16 %v6785
        %v7299 = vunpack.c.l.b16 %v6786
        %v7300 = vunpack.c.l.b16 %v6787
        %v7301 = vunpack.c.l.b16 %v6788
        %v7302 = vunpack.c.l.b16 %v6789
        %v7303 = vunpack.c.l.b16 %v6790
        %v7304 = vunpack.c.l.b16 %v6791
        %v7305 = vunpack.c.l.b16 %v6792
        %v7306 = vunpack.c.l.b16 %v6793
        %v7307 = vunpack.c.l.b16 %v6794
        %v7308 = vunpack.c.l.b16 %v6795
        %v7309 = vunpack.c.l.b16 %v6796
        %v7310 = vunpack.c.l.b16 %v6797
        %v7311 = vunpack.c.l.b16 %v6798
        %v7312 = vunpack.c.l.b16 %v6799
        %v7313 = vunpack.c.l.b16 %v6800
        %v7314 = vunpack.c.l.b16 %v6801
        %v7315 = vunpack.c.l.b16 %v6802
        %v7316 = vunpack.c.l.b16 %v6803
        %v7317 = vunpack.c.l.b16 %v6804
        %v7318 = vunpack.c.l.b16 %v6805
        %v7319 = vunpack.c.l.b16 %v6806
        %v7320 = vunpack.c.l.b16 %v6807
        %v7321 = vunpack.c.l.b16 %v6808
        %v7322 = vunpack.c.l.b16 %v6809
        %v7323 = vunpack.c.l.b16 %v6810
        %v7324 = vunpack.c.l.b16 %v6811
        %v7325 = vunpack.c.l.b16 %v6812
        %v7326 = vunpack.c.l.b16 %v6813
        %v7327 = vunpack.c.l.b16 %v6814
        %v7328 = vunpack.c.l.b16 %v6815
        %v7329 = vunpack.c.l.b16 %v6816
        %v7330 = vunpack.c.l.b16 %v6817
        %v7331 = vunpack.c.l.b16 %v6818
        %v7332 = vunpack.c.l.b16 %v6819
        %v7333 = vunpack.c.l.b16 %v6820
        %v7334 = vunpack.c.l.b16 %v6821
        %v7335 = vunpack.c.l.b16 %v6822
        %v7336 = vunpack.c.l.b16 %v6823
        %v7337 = vunpack.c.l.b16 %v6824
        %v7338 = vunpack.c.l.b16 %v6825
        %v7339 = vunpack.c.l.b16 %v6826
        %v7340 = vunpack.c.l.b16 %v6827
        %v7341 = vunpack.c.l.b16 %v6828
        %v7342 = vunpack.c.l.b16 %v6829
        %v7343 = vpack.c.b16 %v7088, %v7087
        %v7344 = vpack.c.b16 %v7090, %v7089
        %v7345 = vpack.c.b16 %v7092, %v7091
        %v7346 = vpack.c.b16 %v7094, %v7093
        %v7347 = vpack.c.b16 %v7096, %v7095
        %v7348 = vpack.c.b16 %v7098, %v7097
        %v7349 = vpack.c.b16 %v7100, %v7099
        %v7350 = vpack.c.b16 %v7102, %v7101
        %v7351 = vpack.c.b16 %v7104, %v7103
        %v7352 = vpack.c.b16 %v7106, %v7105
        %v7353 = vpack.c.b16 %v7108, %v7107
        %v7354 = vpack.c.b16 %v7110, %v7109
        %v7355 = vpack.c.b16 %v7112, %v7111
        %v7356 = vpack.c.b16 %v7114, %v7113
        %v7357 = vpack.c.b16 %v7116, %v7115
        %v7358 = vpack.c.b16 %v7118, %v7117
        %v7359 = vpack.c.b16 %v7120, %v7119
        %v7360 = vpack.c.b16 %v7122, %v7121
        %v7361 = vpack.c.b16 %v7124, %v7123
        %v7362 = vpack.c.b16 %v7126, %v7125
        %v7363 = vpack.c.b16 %v7128, %v7127
        %v7364 = vpack.c.b16 %v7130, %v7129
        %v7365 = vpack.c.b16 %v7132, %v7131
        %v7366 = vpack.c.b16 %v7134, %v7133
        %v7367 = vpack.c.b16 %v7136, %v7135
        %v7368 = vpack.c.b16 %v7138, %v7137
        %v7369 = vpack.c.b16 %v7140, %v7139
        %v7370 = vpack.c.b16 %v7142, %v7141
        %v7371 = vpack.c.b16 %v7144, %v7143
        %v7372 = vpack.c.b16 %v7146, %v7145
        %v7373 = vpack.c.b16 %v7148, %v7147
        %v7374 = vpack.c.b16 %v7150, %v7149
        %v7375 = vpack.c.b16 %v7152, %v7151
        %v7376 = vpack.c.b16 %v7154, %v7153
        %v7377 = vpack.c.b16 %v7156, %v7155
        %v7378 = vpack.c.b16 %v7158, %v7157
        %v7379 = vpack.c.b16 %v7160, %v7159
        %v7380 = vpack.c.b16 %v7162, %v7161
        %v7381 = vpack.c.b16 %v7164, %v7163
        %v7382 = vpack.c.b16 %v7166, %v7165
        %v7383 = vpack.c.b16 %v7168, %v7167
        %v7384 = vpack.c.b16 %v7170, %v7169
        %v7385 = vpack.c.b16 %v7172, %v7171
        %v7386 = vpack.c.b16 %v7174, %v7173
        %v7387 = vpack.c.b16 %v7176, %v7175
        %v7388 = vpack.c.b16 %v7178, %v7177
        %v7389 = vpack.c.b16 %v7180, %v7179
        %v7390 = vpack.c.b16 %v7182, %v7181
        %v7391 = vpack.c.b16 %v7184, %v7183
        %v7392 = vpack.c.b16 %v7186, %v7185
        %v7393 = vpack.c.b16 %v7188, %v7187
        %v7394 = vpack.c.b16 %v7190, %v7189
        %v7395 = vpack.c.b16 %v7192, %v7191
        %v7396 = vpack.c.b16 %v7194, %v7193
        %v7397 = vpack.c.b16 %v7196, %v7195
        %v7398 = vpack.c.b16 %v7198, %v7197
        %v7399 = vpack.c.b16 %v7200, %v7199
        %v7400 = vpack.c.b16 %v7202, %v7201
        %v7401 = vpack.c.b16 %v7204, %v7203
        %v7402 = vpack.c.b16 %v7206, %v7205
        %v7403 = vpack.c.b16 %v7208, %v7207
        %v7404 = vpack.c.b16 %v7210, %v7209
        %v7405 = vpack.c.b16 %v7212, %v7211
        %v7406 = vpack.c.b16 %v7214, %v7213
        %v7407 = vpack.c.b16 %v7216, %v7215
        %v7408 = vpack.c.b16 %v7218, %v7217
        %v7409 = vpack.c.b16 %v7220, %v7219
        %v7410 = vpack.c.b16 %v7222, %v7221
        %v7411 = vpack.c.b16 %v7224, %v7223
        %v7412 = vpack.c.b16 %v7226, %v7225
        %v7413 = vpack.c.b16 %v7228, %v7227
        %v7414 = vpack.c.b16 %v7230, %v7229
        %v7415 = vpack.c.b16 %v7232, %v7231
        %v7416 = vpack.c.b16 %v7234, %v7233
        %v7417 = vpack.c.b16 %v7236, %v7235
        %v7418 = vpack.c.b16 %v7238, %v7237
        %v7419 = vpack.c.b16 %v7240, %v7239
        %v7420 = vpack.c.b16 %v7242, %v7241
        %v7421 = vpack.c.b16 %v7244, %v7243
        %v7422 = vpack.c.b16 %v7246, %v7245
        %v7423 = vpack.c.b16 %v7248, %v7247
        %v7424 = vpack.c.b16 %v7250, %v7249
        %v7425 = vpack.c.b16 %v7252, %v7251
        %v7426 = vpack.c.b16 %v7254, %v7253
        %v7427 = vpack.c.b16 %v7256, %v7255
        %v7428 = vpack.c.b16 %v7258, %v7257
        %v7429 = vpack.c.b16 %v7260, %v7259
        %v7430 = vpack.c.b16 %v7262, %v7261
        %v7431 = vpack.c.b16 %v7264, %v7263
        %v7432 = vpack.c.b16 %v7266, %v7265
        %v7433 = vpack.c.b16 %v7268, %v7267
        %v7434 = vpack.c.b16 %v7270, %v7269
        %v7435 = vpack.c.b16 %v7272, %v7271
        %v7436 = vpack.c.b16 %v7274, %v7273
        %v7437 = vpack.c.b16 %v7276, %v7275
        %v7438 = vpack.c.b16 %v7278, %v7277
        %v7439 = vpack.c.b16 %v7280, %v7279
        %v7440 = vpack.c.b16 %v7282, %v7281
        %v7441 = vpack.c.b16 %v7284, %v7283
        %v7442 = vpack.c.b16 %v7286, %v7285
        %v7443 = vpack.c.b16 %v7288, %v7287
        %v7444 = vpack.c.b16 %v7290, %v7289
        %v7445 = vpack.c.b16 %v7292, %v7291
        %v7446 = vpack.c.b16 %v7294, %v7293
        %v7447 = vpack.c.b16 %v7296, %v7295
        %v7448 = vpack.c.b16 %v7298, %v7297
        %v7449 = vpack.c.b16 %v7300, %v7299
        %v7450 = vpack.c.b16 %v7302, %v7301
        %v7451 = vpack.c.b16 %v7304, %v7303
        %v7452 = vpack.c.b16 %v7306, %v7305
        %v7453 = vpack.c.b16 %v7308, %v7307
        %v7454 = vpack.c.b16 %v7310, %v7309
        %v7455 = vpack.c.b16 %v7312, %v7311
        %v7456 = vpack.c.b16 %v7314, %v7313
        %v7457 = vpack.c.b16 %v7316, %v7315
        %v7458 = vpack.c.b16 %v7318, %v7317
        %v7459 = vpack.c.b16 %v7320, %v7319
        %v7460 = vpack.c.b16 %v7322, %v7321
        %v7461 = vpack.c.b16 %v7324, %v7323
        %v7462 = vpack.c.b16 %v7326, %v7325
        %v7463 = vpack.c.b16 %v7328, %v7327
        %v7464 = vpack.c.b16 %v7330, %v7329
        %v7465 = vpack.c.b16 %v7332, %v7331
        %v7466 = vpack.c.b16 %v7334, %v7333
        %v7467 = vpack.c.b16 %v7336, %v7335
        %v7468 = vpack.c.b16 %v7338, %v7337
        %v7469 = vpack.c.b16 %v7340, %v7339
        %v7470 = vpack.c.b16 %v7342, %v7341
        %7599 = vmatprep.subr.bf16.mxu0 0
        %7600 = vmatpush1.bf16.msra.mxu0 %v7343
        %7601 = vmatprep.subr.bf16.mxu0 0
        %7602 = vmatpush1.bf16.msra.mxu0 %v7344
        %7603 = vmatprep.subr.bf16.mxu0 0
        %7604 = vmatpush1.bf16.msra.mxu0 %v7345
        %7605 = vmatprep.subr.bf16.mxu0 0
        %7606 = vmatpush1.bf16.msra.mxu0 %v7346
        %7607 = vmatprep.subr.bf16.mxu0 0
        %7608 = vmatpush1.bf16.msra.mxu0 %v7347
        %7609 = vmatprep.subr.bf16.mxu0 0
        %7610 = vmatpush1.bf16.msra.mxu0 %v7348
        %7611 = vmatprep.subr.bf16.mxu0 0
        %7612 = vmatpush1.bf16.msra.mxu0 %v7349
        %7613 = vmatprep.subr.bf16.mxu0 0
        %7614 = vmatpush1.bf16.msra.mxu0 %v7350
        %7615 = vmatprep.subr.bf16.mxu0 0
        %7616 = vmatpush1.bf16.msra.mxu0 %v7351
        %7617 = vmatprep.subr.bf16.mxu0 0
        %7618 = vmatpush1.bf16.msra.mxu0 %v7352
        %7619 = vmatprep.subr.bf16.mxu0 0
        %7620 = vmatpush1.bf16.msra.mxu0 %v7353
        %7621 = vmatprep.subr.bf16.mxu0 0
        %7622 = vmatpush1.bf16.msra.mxu0 %v7354
        %7623 = vmatprep.subr.bf16.mxu0 0
        %7624 = vmatpush1.bf16.msra.mxu0 %v7355
        %7625 = vmatprep.subr.bf16.mxu0 0
        %7626 = vmatpush1.bf16.msra.mxu0 %v7356
        %7627 = vmatprep.subr.bf16.mxu0 0
        %7628 = vmatpush1.bf16.msra.mxu0 %v7357
        %7629 = vmatprep.subr.bf16.mxu0 0
        %7630 = vmatpush1.bf16.msra.mxu0 %v7358
        %7631 = vmatprep.mubr.bf16.mxu0 %v6559
        %7632 = vmatmul.mubr.bf16.gmra.mrb[0].mxu0 %v6558
        %v7633 = vpop.f32.mrb[0].mxu0
        %v7634 = vadd.f32 %v6830, %v7633
        %v7635 = vpop.f32.mrb[0].mxu0
        %v7636 = vpop.f32.mrb[0].mxu0
        %v7637 = vpop.f32.mrb[0].mxu0
        %7638 = vdwg.mxu0
        %7639 = vmatprep.subr.bf16.mxu0 0
        %7640 = vmatpush1.bf16.msra.mxu0 %v7359
        %7641 = vmatprep.subr.bf16.mxu0 0
        %7642 = vmatpush1.bf16.msra.mxu0 %v7360
        %7643 = vmatprep.subr.bf16.mxu0 0
        %7644 = vmatpush1.bf16.msra.mxu0 %v7361
        %7645 = vmatprep.subr.bf16.mxu0 0
        %7646 = vmatpush1.bf16.msra.mxu0 %v7362
        %7647 = vmatprep.subr.bf16.mxu0 0
        %7648 = vmatpush1.bf16.msra.mxu0 %v7363
        %7649 = vmatprep.subr.bf16.mxu0 0
        %7650 = vmatpush1.bf16.msra.mxu0 %v7364
        %7651 = vmatprep.subr.bf16.mxu0 0
        %7652 = vmatpush1.bf16.msra.mxu0 %v7365
        %7653 = vmatprep.subr.bf16.mxu0 0
        %7654 = vmatpush1.bf16.msra.mxu0 %v7366
        %7655 = vmatprep.subr.bf16.mxu0 0
        %7656 = vmatpush1.bf16.msra.mxu0 %v7367
        %7657 = vmatprep.subr.bf16.mxu0 0
        %7658 = vmatpush1.bf16.msra.mxu0 %v7368
        %7659 = vmatprep.subr.bf16.mxu0 0
        %7660 = vmatpush1.bf16.msra.mxu0 %v7369
        %7661 = vmatprep.subr.bf16.mxu0 0
        %7662 = vmatpush1.bf16.msra.mxu0 %v7370
        %7663 = vmatprep.subr.bf16.mxu0 0
        %7664 = vmatpush1.bf16.msra.mxu0 %v7371
        %7665 = vmatprep.subr.bf16.mxu0 0
        %7666 = vmatpush1.bf16.msra.mxu0 %v7372
        %7667 = vmatprep.subr.bf16.mxu0 0
        %7668 = vmatpush1.bf16.msra.mxu0 %v7373
        %7669 = vmatprep.subr.bf16.mxu0 0
        %7670 = vmatpush1.bf16.msra.mxu0 %v7374
        %7671 = vmatprep.mubr.bf16.mxu0 %v6561
        %7672 = vmatmul.mubr.bf16.gmra.mrb[0].mxu0 %v6560
        %v7673 = vpop.f32.mrb[0].mxu0
        %v7674 = vadd.f32 %v7634, %v7673
        %v7675 = vpop.f32.mrb[0].mxu0
        %v7676 = vpop.f32.mrb[0].mxu0
        %v7677 = vpop.f32.mrb[0].mxu0
        %7678 = vdwg.mxu0
        %7679 = vmatprep.subr.bf16.mxu0 0
        %7680 = vmatpush1.bf16.msra.mxu0 %v7375
        %7681 = vmatprep.subr.bf16.mxu0 0
        %7682 = vmatpush1.bf16.msra.mxu0 %v7376
        %7683 = vmatprep.subr.bf16.mxu0 0
        %7684 = vmatpush1.bf16.msra.mxu0 %v7377
        %7685 = vmatprep.subr.bf16.mxu0 0
        %7686 = vmatpush1.bf16.msra.mxu0 %v7378
        %7687 = vmatprep.subr.bf16.mxu0 0
        %7688 = vmatpush1.bf16.msra.mxu0 %v7379
        %7689 = vmatprep.subr.bf16.mxu0 0
        %7690 = vmatpush1.bf16.msra.mxu0 %v7380
        %7691 = vmatprep.subr.bf16.mxu0 0
        %7692 = vmatpush1.bf16.msra.mxu0 %v7381
        %7693 = vmatprep.subr.bf16.mxu0 0
        %7694 = vmatpush1.bf16.msra.mxu0 %v7382
        %7695 = vmatprep.subr.bf16.mxu0 0
        %7696 = vmatpush1.bf16.msra.mxu0 %v7383
        %7697 = vmatprep.subr.bf16.mxu0 0
        %7698 = vmatpush1.bf16.msra.mxu0 %v7384
        %7699 = vmatprep.subr.bf16.mxu0 0
        %7700 = vmatpush1.bf16.msra.mxu0 %v7385
        %7701 = vmatprep.subr.bf16.mxu0 0
        %7702 = vmatpush1.bf16.msra.mxu0 %v7386
        %7703 = vmatprep.subr.bf16.mxu0 0
        %7704 = vmatpush1.bf16.msra.mxu0 %v7387
        %7705 = vmatprep.subr.bf16.mxu0 0
        %7706 = vmatpush1.bf16.msra.mxu0 %v7388
        %7707 = vmatprep.subr.bf16.mxu0 0
        %7708 = vmatpush1.bf16.msra.mxu0 %v7389
        %7709 = vmatprep.subr.bf16.mxu0 0
        %7710 = vmatpush1.bf16.msra.mxu0 %v7390
        %7711 = vmatprep.mubr.bf16.mxu0 %v6563
        %7712 = vmatmul.mubr.bf16.gmra.mrb[0].mxu0 %v6562
        %v7713 = vpop.f32.mrb[0].mxu0
        %v7714 = vadd.f32 %v7674, %v7713
        %v7715 = vpop.f32.mrb[0].mxu0
        %v7716 = vpop.f32.mrb[0].mxu0
        %v7717 = vpop.f32.mrb[0].mxu0
        %7718 = vdwg.mxu0
        %7719 = vmatprep.subr.bf16.mxu0 0
        %7720 = vmatpush1.bf16.msra.mxu0 %v7391
        %7721 = vmatprep.subr.bf16.mxu0 0
        %7722 = vmatpush1.bf16.msra.mxu0 %v7392
        %7723 = vmatprep.subr.bf16.mxu0 0
        %7724 = vmatpush1.bf16.msra.mxu0 %v7393
        %7725 = vmatprep.subr.bf16.mxu0 0
        %7726 = vmatpush1.bf16.msra.mxu0 %v7394
        %7727 = vmatprep.subr.bf16.mxu0 0
        %7728 = vmatpush1.bf16.msra.mxu0 %v7395
        %7729 = vmatprep.subr.bf16.mxu0 0
        %7730 = vmatpush1.bf16.msra.mxu0 %v7396
        %7731 = vmatprep.subr.bf16.mxu0 0
        %7732 = vmatpush1.bf16.msra.mxu0 %v7397
        %7733 = vmatprep.subr.bf16.mxu0 0
        %7734 = vmatpush1.bf16.msra.mxu0 %v7398
        %7735 = vmatprep.subr.bf16.mxu0 0
        %7736 = vmatpush1.bf16.msra.mxu0 %v7399
        %7737 = vmatprep.subr.bf16.mxu0 0
        %7738 = vmatpush1.bf16.msra.mxu0 %v7400
        %7739 = vmatprep.subr.bf16.mxu0 0
        %7740 = vmatpush1.bf16.msra.mxu0 %v7401
        %7741 = vmatprep.subr.bf16.mxu0 0
        %7742 = vmatpush1.bf16.msra.mxu0 %v7402
        %7743 = vmatprep.subr.bf16.mxu0 0
        %7744 = vmatpush1.bf16.msra.mxu0 %v7403
        %7745 = vmatprep.subr.bf16.mxu0 0
        %7746 = vmatpush1.bf16.msra.mxu0 %v7404
        %7747 = vmatprep.subr.bf16.mxu0 0
        %7748 = vmatpush1.bf16.msra.mxu0 %v7405
        %7749 = vmatprep.subr.bf16.mxu0 0
        %7750 = vmatpush1.bf16.msra.mxu0 %v7406
        %7751 = vmatprep.mubr.bf16.mxu0 %v6565
        %7752 = vmatmul.mubr.bf16.gmra.mrb[0].mxu0 %v6564
        %v7753 = vpop.f32.mrb[0].mxu0
        %v7754 = vadd.f32 %v7714, %v7753
        %v7755 = vpop.f32.mrb[0].mxu0
        %v7756 = vpop.f32.mrb[0].mxu0
        %v7757 = vpop.f32.mrb[0].mxu0
        %7758 = vdwg.mxu0
        %7759 = vmatprep.subr.bf16.mxu0 0
        %7760 = vmatpush1.bf16.msra.mxu0 %v7407
        %7761 = vmatprep.subr.bf16.mxu0 0
        %7762 = vmatpush1.bf16.msra.mxu0 %v7408
        %7763 = vmatprep.subr.bf16.mxu0 0
        %7764 = vmatpush1.bf16.msra.mxu0 %v7409
        %7765 = vmatprep.subr.bf16.mxu0 0
        %7766 = vmatpush1.bf16.msra.mxu0 %v7410
        %7767 = vmatprep.subr.bf16.mxu0 0
        %7768 = vmatpush1.bf16.msra.mxu0 %v7411
        %7769 = vmatprep.subr.bf16.mxu0 0
        %7770 = vmatpush1.bf16.msra.mxu0 %v7412
        %7771 = vmatprep.subr.bf16.mxu0 0
        %7772 = vmatpush1.bf16.msra.mxu0 %v7413
        %7773 = vmatprep.subr.bf16.mxu0 0
        %7774 = vmatpush1.bf16.msra.mxu0 %v7414
        %7775 = vmatprep.subr.bf16.mxu0 0
        %7776 = vmatpush1.bf16.msra.mxu0 %v7415
        %7777 = vmatprep.subr.bf16.mxu0 0
        %7778 = vmatpush1.bf16.msra.mxu0 %v7416
        %7779 = vmatprep.subr.bf16.mxu0 0
        %7780 = vmatpush1.bf16.msra.mxu0 %v7417
        %7781 = vmatprep.subr.bf16.mxu0 0
        %7782 = vmatpush1.bf16.msra.mxu0 %v7418
        %7783 = vmatprep.subr.bf16.mxu0 0
        %7784 = vmatpush1.bf16.msra.mxu0 %v7419
        %7785 = vmatprep.subr.bf16.mxu0 0
        %7786 = vmatpush1.bf16.msra.mxu0 %v7420
        %7787 = vmatprep.subr.bf16.mxu0 0
        %7788 = vmatpush1.bf16.msra.mxu0 %v7421
        %7789 = vmatprep.subr.bf16.mxu0 0
        %7790 = vmatpush1.bf16.msra.mxu0 %v7422
        %7791 = vmatprep.mubr.bf16.mxu0 %v6567
        %7792 = vmatmul.mubr.bf16.gmra.mrb[0].mxu0 %v6566
        %v7793 = vpop.f32.mrb[0].mxu0
        %v7794 = vadd.f32 %v7754, %v7793
        %v7795 = vpop.f32.mrb[0].mxu0
        %v7796 = vpop.f32.mrb[0].mxu0
        %v7797 = vpop.f32.mrb[0].mxu0
        %7798 = vdwg.mxu0
        %7799 = vmatprep.subr.bf16.mxu0 0
        %7800 = vmatpush1.bf16.msra.mxu0 %v7423
        %7801 = vmatprep.subr.bf16.mxu0 0
        %7802 = vmatpush1.bf16.msra.mxu0 %v7424
        %7803 = vmatprep.subr.bf16.mxu0 0
        %7804 = vmatpush1.bf16.msra.mxu0 %v7425
        %7805 = vmatprep.subr.bf16.mxu0 0
        %7806 = vmatpush1.bf16.msra.mxu0 %v7426
        %7807 = vmatprep.subr.bf16.mxu0 0
        %7808 = vmatpush1.bf16.msra.mxu0 %v7427
        %7809 = vmatprep.subr.bf16.mxu0 0
        %7810 = vmatpush1.bf16.msra.mxu0 %v7428
        %7811 = vmatprep.subr.bf16.mxu0 0
        %7812 = vmatpush1.bf16.msra.mxu0 %v7429
        %7813 = vmatprep.subr.bf16.mxu0 0
        %7814 = vmatpush1.bf16.msra.mxu0 %v7430
        %7815 = vmatprep.subr.bf16.mxu0 0
        %7816 = vmatpush1.bf16.msra.mxu0 %v7431
        %7817 = vmatprep.subr.bf16.mxu0 0
        %7818 = vmatpush1.bf16.msra.mxu0 %v7432
        %7819 = vmatprep.subr.bf16.mxu0 0
        %7820 = vmatpush1.bf16.msra.mxu0 %v7433
        %7821 = vmatprep.subr.bf16.mxu0 0
        %7822 = vmatpush1.bf16.msra.mxu0 %v7434
        %7823 = vmatprep.subr.bf16.mxu0 0
        %7824 = vmatpush1.bf16.msra.mxu0 %v7435
        %7825 = vmatprep.subr.bf16.mxu0 0
        %7826 = vmatpush1.bf16.msra.mxu0 %v7436
        %7827 = vmatprep.subr.bf16.mxu0 0
        %7828 = vmatpush1.bf16.msra.mxu0 %v7437
        %7829 = vmatprep.subr.bf16.mxu0 0
        %7830 = vmatpush1.bf16.msra.mxu0 %v7438
        %7831 = vmatprep.mubr.bf16.mxu0 %v6569
        %7832 = vmatmul.mubr.bf16.gmra.mrb[0].mxu0 %v6568
        %v7833 = vpop.f32.mrb[0].mxu0
        %v7834 = vadd.f32 %v7794, %v7833
        %v7835 = vpop.f32.mrb[0].mxu0
        %v7836 = vpop.f32.mrb[0].mxu0
        %v7837 = vpop.f32.mrb[0].mxu0
        %7838 = vdwg.mxu0
        %7839 = vmatprep.subr.bf16.mxu0 0
        %7840 = vmatpush1.bf16.msra.mxu0 %v7439
        %7841 = vmatprep.subr.bf16.mxu0 0
        %7842 = vmatpush1.bf16.msra.mxu0 %v7440
        %7843 = vmatprep.subr.bf16.mxu0 0
        %7844 = vmatpush1.bf16.msra.mxu0 %v7441
        %7845 = vmatprep.subr.bf16.mxu0 0
        %7846 = vmatpush1.bf16.msra.mxu0 %v7442
        %7847 = vmatprep.subr.bf16.mxu0 0
        %7848 = vmatpush1.bf16.msra.mxu0 %v7443
        %7849 = vmatprep.subr.bf16.mxu0 0
        %7850 = vmatpush1.bf16.msra.mxu0 %v7444
        %7851 = vmatprep.subr.bf16.mxu0 0
        %7852 = vmatpush1.bf16.msra.mxu0 %v7445
        %7853 = vmatprep.subr.bf16.mxu0 0
        %7854 = vmatpush1.bf16.msra.mxu0 %v7446
        %7855 = vmatprep.subr.bf16.mxu0 0
        %7856 = vmatpush1.bf16.msra.mxu0 %v7447
        %7857 = vmatprep.subr.bf16.mxu0 0
        %7858 = vmatpush1.bf16.msra.mxu0 %v7448
        %7859 = vmatprep.subr.bf16.mxu0 0
        %7860 = vmatpush1.bf16.msra.mxu0 %v7449
        %7861 = vmatprep.subr.bf16.mxu0 0
        %7862 = vmatpush1.bf16.msra.mxu0 %v7450
        %7863 = vmatprep.subr.bf16.mxu0 0
        %7864 = vmatpush1.bf16.msra.mxu0 %v7451
        %7865 = vmatprep.subr.bf16.mxu0 0
        %7866 = vmatpush1.bf16.msra.mxu0 %v7452
        %7867 = vmatprep.subr.bf16.mxu0 0
        %7868 = vmatpush1.bf16.msra.mxu0 %v7453
        %7869 = vmatprep.subr.bf16.mxu0 0
        %7870 = vmatpush1.bf16.msra.mxu0 %v7454
        %7871 = vmatprep.mubr.bf16.mxu0 %v6571
        %7872 = vmatmul.mubr.bf16.gmra.mrb[0].mxu0 %v6570
        %v7873 = vpop.f32.mrb[0].mxu0
        %v7874 = vadd.f32 %v7834, %v7873
        %v7875 = vpop.f32.mrb[0].mxu0
        %v7876 = vpop.f32.mrb[0].mxu0
        %v7877 = vpop.f32.mrb[0].mxu0
        %7878 = vdwg.mxu0
        %7879 = vmatprep.subr.bf16.mxu0 0
        %7880 = vmatpush1.bf16.msra.mxu0 %v7455
        %7881 = vmatprep.subr.bf16.mxu0 0
        %7882 = vmatpush1.bf16.msra.mxu0 %v7456
        %7883 = vmatprep.subr.bf16.mxu0 0
        %7884 = vmatpush1.bf16.msra.mxu0 %v7457
        %7885 = vmatprep.subr.bf16.mxu0 0
        %7886 = vmatpush1.bf16.msra.mxu0 %v7458
        %7887 = vmatprep.subr.bf16.mxu0 0
        %7888 = vmatpush1.bf16.msra.mxu0 %v7459
        %7889 = vmatprep.subr.bf16.mxu0 0
        %7890 = vmatpush1.bf16.msra.mxu0 %v7460
        %7891 = vmatprep.subr.bf16.mxu0 0
        %7892 = vmatpush1.bf16.msra.mxu0 %v7461
        %7893 = vmatprep.subr.bf16.mxu0 0
        %7894 = vmatpush1.bf16.msra.mxu0 %v7462
        %7895 = vmatprep.subr.bf16.mxu0 0
        %7896 = vmatpush1.bf16.msra.mxu0 %v7463
        %7897 = vmatprep.subr.bf16.mxu0 0
        %7898 = vmatpush1.bf16.msra.mxu0 %v7464
        %7899 = vmatprep.subr.bf16.mxu0 0
        %7900 = vmatpush1.bf16.msra.mxu0 %v7465
        %7901 = vmatprep.subr.bf16.mxu0 0
        %7902 = vmatpush1.bf16.msra.mxu0 %v7466
        %7903 = vmatprep.subr.bf16.mxu0 0
        %7904 = vmatpush1.bf16.msra.mxu0 %v7467
        %7905 = vmatprep.subr.bf16.mxu0 0
        %7906 = vmatpush1.bf16.msra.mxu0 %v7468
        %7907 = vmatprep.subr.bf16.mxu0 0
        %7908 = vmatpush1.bf16.msra.mxu0 %v7469
        %7909 = vmatprep.subr.bf16.mxu0 0
        %7910 = vmatpush1.bf16.msra.mxu0 %v7470
        %7911 = vmatprep.mubr.bf16.mxu0 %v6573
        %7912 = vmatmul.mubr.bf16.gmra.mrb[0].mxu0 %v6572
        %v7913 = vpop.f32.mrb[0].mxu0
        %v7914 = vadd.f32 %v7874, %v7913
        %v7915 = vpop.f32.mrb[0].mxu0
        %v7916 = vpop.f32.mrb[0].mxu0
        %v7917 = vpop.f32.mrb[0].mxu0
        %7918 = vdwg.mxu0
        %v7919 = vmax.f32 %v7914, 0.0
        %v7920 = vpack.c.bf16 %v7919, %v7919
        %v7921 = vld [vmem:[%s7] sm:$0xf]
        %v7922 = vld [vmem:[%s7 + $0x4] sm:$0xf]
        %v7923 = vld [vmem:[%s7 + $0x8] sm:$0xf]
        %v7924 = vld [vmem:[%s7 + $0xc] sm:$0xf]
        %v7925 = vld [vmem:[%s7 + $0x10] sm:$0xf]
        %v7926 = vld [vmem:[%s7 + $0x14] sm:$0xf]
        %v7927 = vld [vmem:[%s7 + $0x18] sm:$0xf]
        %v7928 = vld [vmem:[%s7 + $0x1c] sm:$0xf]
        %v7929 = vld [vmem:[%s7 + $0x20] sm:$0xf]
        %v7930 = vld [vmem:[%s7 + $0x24] sm:$0xf]
        %v7931 = vld [vmem:[%s7 + $0x28] sm:$0xf]
        %v7932 = vld [vmem:[%s7 + $0x2c] sm:$0xf]
        %v7933 = vld [vmem:[%s7 + $0x30] sm:$0xf]
        %v7934 = vld [vmem:[%s7 + $0x34] sm:$0xf]
        %v7935 = vld [vmem:[%s7 + $0x38] sm:$0xf]
        %v7936 = vld [vmem:[%s7 + $0x3c] sm:$0xf]
        %v7937 = vld [vmem:[%s8] sm:$0x1]
        %v7954 = vunpack.c.l.b16 %v7921
        %v7955 = vunpack.c.l.b16 %v7922
        %v7956 = vunpack.c.l.b16 %v7923
        %v7957 = vunpack.c.l.b16 %v7924
        %v7958 = vunpack.c.l.b16 %v7925
        %v7959 = vunpack.c.l.b16 %v7926
        %v7960 = vunpack.c.l.b16 %v7927
        %v7961 = vunpack.c.l.b16 %v7928
        %v7962 = vunpack.c.l.b16 %v7929
        %v7963 = vunpack.c.l.b16 %v7930
        %v7964 = vunpack.c.l.b16 %v7931
        %v7965 = vunpack.c.l.b16 %v7932
        %v7966 = vunpack.c.l.b16 %v7933
        %v7967 = vunpack.c.l.b16 %v7934
        %v7968 = vunpack.c.l.b16 %v7935
        %v7969 = vunpack.c.l.b16 %v7936
        %v7970 = vpack.c.b16 %v7955, %v7954
        %v7971 = vpack.c.b16 %v7957, %v7956
        %v7972 = vpack.c.b16 %v7959, %v7958
        %v7973 = vpack.c.b16 %v7961, %v7960
        %v7974 = vpack.c.b16 %v7963, %v7962
        %v7975 = vpack.c.b16 %v7965, %v7964
        %v7976 = vpack.c.b16 %v7967, %v7966
        %v7977 = vpack.c.b16 %v7969, %v7968
        %7986 = vmatprep.subr.bf16.mxu0 0
        %7987 = vmatpush1.bf16.msra.mxu0 %v7970
        %7988 = vmatprep.subr.bf16.mxu0 0
        %7989 = vmatpush1.bf16.msra.mxu0 %v7971
        %7990 = vmatprep.subr.bf16.mxu0 0
        %7991 = vmatpush1.bf16.msra.mxu0 %v7972
        %7992 = vmatprep.subr.bf16.mxu0 0
        %7993 = vmatpush1.bf16.msra.mxu0 %v7973
        %7994 = vmatprep.subr.bf16.mxu0 0
        %7995 = vmatpush1.bf16.msra.mxu0 %v7974
        %7996 = vmatprep.subr.bf16.mxu0 0
        %7997 = vmatpush1.bf16.msra.mxu0 %v7975
        %7998 = vmatprep.subr.bf16.mxu0 0
        %7999 = vmatpush1.bf16.msra.mxu0 %v7976
        %8000 = vmatprep.subr.bf16.mxu0 0
        %8001 = vmatpush1.bf16.msra.mxu0 %v7977
        %8002 = vmatprep.subr.bf16.mxu0 0
        %8003 = vmatpush1.bf16.msra.mxu0 0
        %8004 = vmatprep.subr.bf16.mxu0 0
        %8005 = vmatpush1.bf16.msra.mxu0 0
        %8006 = vmatprep.subr.bf16.mxu0 0
        %8007 = vmatpush1.bf16.msra.mxu0 0
        %8008 = vmatprep.subr.bf16.mxu0 0
        %8009 = vmatpush1.bf16.msra.mxu0 0
        %8010 = vmatprep.subr.bf16.mxu0 0
        %8011 = vmatpush1.bf16.msra.mxu0 0
        %8012 = vmatprep.subr.bf16.mxu0 0
        %8013 = vmatpush1.bf16.msra.mxu0 0
        %8014 = vmatprep.subr.bf16.mxu0 0
        %8015 = vmatpush1.bf16.msra.mxu0 0
        %8016 = vmatprep.subr.bf16.mxu0 0
        %8017 = vmatpush1.bf16.msra.mxu0 0
        %8018 = vmatprep.mubr.bf16.mxu0 0
        %8019 = vmatmul.mubr.bf16.gmra.mrb[0].mxu0 %v7920
        %v8020 = vpop.f32.mrb[0].mxu0
        %v8021 = vadd.f32 %v7937, %v8020
        %v8022 = vpop.f32.mrb[0].mxu0
        %v8023 = vpop.f32.mrb[0].mxu0
        %v8024 = vpop.f32.mrb[0].mxu0
        %8025 = vdwg.mxu0
        %v8026 = vlaneseq
        %v8027 = vand.u32 %v8026, 127
        %vm8028 = vcmp.lt.s32.totalorder %v8027, 2
        %v8029 = vsel %vm8028, %v8021, -inf
        %vm8030 = vcmask 1040384
        %v8031 = vsel %vm8030, %v8029, -inf
        %8032 = vmax.xlane.f32.xlu0 %v8031
        %v8033 = vpop.xlane.xlu0 %8032
        %v8034 = vsub.f32 %v8029, %v8033
        %v8035 = vmul.f32 %v8034, 1.442695
        %v8036 = vpow.pop %v8035
        %v8037 = vsel %vm8030, %v8036, 0.0
        %8038 = vadd.xlane.f32.xlu0 %v8037
        %v8039 = vpop.xlane.xlu0 %8038
        %v8040 = vlog2.pop %v8039
        %v8041 = vmul.f32 %v8040, 0.6931472
        %v8042 = vsub.f32 %v8034, %v8041
        %v8043 = vsel %vm8028, %v8042, 0.0
        %8044 = vst [vmem:[%s339] sm:$0x1] %v8043
        %s8045 = sand.u32 %s226, 1
        %s8046 = scalar_lea.sflag [#allocation6], %s8045
        %s8047 = sand.u32 %s226, 1
        %s8048 = scalar_lea.vmem [#allocation7], %s8047
        // Predicated region
        $region61: #{cnn_forward.1} parent=55 // pred_check
          %p8049 = pneg %p236
        $region62: #{cnn_forward.1} parent=55 // pred_check_branch
          %8051 = sbr.rel (%p8049) target = $region64
        $region63: #{cnn_forward.1} parent=55 // pred_region
          %s8053 = ssub.s32 16, 16
          %8054 = vsyncadd %s8046, %s8053
          %s8055 = smul.addr %s24, 16
          %s8056 = scalar_lea.hbm %s9, %s8055
          %s8058 = sshll.u32 %s8048, 4
          %s8059 = int_to_ptr.vmem [resolvable:$true] %s8058
          %8061 = dma.vmem_to_hbm [thread:$0]  %s8059, 16, %s8056, %s8046
        $region64: #{cnn_forward.1} parent=55 // pred_fallthru
          _
      $region56: #{cnn_forward.1} parent=5 // pred_fallthru
        _
      %p8062 = scmp.le.s32.totalorder 2, %s19
      // Predicated region
      $region65: #{cnn_forward.1} parent=5 // pred_check
        %p8063 = pneg %p8062
      $region66: #{cnn_forward.1} parent=5 // pred_check_branch
        %8065 = sbr.rel (%p8063) target = $region68
      $region67: #{cnn_forward.1} parent=5 // pred_region
        %s8066 = ssub.s32 %s19, 2
        // Predicated region
        $region69: #{cnn_forward.1} parent=67 // pred_check
          %p8067 = pneg %p242
        $region70: #{cnn_forward.1} parent=67 // pred_check_branch
          %8069 = sbr.rel (%p8067) target = $region72
        $region71: #{cnn_forward.1} parent=67 // pred_region
          %s8070 = sand.u32 %s227, 1
          %s8071 = scalar_lea.sflag [#allocation6], %s8070
          %s8072 = sand.u32 %s227, 1
          %s8073 = scalar_lea.vmem [#allocation7], %s8072
          %8074 = dma.done %s8071, 16
        $region72: #{cnn_forward.1} parent=67 // pred_fallthru
          _
      $region68: #{cnn_forward.1} parent=5 // pred_fallthru
        _
    $region6: #{cnn_forward.1} parent=1 // loop_footer
      %s23 = sadd.s32 1, %s19
    $region7: #{cnn_forward.1} parent=1 // loop_footer_branch
      %18 = sbr.rel target = $region3
    $region8: #{cnn_forward.1} parent=1 // loop_exit
      _
    %8075 = vsyncpa [#allocation5], 1
    %s8076 = scalar_lea.sflag [#allocation5], 1
    %8077 = vsyncpa %s8076, 1
    %8078 = vsyncpa [#allocation6], 1
    %s8079 = scalar_lea.sflag [#allocation6], 1
    %8080 = vsyncpa %s8079, 1

</llo_original>
